<compile_context>
chip_gen: v5e
topology: v5e:2x2
jax: 0.10.0
libtpu: 0.0.40
codegen_flags: <defaults>
</compile_context>

<pallas_src>
import functools

import jax
import jax.numpy as jnp
import numpy as np
from jax import lax
from jax.experimental import pallas as pl
from jax.experimental.pallas import tpu as pltpu


# ---------------------------------------------------------------------------
# Fused gInception_ST kernel
# ---------------------------------------------------------------------------
def _make_ginception_kernel(cins, kers, H, W, C_hid, C_out, cout_g, max_pad,
                            eps=1e-5, slope=0.2):
    n_in = len(cins)
    nk = len(kers)
    inv_n = 1.0 / float(H * W * cout_g)
    Hp, Wp = H + 2 * max_pad, W + 2 * max_pad

    def kernel(*refs):
        x_refs = refs[0:n_in]
        w1_refs = refs[n_in:2 * n_in]
        (b1_ref, pmat_ref, wbr_ref, bbr_ref, gbr_ref, bebr_ref,
         o_ref, hp_ref, hcol_ref, acc_ref) = refs[2 * n_in:]

        ki = pl.program_id(1)

        # ---- branch 0: 1x1 conv into the persistent padded scratch ---------
        @pl.when(ki == 0)
        def _():
            # zero only the padding border (interior fully overwritten below)
            zr = jnp.zeros((max_pad, Wp, C_hid), jnp.float32)
            zc = jnp.zeros((H, max_pad, C_hid), jnp.float32)
            hp_ref[0:max_pad, :, :] = zr
            hp_ref[max_pad + H:Hp, :, :] = zr
            hp_ref[max_pad:max_pad + H, 0:max_pad, :] = zc
            hp_ref[max_pad:max_pad + H, max_pad + W:Wp, :] = zc

            # h = concat(x_i) @ W1 + b1  (concat never materialized)
            h = lax.dot_general(
                x_refs[0][0].astype(jnp.bfloat16), w1_refs[0][...],
                dimension_numbers=(((1,), (0,)), ((), ())),
                preferred_element_type=jnp.float32)
            for i in range(1, n_in):
                h = h + lax.dot_general(
                    x_refs[i][0].astype(jnp.bfloat16), w1_refs[i][...],
                    dimension_numbers=(((1,), (0,)), ((), ())),
                    preferred_element_type=jnp.float32)
            h = h + b1_ref[...]                                  # (H*W, C_hid) f32
            hp_ref[max_pad:max_pad + H, max_pad:max_pad + W, :] = (
                h.reshape(H, W, C_hid))

        # ---- per-branch grouped KxK conv + GroupNorm + LeakyReLU -----------
        for bi, K in enumerate(kers):
            @pl.when(ki == bi)
            def _(bi=bi, K=K):
                off = max_pad - K // 2
                kc = K * C_hid

                # one W-axis (sublane) shift per kx; ky shifts become free row
                # offsets of the flattened (Hp*W, K*C_hid) kx-major buffer.
                for kx in range(K):
                    slab = hp_ref[:, off + kx:off + kx + W, :]   # (Hp, W, C_hid)
                    hcol_ref[:, kx * C_hid:(kx + 1) * C_hid] = (
                        slab.reshape(Hp * W, C_hid).astype(hcol_ref.dtype))

                # K matmuls with fat contraction K*C_hid (MXU-friendly)
                conv = jnp.zeros((H * W, C_out), jnp.float32)
                for ky in range(K):
                    r0 = (off + ky) * W
                    conv = conv + lax.dot_general(
                        hcol_ref[r0:r0 + H * W, 0:kc],
                        wbr_ref[0, ky, 0:kc, :],
                        dimension_numbers=(((1,), (0,)), ((), ())),
                        preferred_element_type=jnp.float32)
                conv = conv + bbr_ref[0]                         # (1, C_out) bias

                # GroupNorm: per-group stats via a single (2, C_out) @ indicator
                s = jnp.sum(conv, axis=0, keepdims=True)
                ss = jnp.sum(conv * conv, axis=0, keepdims=True)
                st = jnp.dot(jnp.concatenate([s, ss], axis=0), pmat_ref[...],
                             preferred_element_type=jnp.float32) * inv_n
                mean = st[0:1, :]
                var = jnp.maximum(st[1:2, :] - mean * mean, 0.0)
                xn = (conv - mean) * lax.rsqrt(var + eps)
                xn = xn * gbr_ref[0] + bebr_ref[0]
                act = jnp.where(xn >= 0.0, xn, slope * xn)       # LeakyReLU(0.2)

                if bi == 0:
                    acc_ref[...] = act
                else:
                    acc_ref[...] = acc_ref[...] + act

        # ---- last branch: single lane-dense store ---------------------------
        @pl.when(ki == nk - 1)
        def _():
            o_ref[...] = acc_ref[...].reshape(1, H * W, C_out).astype(o_ref.dtype)

    return kernel


def _block_diag_weights(w):
    """(g, K, K, cin_g, cout_g) -> (K, K, g*cin_g, g*cout_g) block-diagonal."""
    g, K, _, cin_g, cout_g = w.shape
    eye = jnp.eye(g, dtype=w.dtype)
    w_bd = jnp.einsum('gklab,gh->klgahb', w, eye)
    return w_bd.reshape(K, K, g * cin_g, g * cout_g)


def ginception_forward(xs, params, incep_ker, H, W, out_dtype=jnp.bfloat16):
    """Fused gInception_ST.  xs: list of (B, H*W, C) bf16 inputs (implicit concat)."""
    B = xs[0].shape[0]
    C_hid = params['w1'].shape[1]
    g = params['branches'][0]['w'].shape[0]
    cout_g = params['branches'][0]['w'].shape[-1]
    C_out = g * cout_g
    kmax = max(incep_ker)
    max_pad = kmax // 2
    Hp, Wp = H + 2 * max_pad, W + 2 * max_pad
    nk = len(incep_ker)

    cins = [int(x.shape[-1]) for x in xs]
    assert sum(cins) == params['w1'].shape[0]

    # W1 split per input (decoder skip concat never built in HBM)
    w1_parts, ofs = [], 0
    for ci in cins:
        w1_parts.append(params['w1'][ofs:ofs + ci].astype(jnp.bfloat16))
        ofs += ci
    b1 = params['b1'].reshape(1, C_hid).astype(jnp.float32)
    ch_group = jnp.arange(C_out) // cout_g
    pmat = (ch_group[:, None] == ch_group[None, :]).astype(jnp.float32)

    # Streamed branch params: every branch padded to kmax taps so a single
    # BlockSpec indexed by the branch grid axis streams them one at a time.
    w_list, b_list, ga_list, be_list = [], [], [], []
    for bi, K in enumerate(incep_ker):
        bp = params['branches'][bi]
        w_bd = _block_diag_weights(bp['w'])                      # (K, K, C_hid, C_out)
        w_r = w_bd.reshape(K, K * C_hid, C_out)                  # [ky, kx-major*cin, cout]
        w_r = jnp.pad(w_r, ((0, kmax - K), (0, (kmax - K) * C_hid), (0, 0)))
        w_list.append(w_r.astype(jnp.bfloat16))
        b_list.append(bp['b'].reshape(1, C_out).astype(jnp.float32))
        ga_list.append(bp['gamma'].reshape(1, C_out).astype(jnp.float32))
        be_list.append(bp['beta'].reshape(1, C_out).astype(jnp.float32))
    w_all = jnp.stack(w_list)                                    # (nk, kmax, kmax*C_hid, C_out)
    b_all = jnp.stack(b_list)                                    # (nk, 1, C_out)
    ga_all = jnp.stack(ga_list)
    be_all = jnp.stack(be_list)

    xs = [x.astype(jnp.bfloat16) for x in xs]
    operands = list(xs) + w1_parts + [b1, pmat, w_all, b_all, ga_all, be_all]

    in_specs = (
        [pl.BlockSpec((1, H * W, ci), lambda b, k: (b, 0, 0)) for ci in cins]
        + [pl.BlockSpec((ci, C_hid), lambda b, k: (0, 0)) for ci in cins]
        + [pl.BlockSpec((1, C_hid), lambda b, k: (0, 0)),
           pl.BlockSpec((C_out, C_out), lambda b, k: (0, 0)),
           pl.BlockSpec((1, kmax, kmax * C_hid, C_out), lambda b, k: (k, 0, 0, 0)),
           pl.BlockSpec((1, 1, C_out), lambda b, k: (k, 0, 0)),
           pl.BlockSpec((1, 1, C_out), lambda b, k: (k, 0, 0)),
           pl.BlockSpec((1, 1, C_out), lambda b, k: (k, 0, 0))])

    # VMEM budget derived from the actual block / scratch sizes (no fixed cap).
    est = 2 * kmax * kmax * C_hid * C_out * 2                     # streamed weights (x2 buf)
    est += 2 * 3 * C_out * 4
    est += sum(2 * H * W * ci * 2 + 2 * ci * C_hid * 2 for ci in cins)
    est += 2 * C_hid * 4 + 2 * C_out * C_out * 4
    est += 2 * H * W * C_out * jnp.dtype(out_dtype).itemsize
    est += Hp * Wp * C_hid * 4 + Hp * W * kmax * C_hid * 2 + H * W * C_out * 4
    vmem_limit = int(min(max(1.3 * est + (2 << 20), 16 << 20), 60 << 20))

    kernel = _make_ginception_kernel(tuple(cins), tuple(incep_ker), H, W,
                                     C_hid, C_out, cout_g, max_pad)
    return pl.pallas_call(
        kernel,
        out_shape=jax.ShapeDtypeStruct((B, H * W, C_out), out_dtype),
        grid=(B, nk),
        in_specs=in_specs,
        out_specs=pl.BlockSpec((1, H * W, C_out), lambda b, k: (b, 0, 0)),
        scratch_shapes=[pltpu.VMEM((Hp, Wp, C_hid), jnp.float32),
                        pltpu.VMEM((Hp * W, kmax * C_hid), jnp.bfloat16),
                        pltpu.VMEM((H * W, C_out), jnp.float32)],
        compiler_params=pltpu.CompilerParams(
            dimension_semantics=("parallel", "arbitrary"),
            vmem_limit_bytes=vmem_limit),
    )(*operands)


# ---------------------------------------------------------------------------
# MidIncepNet forward (encoder / decoder with skip connections)
# ---------------------------------------------------------------------------
def mid_incepnet_forward(x, enc_params, dec_params, incep_ker, N2):
    B, T, C, H, W = x.shape
    # NCHW -> flattened (B, H*W, C) bf16 once; activations stay bf16 in HBM.
    z = (x.reshape(B, T * C, H, W).transpose(0, 2, 3, 1)
          .reshape(B, H * W, T * C).astype(jnp.bfloat16))
    skips = []
    for i in range(N2):
        z = ginception_forward([z], enc_params[i], incep_ker, H, W)
        if i < N2 - 1:
            skips.append(z)
    z = ginception_forward([z], dec_params[0], incep_ker, H, W)
    for i in range(1, N2):
        out_dt = jnp.float32 if i == N2 - 1 else jnp.bfloat16
        z = ginception_forward([z, skips[-i]], dec_params[i], incep_ker, H, W,
                               out_dtype=out_dt)
    return (z.reshape(B, H, W, T * C).transpose(0, 3, 1, 2)
             .reshape(B, T, C, H, W))


# ---------------------------------------------------------------------------
# Deterministic synthetic parameters (shapes per the module's __init__)
# ---------------------------------------------------------------------------
def init_ginception(key, C_in, C_hid, C_out, incep_ker, groups):
    g = groups if C_hid % groups == 0 else 1          # GroupConv2d fallback
    cin_g, cout_g = C_hid // g, C_out // g
    keys = jax.random.split(key, 2 + 4 * len(incep_ker))
    params = {
        'w1': 0.1 * jax.random.normal(keys[0], (C_in, C_hid), jnp.float32),
        'b1': 0.1 * jax.random.normal(keys[1], (C_hid,), jnp.float32),
        'branches': [],
    }
    for bi, K in enumerate(incep_ker):
        kw, kb, kg, kbe = keys[2 + 4 * bi: 2 + 4 * bi + 4]
        params['branches'].append({
            'w': 0.1 * jax.random.normal(kw, (g, K, K, cin_g, cout_g), jnp.float32),
            'b': 0.1 * jax.random.normal(kb, (g, 1, cout_g), jnp.float32),
            'gamma': 1.0 + 0.1 * jax.random.normal(kg, (g, 1, cout_g), jnp.float32),
            'beta': 0.1 * jax.random.normal(kbe, (g, 1, cout_g), jnp.float32),
        })
    return params


def init_mid_incepnet(key, channel_in, channel_hid, N2, incep_ker, groups):
    assert N2 >= 2 and len(incep_ker) > 1
    keys = jax.random.split(key, 2 * N2)
    enc, dec = [], []
    enc.append(init_ginception(keys[0], channel_in, channel_hid // 2, channel_hid,
                               incep_ker, groups))
    for i in range(1, N2 - 1):
        enc.append(init_ginception(keys[i], channel_hid, channel_hid // 2,
                                   channel_hid, incep_ker, groups))
    enc.append(init_ginception(keys[N2 - 1], channel_hid, channel_hid // 2,
                               channel_hid, incep_ker, groups))
    dec.append(init_ginception(keys[N2], channel_hid, channel_hid // 2,
                               channel_hid, incep_ker, groups))
    for i in range(1, N2 - 1):
        dec.append(init_ginception(keys[N2 + i], 2 * channel_hid, channel_hid // 2,
                                   channel_hid, incep_ker, groups))
    dec.append(init_ginception(keys[2 * N2 - 1], 2 * channel_hid, channel_hid // 2,
                               channel_in, incep_ker, groups))
    return enc, dec


# ---------------------------------------------------------------------------
# Pure-JAX reference (bf16 matmul inputs / bf16 inter-block activations,
# matching the kernel's numerics)
# ---------------------------------------------------------------------------
def ref_ginception(xs, p, incep_ker):
    x = xs[0] if len(xs) == 1 else jnp.concatenate(xs, axis=-1)
    h = lax.dot_general(x.astype(jnp.bfloat16), p['w1'].astype(jnp.bfloat16),
                        dimension_numbers=(((3,), (0,)), ((), ())),
                        preferred_element_type=jnp.float32) + p['b1']
    hb = h.astype(jnp.bfloat16)
    B, H, W, _ = h.shape
    y = None
    for bi, K in enumerate(incep_ker):
        bp = p['branches'][bi]
        g, _, _, cin_g, cout_g = bp['w'].shape
        rhs = bp['w'].transpose(1, 2, 3, 0, 4).reshape(K, K, cin_g, g * cout_g)
        conv = lax.conv_general_dilated(
            hb, rhs.astype(jnp.bfloat16), window_strides=(1, 1),
            padding=[(K // 2, K // 2), (K // 2, K // 2)],
            dimension_numbers=('NHWC', 'HWIO', 'NHWC'),
            feature_group_count=g,
            preferred_element_type=jnp.float32)
        conv = conv + bp['b'].reshape(g * cout_g)
        cg = conv.reshape(B, H, W, g, cout_g)
        mean = jnp.mean(cg, axis=(1, 2, 4), keepdims=True)
        var = jnp.mean((cg - mean) ** 2, axis=(1, 2, 4), keepdims=True)
        xn = (cg - mean) / jnp.sqrt(var + 1e-5)
        xn = xn * bp['gamma'].reshape(1, 1, 1, g, cout_g) \
                + bp['beta'].reshape(1, 1, 1, g, cout_g)
        xn = xn.reshape(B, H, W, g * cout_g)
        act = jnp.where(xn >= 0, xn, 0.2 * xn)
        y = act if y is None else y + act
    return y


def ref_mid_incepnet(x, enc_p, dec_p, incep_ker, N2):
    B, T, C, H, W = x.shape
    z = x.reshape(B, T * C, H, W).transpose(0, 2, 3, 1).astype(jnp.bfloat16)
    skips = []
    for i in range(N2):
        z = ref_ginception([z], enc_p[i], incep_ker).astype(jnp.bfloat16)
        if i < N2 - 1:
            skips.append(z)
    z = ref_ginception([z], dec_p[0], incep_ker).astype(jnp.bfloat16)
    for i in range(1, N2):
        z = ref_ginception([z, skips[-i]], dec_p[i], incep_ker)
        if i < N2 - 1:
            z = z.astype(jnp.bfloat16)
    return z.transpose(0, 3, 1, 2).reshape(B, T, C, H, W)


if __name__ == "__main__":
    # Small config consistent with MidIncepNet: channel_in = T*C.
    B, T, C, H, W = 2, 2, 4, 8, 8
    channel_hid, N2, groups = 32, 2, 4
    incep_ker = [3, 5]
    channel_in = T * C

    key = jax.random.PRNGKey(0)
    kx, kp = jax.random.split(key)
    x = jax.random.normal(kx, (B, T, C, H, W), jnp.float32)
    enc_p, dec_p = init_mid_incepnet(kp, channel_in, channel_hid, N2,
                                     incep_ker, groups)

    fwd = jax.jit(functools.partial(mid_incepnet_forward,
                                    incep_ker=incep_ker, N2=N2))
    y = jax.block_until_ready(fwd(x, enc_p, dec_p))
    assert y.shape == (B, T, C, H, W)

    y_ref = ref_mid_incepnet(x, enc_p, dec_p, incep_ker, N2)
    np.testing.assert_allclose(np.asarray(y), np.asarray(y_ref),
                               rtol=2e-2, atol=2e-2)
    print("KERNEL_OK")
</pallas_src>

<mosaic_0001>
module attributes {stable_mosaic.version = 11 : i64} {
  func.func @kernel(%arg0: i32, %arg1: i32, %arg2: memref<1x64x8xbf16, #tpu.memory_space<vmem>>, %arg3: memref<8x16xbf16, #tpu.memory_space<vmem>>, %arg4: memref<1x16xf32, #tpu.memory_space<vmem>>, %arg5: memref<32x32xf32, #tpu.memory_space<vmem>>, %arg6: memref<1x5x80x32xbf16, #tpu.memory_space<vmem>>, %arg7: memref<1x1x32xf32, #tpu.memory_space<vmem>>, %arg8: memref<1x1x32xf32, #tpu.memory_space<vmem>>, %arg9: memref<1x1x32xf32, #tpu.memory_space<vmem>>, %arg10: memref<1x64x32xbf16, #tpu.memory_space<vmem>>, %arg11: memref<12x12x16xf32, #tpu.memory_space<vmem>>, %arg12: memref<96x80xbf16, #tpu.memory_space<vmem>>, %arg13: memref<64x32xf32, #tpu.memory_space<vmem>>) attributes {dimension_semantics = [#tpu.dimension_semantics<parallel>, #tpu.dimension_semantics<arbitrary>], iteration_bounds = array<i64: 2, 2>, scalar_prefetch = 0 : i64, scratch_operands = 3 : i64, tpu.core_type = #tpu.core_type<tc>, window_params = [{transform_indices = @transform_0, window_bounds = array<i64: 1, 64, 8>}, {pipeline_mode = #tpu.pipeline_mode<synchronous>, transform_indices = @transform_1, window_bounds = array<i64: 8, 16>}, {pipeline_mode = #tpu.pipeline_mode<synchronous>, transform_indices = @transform_2, window_bounds = array<i64: 1, 16>}, {pipeline_mode = #tpu.pipeline_mode<synchronous>, transform_indices = @transform_3, window_bounds = array<i64: 32, 32>}, {transform_indices = @transform_4, window_bounds = array<i64: 1, 5, 80, 32>}, {transform_indices = @transform_5, window_bounds = array<i64: 1, 1, 32>}, {transform_indices = @transform_6, window_bounds = array<i64: 1, 1, 32>}, {transform_indices = @transform_7, window_bounds = array<i64: 1, 1, 32>}, {transform_indices = @transform_8, window_bounds = array<i64: 1, 64, 32>}]} {
    %c0_i32 = arith.constant 0 : i32
    %0 = arith.cmpi eq, %arg1, %c0_i32 : i32
    %1 = arith.extui %0 : i1 to i32
    %c0_i32_0 = arith.constant 0 : i32
    %2 = arith.cmpi ne, %1, %c0_i32_0 : i32
    scf.if %2 {
      %cst = arith.constant 0.000000e+00 : f32
      %12 = vector.broadcast %cst : f32 to vector<2x12x16xf32>
      %cst_6 = arith.constant 0.000000e+00 : f32
      %13 = vector.broadcast %cst_6 : f32 to vector<8x2x16xf32>
      %c0 = arith.constant 0 : index
      %c0_7 = arith.constant 0 : index
      %c0_8 = arith.constant 0 : index
      %14 = vector.load %arg11[%c0, %c0_7, %c0_8] : memref<12x12x16xf32, #tpu.memory_space<vmem>>, vector<2x12x16xf32>
      tpu.vector_store %arg11[%c0, %c0_7, %c0_8], %12 {strides = array<i32>} : memref<12x12x16xf32, #tpu.memory_space<vmem>>, vector<2x12x16xf32>,
      %c10 = arith.constant 10 : index
      %c0_9 = arith.constant 0 : index
      %c0_10 = arith.constant 0 : index
      %15 = vector.load %arg11[%c10, %c0_9, %c0_10] : memref<12x12x16xf32, #tpu.memory_space<vmem>>, vector<2x12x16xf32>
      tpu.vector_store %arg11[%c10, %c0_9, %c0_10], %12 {strides = array<i32>} : memref<12x12x16xf32, #tpu.memory_space<vmem>>, vector<2x12x16xf32>,
      %c2 = arith.constant 2 : index
      %c0_11 = arith.constant 0 : index
      %c0_12 = arith.constant 0 : index
      %16 = vector.load %arg11[%c2, %c0_11, %c0_12] : memref<12x12x16xf32, #tpu.memory_space<vmem>>, vector<8x2x16xf32>
      tpu.vector_store %arg11[%c2, %c0_11, %c0_12], %13 {strides = array<i32>} : memref<12x12x16xf32, #tpu.memory_space<vmem>>, vector<8x2x16xf32>,
      %c2_13 = arith.constant 2 : index
      %c10_14 = arith.constant 10 : index
      %c0_15 = arith.constant 0 : index
      %17 = vector.load %arg11[%c2_13, %c10_14, %c0_15] : memref<12x12x16xf32, #tpu.memory_space<vmem>>, vector<8x2x16xf32>
      tpu.vector_store %arg11[%c2_13, %c10_14, %c0_15], %13 {strides = array<i32>} : memref<12x12x16xf32, #tpu.memory_space<vmem>>, vector<8x2x16xf32>,
      %c0_16 = arith.constant 0 : index
      %c0_17 = arith.constant 0 : index
      %c0_18 = arith.constant 0 : index
      %18 = vector.load %arg2[%c0_16, %c0_17, %c0_18] : memref<1x64x8xbf16, #tpu.memory_space<vmem>>, vector<1x64x8xbf16>
      %19 = vector.shape_cast %18 : vector<1x64x8xbf16> to vector<64x8xbf16>
      %c0_19 = arith.constant 0 : index
      %c0_20 = arith.constant 0 : index
      %20 = vector.load %arg3[%c0_19, %c0_20] : memref<8x16xbf16, #tpu.memory_space<vmem>>, vector<8x16xbf16>
      %cst_21 = arith.constant dense<0.000000e+00> : vector<64x16xf32>
      %21 = tpu.matmul %19, %20, %cst_21 {dimension_numbers = #tpu.dot_dimension_numbers<[1], [0], [0], [1], [0, 0, 1, 1], [], []>} : vector<64x8xbf16>, vector<8x16xbf16>, vector<64x16xf32> -> vector<64x16xf32>
      %c0_22 = arith.constant 0 : index
      %c0_23 = arith.constant 0 : index
      %22 = vector.load %arg4[%c0_22, %c0_23] : memref<1x16xf32, #tpu.memory_space<vmem>>, vector<1x16xf32>
      %23 = vector.broadcast %22 : vector<1x16xf32> to vector<64x16xf32>
      %24 = arith.addf %21, %23 : vector<64x16xf32>
      %25 = vector.shape_cast %24 : vector<64x16xf32> to vector<8x8x16xf32>
      %c2_24 = arith.constant 2 : index
      %c2_25 = arith.constant 2 : index
      %c0_26 = arith.constant 0 : index
      %26 = vector.load %arg11[%c2_24, %c2_25, %c0_26] : memref<12x12x16xf32, #tpu.memory_space<vmem>>, vector<8x8x16xf32>
      tpu.vector_store %arg11[%c2_24, %c2_25, %c0_26], %25 {strides = array<i32>} : memref<12x12x16xf32, #tpu.memory_space<vmem>>, vector<8x8x16xf32>,
    } else {
    }
    %c0_i32_1 = arith.constant 0 : i32
    %3 = arith.cmpi eq, %arg1, %c0_i32_1 : i32
    %4 = arith.extui %3 : i1 to i32
    %c0_i32_2 = arith.constant 0 : i32
    %5 = arith.cmpi ne, %4, %c0_i32_2 : i32
    scf.if %5 {
      %c0 = arith.constant 0 : index
      %c1 = arith.constant 1 : index
      %c0_6 = arith.constant 0 : index
      %12 = vector.load %arg11[%c0, %c1, %c0_6] : memref<12x12x16xf32, #tpu.memory_space<vmem>>, vector<12x8x16xf32>
      %13 = vector.shape_cast %12 : vector<12x8x16xf32> to vector<96x16xf32>
      %14 = arith.truncf %13 : vector<96x16xf32> to vector<96x16xbf16>
      %c0_7 = arith.constant 0 : index
      %c0_8 = arith.constant 0 : index
      %15 = vector.load %arg12[%c0_7, %c0_8] : memref<96x80xbf16, #tpu.memory_space<vmem>>, vector<96x16xbf16>
      tpu.vector_store %arg12[%c0_7, %c0_8], %14 {strides = array<i32>} : memref<96x80xbf16, #tpu.memory_space<vmem>>, vector<96x16xbf16>,
      %c0_9 = arith.constant 0 : index
      %c2 = arith.constant 2 : index
      %c0_10 = arith.constant 0 : index
      %16 = vector.load %arg11[%c0_9, %c2, %c0_10] : memref<12x12x16xf32, #tpu.memory_space<vmem>>, vector<12x8x16xf32>
      %17 = vector.shape_cast %16 : vector<12x8x16xf32> to vector<96x16xf32>
      %18 = arith.truncf %17 : vector<96x16xf32> to vector<96x16xbf16>
      %c0_11 = arith.constant 0 : index
      %c16 = arith.constant 16 : index
      %19 = vector.load %arg12[%c0_11, %c16] : memref<96x80xbf16, #tpu.memory_space<vmem>>, vector<96x16xbf16>
      tpu.vector_store %arg12[%c0_11, %c16], %18 {strides = array<i32>} : memref<96x80xbf16, #tpu.memory_space<vmem>>, vector<96x16xbf16>,
      %c0_12 = arith.constant 0 : index
      %c3 = arith.constant 3 : index
      %c0_13 = arith.constant 0 : index
      %20 = vector.load %arg11[%c0_12, %c3, %c0_13] : memref<12x12x16xf32, #tpu.memory_space<vmem>>, vector<12x8x16xf32>
      %21 = vector.shape_cast %20 : vector<12x8x16xf32> to vector<96x16xf32>
      %22 = arith.truncf %21 : vector<96x16xf32> to vector<96x16xbf16>
      %c0_14 = arith.constant 0 : index
      %c32 = arith.constant 32 : index
      %23 = vector.load %arg12[%c0_14, %c32] : memref<96x80xbf16, #tpu.memory_space<vmem>>, vector<96x16xbf16>
      tpu.vector_store %arg12[%c0_14, %c32], %22 {strides = array<i32>} : memref<96x80xbf16, #tpu.memory_space<vmem>>, vector<96x16xbf16>,
      %cst = arith.constant 0.000000e+00 : f32
      %24 = vector.broadcast %cst : f32 to vector<64x32xf32>
      %c8 = arith.constant 8 : index
      %c0_15 = arith.constant 0 : index
      %25 = vector.load %arg12[%c8, %c0_15] : memref<96x80xbf16, #tpu.memory_space<vmem>>, vector<64x48xbf16>
      %c0_16 = arith.constant 0 : index
      %c0_17 = arith.constant 0 : index
      %c0_18 = arith.constant 0 : index
      %c0_19 = arith.constant 0 : index
      %26 = vector.load %arg6[%c0_16, %c0_17, %c0_18, %c0_19] : memref<1x5x80x32xbf16, #tpu.memory_space<vmem>>, vector<1x1x48x32xbf16>
      %27 = vector.shape_cast %26 : vector<1x1x48x32xbf16> to vector<48x32xbf16>
      %cst_20 = arith.constant dense<0.000000e+00> : vector<64x32xf32>
      %28 = tpu.matmul %25, %27, %cst_20 {dimension_numbers = #tpu.dot_dimension_numbers<[1], [0], [0], [1], [0, 0, 1, 1], [], []>} : vector<64x48xbf16>, vector<48x32xbf16>, vector<64x32xf32> -> vector<64x32xf32>
      %29 = arith.addf %24, %28 : vector<64x32xf32>
      %c16_21 = arith.constant 16 : index
      %c0_22 = arith.constant 0 : index
      %30 = vector.load %arg12[%c16_21, %c0_22] : memref<96x80xbf16, #tpu.memory_space<vmem>>, vector<64x48xbf16>
      %c0_23 = arith.constant 0 : index
      %c1_24 = arith.constant 1 : index
      %c0_25 = arith.constant 0 : index
      %c0_26 = arith.constant 0 : index
      %31 = vector.load %arg6[%c0_23, %c1_24, %c0_25, %c0_26] : memref<1x5x80x32xbf16, #tpu.memory_space<vmem>>, vector<1x1x48x32xbf16>
      %32 = vector.shape_cast %31 : vector<1x1x48x32xbf16> to vector<48x32xbf16>
      %cst_27 = arith.constant dense<0.000000e+00> : vector<64x32xf32>
      %33 = tpu.matmul %30, %32, %cst_27 {dimension_numbers = #tpu.dot_dimension_numbers<[1], [0], [0], [1], [0, 0, 1, 1], [], []>} : vector<64x48xbf16>, vector<48x32xbf16>, vector<64x32xf32> -> vector<64x32xf32>
      %34 = arith.addf %29, %33 : vector<64x32xf32>
      %c24 = arith.constant 24 : index
      %c0_28 = arith.constant 0 : index
      %35 = vector.load %arg12[%c24, %c0_28] : memref<96x80xbf16, #tpu.memory_space<vmem>>, vector<64x48xbf16>
      %c0_29 = arith.constant 0 : index
      %c2_30 = arith.constant 2 : index
      %c0_31 = arith.constant 0 : index
      %c0_32 = arith.constant 0 : index
      %36 = vector.load %arg6[%c0_29, %c2_30, %c0_31, %c0_32] : memref<1x5x80x32xbf16, #tpu.memory_space<vmem>>, vector<1x1x48x32xbf16>
      %37 = vector.shape_cast %36 : vector<1x1x48x32xbf16> to vector<48x32xbf16>
      %cst_33 = arith.constant dense<0.000000e+00> : vector<64x32xf32>
      %38 = tpu.matmul %35, %37, %cst_33 {dimension_numbers = #tpu.dot_dimension_numbers<[1], [0], [0], [1], [0, 0, 1, 1], [], []>} : vector<64x48xbf16>, vector<48x32xbf16>, vector<64x32xf32> -> vector<64x32xf32>
      %39 = arith.addf %34, %38 : vector<64x32xf32>
      %c0_34 = arith.constant 0 : index
      %c0_35 = arith.constant 0 : index
      %c0_36 = arith.constant 0 : index
      %40 = vector.load %arg7[%c0_34, %c0_35, %c0_36] : memref<1x1x32xf32, #tpu.memory_space<vmem>>, vector<1x1x32xf32>
      %41 = vector.shape_cast %40 : vector<1x1x32xf32> to vector<1x32xf32>
      %42 = vector.broadcast %41 : vector<1x32xf32> to vector<64x32xf32>
      %43 = arith.addf %39, %42 : vector<64x32xf32>
      %cst_37 = arith.constant dense<0.000000e+00> : vector<32xf32>
      %44 = vector.multi_reduction <add>, %43, %cst_37 [0] : vector<64x32xf32> to vector<32xf32>
      %45 = vector.shape_cast %44 : vector<32xf32> to vector<1x32xf32>
      %46 = arith.mulf %43, %43 : vector<64x32xf32>
      %cst_38 = arith.constant dense<0.000000e+00> : vector<32xf32>
      %47 = vector.multi_reduction <add>, %46, %cst_38 [0] : vector<64x32xf32> to vector<32xf32>
      %48 = vector.shape_cast %47 : vector<32xf32> to vector<1x32xf32>
      %49 = tpu.concatenate %45, %48 in 0 : vector<1x32xf32>, vector<1x32xf32> -> vector<2x32xf32>
      %c0_39 = arith.constant 0 : index
      %c0_40 = arith.constant 0 : index
      %50 = vector.load %arg5[%c0_39, %c0_40] : memref<32x32xf32, #tpu.memory_space<vmem>>, vector<32x32xf32>
      %cst_41 = arith.constant dense<0.000000e+00> : vector<2x32xf32>
      %51 = tpu.matmul %49, %50, %cst_41 {dimension_numbers = #tpu.dot_dimension_numbers<[1], [0], [0], [1], [0, 0, 1, 1], [], []>} : vector<2x32xf32>, vector<32x32xf32>, vector<2x32xf32> -> vector<2x32xf32>
      %cst_42 = arith.constant 0.001953125 : f32
      %52 = vector.broadcast %cst_42 : f32 to vector<2x32xf32>
      %53 = arith.mulf %51, %52 : vector<2x32xf32>
      %54 = vector.extract_strided_slice %53 {offsets = [0, 0], sizes = [1, 32], strides = [1, 1]} : vector<2x32xf32> to vector<1x32xf32>
      %55 = vector.extract_strided_slice %53 {offsets = [1, 0], sizes = [1, 32], strides = [1, 1]} : vector<2x32xf32> to vector<1x32xf32>
      %56 = arith.mulf %54, %54 : vector<1x32xf32>
      %57 = arith.subf %55, %56 : vector<1x32xf32>
      %cst_43 = arith.constant 0.000000e+00 : f32
      %58 = vector.broadcast %cst_43 : f32 to vector<1x32xf32>
      %59 = arith.maximumf %57, %58 : vector<1x32xf32>
      %60 = vector.broadcast %54 : vector<1x32xf32> to vector<64x32xf32>
      %61 = arith.subf %43, %60 : vector<64x32xf32>
      %cst_44 = arith.constant 9.99999974E-6 : f32
      %62 = vector.broadcast %cst_44 : f32 to vector<1x32xf32>
      %63 = arith.addf %59, %62 : vector<1x32xf32>
      %64 = math.rsqrt %63 : vector<1x32xf32>
      %65 = vector.broadcast %64 : vector<1x32xf32> to vector<64x32xf32>
      %66 = arith.mulf %61, %65 : vector<64x32xf32>
      %c0_45 = arith.constant 0 : index
      %c0_46 = arith.constant 0 : index
      %c0_47 = arith.constant 0 : index
      %67 = vector.load %arg8[%c0_45, %c0_46, %c0_47] : memref<1x1x32xf32, #tpu.memory_space<vmem>>, vector<1x1x32xf32>
      %68 = vector.shape_cast %67 : vector<1x1x32xf32> to vector<1x32xf32>
      %69 = vector.broadcast %68 : vector<1x32xf32> to vector<64x32xf32>
      %70 = arith.mulf %66, %69 : vector<64x32xf32>
      %c0_48 = arith.constant 0 : index
      %c0_49 = arith.constant 0 : index
      %c0_50 = arith.constant 0 : index
      %71 = vector.load %arg9[%c0_48, %c0_49, %c0_50] : memref<1x1x32xf32, #tpu.memory_space<vmem>>, vector<1x1x32xf32>
      %72 = vector.shape_cast %71 : vector<1x1x32xf32> to vector<1x32xf32>
      %73 = vector.broadcast %72 : vector<1x32xf32> to vector<64x32xf32>
      %74 = arith.addf %70, %73 : vector<64x32xf32>
      %cst_51 = arith.constant 0.000000e+00 : f32
      %75 = vector.broadcast %cst_51 : f32 to vector<64x32xf32>
      %76 = arith.cmpf oge, %74, %75 : vector<64x32xf32>
      %cst_52 = arith.constant 2.000000e-01 : f32
      %77 = vector.broadcast %cst_52 : f32 to vector<64x32xf32>
      %78 = arith.mulf %77, %74 : vector<64x32xf32>
      %79 = arith.select %76, %74, %78 : vector<64x32xi1>, vector<64x32xf32>
      %c0_53 = arith.constant 0 : index
      %c0_54 = arith.constant 0 : index
      %80 = vector.load %arg13[%c0_53, %c0_54] : memref<64x32xf32, #tpu.memory_space<vmem>>, vector<64x32xf32>
      tpu.vector_store %arg13[%c0_53, %c0_54], %79 {strides = array<i32>} : memref<64x32xf32, #tpu.memory_space<vmem>>, vector<64x32xf32>,
    } else {
    }
    %c1_i32 = arith.constant 1 : i32
    %6 = arith.cmpi eq, %arg1, %c1_i32 : i32
    %7 = arith.extui %6 : i1 to i32
    %c0_i32_3 = arith.constant 0 : i32
    %8 = arith.cmpi ne, %7, %c0_i32_3 : i32
    scf.if %8 {
      %c0 = arith.constant 0 : index
      %c0_6 = arith.constant 0 : index
      %c0_7 = arith.constant 0 : index
      %12 = vector.load %arg11[%c0, %c0_6, %c0_7] : memref<12x12x16xf32, #tpu.memory_space<vmem>>, vector<12x8x16xf32>
      %13 = vector.shape_cast %12 : vector<12x8x16xf32> to vector<96x16xf32>
      %14 = arith.truncf %13 : vector<96x16xf32> to vector<96x16xbf16>
      %c0_8 = arith.constant 0 : index
      %c0_9 = arith.constant 0 : index
      %15 = vector.load %arg12[%c0_8, %c0_9] : memref<96x80xbf16, #tpu.memory_space<vmem>>, vector<96x16xbf16>
      tpu.vector_store %arg12[%c0_8, %c0_9], %14 {strides = array<i32>} : memref<96x80xbf16, #tpu.memory_space<vmem>>, vector<96x16xbf16>,
      %c0_10 = arith.constant 0 : index
      %c1 = arith.constant 1 : index
      %c0_11 = arith.constant 0 : index
      %16 = vector.load %arg11[%c0_10, %c1, %c0_11] : memref<12x12x16xf32, #tpu.memory_space<vmem>>, vector<12x8x16xf32>
      %17 = vector.shape_cast %16 : vector<12x8x16xf32> to vector<96x16xf32>
      %18 = arith.truncf %17 : vector<96x16xf32> to vector<96x16xbf16>
      %c0_12 = arith.constant 0 : index
      %c16 = arith.constant 16 : index
      %19 = vector.load %arg12[%c0_12, %c16] : memref<96x80xbf16, #tpu.memory_space<vmem>>, vector<96x16xbf16>
      tpu.vector_store %arg12[%c0_12, %c16], %18 {strides = array<i32>} : memref<96x80xbf16, #tpu.memory_space<vmem>>, vector<96x16xbf16>,
      %c0_13 = arith.constant 0 : index
      %c2 = arith.constant 2 : index
      %c0_14 = arith.constant 0 : index
      %20 = vector.load %arg11[%c0_13, %c2, %c0_14] : memref<12x12x16xf32, #tpu.memory_space<vmem>>, vector<12x8x16xf32>
      %21 = vector.shape_cast %20 : vector<12x8x16xf32> to vector<96x16xf32>
      %22 = arith.truncf %21 : vector<96x16xf32> to vector<96x16xbf16>
      %c0_15 = arith.constant 0 : index
      %c32 = arith.constant 32 : index
      %23 = vector.load %arg12[%c0_15, %c32] : memref<96x80xbf16, #tpu.memory_space<vmem>>, vector<96x16xbf16>
      tpu.vector_store %arg12[%c0_15, %c32], %22 {strides = array<i32>} : memref<96x80xbf16, #tpu.memory_space<vmem>>, vector<96x16xbf16>,
      %c0_16 = arith.constant 0 : index
      %c3 = arith.constant 3 : index
      %c0_17 = arith.constant 0 : index
      %24 = vector.load %arg11[%c0_16, %c3, %c0_17] : memref<12x12x16xf32, #tpu.memory_space<vmem>>, vector<12x8x16xf32>
      %25 = vector.shape_cast %24 : vector<12x8x16xf32> to vector<96x16xf32>
      %26 = arith.truncf %25 : vector<96x16xf32> to vector<96x16xbf16>
      %c0_18 = arith.constant 0 : index
      %c48 = arith.constant 48 : index
      %27 = vector.load %arg12[%c0_18, %c48] : memref<96x80xbf16, #tpu.memory_space<vmem>>, vector<96x16xbf16>
      tpu.vector_store %arg12[%c0_18, %c48], %26 {strides = array<i32>} : memref<96x80xbf16, #tpu.memory_space<vmem>>, vector<96x16xbf16>,
      %c0_19 = arith.constant 0 : index
      %c4 = arith.constant 4 : index
      %c0_20 = arith.constant 0 : index
      %28 = vector.load %arg11[%c0_19, %c4, %c0_20] : memref<12x12x16xf32, #tpu.memory_space<vmem>>, vector<12x8x16xf32>
      %29 = vector.shape_cast %28 : vector<12x8x16xf32> to vector<96x16xf32>
      %30 = arith.truncf %29 : vector<96x16xf32> to vector<96x16xbf16>
      %c0_21 = arith.constant 0 : index
      %c64 = arith.constant 64 : index
      %31 = vector.load %arg12[%c0_21, %c64] : memref<96x80xbf16, #tpu.memory_space<vmem>>, vector<96x16xbf16>
      tpu.vector_store %arg12[%c0_21, %c64], %30 {strides = array<i32>} : memref<96x80xbf16, #tpu.memory_space<vmem>>, vector<96x16xbf16>,
      %cst = arith.constant 0.000000e+00 : f32
      %32 = vector.broadcast %cst : f32 to vector<64x32xf32>
      %c0_22 = arith.constant 0 : index
      %c0_23 = arith.constant 0 : index
      %33 = vector.load %arg12[%c0_22, %c0_23] : memref<96x80xbf16, #tpu.memory_space<vmem>>, vector<64x80xbf16>
      %c0_24 = arith.constant 0 : index
      %c0_25 = arith.constant 0 : index
      %c0_26 = arith.constant 0 : index
      %c0_27 = arith.constant 0 : index
      %34 = vector.load %arg6[%c0_24, %c0_25, %c0_26, %c0_27] : memref<1x5x80x32xbf16, #tpu.memory_space<vmem>>, vector<1x1x80x32xbf16>
      %35 = vector.shape_cast %34 : vector<1x1x80x32xbf16> to vector<80x32xbf16>
      %cst_28 = arith.constant dense<0.000000e+00> : vector<64x32xf32>
      %36 = tpu.matmul %33, %35, %cst_28 {dimension_numbers = #tpu.dot_dimension_numbers<[1], [0], [0], [1], [0, 0, 1, 1], [], []>} : vector<64x80xbf16>, vector<80x32xbf16>, vector<64x32xf32> -> vector<64x32xf32>
      %37 = arith.addf %32, %36 : vector<64x32xf32>
      %c8 = arith.constant 8 : index
      %c0_29 = arith.constant 0 : index
      %38 = vector.load %arg12[%c8, %c0_29] : memref<96x80xbf16, #tpu.memory_space<vmem>>, vector<64x80xbf16>
      %c0_30 = arith.constant 0 : index
      %c1_31 = arith.constant 1 : index
      %c0_32 = arith.constant 0 : index
      %c0_33 = arith.constant 0 : index
      %39 = vector.load %arg6[%c0_30, %c1_31, %c0_32, %c0_33] : memref<1x5x80x32xbf16, #tpu.memory_space<vmem>>, vector<1x1x80x32xbf16>
      %40 = vector.shape_cast %39 : vector<1x1x80x32xbf16> to vector<80x32xbf16>
      %cst_34 = arith.constant dense<0.000000e+00> : vector<64x32xf32>
      %41 = tpu.matmul %38, %40, %cst_34 {dimension_numbers = #tpu.dot_dimension_numbers<[1], [0], [0], [1], [0, 0, 1, 1], [], []>} : vector<64x80xbf16>, vector<80x32xbf16>, vector<64x32xf32> -> vector<64x32xf32>
      %42 = arith.addf %37, %41 : vector<64x32xf32>
      %c16_35 = arith.constant 16 : index
      %c0_36 = arith.constant 0 : index
      %43 = vector.load %arg12[%c16_35, %c0_36] : memref<96x80xbf16, #tpu.memory_space<vmem>>, vector<64x80xbf16>
      %c0_37 = arith.constant 0 : index
      %c2_38 = arith.constant 2 : index
      %c0_39 = arith.constant 0 : index
      %c0_40 = arith.constant 0 : index
      %44 = vector.load %arg6[%c0_37, %c2_38, %c0_39, %c0_40] : memref<1x5x80x32xbf16, #tpu.memory_space<vmem>>, vector<1x1x80x32xbf16>
      %45 = vector.shape_cast %44 : vector<1x1x80x32xbf16> to vector<80x32xbf16>
      %cst_41 = arith.constant dense<0.000000e+00> : vector<64x32xf32>
      %46 = tpu.matmul %43, %45, %cst_41 {dimension_numbers = #tpu.dot_dimension_numbers<[1], [0], [0], [1], [0, 0, 1, 1], [], []>} : vector<64x80xbf16>, vector<80x32xbf16>, vector<64x32xf32> -> vector<64x32xf32>
      %47 = arith.addf %42, %46 : vector<64x32xf32>
      %c24 = arith.constant 24 : index
      %c0_42 = arith.constant 0 : index
      %48 = vector.load %arg12[%c24, %c0_42] : memref<96x80xbf16, #tpu.memory_space<vmem>>, vector<64x80xbf16>
      %c0_43 = arith.constant 0 : index
      %c3_44 = arith.constant 3 : index
      %c0_45 = arith.constant 0 : index
      %c0_46 = arith.constant 0 : index
      %49 = vector.load %arg6[%c0_43, %c3_44, %c0_45, %c0_46] : memref<1x5x80x32xbf16, #tpu.memory_space<vmem>>, vector<1x1x80x32xbf16>
      %50 = vector.shape_cast %49 : vector<1x1x80x32xbf16> to vector<80x32xbf16>
      %cst_47 = arith.constant dense<0.000000e+00> : vector<64x32xf32>
      %51 = tpu.matmul %48, %50, %cst_47 {dimension_numbers = #tpu.dot_dimension_numbers<[1], [0], [0], [1], [0, 0, 1, 1], [], []>} : vector<64x80xbf16>, vector<80x32xbf16>, vector<64x32xf32> -> vector<64x32xf32>
      %52 = arith.addf %47, %51 : vector<64x32xf32>
      %c32_48 = arith.constant 32 : index
      %c0_49 = arith.constant 0 : index
      %53 = vector.load %arg12[%c32_48, %c0_49] : memref<96x80xbf16, #tpu.memory_space<vmem>>, vector<64x80xbf16>
      %c0_50 = arith.constant 0 : index
      %c4_51 = arith.constant 4 : index
      %c0_52 = arith.constant 0 : index
      %c0_53 = arith.constant 0 : index
      %54 = vector.load %arg6[%c0_50, %c4_51, %c0_52, %c0_53] : memref<1x5x80x32xbf16, #tpu.memory_space<vmem>>, vector<1x1x80x32xbf16>
      %55 = vector.shape_cast %54 : vector<1x1x80x32xbf16> to vector<80x32xbf16>
      %cst_54 = arith.constant dense<0.000000e+00> : vector<64x32xf32>
      %56 = tpu.matmul %53, %55, %cst_54 {dimension_numbers = #tpu.dot_dimension_numbers<[1], [0], [0], [1], [0, 0, 1, 1], [], []>} : vector<64x80xbf16>, vector<80x32xbf16>, vector<64x32xf32> -> vector<64x32xf32>
      %57 = arith.addf %52, %56 : vector<64x32xf32>
      %c0_55 = arith.constant 0 : index
      %c0_56 = arith.constant 0 : index
      %c0_57 = arith.constant 0 : index
      %58 = vector.load %arg7[%c0_55, %c0_56, %c0_57] : memref<1x1x32xf32, #tpu.memory_space<vmem>>, vector<1x1x32xf32>
      %59 = vector.shape_cast %58 : vector<1x1x32xf32> to vector<1x32xf32>
      %60 = vector.broadcast %59 : vector<1x32xf32> to vector<64x32xf32>
      %61 = arith.addf %57, %60 : vector<64x32xf32>
      %cst_58 = arith.constant dense<0.000000e+00> : vector<32xf32>
      %62 = vector.multi_reduction <add>, %61, %cst_58 [0] : vector<64x32xf32> to vector<32xf32>
      %63 = vector.shape_cast %62 : vector<32xf32> to vector<1x32xf32>
      %64 = arith.mulf %61, %61 : vector<64x32xf32>
      %cst_59 = arith.constant dense<0.000000e+00> : vector<32xf32>
      %65 = vector.multi_reduction <add>, %64, %cst_59 [0] : vector<64x32xf32> to vector<32xf32>
      %66 = vector.shape_cast %65 : vector<32xf32> to vector<1x32xf32>
      %67 = tpu.concatenate %63, %66 in 0 : vector<1x32xf32>, vector<1x32xf32> -> vector<2x32xf32>
      %c0_60 = arith.constant 0 : index
      %c0_61 = arith.constant 0 : index
      %68 = vector.load %arg5[%c0_60, %c0_61] : memref<32x32xf32, #tpu.memory_space<vmem>>, vector<32x32xf32>
      %cst_62 = arith.constant dense<0.000000e+00> : vector<2x32xf32>
      %69 = tpu.matmul %67, %68, %cst_62 {dimension_numbers = #tpu.dot_dimension_numbers<[1], [0], [0], [1], [0, 0, 1, 1], [], []>} : vector<2x32xf32>, vector<32x32xf32>, vector<2x32xf32> -> vector<2x32xf32>
      %cst_63 = arith.constant 0.001953125 : f32
      %70 = vector.broadcast %cst_63 : f32 to vector<2x32xf32>
      %71 = arith.mulf %69, %70 : vector<2x32xf32>
      %72 = vector.extract_strided_slice %71 {offsets = [0, 0], sizes = [1, 32], strides = [1, 1]} : vector<2x32xf32> to vector<1x32xf32>
      %73 = vector.extract_strided_slice %71 {offsets = [1, 0], sizes = [1, 32], strides = [1, 1]} : vector<2x32xf32> to vector<1x32xf32>
      %74 = arith.mulf %72, %72 : vector<1x32xf32>
      %75 = arith.subf %73, %74 : vector<1x32xf32>
      %cst_64 = arith.constant 0.000000e+00 : f32
      %76 = vector.broadcast %cst_64 : f32 to vector<1x32xf32>
      %77 = arith.maximumf %75, %76 : vector<1x32xf32>
      %78 = vector.broadcast %72 : vector<1x32xf32> to vector<64x32xf32>
      %79 = arith.subf %61, %78 : vector<64x32xf32>
      %cst_65 = arith.constant 9.99999974E-6 : f32
      %80 = vector.broadcast %cst_65 : f32 to vector<1x32xf32>
      %81 = arith.addf %77, %80 : vector<1x32xf32>
      %82 = math.rsqrt %81 : vector<1x32xf32>
      %83 = vector.broadcast %82 : vector<1x32xf32> to vector<64x32xf32>
      %84 = arith.mulf %79, %83 : vector<64x32xf32>
      %c0_66 = arith.constant 0 : index
      %c0_67 = arith.constant 0 : index
      %c0_68 = arith.constant 0 : index
      %85 = vector.load %arg8[%c0_66, %c0_67, %c0_68] : memref<1x1x32xf32, #tpu.memory_space<vmem>>, vector<1x1x32xf32>
      %86 = vector.shape_cast %85 : vector<1x1x32xf32> to vector<1x32xf32>
      %87 = vector.broadcast %86 : vector<1x32xf32> to vector<64x32xf32>
      %88 = arith.mulf %84, %87 : vector<64x32xf32>
      %c0_69 = arith.constant 0 : index
      %c0_70 = arith.constant 0 : index
      %c0_71 = arith.constant 0 : index
      %89 = vector.load %arg9[%c0_69, %c0_70, %c0_71] : memref<1x1x32xf32, #tpu.memory_space<vmem>>, vector<1x1x32xf32>
      %90 = vector.shape_cast %89 : vector<1x1x32xf32> to vector<1x32xf32>
      %91 = vector.broadcast %90 : vector<1x32xf32> to vector<64x32xf32>
      %92 = arith.addf %88, %91 : vector<64x32xf32>
      %cst_72 = arith.constant 0.000000e+00 : f32
      %93 = vector.broadcast %cst_72 : f32 to vector<64x32xf32>
      %94 = arith.cmpf oge, %92, %93 : vector<64x32xf32>
      %cst_73 = arith.constant 2.000000e-01 : f32
      %95 = vector.broadcast %cst_73 : f32 to vector<64x32xf32>
      %96 = arith.mulf %95, %92 : vector<64x32xf32>
      %97 = arith.select %94, %92, %96 : vector<64x32xi1>, vector<64x32xf32>
      %c0_74 = arith.constant 0 : index
      %c0_75 = arith.constant 0 : index
      %98 = vector.load %arg13[%c0_74, %c0_75] : memref<64x32xf32, #tpu.memory_space<vmem>>, vector<64x32xf32>
      %99 = arith.addf %98, %97 : vector<64x32xf32>
      %c0_76 = arith.constant 0 : index
      %c0_77 = arith.constant 0 : index
      %100 = vector.load %arg13[%c0_76, %c0_77] : memref<64x32xf32, #tpu.memory_space<vmem>>, vector<64x32xf32>
      tpu.vector_store %arg13[%c0_76, %c0_77], %99 {strides = array<i32>} : memref<64x32xf32, #tpu.memory_space<vmem>>, vector<64x32xf32>,
    } else {
    }
    %c1_i32_4 = arith.constant 1 : i32
    %9 = arith.cmpi eq, %arg1, %c1_i32_4 : i32
    %10 = arith.extui %9 : i1 to i32
    %c0_i32_5 = arith.constant 0 : i32
    %11 = arith.cmpi ne, %10, %c0_i32_5 : i32
    scf.if %11 {
      %c0 = arith.constant 0 : index
      %c0_6 = arith.constant 0 : index
      %12 = vector.load %arg13[%c0, %c0_6] : memref<64x32xf32, #tpu.memory_space<vmem>>, vector<64x32xf32>
      %13 = vector.shape_cast %12 : vector<64x32xf32> to vector<1x64x32xf32>
      %14 = arith.truncf %13 : vector<1x64x32xf32> to vector<1x64x32xbf16>
      %c0_7 = arith.constant 0 : index
      %c0_8 = arith.constant 0 : index
      %c0_9 = arith.constant 0 : index
      %15 = vector.load %arg10[%c0_7, %c0_8, %c0_9] : memref<1x64x32xbf16, #tpu.memory_space<vmem>>, vector<1x64x32xbf16>
      tpu.vector_store %arg10[%c0_7, %c0_8, %c0_9], %14 {strides = array<i32>} : memref<1x64x32xbf16, #tpu.memory_space<vmem>>, vector<1x64x32xbf16>,
    } else {
    }
    return
  }
  func.func @transform_0(%arg0: i32, %arg1: i32) -> (i32, i32, i32) {
    %c0_i32 = arith.constant 0 : i32
    %c0_i32_0 = arith.constant 0 : i32
    %c0_i32_1 = arith.constant 0 : i32
    return %arg0, %c0_i32, %c0_i32_0 : i32, i32, i32
  }
  func.func @transform_1(%arg0: i32, %arg1: i32) -> (i32, i32) {
    %c0_i32 = arith.constant 0 : i32
    %c0_i32_0 = arith.constant 0 : i32
    %c0_i32_1 = arith.constant 0 : i32
    return %c0_i32, %c0_i32_0 : i32, i32
  }
  func.func @transform_2(%arg0: i32, %arg1: i32) -> (i32, i32) {
    %c0_i32 = arith.constant 0 : i32
    %c0_i32_0 = arith.constant 0 : i32
    %c0_i32_1 = arith.constant 0 : i32
    return %c0_i32, %c0_i32_0 : i32, i32
  }
  func.func @transform_3(%arg0: i32, %arg1: i32) -> (i32, i32) {
    %c0_i32 = arith.constant 0 : i32
    %c0_i32_0 = arith.constant 0 : i32
    %c0_i32_1 = arith.constant 0 : i32
    return %c0_i32, %c0_i32_0 : i32, i32
  }
  func.func @transform_4(%arg0: i32, %arg1: i32) -> (i32, i32, i32, i32) {
    %c0_i32 = arith.constant 0 : i32
    %c0_i32_0 = arith.constant 0 : i32
    %c0_i32_1 = arith.constant 0 : i32
    %c0_i32_2 = arith.constant 0 : i32
    return %arg1, %c0_i32, %c0_i32_0, %c0_i32_1 : i32, i32, i32, i32
  }
  func.func @transform_5(%arg0: i32, %arg1: i32) -> (i32, i32, i32) {
    %c0_i32 = arith.constant 0 : i32
    %c0_i32_0 = arith.constant 0 : i32
    %c0_i32_1 = arith.constant 0 : i32
    return %arg1, %c0_i32, %c0_i32_0 : i32, i32, i32
  }
  func.func @transform_6(%arg0: i32, %arg1: i32) -> (i32, i32, i32) {
    %c0_i32 = arith.constant 0 : i32
    %c0_i32_0 = arith.constant 0 : i32
    %c0_i32_1 = arith.constant 0 : i32
    return %arg1, %c0_i32, %c0_i32_0 : i32, i32, i32
  }
  func.func @transform_7(%arg0: i32, %arg1: i32) -> (i32, i32, i32) {
    %c0_i32 = arith.constant 0 : i32
    %c0_i32_0 = arith.constant 0 : i32
    %c0_i32_1 = arith.constant 0 : i32
    return %arg1, %c0_i32, %c0_i32_0 : i32, i32, i32
  }
  func.func @transform_8(%arg0: i32, %arg1: i32) -> (i32, i32, i32) {
    %c0_i32 = arith.constant 0 : i32
    %c0_i32_0 = arith.constant 0 : i32
    %c0_i32_1 = arith.constant 0 : i32
    return %arg0, %c0_i32, %c0_i32_0 : i32, i32, i32
  }
}

module attributes {stable_mosaic.version = 11 : i64} {
  func.func @kernel(%arg0: i32, %arg1: i32, %arg2: memref<1x64x32xbf16, #tpu.memory_space<vmem>>, %arg3: memref<32x16xbf16, #tpu.memory_space<vmem>>, %arg4: memref<1x16xf32, #tpu.memory_space<vmem>>, %arg5: memref<32x32xf32, #tpu.memory_space<vmem>>, %arg6: memref<1x5x80x32xbf16, #tpu.memory_space<vmem>>, %arg7: memref<1x1x32xf32, #tpu.memory_space<vmem>>, %arg8: memref<1x1x32xf32, #tpu.memory_space<vmem>>, %arg9: memref<1x1x32xf32, #tpu.memory_space<vmem>>, %arg10: memref<1x64x32xbf16, #tpu.memory_space<vmem>>, %arg11: memref<12x12x16xf32, #tpu.memory_space<vmem>>, %arg12: memref<96x80xbf16, #tpu.memory_space<vmem>>, %arg13: memref<64x32xf32, #tpu.memory_space<vmem>>) attributes {dimension_semantics = [#tpu.dimension_semantics<parallel>, #tpu.dimension_semantics<arbitrary>], iteration_bounds = array<i64: 2, 2>, scalar_prefetch = 0 : i64, scratch_operands = 3 : i64, tpu.core_type = #tpu.core_type<tc>, window_params = [{transform_indices = @transform_0, window_bounds = array<i64: 1, 64, 32>}, {pipeline_mode = #tpu.pipeline_mode<synchronous>, transform_indices = @transform_1, window_bounds = array<i64: 32, 16>}, {pipeline_mode = #tpu.pipeline_mode<synchronous>, transform_indices = @transform_2, window_bounds = array<i64: 1, 16>}, {pipeline_mode = #tpu.pipeline_mode<synchronous>, transform_indices = @transform_3, window_bounds = array<i64: 32, 32>}, {transform_indices = @transform_4, window_bounds = array<i64: 1, 5, 80, 32>}, {transform_indices = @transform_5, window_bounds = array<i64: 1, 1, 32>}, {transform_indices = @transform_6, window_bounds = array<i64: 1, 1, 32>}, {transform_indices = @transform_7, window_bounds = array<i64: 1, 1, 32>}, {transform_indices = @transform_8, window_bounds = array<i64: 1, 64, 32>}]} {
    %c0_i32 = arith.constant 0 : i32
    %0 = arith.cmpi eq, %arg1, %c0_i32 : i32
    %1 = arith.extui %0 : i1 to i32
    %c0_i32_0 = arith.constant 0 : i32
    %2 = arith.cmpi ne, %1, %c0_i32_0 : i32
    scf.if %2 {
      %cst = arith.constant 0.000000e+00 : f32
      %12 = vector.broadcast %cst : f32 to vector<2x12x16xf32>
      %cst_6 = arith.constant 0.000000e+00 : f32
      %13 = vector.broadcast %cst_6 : f32 to vector<8x2x16xf32>
      %c0 = arith.constant 0 : index
      %c0_7 = arith.constant 0 : index
      %c0_8 = arith.constant 0 : index
      %14 = vector.load %arg11[%c0, %c0_7, %c0_8] : memref<12x12x16xf32, #tpu.memory_space<vmem>>, vector<2x12x16xf32>
      tpu.vector_store %arg11[%c0, %c0_7, %c0_8], %12 {strides = array<i32>} : memref<12x12x16xf32, #tpu.memory_space<vmem>>, vector<2x12x16xf32>,
      %c10 = arith.constant 10 : index
      %c0_9 = arith.constant 0 : index
      %c0_10 = arith.constant 0 : index
      %15 = vector.load %arg11[%c10, %c0_9, %c0_10] : memref<12x12x16xf32, #tpu.memory_space<vmem>>, vector<2x12x16xf32>
      tpu.vector_store %arg11[%c10, %c0_9, %c0_10], %12 {strides = array<i32>} : memref<12x12x16xf32, #tpu.memory_space<vmem>>, vector<2x12x16xf32>,
      %c2 = arith.constant 2 : index
      %c0_11 = arith.constant 0 : index
      %c0_12 = arith.constant 0 : index
      %16 = vector.load %arg11[%c2, %c0_11, %c0_12] : memref<12x12x16xf32, #tpu.memory_space<vmem>>, vector<8x2x16xf32>
      tpu.vector_store %arg11[%c2, %c0_11, %c0_12], %13 {strides = array<i32>} : memref<12x12x16xf32, #tpu.memory_space<vmem>>, vector<8x2x16xf32>,
      %c2_13 = arith.constant 2 : index
      %c10_14 = arith.constant 10 : index
      %c0_15 = arith.constant 0 : index
      %17 = vector.load %arg11[%c2_13, %c10_14, %c0_15] : memref<12x12x16xf32, #tpu.memory_space<vmem>>, vector<8x2x16xf32>
      tpu.vector_store %arg11[%c2_13, %c10_14, %c0_15], %13 {strides = array<i32>} : memref<12x12x16xf32, #tpu.memory_space<vmem>>, vector<8x2x16xf32>,
      %c0_16 = arith.constant 0 : index
      %c0_17 = arith.constant 0 : index
      %c0_18 = arith.constant 0 : index
      %18 = vector.load %arg2[%c0_16, %c0_17, %c0_18] : memref<1x64x32xbf16, #tpu.memory_space<vmem>>, vector<1x64x32xbf16>
      %19 = vector.shape_cast %18 : vector<1x64x32xbf16> to vector<64x32xbf16>
      %c0_19 = arith.constant 0 : index
      %c0_20 = arith.constant 0 : index
      %20 = vector.load %arg3[%c0_19, %c0_20] : memref<32x16xbf16, #tpu.memory_space<vmem>>, vector<32x16xbf16>
      %cst_21 = arith.constant dense<0.000000e+00> : vector<64x16xf32>
      %21 = tpu.matmul %19, %20, %cst_21 {dimension_numbers = #tpu.dot_dimension_numbers<[1], [0], [0], [1], [0, 0, 1, 1], [], []>} : vector<64x32xbf16>, vector<32x16xbf16>, vector<64x16xf32> -> vector<64x16xf32>
      %c0_22 = arith.constant 0 : index
      %c0_23 = arith.constant 0 : index
      %22 = vector.load %arg4[%c0_22, %c0_23] : memref<1x16xf32, #tpu.memory_space<vmem>>, vector<1x16xf32>
      %23 = vector.broadcast %22 : vector<1x16xf32> to vector<64x16xf32>
      %24 = arith.addf %21, %23 : vector<64x16xf32>
      %25 = vector.shape_cast %24 : vector<64x16xf32> to vector<8x8x16xf32>
      %c2_24 = arith.constant 2 : index
      %c2_25 = arith.constant 2 : index
      %c0_26 = arith.constant 0 : index
      %26 = vector.load %arg11[%c2_24, %c2_25, %c0_26] : memref<12x12x16xf32, #tpu.memory_space<vmem>>, vector<8x8x16xf32>
      tpu.vector_store %arg11[%c2_24, %c2_25, %c0_26], %25 {strides = array<i32>} : memref<12x12x16xf32, #tpu.memory_space<vmem>>, vector<8x8x16xf32>,
    } else {
    }
    %c0_i32_1 = arith.constant 0 : i32
    %3 = arith.cmpi eq, %arg1, %c0_i32_1 : i32
    %4 = arith.extui %3 : i1 to i32
    %c0_i32_2 = arith.constant 0 : i32
    %5 = arith.cmpi ne, %4, %c0_i32_2 : i32
    scf.if %5 {
      %c0 = arith.constant 0 : index
      %c1 = arith.constant 1 : index
      %c0_6 = arith.constant 0 : index
      %12 = vector.load %arg11[%c0, %c1, %c0_6] : memref<12x12x16xf32, #tpu.memory_space<vmem>>, vector<12x8x16xf32>
      %13 = vector.shape_cast %12 : vector<12x8x16xf32> to vector<96x16xf32>
      %14 = arith.truncf %13 : vector<96x16xf32> to vector<96x16xbf16>
      %c0_7 = arith.constant 0 : index
      %c0_8 = arith.constant 0 : index
      %15 = vector.load %arg12[%c0_7, %c0_8] : memref<96x80xbf16, #tpu.memory_space<vmem>>, vector<96x16xbf16>
      tpu.vector_store %arg12[%c0_7, %c0_8], %14 {strides = array<i32>} : memref<96x80xbf16, #tpu.memory_space<vmem>>, vector<96x16xbf16>,
      %c0_9 = arith.constant 0 : index
      %c2 = arith.constant 2 : index
      %c0_10 = arith.constant 0 : index
      %16 = vector.load %arg11[%c0_9, %c2, %c0_10] : memref<12x12x16xf32, #tpu.memory_space<vmem>>, vector<12x8x16xf32>
      %17 = vector.shape_cast %16 : vector<12x8x16xf32> to vector<96x16xf32>
      %18 = arith.truncf %17 : vector<96x16xf32> to vector<96x16xbf16>
      %c0_11 = arith.constant 0 : index
      %c16 = arith.constant 16 : index
      %19 = vector.load %arg12[%c0_11, %c16] : memref<96x80xbf16, #tpu.memory_space<vmem>>, vector<96x16xbf16>
      tpu.vector_store %arg12[%c0_11, %c16], %18 {strides = array<i32>} : memref<96x80xbf16, #tpu.memory_space<vmem>>, vector<96x16xbf16>,
      %c0_12 = arith.constant 0 : index
      %c3 = arith.constant 3 : index
      %c0_13 = arith.constant 0 : index
      %20 = vector.load %arg11[%c0_12, %c3, %c0_13] : memref<12x12x16xf32, #tpu.memory_space<vmem>>, vector<12x8x16xf32>
      %21 = vector.shape_cast %20 : vector<12x8x16xf32> to vector<96x16xf32>
      %22 = arith.truncf %21 : vector<96x16xf32> to vector<96x16xbf16>
      %c0_14 = arith.constant 0 : index
      %c32 = arith.constant 32 : index
      %23 = vector.load %arg12[%c0_14, %c32] : memref<96x80xbf16, #tpu.memory_space<vmem>>, vector<96x16xbf16>
      tpu.vector_store %arg12[%c0_14, %c32], %22 {strides = array<i32>} : memref<96x80xbf16, #tpu.memory_space<vmem>>, vector<96x16xbf16>,
      %cst = arith.constant 0.000000e+00 : f32
      %24 = vector.broadcast %cst : f32 to vector<64x32xf32>
      %c8 = arith.constant 8 : index
      %c0_15 = arith.constant 0 : index
      %25 = vector.load %arg12[%c8, %c0_15] : memref<96x80xbf16, #tpu.memory_space<vmem>>, vector<64x48xbf16>
      %c0_16 = arith.constant 0 : index
      %c0_17 = arith.constant 0 : index
      %c0_18 = arith.constant 0 : index
      %c0_19 = arith.constant 0 : index
      %26 = vector.load %arg6[%c0_16, %c0_17, %c0_18, %c0_19] : memref<1x5x80x32xbf16, #tpu.memory_space<vmem>>, vector<1x1x48x32xbf16>
      %27 = vector.shape_cast %26 : vector<1x1x48x32xbf16> to vector<48x32xbf16>
      %cst_20 = arith.constant dense<0.000000e+00> : vector<64x32xf32>
      %28 = tpu.matmul %25, %27, %cst_20 {dimension_numbers = #tpu.dot_dimension_numbers<[1], [0], [0], [1], [0, 0, 1, 1], [], []>} : vector<64x48xbf16>, vector<48x32xbf16>, vector<64x32xf32> -> vector<64x32xf32>
      %29 = arith.addf %24, %28 : vector<64x32xf32>
      %c16_21 = arith.constant 16 : index
      %c0_22 = arith.constant 0 : index
      %30 = vector.load %arg12[%c16_21, %c0_22] : memref<96x80xbf16, #tpu.memory_space<vmem>>, vector<64x48xbf16>
      %c0_23 = arith.constant 0 : index
      %c1_24 = arith.constant 1 : index
      %c0_25 = arith.constant 0 : index
      %c0_26 = arith.constant 0 : index
      %31 = vector.load %arg6[%c0_23, %c1_24, %c0_25, %c0_26] : memref<1x5x80x32xbf16, #tpu.memory_space<vmem>>, vector<1x1x48x32xbf16>
      %32 = vector.shape_cast %31 : vector<1x1x48x32xbf16> to vector<48x32xbf16>
      %cst_27 = arith.constant dense<0.000000e+00> : vector<64x32xf32>
      %33 = tpu.matmul %30, %32, %cst_27 {dimension_numbers = #tpu.dot_dimension_numbers<[1], [0], [0], [1], [0, 0, 1, 1], [], []>} : vector<64x48xbf16>, vector<48x32xbf16>, vector<64x32xf32> -> vector<64x32xf32>
      %34 = arith.addf %29, %33 : vector<64x32xf32>
      %c24 = arith.constant 24 : index
      %c0_28 = arith.constant 0 : index
      %35 = vector.load %arg12[%c24, %c0_28] : memref<96x80xbf16, #tpu.memory_space<vmem>>, vector<64x48xbf16>
      %c0_29 = arith.constant 0 : index
      %c2_30 = arith.constant 2 : index
      %c0_31 = arith.constant 0 : index
      %c0_32 = arith.constant 0 : index
      %36 = vector.load %arg6[%c0_29, %c2_30, %c0_31, %c0_32] : memref<1x5x80x32xbf16, #tpu.memory_space<vmem>>, vector<1x1x48x32xbf16>
      %37 = vector.shape_cast %36 : vector<1x1x48x32xbf16> to vector<48x32xbf16>
      %cst_33 = arith.constant dense<0.000000e+00> : vector<64x32xf32>
      %38 = tpu.matmul %35, %37, %cst_33 {dimension_numbers = #tpu.dot_dimension_numbers<[1], [0], [0], [1], [0, 0, 1, 1], [], []>} : vector<64x48xbf16>, vector<48x32xbf16>, vector<64x32xf32> -> vector<64x32xf32>
      %39 = arith.addf %34, %38 : vector<64x32xf32>
      %c0_34 = arith.constant 0 : index
      %c0_35 = arith.constant 0 : index
      %c0_36 = arith.constant 0 : index
      %40 = vector.load %arg7[%c0_34, %c0_35, %c0_36] : memref<1x1x32xf32, #tpu.memory_space<vmem>>, vector<1x1x32xf32>
      %41 = vector.shape_cast %40 : vector<1x1x32xf32> to vector<1x32xf32>
      %42 = vector.broadcast %41 : vector<1x32xf32> to vector<64x32xf32>
      %43 = arith.addf %39, %42 : vector<64x32xf32>
      %cst_37 = arith.constant dense<0.000000e+00> : vector<32xf32>
      %44 = vector.multi_reduction <add>, %43, %cst_37 [0] : vector<64x32xf32> to vector<32xf32>
      %45 = vector.shape_cast %44 : vector<32xf32> to vector<1x32xf32>
      %46 = arith.mulf %43, %43 : vector<64x32xf32>
      %cst_38 = arith.constant dense<0.000000e+00> : vector<32xf32>
      %47 = vector.multi_reduction <add>, %46, %cst_38 [0] : vector<64x32xf32> to vector<32xf32>
      %48 = vector.shape_cast %47 : vector<32xf32> to vector<1x32xf32>
      %49 = tpu.concatenate %45, %48 in 0 : vector<1x32xf32>, vector<1x32xf32> -> vector<2x32xf32>
      %c0_39 = arith.constant 0 : index
      %c0_40 = arith.constant 0 : index
      %50 = vector.load %arg5[%c0_39, %c0_40] : memref<32x32xf32, #tpu.memory_space<vmem>>, vector<32x32xf32>
      %cst_41 = arith.constant dense<0.000000e+00> : vector<2x32xf32>
      %51 = tpu.matmul %49, %50, %cst_41 {dimension_numbers = #tpu.dot_dimension_numbers<[1], [0], [0], [1], [0, 0, 1, 1], [], []>} : vector<2x32xf32>, vector<32x32xf32>, vector<2x32xf32> -> vector<2x32xf32>
      %cst_42 = arith.constant 0.001953125 : f32
      %52 = vector.broadcast %cst_42 : f32 to vector<2x32xf32>
      %53 = arith.mulf %51, %52 : vector<2x32xf32>
      %54 = vector.extract_strided_slice %53 {offsets = [0, 0], sizes = [1, 32], strides = [1, 1]} : vector<2x32xf32> to vector<1x32xf32>
      %55 = vector.extract_strided_slice %53 {offsets = [1, 0], sizes = [1, 32], strides = [1, 1]} : vector<2x32xf32> to vector<1x32xf32>
      %56 = arith.mulf %54, %54 : vector<1x32xf32>
      %57 = arith.subf %55, %56 : vector<1x32xf32>
      %cst_43 = arith.constant 0.000000e+00 : f32
      %58 = vector.broadcast %cst_43 : f32 to vector<1x32xf32>
      %59 = arith.maximumf %57, %58 : vector<1x32xf32>
      %60 = vector.broadcast %54 : vector<1x32xf32> to vector<64x32xf32>
      %61 = arith.subf %43, %60 : vector<64x32xf32>
      %cst_44 = arith.constant 9.99999974E-6 : f32
      %62 = vector.broadcast %cst_44 : f32 to vector<1x32xf32>
      %63 = arith.addf %59, %62 : vector<1x32xf32>
      %64 = math.rsqrt %63 : vector<1x32xf32>
      %65 = vector.broadcast %64 : vector<1x32xf32> to vector<64x32xf32>
      %66 = arith.mulf %61, %65 : vector<64x32xf32>
      %c0_45 = arith.constant 0 : index
      %c0_46 = arith.constant 0 : index
      %c0_47 = arith.constant 0 : index
      %67 = vector.load %arg8[%c0_45, %c0_46, %c0_47] : memref<1x1x32xf32, #tpu.memory_space<vmem>>, vector<1x1x32xf32>
      %68 = vector.shape_cast %67 : vector<1x1x32xf32> to vector<1x32xf32>
      %69 = vector.broadcast %68 : vector<1x32xf32> to vector<64x32xf32>
      %70 = arith.mulf %66, %69 : vector<64x32xf32>
      %c0_48 = arith.constant 0 : index
      %c0_49 = arith.constant 0 : index
      %c0_50 = arith.constant 0 : index
      %71 = vector.load %arg9[%c0_48, %c0_49, %c0_50] : memref<1x1x32xf32, #tpu.memory_space<vmem>>, vector<1x1x32xf32>
      %72 = vector.shape_cast %71 : vector<1x1x32xf32> to vector<1x32xf32>
      %73 = vector.broadcast %72 : vector<1x32xf32> to vector<64x32xf32>
      %74 = arith.addf %70, %73 : vector<64x32xf32>
      %cst_51 = arith.constant 0.000000e+00 : f32
      %75 = vector.broadcast %cst_51 : f32 to vector<64x32xf32>
      %76 = arith.cmpf oge, %74, %75 : vector<64x32xf32>
      %cst_52 = arith.constant 2.000000e-01 : f32
      %77 = vector.broadcast %cst_52 : f32 to vector<64x32xf32>
      %78 = arith.mulf %77, %74 : vector<64x32xf32>
      %79 = arith.select %76, %74, %78 : vector<64x32xi1>, vector<64x32xf32>
      %c0_53 = arith.constant 0 : index
      %c0_54 = arith.constant 0 : index
      %80 = vector.load %arg13[%c0_53, %c0_54] : memref<64x32xf32, #tpu.memory_space<vmem>>, vector<64x32xf32>
      tpu.vector_store %arg13[%c0_53, %c0_54], %79 {strides = array<i32>} : memref<64x32xf32, #tpu.memory_space<vmem>>, vector<64x32xf32>,
    } else {
    }
    %c1_i32 = arith.constant 1 : i32
    %6 = arith.cmpi eq, %arg1, %c1_i32 : i32
    %7 = arith.extui %6 : i1 to i32
    %c0_i32_3 = arith.constant 0 : i32
    %8 = arith.cmpi ne, %7, %c0_i32_3 : i32
    scf.if %8 {
      %c0 = arith.constant 0 : index
      %c0_6 = arith.constant 0 : index
      %c0_7 = arith.constant 0 : index
      %12 = vector.load %arg11[%c0, %c0_6, %c0_7] : memref<12x12x16xf32, #tpu.memory_space<vmem>>, vector<12x8x16xf32>
      %13 = vector.shape_cast %12 : vector<12x8x16xf32> to vector<96x16xf32>
      %14 = arith.truncf %13 : vector<96x16xf32> to vector<96x16xbf16>
      %c0_8 = arith.constant 0 : index
      %c0_9 = arith.constant 0 : index
      %15 = vector.load %arg12[%c0_8, %c0_9] : memref<96x80xbf16, #tpu.memory_space<vmem>>, vector<96x16xbf16>
      tpu.vector_store %arg12[%c0_8, %c0_9], %14 {strides = array<i32>} : memref<96x80xbf16, #tpu.memory_space<vmem>>, vector<96x16xbf16>,
      %c0_10 = arith.constant 0 : index
      %c1 = arith.constant 1 : index
      %c0_11 = arith.constant 0 : index
      %16 = vector.load %arg11[%c0_10, %c1, %c0_11] : memref<12x12x16xf32, #tpu.memory_space<vmem>>, vector<12x8x16xf32>
      %17 = vector.shape_cast %16 : vector<12x8x16xf32> to vector<96x16xf32>
      %18 = arith.truncf %17 : vector<96x16xf32> to vector<96x16xbf16>
      %c0_12 = arith.constant 0 : index
      %c16 = arith.constant 16 : index
      %19 = vector.load %arg12[%c0_12, %c16] : memref<96x80xbf16, #tpu.memory_space<vmem>>, vector<96x16xbf16>
      tpu.vector_store %arg12[%c0_12, %c16], %18 {strides = array<i32>} : memref<96x80xbf16, #tpu.memory_space<vmem>>, vector<96x16xbf16>,
      %c0_13 = arith.constant 0 : index
      %c2 = arith.constant 2 : index
      %c0_14 = arith.constant 0 : index
      %20 = vector.load %arg11[%c0_13, %c2, %c0_14] : memref<12x12x16xf32, #tpu.memory_space<vmem>>, vector<12x8x16xf32>
      %21 = vector.shape_cast %20 : vector<12x8x16xf32> to vector<96x16xf32>
      %22 = arith.truncf %21 : vector<96x16xf32> to vector<96x16xbf16>
      %c0_15 = arith.constant 0 : index
      %c32 = arith.constant 32 : index
      %23 = vector.load %arg12[%c0_15, %c32] : memref<96x80xbf16, #tpu.memory_space<vmem>>, vector<96x16xbf16>
      tpu.vector_store %arg12[%c0_15, %c32], %22 {strides = array<i32>} : memref<96x80xbf16, #tpu.memory_space<vmem>>, vector<96x16xbf16>,
      %c0_16 = arith.constant 0 : index
      %c3 = arith.constant 3 : index
      %c0_17 = arith.constant 0 : index
      %24 = vector.load %arg11[%c0_16, %c3, %c0_17] : memref<12x12x16xf32, #tpu.memory_space<vmem>>, vector<12x8x16xf32>
      %25 = vector.shape_cast %24 : vector<12x8x16xf32> to vector<96x16xf32>
      %26 = arith.truncf %25 : vector<96x16xf32> to vector<96x16xbf16>
      %c0_18 = arith.constant 0 : index
      %c48 = arith.constant 48 : index
      %27 = vector.load %arg12[%c0_18, %c48] : memref<96x80xbf16, #tpu.memory_space<vmem>>, vector<96x16xbf16>
      tpu.vector_store %arg12[%c0_18, %c48], %26 {strides = array<i32>} : memref<96x80xbf16, #tpu.memory_space<vmem>>, vector<96x16xbf16>,
      %c0_19 = arith.constant 0 : index
      %c4 = arith.constant 4 : index
      %c0_20 = arith.constant 0 : index
      %28 = vector.load %arg11[%c0_19, %c4, %c0_20] : memref<12x12x16xf32, #tpu.memory_space<vmem>>, vector<12x8x16xf32>
      %29 = vector.shape_cast %28 : vector<12x8x16xf32> to vector<96x16xf32>
      %30 = arith.truncf %29 : vector<96x16xf32> to vector<96x16xbf16>
      %c0_21 = arith.constant 0 : index
      %c64 = arith.constant 64 : index
      %31 = vector.load %arg12[%c0_21, %c64] : memref<96x80xbf16, #tpu.memory_space<vmem>>, vector<96x16xbf16>
      tpu.vector_store %arg12[%c0_21, %c64], %30 {strides = array<i32>} : memref<96x80xbf16, #tpu.memory_space<vmem>>, vector<96x16xbf16>,
      %cst = arith.constant 0.000000e+00 : f32
      %32 = vector.broadcast %cst : f32 to vector<64x32xf32>
      %c0_22 = arith.constant 0 : index
      %c0_23 = arith.constant 0 : index
      %33 = vector.load %arg12[%c0_22, %c0_23] : memref<96x80xbf16, #tpu.memory_space<vmem>>, vector<64x80xbf16>
      %c0_24 = arith.constant 0 : index
      %c0_25 = arith.constant 0 : index
      %c0_26 = arith.constant 0 : index
      %c0_27 = arith.constant 0 : index
      %34 = vector.load %arg6[%c0_24, %c0_25, %c0_26, %c0_27] : memref<1x5x80x32xbf16, #tpu.memory_space<vmem>>, vector<1x1x80x32xbf16>
      %35 = vector.shape_cast %34 : vector<1x1x80x32xbf16> to vector<80x32xbf16>
      %cst_28 = arith.constant dense<0.000000e+00> : vector<64x32xf32>
      %36 = tpu.matmul %33, %35, %cst_28 {dimension_numbers = #tpu.dot_dimension_numbers<[1], [0], [0], [1], [0, 0, 1, 1], [], []>} : vector<64x80xbf16>, vector<80x32xbf16>, vector<64x32xf32> -> vector<64x32xf32>
      %37 = arith.addf %32, %36 : vector<64x32xf32>
      %c8 = arith.constant 8 : index
      %c0_29 = arith.constant 0 : index
      %38 = vector.load %arg12[%c8, %c0_29] : memref<96x80xbf16, #tpu.memory_space<vmem>>, vector<64x80xbf16>
      %c0_30 = arith.constant 0 : index
      %c1_31 = arith.constant 1 : index
      %c0_32 = arith.constant 0 : index
      %c0_33 = arith.constant 0 : index
      %39 = vector.load %arg6[%c0_30, %c1_31, %c0_32, %c0_33] : memref<1x5x80x32xbf16, #tpu.memory_space<vmem>>, vector<1x1x80x32xbf16>
      %40 = vector.shape_cast %39 : vector<1x1x80x32xbf16> to vector<80x32xbf16>
      %cst_34 = arith.constant dense<0.000000e+00> : vector<64x32xf32>
      %41 = tpu.matmul %38, %40, %cst_34 {dimension_numbers = #tpu.dot_dimension_numbers<[1], [0], [0], [1], [0, 0, 1, 1], [], []>} : vector<64x80xbf16>, vector<80x32xbf16>, vector<64x32xf32> -> vector<64x32xf32>
      %42 = arith.addf %37, %41 : vector<64x32xf32>
      %c16_35 = arith.constant 16 : index
      %c0_36 = arith.constant 0 : index
      %43 = vector.load %arg12[%c16_35, %c0_36] : memref<96x80xbf16, #tpu.memory_space<vmem>>, vector<64x80xbf16>
      %c0_37 = arith.constant 0 : index
      %c2_38 = arith.constant 2 : index
      %c0_39 = arith.constant 0 : index
      %c0_40 = arith.constant 0 : index
      %44 = vector.load %arg6[%c0_37, %c2_38, %c0_39, %c0_40] : memref<1x5x80x32xbf16, #tpu.memory_space<vmem>>, vector<1x1x80x32xbf16>
      %45 = vector.shape_cast %44 : vector<1x1x80x32xbf16> to vector<80x32xbf16>
      %cst_41 = arith.constant dense<0.000000e+00> : vector<64x32xf32>
      %46 = tpu.matmul %43, %45, %cst_41 {dimension_numbers = #tpu.dot_dimension_numbers<[1], [0], [0], [1], [0, 0, 1, 1], [], []>} : vector<64x80xbf16>, vector<80x32xbf16>, vector<64x32xf32> -> vector<64x32xf32>
      %47 = arith.addf %42, %46 : vector<64x32xf32>
      %c24 = arith.constant 24 : index
      %c0_42 = arith.constant 0 : index
      %48 = vector.load %arg12[%c24, %c0_42] : memref<96x80xbf16, #tpu.memory_space<vmem>>, vector<64x80xbf16>
      %c0_43 = arith.constant 0 : index
      %c3_44 = arith.constant 3 : index
      %c0_45 = arith.constant 0 : index
      %c0_46 = arith.constant 0 : index
      %49 = vector.load %arg6[%c0_43, %c3_44, %c0_45, %c0_46] : memref<1x5x80x32xbf16, #tpu.memory_space<vmem>>, vector<1x1x80x32xbf16>
      %50 = vector.shape_cast %49 : vector<1x1x80x32xbf16> to vector<80x32xbf16>
      %cst_47 = arith.constant dense<0.000000e+00> : vector<64x32xf32>
      %51 = tpu.matmul %48, %50, %cst_47 {dimension_numbers = #tpu.dot_dimension_numbers<[1], [0], [0], [1], [0, 0, 1, 1], [], []>} : vector<64x80xbf16>, vector<80x32xbf16>, vector<64x32xf32> -> vector<64x32xf32>
      %52 = arith.addf %47, %51 : vector<64x32xf32>
      %c32_48 = arith.constant 32 : index
      %c0_49 = arith.constant 0 : index
      %53 = vector.load %arg12[%c32_48, %c0_49] : memref<96x80xbf16, #tpu.memory_space<vmem>>, vector<64x80xbf16>
      %c0_50 = arith.constant 0 : index
      %c4_51 = arith.constant 4 : index
      %c0_52 = arith.constant 0 : index
      %c0_53 = arith.constant 0 : index
      %54 = vector.load %arg6[%c0_50, %c4_51, %c0_52, %c0_53] : memref<1x5x80x32xbf16, #tpu.memory_space<vmem>>, vector<1x1x80x32xbf16>
      %55 = vector.shape_cast %54 : vector<1x1x80x32xbf16> to vector<80x32xbf16>
      %cst_54 = arith.constant dense<0.000000e+00> : vector<64x32xf32>
      %56 = tpu.matmul %53, %55, %cst_54 {dimension_numbers = #tpu.dot_dimension_numbers<[1], [0], [0], [1], [0, 0, 1, 1], [], []>} : vector<64x80xbf16>, vector<80x32xbf16>, vector<64x32xf32> -> vector<64x32xf32>
      %57 = arith.addf %52, %56 : vector<64x32xf32>
      %c0_55 = arith.constant 0 : index
      %c0_56 = arith.constant 0 : index
      %c0_57 = arith.constant 0 : index
      %58 = vector.load %arg7[%c0_55, %c0_56, %c0_57] : memref<1x1x32xf32, #tpu.memory_space<vmem>>, vector<1x1x32xf32>
      %59 = vector.shape_cast %58 : vector<1x1x32xf32> to vector<1x32xf32>
      %60 = vector.broadcast %59 : vector<1x32xf32> to vector<64x32xf32>
      %61 = arith.addf %57, %60 : vector<64x32xf32>
      %cst_58 = arith.constant dense<0.000000e+00> : vector<32xf32>
      %62 = vector.multi_reduction <add>, %61, %cst_58 [0] : vector<64x32xf32> to vector<32xf32>
      %63 = vector.shape_cast %62 : vector<32xf32> to vector<1x32xf32>
      %64 = arith.mulf %61, %61 : vector<64x32xf32>
      %cst_59 = arith.constant dense<0.000000e+00> : vector<32xf32>
      %65 = vector.multi_reduction <add>, %64, %cst_59 [0] : vector<64x32xf32> to vector<32xf32>
      %66 = vector.shape_cast %65 : vector<32xf32> to vector<1x32xf32>
      %67 = tpu.concatenate %63, %66 in 0 : vector<1x32xf32>, vector<1x32xf32> -> vector<2x32xf32>
      %c0_60 = arith.constant 0 : index
      %c0_61 = arith.constant 0 : index
      %68 = vector.load %arg5[%c0_60, %c0_61] : memref<32x32xf32, #tpu.memory_space<vmem>>, vector<32x32xf32>
      %cst_62 = arith.constant dense<0.000000e+00> : vector<2x32xf32>
      %69 = tpu.matmul %67, %68, %cst_62 {dimension_numbers = #tpu.dot_dimension_numbers<[1], [0], [0], [1], [0, 0, 1, 1], [], []>} : vector<2x32xf32>, vector<32x32xf32>, vector<2x32xf32> -> vector<2x32xf32>
      %cst_63 = arith.constant 0.001953125 : f32
      %70 = vector.broadcast %cst_63 : f32 to vector<2x32xf32>
      %71 = arith.mulf %69, %70 : vector<2x32xf32>
      %72 = vector.extract_strided_slice %71 {offsets = [0, 0], sizes = [1, 32], strides = [1, 1]} : vector<2x32xf32> to vector<1x32xf32>
      %73 = vector.extract_strided_slice %71 {offsets = [1, 0], sizes = [1, 32], strides = [1, 1]} : vector<2x32xf32> to vector<1x32xf32>
      %74 = arith.mulf %72, %72 : vector<1x32xf32>
      %75 = arith.subf %73, %74 : vector<1x32xf32>
      %cst_64 = arith.constant 0.000000e+00 : f32
      %76 = vector.broadcast %cst_64 : f32 to vector<1x32xf32>
      %77 = arith.maximumf %75, %76 : vector<1x32xf32>
      %78 = vector.broadcast %72 : vector<1x32xf32> to vector<64x32xf32>
      %79 = arith.subf %61, %78 : vector<64x32xf32>
      %cst_65 = arith.constant 9.99999974E-6 : f32
      %80 = vector.broadcast %cst_65 : f32 to vector<1x32xf32>
      %81 = arith.addf %77, %80 : vector<1x32xf32>
      %82 = math.rsqrt %81 : vector<1x32xf32>
      %83 = vector.broadcast %82 : vector<1x32xf32> to vector<64x32xf32>
      %84 = arith.mulf %79, %83 : vector<64x32xf32>
      %c0_66 = arith.constant 0 : index
      %c0_67 = arith.constant 0 : index
      %c0_68 = arith.constant 0 : index
      %85 = vector.load %arg8[%c0_66, %c0_67, %c0_68] : memref<1x1x32xf32, #tpu.memory_space<vmem>>, vector<1x1x32xf32>
      %86 = vector.shape_cast %85 : vector<1x1x32xf32> to vector<1x32xf32>
      %87 = vector.broadcast %86 : vector<1x32xf32> to vector<64x32xf32>
      %88 = arith.mulf %84, %87 : vector<64x32xf32>
      %c0_69 = arith.constant 0 : index
      %c0_70 = arith.constant 0 : index
      %c0_71 = arith.constant 0 : index
      %89 = vector.load %arg9[%c0_69, %c0_70, %c0_71] : memref<1x1x32xf32, #tpu.memory_space<vmem>>, vector<1x1x32xf32>
      %90 = vector.shape_cast %89 : vector<1x1x32xf32> to vector<1x32xf32>
      %91 = vector.broadcast %90 : vector<1x32xf32> to vector<64x32xf32>
      %92 = arith.addf %88, %91 : vector<64x32xf32>
      %cst_72 = arith.constant 0.000000e+00 : f32
      %93 = vector.broadcast %cst_72 : f32 to vector<64x32xf32>
      %94 = arith.cmpf oge, %92, %93 : vector<64x32xf32>
      %cst_73 = arith.constant 2.000000e-01 : f32
      %95 = vector.broadcast %cst_73 : f32 to vector<64x32xf32>
      %96 = arith.mulf %95, %92 : vector<64x32xf32>
      %97 = arith.select %94, %92, %96 : vector<64x32xi1>, vector<64x32xf32>
      %c0_74 = arith.constant 0 : index
      %c0_75 = arith.constant 0 : index
      %98 = vector.load %arg13[%c0_74, %c0_75] : memref<64x32xf32, #tpu.memory_space<vmem>>, vector<64x32xf32>
      %99 = arith.addf %98, %97 : vector<64x32xf32>
      %c0_76 = arith.constant 0 : index
      %c0_77 = arith.constant 0 : index
      %100 = vector.load %arg13[%c0_76, %c0_77] : memref<64x32xf32, #tpu.memory_space<vmem>>, vector<64x32xf32>
      tpu.vector_store %arg13[%c0_76, %c0_77], %99 {strides = array<i32>} : memref<64x32xf32, #tpu.memory_space<vmem>>, vector<64x32xf32>,
    } else {
    }
    %c1_i32_4 = arith.constant 1 : i32
    %9 = arith.cmpi eq, %arg1, %c1_i32_4 : i32
    %10 = arith.extui %9 : i1 to i32
    %c0_i32_5 = arith.constant 0 : i32
    %11 = arith.cmpi ne, %10, %c0_i32_5 : i32
    scf.if %11 {
      %c0 = arith.constant 0 : index
      %c0_6 = arith.constant 0 : index
      %12 = vector.load %arg13[%c0, %c0_6] : memref<64x32xf32, #tpu.memory_space<vmem>>, vector<64x32xf32>
      %13 = vector.shape_cast %12 : vector<64x32xf32> to vector<1x64x32xf32>
      %14 = arith.truncf %13 : vector<1x64x32xf32> to vector<1x64x32xbf16>
      %c0_7 = arith.constant 0 : index
      %c0_8 = arith.constant 0 : index
      %c0_9 = arith.constant 0 : index
      %15 = vector.load %arg10[%c0_7, %c0_8, %c0_9] : memref<1x64x32xbf16, #tpu.memory_space<vmem>>, vector<1x64x32xbf16>
      tpu.vector_store %arg10[%c0_7, %c0_8, %c0_9], %14 {strides = array<i32>} : memref<1x64x32xbf16, #tpu.memory_space<vmem>>, vector<1x64x32xbf16>,
    } else {
    }
    return
  }
  func.func @transform_0(%arg0: i32, %arg1: i32) -> (i32, i32, i32) {
    %c0_i32 = arith.constant 0 : i32
    %c0_i32_0 = arith.constant 0 : i32
    %c0_i32_1 = arith.constant 0 : i32
    return %arg0, %c0_i32, %c0_i32_0 : i32, i32, i32
  }
  func.func @transform_1(%arg0: i32, %arg1: i32) -> (i32, i32) {
    %c0_i32 = arith.constant 0 : i32
    %c0_i32_0 = arith.constant 0 : i32
    %c0_i32_1 = arith.constant 0 : i32
    return %c0_i32, %c0_i32_0 : i32, i32
  }
  func.func @transform_2(%arg0: i32, %arg1: i32) -> (i32, i32) {
    %c0_i32 = arith.constant 0 : i32
    %c0_i32_0 = arith.constant 0 : i32
    %c0_i32_1 = arith.constant 0 : i32
    return %c0_i32, %c0_i32_0 : i32, i32
  }
  func.func @transform_3(%arg0: i32, %arg1: i32) -> (i32, i32) {
    %c0_i32 = arith.constant 0 : i32
    %c0_i32_0 = arith.constant 0 : i32
    %c0_i32_1 = arith.constant 0 : i32
    return %c0_i32, %c0_i32_0 : i32, i32
  }
  func.func @transform_4(%arg0: i32, %arg1: i32) -> (i32, i32, i32, i32) {
    %c0_i32 = arith.constant 0 : i32
    %c0_i32_0 = arith.constant 0 : i32
    %c0_i32_1 = arith.constant 0 : i32
    %c0_i32_2 = arith.constant 0 : i32
    return %arg1, %c0_i32, %c0_i32_0, %c0_i32_1 : i32, i32, i32, i32
  }
  func.func @transform_5(%arg0: i32, %arg1: i32) -> (i32, i32, i32) {
    %c0_i32 = arith.constant 0 : i32
    %c0_i32_0 = arith.constant 0 : i32
    %c0_i32_1 = arith.constant 0 : i32
    return %arg1, %c0_i32, %c0_i32_0 : i32, i32, i32
  }
  func.func @transform_6(%arg0: i32, %arg1: i32) -> (i32, i32, i32) {
    %c0_i32 = arith.constant 0 : i32
    %c0_i32_0 = arith.constant 0 : i32
    %c0_i32_1 = arith.constant 0 : i32
    return %arg1, %c0_i32, %c0_i32_0 : i32, i32, i32
  }
  func.func @transform_7(%arg0: i32, %arg1: i32) -> (i32, i32, i32) {
    %c0_i32 = arith.constant 0 : i32
    %c0_i32_0 = arith.constant 0 : i32
    %c0_i32_1 = arith.constant 0 : i32
    return %arg1, %c0_i32, %c0_i32_0 : i32, i32, i32
  }
  func.func @transform_8(%arg0: i32, %arg1: i32) -> (i32, i32, i32) {
    %c0_i32 = arith.constant 0 : i32
    %c0_i32_0 = arith.constant 0 : i32
    %c0_i32_1 = arith.constant 0 : i32
    return %arg0, %c0_i32, %c0_i32_0 : i32, i32, i32
  }
}

module attributes {stable_mosaic.version = 11 : i64} {
  func.func @kernel(%arg0: i32, %arg1: i32, %arg2: memref<1x64x32xbf16, #tpu.memory_space<vmem>>, %arg3: memref<1x64x32xbf16, #tpu.memory_space<vmem>>, %arg4: memref<32x16xbf16, #tpu.memory_space<vmem>>, %arg5: memref<32x16xbf16, #tpu.memory_space<vmem>>, %arg6: memref<1x16xf32, #tpu.memory_space<vmem>>, %arg7: memref<8x8xf32, #tpu.memory_space<vmem>>, %arg8: memref<1x5x80x8xbf16, #tpu.memory_space<vmem>>, %arg9: memref<1x1x8xf32, #tpu.memory_space<vmem>>, %arg10: memref<1x1x8xf32, #tpu.memory_space<vmem>>, %arg11: memref<1x1x8xf32, #tpu.memory_space<vmem>>, %arg12: memref<1x64x8xf32, #tpu.memory_space<vmem>>, %arg13: memref<12x12x16xf32, #tpu.memory_space<vmem>>, %arg14: memref<96x80xbf16, #tpu.memory_space<vmem>>, %arg15: memref<64x8xf32, #tpu.memory_space<vmem>>) attributes {dimension_semantics = [#tpu.dimension_semantics<parallel>, #tpu.dimension_semantics<arbitrary>], iteration_bounds = array<i64: 2, 2>, scalar_prefetch = 0 : i64, scratch_operands = 3 : i64, tpu.core_type = #tpu.core_type<tc>, window_params = [{transform_indices = @transform_0, window_bounds = array<i64: 1, 64, 32>}, {transform_indices = @transform_1, window_bounds = array<i64: 1, 64, 32>}, {pipeline_mode = #tpu.pipeline_mode<synchronous>, transform_indices = @transform_2, window_bounds = array<i64: 32, 16>}, {pipeline_mode = #tpu.pipeline_mode<synchronous>, transform_indices = @transform_3, window_bounds = array<i64: 32, 16>}, {pipeline_mode = #tpu.pipeline_mode<synchronous>, transform_indices = @transform_4, window_bounds = array<i64: 1, 16>}, {pipeline_mode = #tpu.pipeline_mode<synchronous>, transform_indices = @transform_5, window_bounds = array<i64: 8, 8>}, {transform_indices = @transform_6, window_bounds = array<i64: 1, 5, 80, 8>}, {transform_indices = @transform_7, window_bounds = array<i64: 1, 1, 8>}, {transform_indices = @transform_8, window_bounds = array<i64: 1, 1, 8>}, {transform_indices = @transform_9, window_bounds = array<i64: 1, 1, 8>}, {transform_indices = @transform_10, window_bounds = array<i64: 1, 64, 8>}]} {
    %c0_i32 = arith.constant 0 : i32
    %0 = arith.cmpi eq, %arg1, %c0_i32 : i32
    %1 = arith.extui %0 : i1 to i32
    %c0_i32_0 = arith.constant 0 : i32
    %2 = arith.cmpi ne, %1, %c0_i32_0 : i32
    scf.if %2 {
      %cst = arith.constant 0.000000e+00 : f32
      %12 = vector.broadcast %cst : f32 to vector<2x12x16xf32>
      %cst_6 = arith.constant 0.000000e+00 : f32
      %13 = vector.broadcast %cst_6 : f32 to vector<8x2x16xf32>
      %c0 = arith.constant 0 : index
      %c0_7 = arith.constant 0 : index
      %c0_8 = arith.constant 0 : index
      %14 = vector.load %arg13[%c0, %c0_7, %c0_8] : memref<12x12x16xf32, #tpu.memory_space<vmem>>, vector<2x12x16xf32>
      tpu.vector_store %arg13[%c0, %c0_7, %c0_8], %12 {strides = array<i32>} : memref<12x12x16xf32, #tpu.memory_space<vmem>>, vector<2x12x16xf32>,
      %c10 = arith.constant 10 : index
      %c0_9 = arith.constant 0 : index
      %c0_10 = arith.constant 0 : index
      %15 = vector.load %arg13[%c10, %c0_9, %c0_10] : memref<12x12x16xf32, #tpu.memory_space<vmem>>, vector<2x12x16xf32>
      tpu.vector_store %arg13[%c10, %c0_9, %c0_10], %12 {strides = array<i32>} : memref<12x12x16xf32, #tpu.memory_space<vmem>>, vector<2x12x16xf32>,
      %c2 = arith.constant 2 : index
      %c0_11 = arith.constant 0 : index
      %c0_12 = arith.constant 0 : index
      %16 = vector.load %arg13[%c2, %c0_11, %c0_12] : memref<12x12x16xf32, #tpu.memory_space<vmem>>, vector<8x2x16xf32>
      tpu.vector_store %arg13[%c2, %c0_11, %c0_12], %13 {strides = array<i32>} : memref<12x12x16xf32, #tpu.memory_space<vmem>>, vector<8x2x16xf32>,
      %c2_13 = arith.constant 2 : index
      %c10_14 = arith.constant 10 : index
      %c0_15 = arith.constant 0 : index
      %17 = vector.load %arg13[%c2_13, %c10_14, %c0_15] : memref<12x12x16xf32, #tpu.memory_space<vmem>>, vector<8x2x16xf32>
      tpu.vector_store %arg13[%c2_13, %c10_14, %c0_15], %13 {strides = array<i32>} : memref<12x12x16xf32, #tpu.memory_space<vmem>>, vector<8x2x16xf32>,
      %c0_16 = arith.constant 0 : index
      %c0_17 = arith.constant 0 : index
      %c0_18 = arith.constant 0 : index
      %18 = vector.load %arg2[%c0_16, %c0_17, %c0_18] : memref<1x64x32xbf16, #tpu.memory_space<vmem>>, vector<1x64x32xbf16>
      %19 = vector.shape_cast %18 : vector<1x64x32xbf16> to vector<64x32xbf16>
      %c0_19 = arith.constant 0 : index
      %c0_20 = arith.constant 0 : index
      %20 = vector.load %arg4[%c0_19, %c0_20] : memref<32x16xbf16, #tpu.memory_space<vmem>>, vector<32x16xbf16>
      %cst_21 = arith.constant dense<0.000000e+00> : vector<64x16xf32>
      %21 = tpu.matmul %19, %20, %cst_21 {dimension_numbers = #tpu.dot_dimension_numbers<[1], [0], [0], [1], [0, 0, 1, 1], [], []>} : vector<64x32xbf16>, vector<32x16xbf16>, vector<64x16xf32> -> vector<64x16xf32>
      %c0_22 = arith.constant 0 : index
      %c0_23 = arith.constant 0 : index
      %c0_24 = arith.constant 0 : index
      %22 = vector.load %arg3[%c0_22, %c0_23, %c0_24] : memref<1x64x32xbf16, #tpu.memory_space<vmem>>, vector<1x64x32xbf16>
      %23 = vector.shape_cast %22 : vector<1x64x32xbf16> to vector<64x32xbf16>
      %c0_25 = arith.constant 0 : index
      %c0_26 = arith.constant 0 : index
      %24 = vector.load %arg5[%c0_25, %c0_26] : memref<32x16xbf16, #tpu.memory_space<vmem>>, vector<32x16xbf16>
      %cst_27 = arith.constant dense<0.000000e+00> : vector<64x16xf32>
      %25 = tpu.matmul %23, %24, %cst_27 {dimension_numbers = #tpu.dot_dimension_numbers<[1], [0], [0], [1], [0, 0, 1, 1], [], []>} : vector<64x32xbf16>, vector<32x16xbf16>, vector<64x16xf32> -> vector<64x16xf32>
      %26 = arith.addf %21, %25 : vector<64x16xf32>
      %c0_28 = arith.constant 0 : index
      %c0_29 = arith.constant 0 : index
      %27 = vector.load %arg6[%c0_28, %c0_29] : memref<1x16xf32, #tpu.memory_space<vmem>>, vector<1x16xf32>
      %28 = vector.broadcast %27 : vector<1x16xf32> to vector<64x16xf32>
      %29 = arith.addf %26, %28 : vector<64x16xf32>
      %30 = vector.shape_cast %29 : vector<64x16xf32> to vector<8x8x16xf32>
      %c2_30 = arith.constant 2 : index
      %c2_31 = arith.constant 2 : index
      %c0_32 = arith.constant 0 : index
      %31 = vector.load %arg13[%c2_30, %c2_31, %c0_32] : memref<12x12x16xf32, #tpu.memory_space<vmem>>, vector<8x8x16xf32>
      tpu.vector_store %arg13[%c2_30, %c2_31, %c0_32], %30 {strides = array<i32>} : memref<12x12x16xf32, #tpu.memory_space<vmem>>, vector<8x8x16xf32>,
    } else {
    }
    %c0_i32_1 = arith.constant 0 : i32
    %3 = arith.cmpi eq, %arg1, %c0_i32_1 : i32
    %4 = arith.extui %3 : i1 to i32
    %c0_i32_2 = arith.constant 0 : i32
    %5 = arith.cmpi ne, %4, %c0_i32_2 : i32
    scf.if %5 {
      %c0 = arith.constant 0 : index
      %c1 = arith.constant 1 : index
      %c0_6 = arith.constant 0 : index
      %12 = vector.load %arg13[%c0, %c1, %c0_6] : memref<12x12x16xf32, #tpu.memory_space<vmem>>, vector<12x8x16xf32>
      %13 = vector.shape_cast %12 : vector<12x8x16xf32> to vector<96x16xf32>
      %14 = arith.truncf %13 : vector<96x16xf32> to vector<96x16xbf16>
      %c0_7 = arith.constant 0 : index
      %c0_8 = arith.constant 0 : index
      %15 = vector.load %arg14[%c0_7, %c0_8] : memref<96x80xbf16, #tpu.memory_space<vmem>>, vector<96x16xbf16>
      tpu.vector_store %arg14[%c0_7, %c0_8], %14 {strides = array<i32>} : memref<96x80xbf16, #tpu.memory_space<vmem>>, vector<96x16xbf16>,
      %c0_9 = arith.constant 0 : index
      %c2 = arith.constant 2 : index
      %c0_10 = arith.constant 0 : index
      %16 = vector.load %arg13[%c0_9, %c2, %c0_10] : memref<12x12x16xf32, #tpu.memory_space<vmem>>, vector<12x8x16xf32>
      %17 = vector.shape_cast %16 : vector<12x8x16xf32> to vector<96x16xf32>
      %18 = arith.truncf %17 : vector<96x16xf32> to vector<96x16xbf16>
      %c0_11 = arith.constant 0 : index
      %c16 = arith.constant 16 : index
      %19 = vector.load %arg14[%c0_11, %c16] : memref<96x80xbf16, #tpu.memory_space<vmem>>, vector<96x16xbf16>
      tpu.vector_store %arg14[%c0_11, %c16], %18 {strides = array<i32>} : memref<96x80xbf16, #tpu.memory_space<vmem>>, vector<96x16xbf16>,
      %c0_12 = arith.constant 0 : index
      %c3 = arith.constant 3 : index
      %c0_13 = arith.constant 0 : index
      %20 = vector.load %arg13[%c0_12, %c3, %c0_13] : memref<12x12x16xf32, #tpu.memory_space<vmem>>, vector<12x8x16xf32>
      %21 = vector.shape_cast %20 : vector<12x8x16xf32> to vector<96x16xf32>
      %22 = arith.truncf %21 : vector<96x16xf32> to vector<96x16xbf16>
      %c0_14 = arith.constant 0 : index
      %c32 = arith.constant 32 : index
      %23 = vector.load %arg14[%c0_14, %c32] : memref<96x80xbf16, #tpu.memory_space<vmem>>, vector<96x16xbf16>
      tpu.vector_store %arg14[%c0_14, %c32], %22 {strides = array<i32>} : memref<96x80xbf16, #tpu.memory_space<vmem>>, vector<96x16xbf16>,
      %cst = arith.constant 0.000000e+00 : f32
      %24 = vector.broadcast %cst : f32 to vector<64x8xf32>
      %c8 = arith.constant 8 : index
      %c0_15 = arith.constant 0 : index
      %25 = vector.load %arg14[%c8, %c0_15] : memref<96x80xbf16, #tpu.memory_space<vmem>>, vector<64x48xbf16>
      %c0_16 = arith.constant 0 : index
      %c0_17 = arith.constant 0 : index
      %c0_18 = arith.constant 0 : index
      %c0_19 = arith.constant 0 : index
      %26 = vector.load %arg8[%c0_16, %c0_17, %c0_18, %c0_19] : memref<1x5x80x8xbf16, #tpu.memory_space<vmem>>, vector<1x1x48x8xbf16>
      %27 = vector.shape_cast %26 : vector<1x1x48x8xbf16> to vector<48x8xbf16>
      %cst_20 = arith.constant dense<0.000000e+00> : vector<64x8xf32>
      %28 = tpu.matmul %25, %27, %cst_20 {dimension_numbers = #tpu.dot_dimension_numbers<[1], [0], [0], [1], [0, 0, 1, 1], [], []>} : vector<64x48xbf16>, vector<48x8xbf16>, vector<64x8xf32> -> vector<64x8xf32>
      %29 = arith.addf %24, %28 : vector<64x8xf32>
      %c16_21 = arith.constant 16 : index
      %c0_22 = arith.constant 0 : index
      %30 = vector.load %arg14[%c16_21, %c0_22] : memref<96x80xbf16, #tpu.memory_space<vmem>>, vector<64x48xbf16>
      %c0_23 = arith.constant 0 : index
      %c1_24 = arith.constant 1 : index
      %c0_25 = arith.constant 0 : index
      %c0_26 = arith.constant 0 : index
      %31 = vector.load %arg8[%c0_23, %c1_24, %c0_25, %c0_26] : memref<1x5x80x8xbf16, #tpu.memory_space<vmem>>, vector<1x1x48x8xbf16>
      %32 = vector.shape_cast %31 : vector<1x1x48x8xbf16> to vector<48x8xbf16>
      %cst_27 = arith.constant dense<0.000000e+00> : vector<64x8xf32>
      %33 = tpu.matmul %30, %32, %cst_27 {dimension_numbers = #tpu.dot_dimension_numbers<[1], [0], [0], [1], [0, 0, 1, 1], [], []>} : vector<64x48xbf16>, vector<48x8xbf16>, vector<64x8xf32> -> vector<64x8xf32>
      %34 = arith.addf %29, %33 : vector<64x8xf32>
      %c24 = arith.constant 24 : index
      %c0_28 = arith.constant 0 : index
      %35 = vector.load %arg14[%c24, %c0_28] : memref<96x80xbf16, #tpu.memory_space<vmem>>, vector<64x48xbf16>
      %c0_29 = arith.constant 0 : index
      %c2_30 = arith.constant 2 : index
      %c0_31 = arith.constant 0 : index
      %c0_32 = arith.constant 0 : index
      %36 = vector.load %arg8[%c0_29, %c2_30, %c0_31, %c0_32] : memref<1x5x80x8xbf16, #tpu.memory_space<vmem>>, vector<1x1x48x8xbf16>
      %37 = vector.shape_cast %36 : vector<1x1x48x8xbf16> to vector<48x8xbf16>
      %cst_33 = arith.constant dense<0.000000e+00> : vector<64x8xf32>
      %38 = tpu.matmul %35, %37, %cst_33 {dimension_numbers = #tpu.dot_dimension_numbers<[1], [0], [0], [1], [0, 0, 1, 1], [], []>} : vector<64x48xbf16>, vector<48x8xbf16>, vector<64x8xf32> -> vector<64x8xf32>
      %39 = arith.addf %34, %38 : vector<64x8xf32>
      %c0_34 = arith.constant 0 : index
      %c0_35 = arith.constant 0 : index
      %c0_36 = arith.constant 0 : index
      %40 = vector.load %arg9[%c0_34, %c0_35, %c0_36] : memref<1x1x8xf32, #tpu.memory_space<vmem>>, vector<1x1x8xf32>
      %41 = vector.shape_cast %40 : vector<1x1x8xf32> to vector<1x8xf32>
      %42 = vector.broadcast %41 : vector<1x8xf32> to vector<64x8xf32>
      %43 = arith.addf %39, %42 : vector<64x8xf32>
      %cst_37 = arith.constant dense<0.000000e+00> : vector<8xf32>
      %44 = vector.multi_reduction <add>, %43, %cst_37 [0] : vector<64x8xf32> to vector<8xf32>
      %45 = vector.shape_cast %44 : vector<8xf32> to vector<1x8xf32>
      %46 = arith.mulf %43, %43 : vector<64x8xf32>
      %cst_38 = arith.constant dense<0.000000e+00> : vector<8xf32>
      %47 = vector.multi_reduction <add>, %46, %cst_38 [0] : vector<64x8xf32> to vector<8xf32>
      %48 = vector.shape_cast %47 : vector<8xf32> to vector<1x8xf32>
      %49 = tpu.concatenate %45, %48 in 0 : vector<1x8xf32>, vector<1x8xf32> -> vector<2x8xf32>
      %c0_39 = arith.constant 0 : index
      %c0_40 = arith.constant 0 : index
      %50 = vector.load %arg7[%c0_39, %c0_40] : memref<8x8xf32, #tpu.memory_space<vmem>>, vector<8x8xf32>
      %cst_41 = arith.constant dense<0.000000e+00> : vector<2x8xf32>
      %51 = tpu.matmul %49, %50, %cst_41 {dimension_numbers = #tpu.dot_dimension_numbers<[1], [0], [0], [1], [0, 0, 1, 1], [], []>} : vector<2x8xf32>, vector<8x8xf32>, vector<2x8xf32> -> vector<2x8xf32>
      %cst_42 = arith.constant 7.812500e-03 : f32
      %52 = vector.broadcast %cst_42 : f32 to vector<2x8xf32>
      %53 = arith.mulf %51, %52 : vector<2x8xf32>
      %54 = vector.extract_strided_slice %53 {offsets = [0, 0], sizes = [1, 8], strides = [1, 1]} : vector<2x8xf32> to vector<1x8xf32>
      %55 = vector.extract_strided_slice %53 {offsets = [1, 0], sizes = [1, 8], strides = [1, 1]} : vector<2x8xf32> to vector<1x8xf32>
      %56 = arith.mulf %54, %54 : vector<1x8xf32>
      %57 = arith.subf %55, %56 : vector<1x8xf32>
      %cst_43 = arith.constant 0.000000e+00 : f32
      %58 = vector.broadcast %cst_43 : f32 to vector<1x8xf32>
      %59 = arith.maximumf %57, %58 : vector<1x8xf32>
      %60 = vector.broadcast %54 : vector<1x8xf32> to vector<64x8xf32>
      %61 = arith.subf %43, %60 : vector<64x8xf32>
      %cst_44 = arith.constant 9.99999974E-6 : f32
      %62 = vector.broadcast %cst_44 : f32 to vector<1x8xf32>
      %63 = arith.addf %59, %62 : vector<1x8xf32>
      %64 = math.rsqrt %63 : vector<1x8xf32>
      %65 = vector.broadcast %64 : vector<1x8xf32> to vector<64x8xf32>
      %66 = arith.mulf %61, %65 : vector<64x8xf32>
      %c0_45 = arith.constant 0 : index
      %c0_46 = arith.constant 0 : index
      %c0_47 = arith.constant 0 : index
      %67 = vector.load %arg10[%c0_45, %c0_46, %c0_47] : memref<1x1x8xf32, #tpu.memory_space<vmem>>, vector<1x1x8xf32>
      %68 = vector.shape_cast %67 : vector<1x1x8xf32> to vector<1x8xf32>
      %69 = vector.broadcast %68 : vector<1x8xf32> to vector<64x8xf32>
      %70 = arith.mulf %66, %69 : vector<64x8xf32>
      %c0_48 = arith.constant 0 : index
      %c0_49 = arith.constant 0 : index
      %c0_50 = arith.constant 0 : index
      %71 = vector.load %arg11[%c0_48, %c0_49, %c0_50] : memref<1x1x8xf32, #tpu.memory_space<vmem>>, vector<1x1x8xf32>
      %72 = vector.shape_cast %71 : vector<1x1x8xf32> to vector<1x8xf32>
      %73 = vector.broadcast %72 : vector<1x8xf32> to vector<64x8xf32>
      %74 = arith.addf %70, %73 : vector<64x8xf32>
      %cst_51 = arith.constant 0.000000e+00 : f32
      %75 = vector.broadcast %cst_51 : f32 to vector<64x8xf32>
      %76 = arith.cmpf oge, %74, %75 : vector<64x8xf32>
      %cst_52 = arith.constant 2.000000e-01 : f32
      %77 = vector.broadcast %cst_52 : f32 to vector<64x8xf32>
      %78 = arith.mulf %77, %74 : vector<64x8xf32>
      %79 = arith.select %76, %74, %78 : vector<64x8xi1>, vector<64x8xf32>
      %c0_53 = arith.constant 0 : index
      %c0_54 = arith.constant 0 : index
      %80 = vector.load %arg15[%c0_53, %c0_54] : memref<64x8xf32, #tpu.memory_space<vmem>>, vector<64x8xf32>
      tpu.vector_store %arg15[%c0_53, %c0_54], %79 {strides = array<i32>} : memref<64x8xf32, #tpu.memory_space<vmem>>, vector<64x8xf32>,
    } else {
    }
    %c1_i32 = arith.constant 1 : i32
    %6 = arith.cmpi eq, %arg1, %c1_i32 : i32
    %7 = arith.extui %6 : i1 to i32
    %c0_i32_3 = arith.constant 0 : i32
    %8 = arith.cmpi ne, %7, %c0_i32_3 : i32
    scf.if %8 {
      %c0 = arith.constant 0 : index
      %c0_6 = arith.constant 0 : index
      %c0_7 = arith.constant 0 : index
      %12 = vector.load %arg13[%c0, %c0_6, %c0_7] : memref<12x12x16xf32, #tpu.memory_space<vmem>>, vector<12x8x16xf32>
      %13 = vector.shape_cast %12 : vector<12x8x16xf32> to vector<96x16xf32>
      %14 = arith.truncf %13 : vector<96x16xf32> to vector<96x16xbf16>
      %c0_8 = arith.constant 0 : index
      %c0_9 = arith.constant 0 : index
      %15 = vector.load %arg14[%c0_8, %c0_9] : memref<96x80xbf16, #tpu.memory_space<vmem>>, vector<96x16xbf16>
      tpu.vector_store %arg14[%c0_8, %c0_9], %14 {strides = array<i32>} : memref<96x80xbf16, #tpu.memory_space<vmem>>, vector<96x16xbf16>,
      %c0_10 = arith.constant 0 : index
      %c1 = arith.constant 1 : index
      %c0_11 = arith.constant 0 : index
      %16 = vector.load %arg13[%c0_10, %c1, %c0_11] : memref<12x12x16xf32, #tpu.memory_space<vmem>>, vector<12x8x16xf32>
      %17 = vector.shape_cast %16 : vector<12x8x16xf32> to vector<96x16xf32>
      %18 = arith.truncf %17 : vector<96x16xf32> to vector<96x16xbf16>
      %c0_12 = arith.constant 0 : index
      %c16 = arith.constant 16 : index
      %19 = vector.load %arg14[%c0_12, %c16] : memref<96x80xbf16, #tpu.memory_space<vmem>>, vector<96x16xbf16>
      tpu.vector_store %arg14[%c0_12, %c16], %18 {strides = array<i32>} : memref<96x80xbf16, #tpu.memory_space<vmem>>, vector<96x16xbf16>,
      %c0_13 = arith.constant 0 : index
      %c2 = arith.constant 2 : index
      %c0_14 = arith.constant 0 : index
      %20 = vector.load %arg13[%c0_13, %c2, %c0_14] : memref<12x12x16xf32, #tpu.memory_space<vmem>>, vector<12x8x16xf32>
      %21 = vector.shape_cast %20 : vector<12x8x16xf32> to vector<96x16xf32>
      %22 = arith.truncf %21 : vector<96x16xf32> to vector<96x16xbf16>
      %c0_15 = arith.constant 0 : index
      %c32 = arith.constant 32 : index
      %23 = vector.load %arg14[%c0_15, %c32] : memref<96x80xbf16, #tpu.memory_space<vmem>>, vector<96x16xbf16>
      tpu.vector_store %arg14[%c0_15, %c32], %22 {strides = array<i32>} : memref<96x80xbf16, #tpu.memory_space<vmem>>, vector<96x16xbf16>,
      %c0_16 = arith.constant 0 : index
      %c3 = arith.constant 3 : index
      %c0_17 = arith.constant 0 : index
      %24 = vector.load %arg13[%c0_16, %c3, %c0_17] : memref<12x12x16xf32, #tpu.memory_space<vmem>>, vector<12x8x16xf32>
      %25 = vector.shape_cast %24 : vector<12x8x16xf32> to vector<96x16xf32>
      %26 = arith.truncf %25 : vector<96x16xf32> to vector<96x16xbf16>
      %c0_18 = arith.constant 0 : index
      %c48 = arith.constant 48 : index
      %27 = vector.load %arg14[%c0_18, %c48] : memref<96x80xbf16, #tpu.memory_space<vmem>>, vector<96x16xbf16>
      tpu.vector_store %arg14[%c0_18, %c48], %26 {strides = array<i32>} : memref<96x80xbf16, #tpu.memory_space<vmem>>, vector<96x16xbf16>,
      %c0_19 = arith.constant 0 : index
      %c4 = arith.constant 4 : index
      %c0_20 = arith.constant 0 : index
      %28 = vector.load %arg13[%c0_19, %c4, %c0_20] : memref<12x12x16xf32, #tpu.memory_space<vmem>>, vector<12x8x16xf32>
      %29 = vector.shape_cast %28 : vector<12x8x16xf32> to vector<96x16xf32>
      %30 = arith.truncf %29 : vector<96x16xf32> to vector<96x16xbf16>
      %c0_21 = arith.constant 0 : index
      %c64 = arith.constant 64 : index
      %31 = vector.load %arg14[%c0_21, %c64] : memref<96x80xbf16, #tpu.memory_space<vmem>>, vector<96x16xbf16>
      tpu.vector_store %arg14[%c0_21, %c64], %30 {strides = array<i32>} : memref<96x80xbf16, #tpu.memory_space<vmem>>, vector<96x16xbf16>,
      %cst = arith.constant 0.000000e+00 : f32
      %32 = vector.broadcast %cst : f32 to vector<64x8xf32>
      %c0_22 = arith.constant 0 : index
      %c0_23 = arith.constant 0 : index
      %33 = vector.load %arg14[%c0_22, %c0_23] : memref<96x80xbf16, #tpu.memory_space<vmem>>, vector<64x80xbf16>
      %c0_24 = arith.constant 0 : index
      %c0_25 = arith.constant 0 : index
      %c0_26 = arith.constant 0 : index
      %c0_27 = arith.constant 0 : index
      %34 = vector.load %arg8[%c0_24, %c0_25, %c0_26, %c0_27] : memref<1x5x80x8xbf16, #tpu.memory_space<vmem>>, vector<1x1x80x8xbf16>
      %35 = vector.shape_cast %34 : vector<1x1x80x8xbf16> to vector<80x8xbf16>
      %cst_28 = arith.constant dense<0.000000e+00> : vector<64x8xf32>
      %36 = tpu.matmul %33, %35, %cst_28 {dimension_numbers = #tpu.dot_dimension_numbers<[1], [0], [0], [1], [0, 0, 1, 1], [], []>} : vector<64x80xbf16>, vector<80x8xbf16>, vector<64x8xf32> -> vector<64x8xf32>
      %37 = arith.addf %32, %36 : vector<64x8xf32>
      %c8 = arith.constant 8 : index
      %c0_29 = arith.constant 0 : index
      %38 = vector.load %arg14[%c8, %c0_29] : memref<96x80xbf16, #tpu.memory_space<vmem>>, vector<64x80xbf16>
      %c0_30 = arith.constant 0 : index
      %c1_31 = arith.constant 1 : index
      %c0_32 = arith.constant 0 : index
      %c0_33 = arith.constant 0 : index
      %39 = vector.load %arg8[%c0_30, %c1_31, %c0_32, %c0_33] : memref<1x5x80x8xbf16, #tpu.memory_space<vmem>>, vector<1x1x80x8xbf16>
      %40 = vector.shape_cast %39 : vector<1x1x80x8xbf16> to vector<80x8xbf16>
      %cst_34 = arith.constant dense<0.000000e+00> : vector<64x8xf32>
      %41 = tpu.matmul %38, %40, %cst_34 {dimension_numbers = #tpu.dot_dimension_numbers<[1], [0], [0], [1], [0, 0, 1, 1], [], []>} : vector<64x80xbf16>, vector<80x8xbf16>, vector<64x8xf32> -> vector<64x8xf32>
      %42 = arith.addf %37, %41 : vector<64x8xf32>
      %c16_35 = arith.constant 16 : index
      %c0_36 = arith.constant 0 : index
      %43 = vector.load %arg14[%c16_35, %c0_36] : memref<96x80xbf16, #tpu.memory_space<vmem>>, vector<64x80xbf16>
      %c0_37 = arith.constant 0 : index
      %c2_38 = arith.constant 2 : index
      %c0_39 = arith.constant 0 : index
      %c0_40 = arith.constant 0 : index
      %44 = vector.load %arg8[%c0_37, %c2_38, %c0_39, %c0_40] : memref<1x5x80x8xbf16, #tpu.memory_space<vmem>>, vector<1x1x80x8xbf16>
      %45 = vector.shape_cast %44 : vector<1x1x80x8xbf16> to vector<80x8xbf16>
      %cst_41 = arith.constant dense<0.000000e+00> : vector<64x8xf32>
      %46 = tpu.matmul %43, %45, %cst_41 {dimension_numbers = #tpu.dot_dimension_numbers<[1], [0], [0], [1], [0, 0, 1, 1], [], []>} : vector<64x80xbf16>, vector<80x8xbf16>, vector<64x8xf32> -> vector<64x8xf32>
      %47 = arith.addf %42, %46 : vector<64x8xf32>
      %c24 = arith.constant 24 : index
      %c0_42 = arith.constant 0 : index
      %48 = vector.load %arg14[%c24, %c0_42] : memref<96x80xbf16, #tpu.memory_space<vmem>>, vector<64x80xbf16>
      %c0_43 = arith.constant 0 : index
      %c3_44 = arith.constant 3 : index
      %c0_45 = arith.constant 0 : index
      %c0_46 = arith.constant 0 : index
      %49 = vector.load %arg8[%c0_43, %c3_44, %c0_45, %c0_46] : memref<1x5x80x8xbf16, #tpu.memory_space<vmem>>, vector<1x1x80x8xbf16>
      %50 = vector.shape_cast %49 : vector<1x1x80x8xbf16> to vector<80x8xbf16>
      %cst_47 = arith.constant dense<0.000000e+00> : vector<64x8xf32>
      %51 = tpu.matmul %48, %50, %cst_47 {dimension_numbers = #tpu.dot_dimension_numbers<[1], [0], [0], [1], [0, 0, 1, 1], [], []>} : vector<64x80xbf16>, vector<80x8xbf16>, vector<64x8xf32> -> vector<64x8xf32>
      %52 = arith.addf %47, %51 : vector<64x8xf32>
      %c32_48 = arith.constant 32 : index
      %c0_49 = arith.constant 0 : index
      %53 = vector.load %arg14[%c32_48, %c0_49] : memref<96x80xbf16, #tpu.memory_space<vmem>>, vector<64x80xbf16>
      %c0_50 = arith.constant 0 : index
      %c4_51 = arith.constant 4 : index
      %c0_52 = arith.constant 0 : index
      %c0_53 = arith.constant 0 : index
      %54 = vector.load %arg8[%c0_50, %c4_51, %c0_52, %c0_53] : memref<1x5x80x8xbf16, #tpu.memory_space<vmem>>, vector<1x1x80x8xbf16>
      %55 = vector.shape_cast %54 : vector<1x1x80x8xbf16> to vector<80x8xbf16>
      %cst_54 = arith.constant dense<0.000000e+00> : vector<64x8xf32>
      %56 = tpu.matmul %53, %55, %cst_54 {dimension_numbers = #tpu.dot_dimension_numbers<[1], [0], [0], [1], [0, 0, 1, 1], [], []>} : vector<64x80xbf16>, vector<80x8xbf16>, vector<64x8xf32> -> vector<64x8xf32>
      %57 = arith.addf %52, %56 : vector<64x8xf32>
      %c0_55 = arith.constant 0 : index
      %c0_56 = arith.constant 0 : index
      %c0_57 = arith.constant 0 : index
      %58 = vector.load %arg9[%c0_55, %c0_56, %c0_57] : memref<1x1x8xf32, #tpu.memory_space<vmem>>, vector<1x1x8xf32>
      %59 = vector.shape_cast %58 : vector<1x1x8xf32> to vector<1x8xf32>
      %60 = vector.broadcast %59 : vector<1x8xf32> to vector<64x8xf32>
      %61 = arith.addf %57, %60 : vector<64x8xf32>
      %cst_58 = arith.constant dense<0.000000e+00> : vector<8xf32>
      %62 = vector.multi_reduction <add>, %61, %cst_58 [0] : vector<64x8xf32> to vector<8xf32>
      %63 = vector.shape_cast %62 : vector<8xf32> to vector<1x8xf32>
      %64 = arith.mulf %61, %61 : vector<64x8xf32>
      %cst_59 = arith.constant dense<0.000000e+00> : vector<8xf32>
      %65 = vector.multi_reduction <add>, %64, %cst_59 [0] : vector<64x8xf32> to vector<8xf32>
      %66 = vector.shape_cast %65 : vector<8xf32> to vector<1x8xf32>
      %67 = tpu.concatenate %63, %66 in 0 : vector<1x8xf32>, vector<1x8xf32> -> vector<2x8xf32>
      %c0_60 = arith.constant 0 : index
      %c0_61 = arith.constant 0 : index
      %68 = vector.load %arg7[%c0_60, %c0_61] : memref<8x8xf32, #tpu.memory_space<vmem>>, vector<8x8xf32>
      %cst_62 = arith.constant dense<0.000000e+00> : vector<2x8xf32>
      %69 = tpu.matmul %67, %68, %cst_62 {dimension_numbers = #tpu.dot_dimension_numbers<[1], [0], [0], [1], [0, 0, 1, 1], [], []>} : vector<2x8xf32>, vector<8x8xf32>, vector<2x8xf32> -> vector<2x8xf32>
      %cst_63 = arith.constant 7.812500e-03 : f32
      %70 = vector.broadcast %cst_63 : f32 to vector<2x8xf32>
      %71 = arith.mulf %69, %70 : vector<2x8xf32>
      %72 = vector.extract_strided_slice %71 {offsets = [0, 0], sizes = [1, 8], strides = [1, 1]} : vector<2x8xf32> to vector<1x8xf32>
      %73 = vector.extract_strided_slice %71 {offsets = [1, 0], sizes = [1, 8], strides = [1, 1]} : vector<2x8xf32> to vector<1x8xf32>
      %74 = arith.mulf %72, %72 : vector<1x8xf32>
      %75 = arith.subf %73, %74 : vector<1x8xf32>
      %cst_64 = arith.constant 0.000000e+00 : f32
      %76 = vector.broadcast %cst_64 : f32 to vector<1x8xf32>
      %77 = arith.maximumf %75, %76 : vector<1x8xf32>
      %78 = vector.broadcast %72 : vector<1x8xf32> to vector<64x8xf32>
      %79 = arith.subf %61, %78 : vector<64x8xf32>
      %cst_65 = arith.constant 9.99999974E-6 : f32
      %80 = vector.broadcast %cst_65 : f32 to vector<1x8xf32>
      %81 = arith.addf %77, %80 : vector<1x8xf32>
      %82 = math.rsqrt %81 : vector<1x8xf32>
      %83 = vector.broadcast %82 : vector<1x8xf32> to vector<64x8xf32>
      %84 = arith.mulf %79, %83 : vector<64x8xf32>
      %c0_66 = arith.constant 0 : index
      %c0_67 = arith.constant 0 : index
      %c0_68 = arith.constant 0 : index
      %85 = vector.load %arg10[%c0_66, %c0_67, %c0_68] : memref<1x1x8xf32, #tpu.memory_space<vmem>>, vector<1x1x8xf32>
      %86 = vector.shape_cast %85 : vector<1x1x8xf32> to vector<1x8xf32>
      %87 = vector.broadcast %86 : vector<1x8xf32> to vector<64x8xf32>
      %88 = arith.mulf %84, %87 : vector<64x8xf32>
      %c0_69 = arith.constant 0 : index
      %c0_70 = arith.constant 0 : index
      %c0_71 = arith.constant 0 : index
      %89 = vector.load %arg11[%c0_69, %c0_70, %c0_71] : memref<1x1x8xf32, #tpu.memory_space<vmem>>, vector<1x1x8xf32>
      %90 = vector.shape_cast %89 : vector<1x1x8xf32> to vector<1x8xf32>
      %91 = vector.broadcast %90 : vector<1x8xf32> to vector<64x8xf32>
      %92 = arith.addf %88, %91 : vector<64x8xf32>
      %cst_72 = arith.constant 0.000000e+00 : f32
      %93 = vector.broadcast %cst_72 : f32 to vector<64x8xf32>
      %94 = arith.cmpf oge, %92, %93 : vector<64x8xf32>
      %cst_73 = arith.constant 2.000000e-01 : f32
      %95 = vector.broadcast %cst_73 : f32 to vector<64x8xf32>
      %96 = arith.mulf %95, %92 : vector<64x8xf32>
      %97 = arith.select %94, %92, %96 : vector<64x8xi1>, vector<64x8xf32>
      %c0_74 = arith.constant 0 : index
      %c0_75 = arith.constant 0 : index
      %98 = vector.load %arg15[%c0_74, %c0_75] : memref<64x8xf32, #tpu.memory_space<vmem>>, vector<64x8xf32>
      %99 = arith.addf %98, %97 : vector<64x8xf32>
      %c0_76 = arith.constant 0 : index
      %c0_77 = arith.constant 0 : index
      %100 = vector.load %arg15[%c0_76, %c0_77] : memref<64x8xf32, #tpu.memory_space<vmem>>, vector<64x8xf32>
      tpu.vector_store %arg15[%c0_76, %c0_77], %99 {strides = array<i32>} : memref<64x8xf32, #tpu.memory_space<vmem>>, vector<64x8xf32>,
    } else {
    }
    %c1_i32_4 = arith.constant 1 : i32
    %9 = arith.cmpi eq, %arg1, %c1_i32_4 : i32
    %10 = arith.extui %9 : i1 to i32
    %c0_i32_5 = arith.constant 0 : i32
    %11 = arith.cmpi ne, %10, %c0_i32_5 : i32
    scf.if %11 {
      %c0 = arith.constant 0 : index
      %c0_6 = arith.constant 0 : index
      %12 = vector.load %arg15[%c0, %c0_6] : memref<64x8xf32, #tpu.memory_space<vmem>>, vector<64x8xf32>
      %13 = vector.shape_cast %12 : vector<64x8xf32> to vector<1x64x8xf32>
      %c0_7 = arith.constant 0 : index
      %c0_8 = arith.constant 0 : index
      %c0_9 = arith.constant 0 : index
      %14 = vector.load %arg12[%c0_7, %c0_8, %c0_9] : memref<1x64x8xf32, #tpu.memory_space<vmem>>, vector<1x64x8xf32>
      tpu.vector_store %arg12[%c0_7, %c0_8, %c0_9], %13 {strides = array<i32>} : memref<1x64x8xf32, #tpu.memory_space<vmem>>, vector<1x64x8xf32>,
    } else {
    }
    return
  }
  func.func @transform_0(%arg0: i32, %arg1: i32) -> (i32, i32, i32) {
    %c0_i32 = arith.constant 0 : i32
    %c0_i32_0 = arith.constant 0 : i32
    %c0_i32_1 = arith.constant 0 : i32
    return %arg0, %c0_i32, %c0_i32_0 : i32, i32, i32
  }
  func.func @transform_1(%arg0: i32, %arg1: i32) -> (i32, i32, i32) {
    %c0_i32 = arith.constant 0 : i32
    %c0_i32_0 = arith.constant 0 : i32
    %c0_i32_1 = arith.constant 0 : i32
    return %arg0, %c0_i32, %c0_i32_0 : i32, i32, i32
  }
  func.func @transform_2(%arg0: i32, %arg1: i32) -> (i32, i32) {
    %c0_i32 = arith.constant 0 : i32
    %c0_i32_0 = arith.constant 0 : i32
    %c0_i32_1 = arith.constant 0 : i32
    return %c0_i32, %c0_i32_0 : i32, i32
  }
  func.func @transform_3(%arg0: i32, %arg1: i32) -> (i32, i32) {
    %c0_i32 = arith.constant 0 : i32
    %c0_i32_0 = arith.constant 0 : i32
    %c0_i32_1 = arith.constant 0 : i32
    return %c0_i32, %c0_i32_0 : i32, i32
  }
  func.func @transform_4(%arg0: i32, %arg1: i32) -> (i32, i32) {
    %c0_i32 = arith.constant 0 : i32
    %c0_i32_0 = arith.constant 0 : i32
    %c0_i32_1 = arith.constant 0 : i32
    return %c0_i32, %c0_i32_0 : i32, i32
  }
  func.func @transform_5(%arg0: i32, %arg1: i32) -> (i32, i32) {
    %c0_i32 = arith.constant 0 : i32
    %c0_i32_0 = arith.constant 0 : i32
    %c0_i32_1 = arith.constant 0 : i32
    return %c0_i32, %c0_i32_0 : i32, i32
  }
  func.func @transform_6(%arg0: i32, %arg1: i32) -> (i32, i32, i32, i32) {
    %c0_i32 = arith.constant 0 : i32
    %c0_i32_0 = arith.constant 0 : i32
    %c0_i32_1 = arith.constant 0 : i32
    %c0_i32_2 = arith.constant 0 : i32
    return %arg1, %c0_i32, %c0_i32_0, %c0_i32_1 : i32, i32, i32, i32
  }
  func.func @transform_7(%arg0: i32, %arg1: i32) -> (i32, i32, i32) {
    %c0_i32 = arith.constant 0 : i32
    %c0_i32_0 = arith.constant 0 : i32
    %c0_i32_1 = arith.constant 0 : i32
    return %arg1, %c0_i32, %c0_i32_0 : i32, i32, i32
  }
  func.func @transform_8(%arg0: i32, %arg1: i32) -> (i32, i32, i32) {
    %c0_i32 = arith.constant 0 : i32
    %c0_i32_0 = arith.constant 0 : i32
    %c0_i32_1 = arith.constant 0 : i32
    return %arg1, %c0_i32, %c0_i32_0 : i32, i32, i32
  }
  func.func @transform_9(%arg0: i32, %arg1: i32) -> (i32, i32, i32) {
    %c0_i32 = arith.constant 0 : i32
    %c0_i32_0 = arith.constant 0 : i32
    %c0_i32_1 = arith.constant 0 : i32
    return %arg1, %c0_i32, %c0_i32_0 : i32, i32, i32
  }
  func.func @transform_10(%arg0: i32, %arg1: i32) -> (i32, i32, i32) {
    %c0_i32 = arith.constant 0 : i32
    %c0_i32_0 = arith.constant 0 : i32
    %c0_i32_1 = arith.constant 0 : i32
    return %arg0, %c0_i32, %c0_i32_0 : i32, i32, i32
  }
}

</mosaic_0001>

<llo_original>
// kernel: mid_incepnet_forward.4
$region0: #{mid_incepnet_forward.4}
  #allocation0 [shape = 'u32[]', space=smem, size = 0x4, offset = 0x4, fixed_abs, tag = 'smem constant byte address 0x4 - core index']
  #allocation1 [shape = 'u32[72,128]{1,0:T(1,128)}', space=vmem, size = 0x9000, scoped, tag = 'internal scratch']
  #allocation2 [shape = 'f32[12,12,16]{2,1,0:T(8,128)}', space=vmem, size = 0x18000, scoped, tag = 'scratch operand']
  #allocation3 [shape = 'bf16[96,80]{1,0:T(8,128)(2,1)}', space=vmem, size = 0x6000, scoped, tag = 'scratch operand']
  #allocation4 [shape = 'f32[64,32]{1,0:T(8,128)}', space=vmem, size = 0x8000, scoped, tag = 'scratch operand']
  %s0 = inlined_call_operand.vmem [shape: bf16[2,64,8], index: 0, kind: input, shape index: {}]
  %s1 = inlined_call_operand.vmem [shape: bf16[8,16], index: 1, kind: input, shape index: {}]
  %s2 = inlined_call_operand.vmem [shape: f32[1,16], index: 2, kind: input, shape index: {}]
  %s3 = inlined_call_operand.vmem [shape: f32[32,32], index: 3, kind: input, shape index: {}]
  %s4 = inlined_call_operand.vmem [shape: bf16[2,5,80,32], index: 4, kind: input, shape index: {}]
  %s5 = inlined_call_operand.vmem [shape: f32[2,1,32], index: 5, kind: input, shape index: {}]
  %s6 = inlined_call_operand.vmem [shape: f32[2,1,32], index: 6, kind: input, shape index: {}]
  %s7 = inlined_call_operand.vmem [shape: f32[2,1,32], index: 7, kind: input, shape index: {}]
  %s8 = inlined_call_operand.vmem [shape: bf16[2,64,32], index: 8, kind: output, shape index: {}]
  %s9 = sld [smem:[#allocation0]]
  $region73: #{mid_incepnet_forward.4} parent=0
    _
  %s11 = ssub.s32 1, %s9
  %s12 = scalar_select 0, %s11, %s9
  loop: start=0, step=1, limit=6
  $region2: #{mid_incepnet_forward.4} parent=0 // loop_pre_header
    _
  $region3: #{mid_incepnet_forward.4} parent=0 // loop_header
    %s14 = sphi 0, %s18
    %p15 = scmp.ge.s32.totalorder %s14, 6
    %s21 = sphi 0, %s33
    %s22 = sphi 0, %s29
    %s23 = sphi 0, %s21
    %s24 = sphi 0, %s22
    %s25 = sphi 0, %s23
    %s26 = sphi 0, %s24
    %s36 = sphi 0, %s38
    %s39 = sphi 0, %s36
    %s40 = sphi 0, %s39
    %s56 = sphi 0, %s40
    %s60 = sphi 0, %s60
    %s62 = sphi 0, %s60
    %s63 = sphi 0, %s62
    %s77 = sphi 0, %s63
    %s81 = sphi 0, %s81
    %s83 = sphi 0, %s81
    %s84 = sphi 0, %s83
    %s98 = sphi 0, %s84
    %s102 = sphi 0, %s102
    %s104 = sphi 0, %s102
    %s105 = sphi 0, %s104
    %s119 = sphi 0, %s105
    %s125 = sphi 0, %s127
    %s128 = sphi 0, %s125
    %s129 = sphi 0, %s128
    %s145 = sphi 0, %s129
    %s151 = sphi 0, %s153
    %s154 = sphi 0, %s151
    %s155 = sphi 0, %s154
    %s171 = sphi 0, %s155
    %s177 = sphi 0, %s179
    %s180 = sphi 0, %s177
    %s181 = sphi 0, %s180
    %s197 = sphi 0, %s181
    %s203 = sphi 0, %s205
    %s206 = sphi 0, %s203
    %s207 = sphi 0, %s206
    %s223 = sphi 0, %s207
    %s229 = sphi 0, %s231
    %s232 = sphi 0, %s229
    %s233 = sphi 0, %s232
    %s249 = sphi 0, %s233
  $region4: #{mid_incepnet_forward.4} parent=0 // loop_header_branch
    %17 = sbr.rel (%p15) target = $region8
  $region5: #{mid_incepnet_forward.4} parent=0 // loop_body
    %s19 = ssub.s32 %s14, 1
    %s20 = ssub.s32 %s14, 2
    %s27 = sadd.s32 1, %s22
    %p28 = scmp.ge.s32.totalorder %s27, 2
    %s29 = scalar_select %p28, 0, %s27
    %s30 = sadd.s32 1, %s21
    %s31 = scalar_select %p28, %s30, %s21
    %p32 = scmp.ge.s32.totalorder %s31, 2
    %s33 = scalar_select %p32, 0, %s31
    %s34 = ssub.s32 %s21, %s33
    %p35 = scmp.eq.s32.totalorder %s34, 0
    %s37 = sadd.s32 %s36, 1
    %s38 = scalar_select %p35, %s36, %s37
    %p41 = pneg %p35
    %p42 = scmp.eq.s32.totalorder %s14, 3
    %p43 = por %p41, %p42
    %p44 = scmp.ne.s32.totalorder %s36, %s39
    %p45 = scmp.eq.s32.totalorder %s14, 0
    %p46 = por %p44, %p45
    %p47 = scmp.ne.s32.totalorder %s36, %s39
    %p48 = scmp.eq.s32.totalorder %s19, 3
    %p49 = por %p47, %p48
    %p50 = scmp.ne.s32.totalorder %s39, %s40
    %p51 = scmp.eq.s32.totalorder %s19, 0
    %p52 = por %p50, %p51
    %p53 = scmp.ne.s32.totalorder %s39, %s40
    %p54 = scmp.eq.s32.totalorder %s20, 3
    %p55 = por %p53, %p54
    %p57 = scmp.ne.s32.totalorder %s40, %s56
    %p58 = scmp.eq.s32.totalorder %s20, 0
    %p59 = por %p57, %p58
    %s61 = sadd.s32 %s60, 1
    %p64 = scmp.eq.s32.totalorder %s14, 3
    %p65 = scmp.ne.s32.totalorder %s60, %s62
    %p66 = scmp.eq.s32.totalorder %s14, 0
    %p67 = por %p65, %p66
    %p68 = scmp.ne.s32.totalorder %s60, %s62
    %p69 = scmp.eq.s32.totalorder %s19, 3
    %p70 = por %p68, %p69
    %p71 = scmp.ne.s32.totalorder %s62, %s63
    %p72 = scmp.eq.s32.totalorder %s19, 0
    %p73 = por %p71, %p72
    %p74 = scmp.ne.s32.totalorder %s62, %s63
    %p75 = scmp.eq.s32.totalorder %s20, 3
    %p76 = por %p74, %p75
    %p78 = scmp.ne.s32.totalorder %s63, %s77
    %p79 = scmp.eq.s32.totalorder %s20, 0
    %p80 = por %p78, %p79
    %s82 = sadd.s32 %s81, 1
    %p85 = scmp.eq.s32.totalorder %s14, 3
    %p86 = scmp.ne.s32.totalorder %s81, %s83
    %p87 = scmp.eq.s32.totalorder %s14, 0
    %p88 = por %p86, %p87
    %p89 = scmp.ne.s32.totalorder %s81, %s83
    %p90 = scmp.eq.s32.totalorder %s19, 3
    %p91 = por %p89, %p90
    %p92 = scmp.ne.s32.totalorder %s83, %s84
    %p93 = scmp.eq.s32.totalorder %s19, 0
    %p94 = por %p92, %p93
    %p95 = scmp.ne.s32.totalorder %s83, %s84
    %p96 = scmp.eq.s32.totalorder %s20, 3
    %p97 = por %p95, %p96
    %p99 = scmp.ne.s32.totalorder %s84, %s98
    %p100 = scmp.eq.s32.totalorder %s20, 0
    %p101 = por %p99, %p100
    %s103 = sadd.s32 %s102, 1
    %p106 = scmp.eq.s32.totalorder %s14, 3
    %p107 = scmp.ne.s32.totalorder %s102, %s104
    %p108 = scmp.eq.s32.totalorder %s14, 0
    %p109 = por %p107, %p108
    %p110 = scmp.ne.s32.totalorder %s102, %s104
    %p111 = scmp.eq.s32.totalorder %s19, 3
    %p112 = por %p110, %p111
    %p113 = scmp.ne.s32.totalorder %s104, %s105
    %p114 = scmp.eq.s32.totalorder %s19, 0
    %p115 = por %p113, %p114
    %p116 = scmp.ne.s32.totalorder %s104, %s105
    %p117 = scmp.eq.s32.totalorder %s20, 3
    %p118 = por %p116, %p117
    %p120 = scmp.ne.s32.totalorder %s105, %s119
    %p121 = scmp.eq.s32.totalorder %s20, 0
    %p122 = por %p120, %p121
    %s123 = ssub.s32 %s22, %s29
    %p124 = scmp.eq.s32.totalorder %s123, 0
    %s126 = sadd.s32 %s125, 1
    %s127 = scalar_select %p124, %s125, %s126
    %p130 = pneg %p124
    %p131 = scmp.eq.s32.totalorder %s14, 3
    %p132 = por %p130, %p131
    %p133 = scmp.ne.s32.totalorder %s125, %s128
    %p134 = scmp.eq.s32.totalorder %s14, 0
    %p135 = por %p133, %p134
    %p136 = scmp.ne.s32.totalorder %s125, %s128
    %p137 = scmp.eq.s32.totalorder %s19, 3
    %p138 = por %p136, %p137
    %p139 = scmp.ne.s32.totalorder %s128, %s129
    %p140 = scmp.eq.s32.totalorder %s19, 0
    %p141 = por %p139, %p140
    %p142 = scmp.ne.s32.totalorder %s128, %s129
    %p143 = scmp.eq.s32.totalorder %s20, 3
    %p144 = por %p142, %p143
    %p146 = scmp.ne.s32.totalorder %s129, %s145
    %p147 = scmp.eq.s32.totalorder %s20, 0
    %p148 = por %p146, %p147
    %s149 = ssub.s32 %s22, %s29
    %p150 = scmp.eq.s32.totalorder %s149, 0
    %s152 = sadd.s32 %s151, 1
    %s153 = scalar_select %p150, %s151, %s152
    %p156 = pneg %p150
    %p157 = scmp.eq.s32.totalorder %s14, 3
    %p158 = por %p156, %p157
    %p159 = scmp.ne.s32.totalorder %s151, %s154
    %p160 = scmp.eq.s32.totalorder %s14, 0
    %p161 = por %p159, %p160
    %p162 = scmp.ne.s32.totalorder %s151, %s154
    %p163 = scmp.eq.s32.totalorder %s19, 3
    %p164 = por %p162, %p163
    %p165 = scmp.ne.s32.totalorder %s154, %s155
    %p166 = scmp.eq.s32.totalorder %s19, 0
    %p167 = por %p165, %p166
    %p168 = scmp.ne.s32.totalorder %s154, %s155
    %p169 = scmp.eq.s32.totalorder %s20, 3
    %p170 = por %p168, %p169
    %p172 = scmp.ne.s32.totalorder %s155, %s171
    %p173 = scmp.eq.s32.totalorder %s20, 0
    %p174 = por %p172, %p173
    %s175 = ssub.s32 %s22, %s29
    %p176 = scmp.eq.s32.totalorder %s175, 0
    %s178 = sadd.s32 %s177, 1
    %s179 = scalar_select %p176, %s177, %s178
    %p182 = pneg %p176
    %p183 = scmp.eq.s32.totalorder %s14, 3
    %p184 = por %p182, %p183
    %p185 = scmp.ne.s32.totalorder %s177, %s180
    %p186 = scmp.eq.s32.totalorder %s14, 0
    %p187 = por %p185, %p186
    %p188 = scmp.ne.s32.totalorder %s177, %s180
    %p189 = scmp.eq.s32.totalorder %s19, 3
    %p190 = por %p188, %p189
    %p191 = scmp.ne.s32.totalorder %s180, %s181
    %p192 = scmp.eq.s32.totalorder %s19, 0
    %p193 = por %p191, %p192
    %p194 = scmp.ne.s32.totalorder %s180, %s181
    %p195 = scmp.eq.s32.totalorder %s20, 3
    %p196 = por %p194, %p195
    %p198 = scmp.ne.s32.totalorder %s181, %s197
    %p199 = scmp.eq.s32.totalorder %s20, 0
    %p200 = por %p198, %p199
    %s201 = ssub.s32 %s22, %s29
    %p202 = scmp.eq.s32.totalorder %s201, 0
    %s204 = sadd.s32 %s203, 1
    %s205 = scalar_select %p202, %s203, %s204
    %p208 = pneg %p202
    %p209 = scmp.eq.s32.totalorder %s14, 3
    %p210 = por %p208, %p209
    %p211 = scmp.ne.s32.totalorder %s203, %s206
    %p212 = scmp.eq.s32.totalorder %s14, 0
    %p213 = por %p211, %p212
    %p214 = scmp.ne.s32.totalorder %s203, %s206
    %p215 = scmp.eq.s32.totalorder %s19, 3
    %p216 = por %p214, %p215
    %p217 = scmp.ne.s32.totalorder %s206, %s207
    %p218 = scmp.eq.s32.totalorder %s19, 0
    %p219 = por %p217, %p218
    %p220 = scmp.ne.s32.totalorder %s206, %s207
    %p221 = scmp.eq.s32.totalorder %s20, 3
    %p222 = por %p220, %p221
    %p224 = scmp.ne.s32.totalorder %s207, %s223
    %p225 = scmp.eq.s32.totalorder %s20, 0
    %p226 = por %p224, %p225
    %s227 = ssub.s32 %s21, %s33
    %p228 = scmp.eq.s32.totalorder %s227, 0
    %s230 = sadd.s32 %s229, 1
    %s231 = scalar_select %p228, %s229, %s230
    %p234 = pneg %p228
    %p235 = scmp.eq.s32.totalorder %s14, 3
    %p236 = por %p234, %p235
    %p237 = scmp.ne.s32.totalorder %s229, %s232
    %p238 = scmp.eq.s32.totalorder %s14, 0
    %p239 = por %p237, %p238
    %p240 = scmp.ne.s32.totalorder %s229, %s232
    %p241 = scmp.eq.s32.totalorder %s19, 3
    %p242 = por %p240, %p241
    %p243 = scmp.ne.s32.totalorder %s232, %s233
    %p244 = scmp.eq.s32.totalorder %s19, 0
    %p245 = por %p243, %p244
    %p246 = scmp.ne.s32.totalorder %s232, %s233
    %p247 = scmp.eq.s32.totalorder %s20, 3
    %p248 = por %p246, %p247
    %p250 = scmp.ne.s32.totalorder %s233, %s249
    %p251 = scmp.eq.s32.totalorder %s20, 0
    %p252 = por %p250, %p251
    %p253 = scmp.le.s32.totalorder 1, %s14
    %p254 = scmp.lt.s32.totalorder %s14, 5
    %p255 = pnand %p253, %p254
    %p256 = pneg %p255
    // Predicated region
    $region9: #{mid_incepnet_forward.4} parent=5 // pred_check
      _
    $region10: #{mid_incepnet_forward.4} parent=5 // pred_check_branch
      %258 = sbr.rel (%p255) target = $region12
    $region11: #{mid_incepnet_forward.4} parent=5 // pred_region
      %s259 = ssub.s32 %s14, 1
      // Predicated region
      $region13: #{mid_incepnet_forward.4} parent=11 // pred_check
        %p260 = pneg %p73
      $region14: #{mid_incepnet_forward.4} parent=11 // pred_check_branch
        %262 = sbr.rel (%p260) target = $region16
      $region15: #{mid_incepnet_forward.4} parent=11 // pred_region
        _
      $region16: #{mid_incepnet_forward.4} parent=11 // pred_fallthru
        _
      // Predicated region
      $region17: #{mid_incepnet_forward.4} parent=11 // pred_check
        %p263 = pneg %p94
      $region18: #{mid_incepnet_forward.4} parent=11 // pred_check_branch
        %265 = sbr.rel (%p263) target = $region20
      $region19: #{mid_incepnet_forward.4} parent=11 // pred_region
        _
      $region20: #{mid_incepnet_forward.4} parent=11 // pred_fallthru
        _
      // Predicated region
      $region21: #{mid_incepnet_forward.4} parent=11 // pred_check
        %p266 = pneg %p115
      $region22: #{mid_incepnet_forward.4} parent=11 // pred_check_branch
        %268 = sbr.rel (%p266) target = $region24
      $region23: #{mid_incepnet_forward.4} parent=11 // pred_region
        _
      $region24: #{mid_incepnet_forward.4} parent=11 // pred_fallthru
        _
    $region12: #{mid_incepnet_forward.4} parent=5 // pred_fallthru
      _
    %p269 = scmp.lt.s32.totalorder %s14, 4
    // Predicated region
    $region25: #{mid_incepnet_forward.4} parent=5 // pred_check
      %p270 = pneg %p269
    $region26: #{mid_incepnet_forward.4} parent=5 // pred_check_branch
      %272 = sbr.rel (%p270) target = $region28
    $region27: #{mid_incepnet_forward.4} parent=5 // pred_region
      // Predicated region
      $region29: #{mid_incepnet_forward.4} parent=27 // pred_check
        %p273 = pneg %p46
      $region30: #{mid_incepnet_forward.4} parent=27 // pred_check_branch
        %275 = sbr.rel (%p273) target = $region32
      $region31: #{mid_incepnet_forward.4} parent=27 // pred_region
        %p276 = scmp.lt.s32.totalorder %s21, 1
        %s277 = scalar_select %p276, %s21, 1
        %s278 = smul.addr %s277, 8
        %s279 = smul.addr %s278, 4
        %s280 = scalar_lea.vmem %s0, %s279
      $region32: #{mid_incepnet_forward.4} parent=27 // pred_fallthru
        _
      // Predicated region
      $region33: #{mid_incepnet_forward.4} parent=27 // pred_check
        %p281 = pneg %p135
      $region34: #{mid_incepnet_forward.4} parent=27 // pred_check_branch
        %283 = sbr.rel (%p281) target = $region36
      $region35: #{mid_incepnet_forward.4} parent=27 // pred_region
        %p284 = scmp.lt.s32.totalorder %s22, 1
        %s285 = scalar_select %p284, %s22, 1
        %s286 = smul.addr %s285, 50
        %s287 = smul.addr %s286, 4
        %s288 = scalar_lea.vmem %s4, %s287
      $region36: #{mid_incepnet_forward.4} parent=27 // pred_fallthru
        _
      // Predicated region
      $region37: #{mid_incepnet_forward.4} parent=27 // pred_check
        %p289 = pneg %p161
      $region38: #{mid_incepnet_forward.4} parent=27 // pred_check_branch
        %291 = sbr.rel (%p289) target = $region40
      $region39: #{mid_incepnet_forward.4} parent=27 // pred_region
        %p292 = scmp.lt.s32.totalorder %s22, 1
        %s293 = scalar_select %p292, %s22, 1
        %s294 = scalar_lea.vmem %s5, %s293
      $region40: #{mid_incepnet_forward.4} parent=27 // pred_fallthru
        _
      // Predicated region
      $region41: #{mid_incepnet_forward.4} parent=27 // pred_check
        %p295 = pneg %p187
      $region42: #{mid_incepnet_forward.4} parent=27 // pred_check_branch
        %297 = sbr.rel (%p295) target = $region44
      $region43: #{mid_incepnet_forward.4} parent=27 // pred_region
        %p298 = scmp.lt.s32.totalorder %s22, 1
        %s299 = scalar_select %p298, %s22, 1
        %s300 = scalar_lea.vmem %s6, %s299
      $region44: #{mid_incepnet_forward.4} parent=27 // pred_fallthru
        _
      // Predicated region
      $region45: #{mid_incepnet_forward.4} parent=27 // pred_check
        %p301 = pneg %p213
      $region46: #{mid_incepnet_forward.4} parent=27 // pred_check_branch
        %303 = sbr.rel (%p301) target = $region48
      $region47: #{mid_incepnet_forward.4} parent=27 // pred_region
        %p304 = scmp.lt.s32.totalorder %s22, 1
        %s305 = scalar_select %p304, %s22, 1
        %s306 = scalar_lea.vmem %s7, %s305
      $region48: #{mid_incepnet_forward.4} parent=27 // pred_fallthru
        _
    $region28: #{mid_incepnet_forward.4} parent=5 // pred_fallthru
      _
    %p307 = scmp.le.s32.totalorder 1, %s14
    %p308 = scmp.lt.s32.totalorder %s14, 5
    %p309 = pnand %p307, %p308
    %p310 = pneg %p309
    // Predicated region
    $region49: #{mid_incepnet_forward.4} parent=5 // pred_check
      _
    $region50: #{mid_incepnet_forward.4} parent=5 // pred_check_branch
      %312 = sbr.rel (%p309) target = $region52
    $region51: #{mid_incepnet_forward.4} parent=5 // pred_region
      %s313 = ssub.s32 %s14, 1
      %p314 = scmp.lt.s32.totalorder %s23, 1
      %s315 = scalar_select %p314, %s23, 1
      %s316 = smul.addr %s315, 8
      %s317 = smul.addr %s316, 4
      %s318 = scalar_lea.vmem %s0, %s317
      %p319 = pneg %p52
      %p320 = pneg %p49
      %p321 = pneg %p73
      %p322 = pneg %p70
      %p323 = pneg %p94
      %p324 = pneg %p91
      %p325 = pneg %p115
      %p326 = pneg %p112
      %p327 = scmp.lt.s32.totalorder %s24, 1
      %s328 = scalar_select %p327, %s24, 1
      %s329 = smul.addr %s328, 50
      %s330 = smul.addr %s329, 4
      %s331 = scalar_lea.vmem %s4, %s330
      %p332 = pneg %p141
      %p333 = pneg %p138
      %p334 = scmp.lt.s32.totalorder %s24, 1
      %s335 = scalar_select %p334, %s24, 1
      %s336 = scalar_lea.vmem %s5, %s335
      %p337 = pneg %p167
      %p338 = pneg %p164
      %p339 = scmp.lt.s32.totalorder %s24, 1
      %s340 = scalar_select %p339, %s24, 1
      %s341 = scalar_lea.vmem %s6, %s340
      %p342 = pneg %p193
      %p343 = pneg %p190
      %p344 = scmp.lt.s32.totalorder %s24, 1
      %s345 = scalar_select %p344, %s24, 1
      %s346 = scalar_lea.vmem %s7, %s345
      %p347 = pneg %p219
      %p348 = pneg %p216
      %p349 = pneg %p245
      %p350 = pneg %p242
      %p351 = scmp.lt.s32.totalorder %s23, 1
      %s352 = scalar_select %p351, %s23, 1
      %s353 = smul.addr %s352, 8
      %s354 = smul.addr %s353, 4
      %s355 = scalar_lea.vmem %s8, %s354
      %p356 = scmp.lt.s32.totalorder %s23, 1
      %s357 = scalar_select %p356, %s23, 1
      %s358 = smul.addr %s357, 8
      %s359 = smul.addr %s358, 4
      %s360 = scalar_lea.vmem %s0, %s359
      %p361 = scmp.lt.s32.totalorder %s24, 1
      %s362 = scalar_select %p361, %s24, 1
      %s363 = smul.addr %s362, 50
      %s364 = smul.addr %s363, 4
      %s365 = scalar_lea.vmem %s4, %s364
      %p366 = scmp.lt.s32.totalorder %s24, 1
      %s367 = scalar_select %p366, %s24, 1
      %s368 = scalar_lea.vmem %s5, %s367
      %p369 = scmp.lt.s32.totalorder %s24, 1
      %s370 = scalar_select %p369, %s24, 1
      %s371 = scalar_lea.vmem %s6, %s370
      %p372 = scmp.lt.s32.totalorder %s24, 1
      %s373 = scalar_select %p372, %s24, 1
      %s374 = scalar_lea.vmem %s7, %s373
      %p375 = scmp.lt.s32.totalorder %s23, 1
      %s376 = scalar_select %p375, %s23, 1
      %s377 = smul.addr %s376, 8
      %s378 = smul.addr %s377, 4
      %s379 = scalar_lea.vmem %s8, %s378
      %p381 = scmp.eq.s32.totalorder %s24, 0
      // Predicated region
      $region53: #{mid_incepnet_forward.4} parent=51 // pred_check
        %p382 = pneg %p381
      $region54: #{mid_incepnet_forward.4} parent=51 // pred_check_branch
        %384 = sbr.rel (%p382) target = $region56
      $region55: #{mid_incepnet_forward.4} parent=51 // pred_region
        %vm385 = vcmask 130048
        %386 = vst.msk [vmem:[#allocation2] sm:$0xff] %vm385, 0.0
        %vm387 = vcmask 125952
        %388 = vst.msk [vmem:[#allocation2 + $0x8] sm:$0xf] %vm387, 0.0
        %389 = vst.msk [vmem:[#allocation2 + $0x10] sm:$0xff] %vm385, 0.0
        %390 = vst.msk [vmem:[#allocation2 + $0x18] sm:$0xf] %vm387, 0.0
        %s391 = scalar_lea.vmem [#allocation2], 160
        %392 = vst.msk [vmem:[%s391] sm:$0xff] %vm385, 0.0
        %393 = vst.msk [vmem:[%s391 + $0x8] sm:$0xf] %vm387, 0.0
        %394 = vst.msk [vmem:[%s391 + $0x10] sm:$0xff] %vm385, 0.0
        %395 = vst.msk [vmem:[%s391 + $0x18] sm:$0xf] %vm387, 0.0
        %s396 = scalar_lea.vmem [#allocation2], 32
        %vm397 = vcmask 123904
        %398 = vst.msk [vmem:[%s396] sm:$0x3] %vm397, 0.0
        %399 = vst.msk [vmem:[%s396 + $0x10] sm:$0x3] %vm397, 0.0
        %400 = vst.msk [vmem:[%s396 + $0x20] sm:$0x3] %vm397, 0.0
        %401 = vst.msk [vmem:[%s396 + $0x30] sm:$0x3] %vm397, 0.0
        %402 = vst.msk [vmem:[%s396 + $0x40] sm:$0x3] %vm397, 0.0
        %403 = vst.msk [vmem:[%s396 + $0x50] sm:$0x3] %vm397, 0.0
        %404 = vst.msk [vmem:[%s396 + $0x60] sm:$0x3] %vm397, 0.0
        %405 = vst.msk [vmem:[%s396 + $0x70] sm:$0x3] %vm397, 0.0
        %406 = vst.msk [vmem:[%s396 + $0xa] sm:$0x3] %vm397, 0.0
        %407 = vst.msk [vmem:[%s396 + $0x1a] sm:$0x3] %vm397, 0.0
        %408 = vst.msk [vmem:[%s396 + $0x2a] sm:$0x3] %vm397, 0.0
        %409 = vst.msk [vmem:[%s396 + $0x3a] sm:$0x3] %vm397, 0.0
        %410 = vst.msk [vmem:[%s396 + $0x4a] sm:$0x3] %vm397, 0.0
        %411 = vst.msk [vmem:[%s396 + $0x5a] sm:$0x3] %vm397, 0.0
        %412 = vst.msk [vmem:[%s396 + $0x6a] sm:$0x3] %vm397, 0.0
        %413 = vst.msk [vmem:[%s396 + $0x7a] sm:$0x3] %vm397, 0.0
        %v414 = vld [vmem:[%s360] sm:$0xf]
        %v415 = vld [vmem:[%s360 + $0x4] sm:$0xf]
        %v416 = vld [vmem:[%s360 + $0x8] sm:$0xf]
        %v417 = vld [vmem:[%s360 + $0xc] sm:$0xf]
        %v418 = vld [vmem:[%s360 + $0x10] sm:$0xf]
        %v419 = vld [vmem:[%s360 + $0x14] sm:$0xf]
        %v420 = vld [vmem:[%s360 + $0x18] sm:$0xf]
        %v421 = vld [vmem:[%s360 + $0x1c] sm:$0xf]
        %v422 = vld [vmem:[%s1] sm:$0xf]
        %v423 = vld [vmem:[%s2] sm:$0x1]
        %v425 = vperm.slane %v423, 0
        %v435 = vunpack.c.l.b16 %v414
        %v436 = vunpack.c.l.b16 %v415
        %v437 = vunpack.c.l.b16 %v416
        %v438 = vunpack.c.l.b16 %v417
        %v439 = vunpack.c.l.b16 %v418
        %v440 = vunpack.c.l.b16 %v419
        %v441 = vunpack.c.l.b16 %v420
        %v442 = vunpack.c.l.b16 %v421
        %v443 = vpack.c.b16 %v436, %v435
        %v444 = vpack.c.b16 %v438, %v437
        %v445 = vpack.c.b16 %v440, %v439
        %v446 = vpack.c.b16 %v442, %v441
        %vm447 = vcmask 64512
        %v449 = vsel %vm447, %v443, 0
        %v452 = vsel %vm447, %v444, 0
        %v455 = vsel %vm447, %v445, 0
        %v458 = vsel %vm447, %v446, 0
        %vm460 = vcmask 1043456
        %v462 = vsel %vm460, %v422, 0
        %464 = vmatpush.bf16.msra.mxu0 0
        %465 = vmatpush.bf16.msra.mxu0 0
        %466 = vmatpush.bf16.msra.mxu0 0
        %467 = vmatpush.bf16.msra.mxu0 0
        %468 = vmatpush.bf16.msra.mxu0 0
        %469 = vmatpush.bf16.msra.mxu0 0
        %470 = vmatpush.bf16.msra.mxu0 0
        %471 = vmatpush.bf16.msra.mxu0 %v462
        %472 = vmatmul.bf16.gmra.mxu0 %v449
        %v473 = vpop.f32.mrf.mxu0
        %v474 = vadd.f32 %v425, %v473
        %v475 = vpop.f32.mrf.mxu0
        %v476 = vadd.f32 %v425, %v475
        %477 = vmatmul.bf16.gmra.mxu0 %v452
        %v478 = vpop.f32.mrf.mxu0
        %v479 = vadd.f32 %v425, %v478
        %v480 = vpop.f32.mrf.mxu0
        %v481 = vadd.f32 %v425, %v480
        %482 = vmatmul.bf16.gmra.mxu0 %v455
        %v483 = vpop.f32.mrf.mxu0
        %v484 = vadd.f32 %v425, %v483
        %v485 = vpop.f32.mrf.mxu0
        %v486 = vadd.f32 %v425, %v485
        %487 = vmatmul.bf16.gmra.mxu0 %v458
        %v488 = vpop.f32.mrf.mxu0
        %v489 = vadd.f32 %v425, %v488
        %v490 = vpop.f32.mrf.mxu0
        %v491 = vadd.f32 %v425, %v490
        %492 = vdwg.mxu0
        %493 = vst.msk [vmem:[%s396 + $0x2] sm:$0xff] %vm385, %v474
        %494 = vst.msk [vmem:[%s396 + $0x12] sm:$0xff] %vm385, %v476
        %495 = vst.msk [vmem:[%s396 + $0x22] sm:$0xff] %vm385, %v479
        %496 = vst.msk [vmem:[%s396 + $0x32] sm:$0xff] %vm385, %v481
        %497 = vst.msk [vmem:[%s396 + $0x42] sm:$0xff] %vm385, %v484
        %498 = vst.msk [vmem:[%s396 + $0x52] sm:$0xff] %vm385, %v486
        %499 = vst.msk [vmem:[%s396 + $0x62] sm:$0xff] %vm385, %v489
        %500 = vst.msk [vmem:[%s396 + $0x72] sm:$0xff] %vm385, %v491
        %v501 = vld [vmem:[#allocation2 + $0x1] sm:$0xff]
        %v502 = vld [vmem:[#allocation2 + $0x11] sm:$0xff]
        %v503 = vld [vmem:[#allocation2 + $0x21] sm:$0xff]
        %v504 = vld [vmem:[#allocation2 + $0x31] sm:$0xff]
        %v505 = vld [vmem:[#allocation2 + $0x41] sm:$0xff]
        %v506 = vld [vmem:[#allocation2 + $0x51] sm:$0xff]
        %v507 = vld [vmem:[#allocation2 + $0x61] sm:$0xff]
        %v508 = vld [vmem:[#allocation2 + $0x71] sm:$0xff]
        %v509 = vld [vmem:[#allocation2 + $0x81] sm:$0xff]
        %v510 = vld [vmem:[#allocation2 + $0x91] sm:$0xff]
        %v511 = vld [vmem:[#allocation2 + $0xa1] sm:$0xff]
        %v512 = vld [vmem:[#allocation2 + $0xb1] sm:$0xff]
        %v513 = vpack.c.bf16 %v501, %v501
        %v514 = vpack.c.bf16 %v502, %v502
        %v515 = vpack.c.bf16 %v503, %v503
        %v516 = vpack.c.bf16 %v504, %v504
        %v517 = vpack.c.bf16 %v505, %v505
        %v518 = vpack.c.bf16 %v506, %v506
        %v519 = vpack.c.bf16 %v507, %v507
        %v520 = vpack.c.bf16 %v508, %v508
        %v521 = vpack.c.bf16 %v509, %v509
        %v522 = vpack.c.bf16 %v510, %v510
        %v523 = vpack.c.bf16 %v511, %v511
        %v524 = vpack.c.bf16 %v512, %v512
        %525 = vst.msk [vmem:[#allocation3] sm:$0xf] %vm387, %v513
        %526 = vst.msk [vmem:[#allocation3 + $0x4] sm:$0xf] %vm387, %v514
        %527 = vst.msk [vmem:[#allocation3 + $0x8] sm:$0xf] %vm387, %v515
        %528 = vst.msk [vmem:[#allocation3 + $0xc] sm:$0xf] %vm387, %v516
        %529 = vst.msk [vmem:[#allocation3 + $0x10] sm:$0xf] %vm387, %v517
        %530 = vst.msk [vmem:[#allocation3 + $0x14] sm:$0xf] %vm387, %v518
        %531 = vst.msk [vmem:[#allocation3 + $0x18] sm:$0xf] %vm387, %v519
        %532 = vst.msk [vmem:[#allocation3 + $0x1c] sm:$0xf] %vm387, %v520
        %533 = vst.msk [vmem:[#allocation3 + $0x20] sm:$0xf] %vm387, %v521
        %534 = vst.msk [vmem:[#allocation3 + $0x24] sm:$0xf] %vm387, %v522
        %535 = vst.msk [vmem:[#allocation3 + $0x28] sm:$0xf] %vm387, %v523
        %536 = vst.msk [vmem:[#allocation3 + $0x2c] sm:$0xf] %vm387, %v524
        %v537 = vld [vmem:[#allocation2 + $0x2] sm:$0xff]
        %v538 = vld [vmem:[#allocation2 + $0x12] sm:$0xff]
        %v539 = vld [vmem:[#allocation2 + $0x22] sm:$0xff]
        %v540 = vld [vmem:[#allocation2 + $0x32] sm:$0xff]
        %v541 = vld [vmem:[#allocation2 + $0x42] sm:$0xff]
        %v542 = vld [vmem:[#allocation2 + $0x52] sm:$0xff]
        %v543 = vld [vmem:[#allocation2 + $0x62] sm:$0xff]
        %v544 = vld [vmem:[#allocation2 + $0x72] sm:$0xff]
        %v545 = vld [vmem:[#allocation2 + $0x82] sm:$0xff]
        %v546 = vld [vmem:[#allocation2 + $0x92] sm:$0xff]
        %v547 = vld [vmem:[#allocation2 + $0xa2] sm:$0xff]
        %v548 = vld [vmem:[#allocation2 + $0xb2] sm:$0xff]
        %v549 = vpack.c.bf16 %v537, %v537
        %v550 = vpack.c.bf16 %v538, %v538
        %v551 = vpack.c.bf16 %v539, %v539
        %v552 = vpack.c.bf16 %v540, %v540
        %v553 = vpack.c.bf16 %v541, %v541
        %v554 = vpack.c.bf16 %v542, %v542
        %v555 = vpack.c.bf16 %v543, %v543
        %v556 = vpack.c.bf16 %v544, %v544
        %v557 = vpack.c.bf16 %v545, %v545
        %v558 = vpack.c.bf16 %v546, %v546
        %v559 = vpack.c.bf16 %v547, %v547
        %v560 = vpack.c.bf16 %v548, %v548
        %573 = vrot.lane.b32.xlu0 %v549, 16
        %v574 = vpop.permute.xlu0 %573
        %575 = vrot.lane.b32.xlu0 %v550, 16
        %v576 = vpop.permute.xlu0 %575
        %577 = vrot.lane.b32.xlu0 %v551, 16
        %v578 = vpop.permute.xlu0 %577
        %579 = vrot.lane.b32.xlu0 %v552, 16
        %v580 = vpop.permute.xlu0 %579
        %581 = vrot.lane.b32.xlu0 %v553, 16
        %v582 = vpop.permute.xlu0 %581
        %583 = vrot.lane.b32.xlu0 %v554, 16
        %v584 = vpop.permute.xlu0 %583
        %585 = vrot.lane.b32.xlu0 %v555, 16
        %v586 = vpop.permute.xlu0 %585
        %587 = vrot.lane.b32.xlu0 %v556, 16
        %v588 = vpop.permute.xlu0 %587
        %589 = vrot.lane.b32.xlu0 %v557, 16
        %v590 = vpop.permute.xlu0 %589
        %591 = vrot.lane.b32.xlu0 %v558, 16
        %v592 = vpop.permute.xlu0 %591
        %593 = vrot.lane.b32.xlu0 %v559, 16
        %v594 = vpop.permute.xlu0 %593
        %595 = vrot.lane.b32.xlu0 %v560, 16
        %v596 = vpop.permute.xlu0 %595
        %vm609 = vcmask 257152
        %610 = vst.msk [vmem:[#allocation3] sm:$0xf] %vm609, %v574
        %611 = vst.msk [vmem:[#allocation3 + $0x4] sm:$0xf] %vm609, %v576
        %612 = vst.msk [vmem:[#allocation3 + $0x8] sm:$0xf] %vm609, %v578
        %613 = vst.msk [vmem:[#allocation3 + $0xc] sm:$0xf] %vm609, %v580
        %614 = vst.msk [vmem:[#allocation3 + $0x10] sm:$0xf] %vm609, %v582
        %615 = vst.msk [vmem:[#allocation3 + $0x14] sm:$0xf] %vm609, %v584
        %616 = vst.msk [vmem:[#allocation3 + $0x18] sm:$0xf] %vm609, %v586
        %617 = vst.msk [vmem:[#allocation3 + $0x1c] sm:$0xf] %vm609, %v588
        %618 = vst.msk [vmem:[#allocation3 + $0x20] sm:$0xf] %vm609, %v590
        %619 = vst.msk [vmem:[#allocation3 + $0x24] sm:$0xf] %vm609, %v592
        %620 = vst.msk [vmem:[#allocation3 + $0x28] sm:$0xf] %vm609, %v594
        %621 = vst.msk [vmem:[#allocation3 + $0x2c] sm:$0xf] %vm609, %v596
        %v622 = vld [vmem:[#allocation2 + $0x3] sm:$0xff]
        %v623 = vld [vmem:[#allocation2 + $0x13] sm:$0xff]
        %v624 = vld [vmem:[#allocation2 + $0x23] sm:$0xff]
        %v625 = vld [vmem:[#allocation2 + $0x33] sm:$0xff]
        %v626 = vld [vmem:[#allocation2 + $0x43] sm:$0xff]
        %v627 = vld [vmem:[#allocation2 + $0x53] sm:$0xff]
        %v628 = vld [vmem:[#allocation2 + $0x63] sm:$0xff]
        %v629 = vld [vmem:[#allocation2 + $0x73] sm:$0xff]
        %v630 = vld [vmem:[#allocation2 + $0x83] sm:$0xff]
        %v631 = vld [vmem:[#allocation2 + $0x93] sm:$0xff]
        %v632 = vld [vmem:[#allocation2 + $0xa3] sm:$0xff]
        %v633 = vld [vmem:[#allocation2 + $0xb3] sm:$0xff]
        %v634 = vpack.c.bf16 %v622, %v622
        %v635 = vpack.c.bf16 %v623, %v623
        %v636 = vpack.c.bf16 %v624, %v624
        %v637 = vpack.c.bf16 %v625, %v625
        %v638 = vpack.c.bf16 %v626, %v626
        %v639 = vpack.c.bf16 %v627, %v627
        %v640 = vpack.c.bf16 %v628, %v628
        %v641 = vpack.c.bf16 %v629, %v629
        %v642 = vpack.c.bf16 %v630, %v630
        %v643 = vpack.c.bf16 %v631, %v631
        %v644 = vpack.c.bf16 %v632, %v632
        %v645 = vpack.c.bf16 %v633, %v633
        %658 = vrot.lane.b32.xlu0 %v634, 32
        %v659 = vpop.permute.xlu0 %658
        %660 = vrot.lane.b32.xlu0 %v635, 32
        %v661 = vpop.permute.xlu0 %660
        %662 = vrot.lane.b32.xlu0 %v636, 32
        %v663 = vpop.permute.xlu0 %662
        %664 = vrot.lane.b32.xlu0 %v637, 32
        %v665 = vpop.permute.xlu0 %664
        %666 = vrot.lane.b32.xlu0 %v638, 32
        %v667 = vpop.permute.xlu0 %666
        %668 = vrot.lane.b32.xlu0 %v639, 32
        %v669 = vpop.permute.xlu0 %668
        %670 = vrot.lane.b32.xlu0 %v640, 32
        %v671 = vpop.permute.xlu0 %670
        %672 = vrot.lane.b32.xlu0 %v641, 32
        %v673 = vpop.permute.xlu0 %672
        %674 = vrot.lane.b32.xlu0 %v642, 32
        %v675 = vpop.permute.xlu0 %674
        %676 = vrot.lane.b32.xlu0 %v643, 32
        %v677 = vpop.permute.xlu0 %676
        %678 = vrot.lane.b32.xlu0 %v644, 32
        %v679 = vpop.permute.xlu0 %678
        %680 = vrot.lane.b32.xlu0 %v645, 32
        %v681 = vpop.permute.xlu0 %680
        %vm694 = vcmask 388352
        %695 = vst.msk [vmem:[#allocation3] sm:$0xf] %vm694, %v659
        %696 = vst.msk [vmem:[#allocation3 + $0x4] sm:$0xf] %vm694, %v661
        %697 = vst.msk [vmem:[#allocation3 + $0x8] sm:$0xf] %vm694, %v663
        %698 = vst.msk [vmem:[#allocation3 + $0xc] sm:$0xf] %vm694, %v665
        %699 = vst.msk [vmem:[#allocation3 + $0x10] sm:$0xf] %vm694, %v667
        %700 = vst.msk [vmem:[#allocation3 + $0x14] sm:$0xf] %vm694, %v669
        %701 = vst.msk [vmem:[#allocation3 + $0x18] sm:$0xf] %vm694, %v671
        %702 = vst.msk [vmem:[#allocation3 + $0x1c] sm:$0xf] %vm694, %v673
        %703 = vst.msk [vmem:[#allocation3 + $0x20] sm:$0xf] %vm694, %v675
        %704 = vst.msk [vmem:[#allocation3 + $0x24] sm:$0xf] %vm694, %v677
        %705 = vst.msk [vmem:[#allocation3 + $0x28] sm:$0xf] %vm694, %v679
        %706 = vst.msk [vmem:[#allocation3 + $0x2c] sm:$0xf] %vm694, %v681
        %v707 = vld [vmem:[#allocation3 + $0x4] sm:$0xf]
        %v708 = vld [vmem:[#allocation3 + $0x8] sm:$0xf]
        %v709 = vld [vmem:[#allocation3 + $0xc] sm:$0xf]
        %v710 = vld [vmem:[#allocation3 + $0x10] sm:$0xf]
        %v711 = vld [vmem:[#allocation3 + $0x14] sm:$0xf]
        %v712 = vld [vmem:[#allocation3 + $0x18] sm:$0xf]
        %v713 = vld [vmem:[#allocation3 + $0x1c] sm:$0xf]
        %v714 = vld [vmem:[#allocation3 + $0x20] sm:$0xf]
        %v715 = vld [vmem:[%s365] sm:$0xf]
        %v716 = vld [vmem:[%s365 + $0x4] sm:$0xf]
        %v717 = vld [vmem:[%s365 + $0x8] sm:$0xf]
        %v718 = vld [vmem:[%s365 + $0xc] sm:$0xf]
        %v719 = vld [vmem:[%s365 + $0x10] sm:$0xf]
        %v720 = vld [vmem:[%s365 + $0x14] sm:$0xf]
        %v721 = vld [vmem:[#allocation3 + $0x24] sm:$0xf]
        %s722 = scalar_lea.vmem %s365, 40
        %v723 = vld [vmem:[%s722] sm:$0xf]
        %v724 = vld [vmem:[%s722 + $0x4] sm:$0xf]
        %v725 = vld [vmem:[%s722 + $0x8] sm:$0xf]
        %v726 = vld [vmem:[%s722 + $0xc] sm:$0xf]
        %v727 = vld [vmem:[%s722 + $0x10] sm:$0xf]
        %v728 = vld [vmem:[%s722 + $0x14] sm:$0xf]
        %v737 = vunpack.c.l.b16 %v708
        %v738 = vunpack.c.l.b16 %v709
        %v739 = vunpack.c.l.b16 %v710
        %v740 = vunpack.c.l.b16 %v711
        %v741 = vunpack.c.l.b16 %v712
        %v742 = vunpack.c.l.b16 %v713
        %v743 = vunpack.c.l.b16 %v714
        %v744 = vunpack.c.l.b16 %v721
        %v745 = vpack.c.b16 %v738, %v737
        %v746 = vpack.c.b16 %v740, %v739
        %v747 = vpack.c.b16 %v742, %v741
        %v748 = vpack.c.b16 %v744, %v743
        %v755 = vunpack.c.l.b16 %v723
        %v756 = vunpack.c.l.b16 %v724
        %v757 = vunpack.c.l.b16 %v725
        %v758 = vunpack.c.l.b16 %v726
        %v759 = vunpack.c.l.b16 %v727
        %v760 = vunpack.c.l.b16 %v728
        %v761 = vpack.c.b16 %v756, %v755
        %v762 = vpack.c.b16 %v758, %v757
        %v763 = vpack.c.b16 %v760, %v759
        %vm767 = vcmask 392192
        %v769 = vsel %vm767, %v745, 0
        %v772 = vsel %vm767, %v746, 0
        %v775 = vsel %vm767, %v747, 0
        %v778 = vsel %vm767, %v748, 0
        %780 = vmatpush.bf16.msra.mxu0 0
        %781 = vmatpush.bf16.msra.mxu0 0
        %782 = vmatpush.bf16.msra.mxu0 0
        %783 = vmatpush.bf16.msra.mxu0 0
        %784 = vmatpush.bf16.msra.mxu0 0
        %785 = vmatpush.bf16.msra.mxu0 %v763
        %786 = vmatpush.bf16.msra.mxu0 %v762
        %787 = vmatpush.bf16.msra.mxu0 %v761
        %788 = vmatmul.bf16.gmra.mxu0 %v769
        %v789 = vpop.f32.mrf.mxu0
        %v790 = vadd.f32 0.0, %v789
        %v791 = vpop.f32.mrf.mxu0
        %v792 = vadd.f32 0.0, %v791
        %793 = vmatmul.bf16.gmra.mxu0 %v772
        %v794 = vpop.f32.mrf.mxu0
        %v795 = vadd.f32 0.0, %v794
        %v796 = vpop.f32.mrf.mxu0
        %v797 = vadd.f32 0.0, %v796
        %798 = vmatmul.bf16.gmra.mxu0 %v775
        %v799 = vpop.f32.mrf.mxu0
        %v800 = vadd.f32 0.0, %v799
        %v801 = vpop.f32.mrf.mxu0
        %v802 = vadd.f32 0.0, %v801
        %803 = vmatmul.bf16.gmra.mxu0 %v778
        %v804 = vpop.f32.mrf.mxu0
        %v805 = vadd.f32 0.0, %v804
        %v806 = vpop.f32.mrf.mxu0
        %v807 = vadd.f32 0.0, %v806
        %808 = vdwg.mxu0
        %v810 = vunpack.c.l.b16 %v707
        %v811 = vpack.c.b16 %v737, %v810
        %v812 = vpack.c.b16 %v739, %v738
        %v813 = vpack.c.b16 %v741, %v740
        %v814 = vpack.c.b16 %v743, %v742
        %v821 = vunpack.c.l.b16 %v715
        %v822 = vunpack.c.l.b16 %v716
        %v823 = vunpack.c.l.b16 %v717
        %v824 = vunpack.c.l.b16 %v718
        %v825 = vunpack.c.l.b16 %v719
        %v826 = vunpack.c.l.b16 %v720
        %v827 = vpack.c.b16 %v822, %v821
        %v828 = vpack.c.b16 %v824, %v823
        %v829 = vpack.c.b16 %v826, %v825
        %v834 = vsel %vm767, %v811, 0
        %v837 = vsel %vm767, %v812, 0
        %v840 = vsel %vm767, %v813, 0
        %v843 = vsel %vm767, %v814, 0
        %845 = vmatpush.bf16.msra.mxu0 0
        %846 = vmatpush.bf16.msra.mxu0 0
        %847 = vmatpush.bf16.msra.mxu0 0
        %848 = vmatpush.bf16.msra.mxu0 0
        %849 = vmatpush.bf16.msra.mxu0 0
        %850 = vmatpush.bf16.msra.mxu0 %v829
        %851 = vmatpush.bf16.msra.mxu0 %v828
        %852 = vmatpush.bf16.msra.mxu0 %v827
        %853 = vmatmul.bf16.gmra.mxu0 %v834
        %v854 = vpop.f32.mrf.mxu0
        %v855 = vadd.f32 %v790, %v854
        %v856 = vpop.f32.mrf.mxu0
        %v857 = vadd.f32 %v792, %v856
        %858 = vmatmul.bf16.gmra.mxu0 %v837
        %v859 = vpop.f32.mrf.mxu0
        %v860 = vadd.f32 %v795, %v859
        %v861 = vpop.f32.mrf.mxu0
        %v862 = vadd.f32 %v797, %v861
        %863 = vmatmul.bf16.gmra.mxu0 %v840
        %v864 = vpop.f32.mrf.mxu0
        %v865 = vadd.f32 %v800, %v864
        %v866 = vpop.f32.mrf.mxu0
        %v867 = vadd.f32 %v802, %v866
        %868 = vmatmul.bf16.gmra.mxu0 %v843
        %v869 = vpop.f32.mrf.mxu0
        %v870 = vadd.f32 %v805, %v869
        %v871 = vpop.f32.mrf.mxu0
        %v872 = vadd.f32 %v807, %v871
        %873 = vdwg.mxu0
        %v874 = vld [vmem:[#allocation3 + $0xc] sm:$0xf]
        %v875 = vld [vmem:[#allocation3 + $0x10] sm:$0xf]
        %v876 = vld [vmem:[#allocation3 + $0x14] sm:$0xf]
        %v877 = vld [vmem:[#allocation3 + $0x18] sm:$0xf]
        %v878 = vld [vmem:[#allocation3 + $0x1c] sm:$0xf]
        %v879 = vld [vmem:[#allocation3 + $0x20] sm:$0xf]
        %v880 = vld [vmem:[#allocation3 + $0x24] sm:$0xf]
        %v881 = vld [vmem:[#allocation3 + $0x28] sm:$0xf]
        %s882 = scalar_lea.vmem %s365, 80
        %v883 = vld [vmem:[%s882] sm:$0xf]
        %v884 = vld [vmem:[%s882 + $0x4] sm:$0xf]
        %v885 = vld [vmem:[%s882 + $0x8] sm:$0xf]
        %v886 = vld [vmem:[%s882 + $0xc] sm:$0xf]
        %v887 = vld [vmem:[%s882 + $0x10] sm:$0xf]
        %v888 = vld [vmem:[%s882 + $0x14] sm:$0xf]
        %v897 = vunpack.c.l.b16 %v874
        %v898 = vunpack.c.l.b16 %v875
        %v899 = vunpack.c.l.b16 %v876
        %v900 = vunpack.c.l.b16 %v877
        %v901 = vunpack.c.l.b16 %v878
        %v902 = vunpack.c.l.b16 %v879
        %v903 = vunpack.c.l.b16 %v880
        %v904 = vunpack.c.l.b16 %v881
        %v905 = vpack.c.b16 %v898, %v897
        %v906 = vpack.c.b16 %v900, %v899
        %v907 = vpack.c.b16 %v902, %v901
        %v908 = vpack.c.b16 %v904, %v903
        %v915 = vunpack.c.l.b16 %v883
        %v916 = vunpack.c.l.b16 %v884
        %v917 = vunpack.c.l.b16 %v885
        %v918 = vunpack.c.l.b16 %v886
        %v919 = vunpack.c.l.b16 %v887
        %v920 = vunpack.c.l.b16 %v888
        %v921 = vpack.c.b16 %v916, %v915
        %v922 = vpack.c.b16 %v918, %v917
        %v923 = vpack.c.b16 %v920, %v919
        %v928 = vsel %vm767, %v905, 0
        %v931 = vsel %vm767, %v906, 0
        %v934 = vsel %vm767, %v907, 0
        %v937 = vsel %vm767, %v908, 0
        %939 = vmatpush.bf16.msra.mxu0 0
        %940 = vmatpush.bf16.msra.mxu0 0
        %941 = vmatpush.bf16.msra.mxu0 0
        %942 = vmatpush.bf16.msra.mxu0 0
        %943 = vmatpush.bf16.msra.mxu0 0
        %944 = vmatpush.bf16.msra.mxu0 %v923
        %945 = vmatpush.bf16.msra.mxu0 %v922
        %946 = vmatpush.bf16.msra.mxu0 %v921
        %947 = vmatmul.bf16.gmra.mxu0 %v928
        %v948 = vpop.f32.mrf.mxu0
        %v949 = vadd.f32 0.0, %v948
        %v950 = vpop.f32.mrf.mxu0
        %v951 = vadd.f32 0.0, %v950
        %952 = vmatmul.bf16.gmra.mxu0 %v931
        %v953 = vpop.f32.mrf.mxu0
        %v954 = vadd.f32 0.0, %v953
        %v955 = vpop.f32.mrf.mxu0
        %v956 = vadd.f32 0.0, %v955
        %957 = vmatmul.bf16.gmra.mxu0 %v934
        %v958 = vpop.f32.mrf.mxu0
        %v959 = vadd.f32 0.0, %v958
        %v960 = vpop.f32.mrf.mxu0
        %v961 = vadd.f32 0.0, %v960
        %962 = vmatmul.bf16.gmra.mxu0 %v937
        %v963 = vpop.f32.mrf.mxu0
        %v964 = vadd.f32 0.0, %v963
        %v965 = vpop.f32.mrf.mxu0
        %v966 = vadd.f32 0.0, %v965
        %967 = vdwg.mxu0
        %v968 = vadd.f32 %v855, %v949
        %v969 = vadd.f32 %v857, %v951
        %v970 = vadd.f32 %v860, %v954
        %v971 = vadd.f32 %v862, %v956
        %v972 = vadd.f32 %v865, %v959
        %v973 = vadd.f32 %v867, %v961
        %v974 = vadd.f32 %v870, %v964
        %v975 = vadd.f32 %v872, %v966
        %v976 = vld [vmem:[%s368] sm:$0x1]
        %v978 = vperm.slane %v976, 0
        %v980 = vadd.f32 %v968, %v978
        %v981 = vadd.f32 %v969, %v978
        %v982 = vadd.f32 %v970, %v978
        %v983 = vadd.f32 %v971, %v978
        %v984 = vadd.f32 %v972, %v978
        %v985 = vadd.f32 %v973, %v978
        %v986 = vadd.f32 %v974, %v978
        %v987 = vadd.f32 %v975, %v978
        %vm988 = vcmask 261120
        %v989 = vsel %vm988, %v980, 0.0
        %v990 = vsel %vm988, %v981, 0.0
        %v991 = vadd.f32 %v989, %v990
        %v992 = vsel %vm988, %v982, 0.0
        %v993 = vadd.f32 %v991, %v992
        %v994 = vsel %vm988, %v983, 0.0
        %v995 = vadd.f32 %v993, %v994
        %v996 = vsel %vm988, %v984, 0.0
        %v997 = vadd.f32 %v995, %v996
        %v998 = vsel %vm988, %v985, 0.0
        %v999 = vadd.f32 %v997, %v998
        %v1000 = vsel %vm988, %v986, 0.0
        %v1001 = vadd.f32 %v999, %v1000
        %v1002 = vsel %vm988, %v987, 0.0
        %v1003 = vadd.f32 %v1001, %v1002
        %v1004 = vrot.slane %v1003, 4
        %v1005 = vadd.f32 %v1003, %v1004
        %v1006 = vrot.slane %v1005, 2
        %v1007 = vadd.f32 %v1005, %v1006
        %v1008 = vrot.slane %v1007, 1
        %v1009 = vadd.f32 %v1007, %v1008
        %v1010 = vmul.f32 %v980, %v980
        %v1011 = vmul.f32 %v981, %v981
        %v1012 = vmul.f32 %v982, %v982
        %v1013 = vmul.f32 %v983, %v983
        %v1014 = vmul.f32 %v984, %v984
        %v1015 = vmul.f32 %v985, %v985
        %v1016 = vmul.f32 %v986, %v986
        %v1017 = vmul.f32 %v987, %v987
        %v1018 = vsel %vm988, %v1010, 0.0
        %v1019 = vsel %vm988, %v1011, 0.0
        %v1020 = vadd.f32 %v1018, %v1019
        %v1021 = vsel %vm988, %v1012, 0.0
        %v1022 = vadd.f32 %v1020, %v1021
        %v1023 = vsel %vm988, %v1013, 0.0
        %v1024 = vadd.f32 %v1022, %v1023
        %v1025 = vsel %vm988, %v1014, 0.0
        %v1026 = vadd.f32 %v1024, %v1025
        %v1027 = vsel %vm988, %v1015, 0.0
        %v1028 = vadd.f32 %v1026, %v1027
        %v1029 = vsel %vm988, %v1016, 0.0
        %v1030 = vadd.f32 %v1028, %v1029
        %v1031 = vsel %vm988, %v1017, 0.0
        %v1032 = vadd.f32 %v1030, %v1031
        %v1033 = vrot.slane %v1032, 4
        %v1034 = vadd.f32 %v1032, %v1033
        %v1035 = vrot.slane %v1034, 2
        %v1036 = vadd.f32 %v1034, %v1035
        %v1037 = vrot.slane %v1036, 1
        %v1038 = vadd.f32 %v1036, %v1037
        %vm1039 = vcmask 1040384
        %v1040 = vsel %vm1039, %v1009, %v1038
        %v1041 = vld [vmem:[%s3] sm:$0xff]
        %v1042 = vld [vmem:[%s3 + $0x8] sm:$0xff]
        %v1043 = vld [vmem:[%s3 + $0x10] sm:$0xff]
        %v1044 = vld [vmem:[%s3 + $0x18] sm:$0xff]
        %v1046 = vsel %vm988, %v1040, 0
        %1048 = vmatpush.msra.mxu0 0.0
        %1049 = vmatpush.msra.mxu0 0.0
        %1050 = vmatpush.msra.mxu0 0.0
        %1051 = vmatpush.msra.mxu0 0.0
        %1052 = vmatpush.msra.mxu0 0.0
        %1053 = vmatpush.msra.mxu0 0.0
        %1054 = vmatpush.msra.mxu0 0.0
        %1055 = vmatpush.msra.mxu0 0.0
        %1056 = vmatpush.msra.mxu0 0.0
        %1057 = vmatpush.msra.mxu0 0.0
        %1058 = vmatpush.msra.mxu0 0.0
        %1059 = vmatpush.msra.mxu0 0.0
        %1060 = vmatpush.msra.mxu0 %v1044
        %1061 = vmatpush.msra.mxu0 %v1043
        %1062 = vmatpush.msra.mxu0 %v1042
        %1063 = vmatpush.msra.mxu0 %v1041
        %1064 = vmatmul.f32.gmra.mxu0 %v1046
        %v1065 = vpop.f32.mrf.mxu0
        %v1066 = vadd.f32 0.0, %v1065
        %1067 = vdwg.mxu0
        %v1068 = vmul.f32 %v1066, 0.001953125
        %v1069 = vmul.f32 %v1068, %v1068
        %v1071 = vrot.slane %v1069, 7
        %v1073 = vsub.f32 %v1068, %v1071
        %v1074 = vmax.f32 %v1073, 0.0
        %v1075 = vperm.slane %v1068, 0
        %v1076 = vsub.f32 %v980, %v1075
        %v1077 = vsub.f32 %v981, %v1075
        %v1078 = vsub.f32 %v982, %v1075
        %v1079 = vsub.f32 %v983, %v1075
        %v1080 = vsub.f32 %v984, %v1075
        %v1081 = vsub.f32 %v985, %v1075
        %v1082 = vsub.f32 %v986, %v1075
        %v1083 = vsub.f32 %v987, %v1075
        %v1084 = vadd.f32 %v1074, 1e-05
        %v1085 = vrsqrt.pop %v1084
        %v1086 = vmul.f32 %v1085, %v1084
        %v1087 = vmul.f32 %v1086, %v1085
        %v1088 = vmul.f32 0.5, %v1087
        %v1089 = vsub.f32 1.5, %v1088
        %v1090 = vmul.f32 %v1085, %v1089
        %vm1091 = vweird.f32 %v1084
        %vm1092 = vweird.f32 %v1085
        %vm1093 = vmor %vm1091, %vm1092
        %v1094 = vsel %vm1093, %v1085, %v1090
        %v1095 = vperm.slane %v1094, 1
        %v1096 = vmul.f32 %v1076, %v1095
        %v1097 = vmul.f32 %v1077, %v1095
        %v1098 = vmul.f32 %v1078, %v1095
        %v1099 = vmul.f32 %v1079, %v1095
        %v1100 = vmul.f32 %v1080, %v1095
        %v1101 = vmul.f32 %v1081, %v1095
        %v1102 = vmul.f32 %v1082, %v1095
        %v1103 = vmul.f32 %v1083, %v1095
        %v1104 = vld [vmem:[%s371] sm:$0x1]
        %v1106 = vperm.slane %v1104, 0
        %v1108 = vmul.f32 %v1096, %v1106
        %v1109 = vmul.f32 %v1097, %v1106
        %v1110 = vmul.f32 %v1098, %v1106
        %v1111 = vmul.f32 %v1099, %v1106
        %v1112 = vmul.f32 %v1100, %v1106
        %v1113 = vmul.f32 %v1101, %v1106
        %v1114 = vmul.f32 %v1102, %v1106
        %v1115 = vmul.f32 %v1103, %v1106
        %v1116 = vld [vmem:[%s374] sm:$0x1]
        %v1118 = vperm.slane %v1116, 0
        %v1120 = vadd.f32 %v1108, %v1118
        %v1121 = vadd.f32 %v1109, %v1118
        %v1122 = vadd.f32 %v1110, %v1118
        %v1123 = vadd.f32 %v1111, %v1118
        %v1124 = vadd.f32 %v1112, %v1118
        %v1125 = vadd.f32 %v1113, %v1118
        %v1126 = vadd.f32 %v1114, %v1118
        %v1127 = vadd.f32 %v1115, %v1118
        %vm1128 = vcmp.ge.f32.partialorder %v1120, 0.0
        %vm1129 = vcmp.ge.f32.partialorder %v1121, 0.0
        %vm1130 = vcmp.ge.f32.partialorder %v1122, 0.0
        %vm1131 = vcmp.ge.f32.partialorder %v1123, 0.0
        %vm1132 = vcmp.ge.f32.partialorder %v1124, 0.0
        %vm1133 = vcmp.ge.f32.partialorder %v1125, 0.0
        %vm1134 = vcmp.ge.f32.partialorder %v1126, 0.0
        %vm1135 = vcmp.ge.f32.partialorder %v1127, 0.0
        %v1136 = vmul.f32 %v1120, 0.2
        %v1137 = vmul.f32 %v1121, 0.2
        %v1138 = vmul.f32 %v1122, 0.2
        %v1139 = vmul.f32 %v1123, 0.2
        %v1140 = vmul.f32 %v1124, 0.2
        %v1141 = vmul.f32 %v1125, 0.2
        %v1142 = vmul.f32 %v1126, 0.2
        %v1143 = vmul.f32 %v1127, 0.2
        %v1144 = vsel %vm1128, %v1120, %v1136
        %v1145 = vsel %vm1129, %v1121, %v1137
        %v1146 = vsel %vm1130, %v1122, %v1138
        %v1147 = vsel %vm1131, %v1123, %v1139
        %v1148 = vsel %vm1132, %v1124, %v1140
        %v1149 = vsel %vm1133, %v1125, %v1141
        %v1150 = vsel %vm1134, %v1126, %v1142
        %v1151 = vsel %vm1135, %v1127, %v1143
        %1152 = vst.msk [vmem:[#allocation4] sm:$0xff] %vm988, %v1144
        %1153 = vst.msk [vmem:[#allocation4 + $0x8] sm:$0xff] %vm988, %v1145
        %1154 = vst.msk [vmem:[#allocation4 + $0x10] sm:$0xff] %vm988, %v1146
        %1155 = vst.msk [vmem:[#allocation4 + $0x18] sm:$0xff] %vm988, %v1147
        %1156 = vst.msk [vmem:[#allocation4 + $0x20] sm:$0xff] %vm988, %v1148
        %1157 = vst.msk [vmem:[#allocation4 + $0x28] sm:$0xff] %vm988, %v1149
        %1158 = vst.msk [vmem:[#allocation4 + $0x30] sm:$0xff] %vm988, %v1150
        %1159 = vst.msk [vmem:[#allocation4 + $0x38] sm:$0xff] %vm988, %v1151
      $region56: #{mid_incepnet_forward.4} parent=51 // pred_fallthru
        _
      %p1160 = scmp.eq.s32.totalorder %s24, 1
      // Predicated region
      $region57: #{mid_incepnet_forward.4} parent=51 // pred_check
        %p1161 = pneg %p1160
      $region58: #{mid_incepnet_forward.4} parent=51 // pred_check_branch
        %1163 = sbr.rel (%p1161) target = $region60
      $region59: #{mid_incepnet_forward.4} parent=51 // pred_region
        %v1164 = vld [vmem:[#allocation2] sm:$0xff]
        %v1165 = vld [vmem:[#allocation2 + $0x10] sm:$0xff]
        %v1166 = vld [vmem:[#allocation2 + $0x20] sm:$0xff]
        %v1167 = vld [vmem:[#allocation2 + $0x30] sm:$0xff]
        %v1168 = vld [vmem:[#allocation2 + $0x40] sm:$0xff]
        %v1169 = vld [vmem:[#allocation2 + $0x50] sm:$0xff]
        %v1170 = vld [vmem:[#allocation2 + $0x60] sm:$0xff]
        %v1171 = vld [vmem:[#allocation2 + $0x70] sm:$0xff]
        %v1172 = vld [vmem:[#allocation2 + $0x80] sm:$0xff]
        %v1173 = vld [vmem:[#allocation2 + $0x90] sm:$0xff]
        %v1174 = vld [vmem:[#allocation2 + $0xa0] sm:$0xff]
        %v1175 = vld [vmem:[#allocation2 + $0xb0] sm:$0xff]
        %v1176 = vpack.c.bf16 %v1164, %v1164
        %v1177 = vpack.c.bf16 %v1165, %v1165
        %v1178 = vpack.c.bf16 %v1166, %v1166
        %v1179 = vpack.c.bf16 %v1167, %v1167
        %v1180 = vpack.c.bf16 %v1168, %v1168
        %v1181 = vpack.c.bf16 %v1169, %v1169
        %v1182 = vpack.c.bf16 %v1170, %v1170
        %v1183 = vpack.c.bf16 %v1171, %v1171
        %v1184 = vpack.c.bf16 %v1172, %v1172
        %v1185 = vpack.c.bf16 %v1173, %v1173
        %v1186 = vpack.c.bf16 %v1174, %v1174
        %v1187 = vpack.c.bf16 %v1175, %v1175
        %vm1188 = vcmask 125952
        %1189 = vst.msk [vmem:[#allocation3] sm:$0xf] %vm1188, %v1176
        %1190 = vst.msk [vmem:[#allocation3 + $0x4] sm:$0xf] %vm1188, %v1177
        %1191 = vst.msk [vmem:[#allocation3 + $0x8] sm:$0xf] %vm1188, %v1178
        %1192 = vst.msk [vmem:[#allocation3 + $0xc] sm:$0xf] %vm1188, %v1179
        %1193 = vst.msk [vmem:[#allocation3 + $0x10] sm:$0xf] %vm1188, %v1180
        %1194 = vst.msk [vmem:[#allocation3 + $0x14] sm:$0xf] %vm1188, %v1181
        %1195 = vst.msk [vmem:[#allocation3 + $0x18] sm:$0xf] %vm1188, %v1182
        %1196 = vst.msk [vmem:[#allocation3 + $0x1c] sm:$0xf] %vm1188, %v1183
        %1197 = vst.msk [vmem:[#allocation3 + $0x20] sm:$0xf] %vm1188, %v1184
        %1198 = vst.msk [vmem:[#allocation3 + $0x24] sm:$0xf] %vm1188, %v1185
        %1199 = vst.msk [vmem:[#allocation3 + $0x28] sm:$0xf] %vm1188, %v1186
        %1200 = vst.msk [vmem:[#allocation3 + $0x2c] sm:$0xf] %vm1188, %v1187
        %v1201 = vld [vmem:[#allocation2 + $0x1] sm:$0xff]
        %v1202 = vld [vmem:[#allocation2 + $0x11] sm:$0xff]
        %v1203 = vld [vmem:[#allocation2 + $0x21] sm:$0xff]
        %v1204 = vld [vmem:[#allocation2 + $0x31] sm:$0xff]
        %v1205 = vld [vmem:[#allocation2 + $0x41] sm:$0xff]
        %v1206 = vld [vmem:[#allocation2 + $0x51] sm:$0xff]
        %v1207 = vld [vmem:[#allocation2 + $0x61] sm:$0xff]
        %v1208 = vld [vmem:[#allocation2 + $0x71] sm:$0xff]
        %v1209 = vld [vmem:[#allocation2 + $0x81] sm:$0xff]
        %v1210 = vld [vmem:[#allocation2 + $0x91] sm:$0xff]
        %v1211 = vld [vmem:[#allocation2 + $0xa1] sm:$0xff]
        %v1212 = vld [vmem:[#allocation2 + $0xb1] sm:$0xff]
        %v1213 = vpack.c.bf16 %v1201, %v1201
        %v1214 = vpack.c.bf16 %v1202, %v1202
        %v1215 = vpack.c.bf16 %v1203, %v1203
        %v1216 = vpack.c.bf16 %v1204, %v1204
        %v1217 = vpack.c.bf16 %v1205, %v1205
        %v1218 = vpack.c.bf16 %v1206, %v1206
        %v1219 = vpack.c.bf16 %v1207, %v1207
        %v1220 = vpack.c.bf16 %v1208, %v1208
        %v1221 = vpack.c.bf16 %v1209, %v1209
        %v1222 = vpack.c.bf16 %v1210, %v1210
        %v1223 = vpack.c.bf16 %v1211, %v1211
        %v1224 = vpack.c.bf16 %v1212, %v1212
        %1237 = vrot.lane.b32.xlu0 %v1213, 16
        %v1238 = vpop.permute.xlu0 %1237
        %1239 = vrot.lane.b32.xlu0 %v1214, 16
        %v1240 = vpop.permute.xlu0 %1239
        %1241 = vrot.lane.b32.xlu0 %v1215, 16
        %v1242 = vpop.permute.xlu0 %1241
        %1243 = vrot.lane.b32.xlu0 %v1216, 16
        %v1244 = vpop.permute.xlu0 %1243
        %1245 = vrot.lane.b32.xlu0 %v1217, 16
        %v1246 = vpop.permute.xlu0 %1245
        %1247 = vrot.lane.b32.xlu0 %v1218, 16
        %v1248 = vpop.permute.xlu0 %1247
        %1249 = vrot.lane.b32.xlu0 %v1219, 16
        %v1250 = vpop.permute.xlu0 %1249
        %1251 = vrot.lane.b32.xlu0 %v1220, 16
        %v1252 = vpop.permute.xlu0 %1251
        %1253 = vrot.lane.b32.xlu0 %v1221, 16
        %v1254 = vpop.permute.xlu0 %1253
        %1255 = vrot.lane.b32.xlu0 %v1222, 16
        %v1256 = vpop.permute.xlu0 %1255
        %1257 = vrot.lane.b32.xlu0 %v1223, 16
        %v1258 = vpop.permute.xlu0 %1257
        %1259 = vrot.lane.b32.xlu0 %v1224, 16
        %v1260 = vpop.permute.xlu0 %1259
        %vm1273 = vcmask 257152
        %1274 = vst.msk [vmem:[#allocation3] sm:$0xf] %vm1273, %v1238
        %1275 = vst.msk [vmem:[#allocation3 + $0x4] sm:$0xf] %vm1273, %v1240
        %1276 = vst.msk [vmem:[#allocation3 + $0x8] sm:$0xf] %vm1273, %v1242
        %1277 = vst.msk [vmem:[#allocation3 + $0xc] sm:$0xf] %vm1273, %v1244
        %1278 = vst.msk [vmem:[#allocation3 + $0x10] sm:$0xf] %vm1273, %v1246
        %1279 = vst.msk [vmem:[#allocation3 + $0x14] sm:$0xf] %vm1273, %v1248
        %1280 = vst.msk [vmem:[#allocation3 + $0x18] sm:$0xf] %vm1273, %v1250
        %1281 = vst.msk [vmem:[#allocation3 + $0x1c] sm:$0xf] %vm1273, %v1252
        %1282 = vst.msk [vmem:[#allocation3 + $0x20] sm:$0xf] %vm1273, %v1254
        %1283 = vst.msk [vmem:[#allocation3 + $0x24] sm:$0xf] %vm1273, %v1256
        %1284 = vst.msk [vmem:[#allocation3 + $0x28] sm:$0xf] %vm1273, %v1258
        %1285 = vst.msk [vmem:[#allocation3 + $0x2c] sm:$0xf] %vm1273, %v1260
        %v1286 = vld [vmem:[#allocation2 + $0x2] sm:$0xff]
        %v1287 = vld [vmem:[#allocation2 + $0x12] sm:$0xff]
        %v1288 = vld [vmem:[#allocation2 + $0x22] sm:$0xff]
        %v1289 = vld [vmem:[#allocation2 + $0x32] sm:$0xff]
        %v1290 = vld [vmem:[#allocation2 + $0x42] sm:$0xff]
        %v1291 = vld [vmem:[#allocation2 + $0x52] sm:$0xff]
        %v1292 = vld [vmem:[#allocation2 + $0x62] sm:$0xff]
        %v1293 = vld [vmem:[#allocation2 + $0x72] sm:$0xff]
        %v1294 = vld [vmem:[#allocation2 + $0x82] sm:$0xff]
        %v1295 = vld [vmem:[#allocation2 + $0x92] sm:$0xff]
        %v1296 = vld [vmem:[#allocation2 + $0xa2] sm:$0xff]
        %v1297 = vld [vmem:[#allocation2 + $0xb2] sm:$0xff]
        %v1298 = vpack.c.bf16 %v1286, %v1286
        %v1299 = vpack.c.bf16 %v1287, %v1287
        %v1300 = vpack.c.bf16 %v1288, %v1288
        %v1301 = vpack.c.bf16 %v1289, %v1289
        %v1302 = vpack.c.bf16 %v1290, %v1290
        %v1303 = vpack.c.bf16 %v1291, %v1291
        %v1304 = vpack.c.bf16 %v1292, %v1292
        %v1305 = vpack.c.bf16 %v1293, %v1293
        %v1306 = vpack.c.bf16 %v1294, %v1294
        %v1307 = vpack.c.bf16 %v1295, %v1295
        %v1308 = vpack.c.bf16 %v1296, %v1296
        %v1309 = vpack.c.bf16 %v1297, %v1297
        %1322 = vrot.lane.b32.xlu0 %v1298, 32
        %v1323 = vpop.permute.xlu0 %1322
        %1324 = vrot.lane.b32.xlu0 %v1299, 32
        %v1325 = vpop.permute.xlu0 %1324
        %1326 = vrot.lane.b32.xlu0 %v1300, 32
        %v1327 = vpop.permute.xlu0 %1326
        %1328 = vrot.lane.b32.xlu0 %v1301, 32
        %v1329 = vpop.permute.xlu0 %1328
        %1330 = vrot.lane.b32.xlu0 %v1302, 32
        %v1331 = vpop.permute.xlu0 %1330
        %1332 = vrot.lane.b32.xlu0 %v1303, 32
        %v1333 = vpop.permute.xlu0 %1332
        %1334 = vrot.lane.b32.xlu0 %v1304, 32
        %v1335 = vpop.permute.xlu0 %1334
        %1336 = vrot.lane.b32.xlu0 %v1305, 32
        %v1337 = vpop.permute.xlu0 %1336
        %1338 = vrot.lane.b32.xlu0 %v1306, 32
        %v1339 = vpop.permute.xlu0 %1338
        %1340 = vrot.lane.b32.xlu0 %v1307, 32
        %v1341 = vpop.permute.xlu0 %1340
        %1342 = vrot.lane.b32.xlu0 %v1308, 32
        %v1343 = vpop.permute.xlu0 %1342
        %1344 = vrot.lane.b32.xlu0 %v1309, 32
        %v1345 = vpop.permute.xlu0 %1344
        %vm1358 = vcmask 388352
        %1359 = vst.msk [vmem:[#allocation3] sm:$0xf] %vm1358, %v1323
        %1360 = vst.msk [vmem:[#allocation3 + $0x4] sm:$0xf] %vm1358, %v1325
        %1361 = vst.msk [vmem:[#allocation3 + $0x8] sm:$0xf] %vm1358, %v1327
        %1362 = vst.msk [vmem:[#allocation3 + $0xc] sm:$0xf] %vm1358, %v1329
        %1363 = vst.msk [vmem:[#allocation3 + $0x10] sm:$0xf] %vm1358, %v1331
        %1364 = vst.msk [vmem:[#allocation3 + $0x14] sm:$0xf] %vm1358, %v1333
        %1365 = vst.msk [vmem:[#allocation3 + $0x18] sm:$0xf] %vm1358, %v1335
        %1366 = vst.msk [vmem:[#allocation3 + $0x1c] sm:$0xf] %vm1358, %v1337
        %1367 = vst.msk [vmem:[#allocation3 + $0x20] sm:$0xf] %vm1358, %v1339
        %1368 = vst.msk [vmem:[#allocation3 + $0x24] sm:$0xf] %vm1358, %v1341
        %1369 = vst.msk [vmem:[#allocation3 + $0x28] sm:$0xf] %vm1358, %v1343
        %1370 = vst.msk [vmem:[#allocation3 + $0x2c] sm:$0xf] %vm1358, %v1345
        %v1371 = vld [vmem:[#allocation2 + $0x3] sm:$0xff]
        %v1372 = vld [vmem:[#allocation2 + $0x13] sm:$0xff]
        %v1373 = vld [vmem:[#allocation2 + $0x23] sm:$0xff]
        %v1374 = vld [vmem:[#allocation2 + $0x33] sm:$0xff]
        %v1375 = vld [vmem:[#allocation2 + $0x43] sm:$0xff]
        %v1376 = vld [vmem:[#allocation2 + $0x53] sm:$0xff]
        %v1377 = vld [vmem:[#allocation2 + $0x63] sm:$0xff]
        %v1378 = vld [vmem:[#allocation2 + $0x73] sm:$0xff]
        %v1379 = vld [vmem:[#allocation2 + $0x83] sm:$0xff]
        %v1380 = vld [vmem:[#allocation2 + $0x93] sm:$0xff]
        %v1381 = vld [vmem:[#allocation2 + $0xa3] sm:$0xff]
        %v1382 = vld [vmem:[#allocation2 + $0xb3] sm:$0xff]
        %v1383 = vpack.c.bf16 %v1371, %v1371
        %v1384 = vpack.c.bf16 %v1372, %v1372
        %v1385 = vpack.c.bf16 %v1373, %v1373
        %v1386 = vpack.c.bf16 %v1374, %v1374
        %v1387 = vpack.c.bf16 %v1375, %v1375
        %v1388 = vpack.c.bf16 %v1376, %v1376
        %v1389 = vpack.c.bf16 %v1377, %v1377
        %v1390 = vpack.c.bf16 %v1378, %v1378
        %v1391 = vpack.c.bf16 %v1379, %v1379
        %v1392 = vpack.c.bf16 %v1380, %v1380
        %v1393 = vpack.c.bf16 %v1381, %v1381
        %v1394 = vpack.c.bf16 %v1382, %v1382
        %1407 = vrot.lane.b32.xlu0 %v1383, 48
        %v1408 = vpop.permute.xlu0 %1407
        %1409 = vrot.lane.b32.xlu0 %v1384, 48
        %v1410 = vpop.permute.xlu0 %1409
        %1411 = vrot.lane.b32.xlu0 %v1385, 48
        %v1412 = vpop.permute.xlu0 %1411
        %1413 = vrot.lane.b32.xlu0 %v1386, 48
        %v1414 = vpop.permute.xlu0 %1413
        %1415 = vrot.lane.b32.xlu0 %v1387, 48
        %v1416 = vpop.permute.xlu0 %1415
        %1417 = vrot.lane.b32.xlu0 %v1388, 48
        %v1418 = vpop.permute.xlu0 %1417
        %1419 = vrot.lane.b32.xlu0 %v1389, 48
        %v1420 = vpop.permute.xlu0 %1419
        %1421 = vrot.lane.b32.xlu0 %v1390, 48
        %v1422 = vpop.permute.xlu0 %1421
        %1423 = vrot.lane.b32.xlu0 %v1391, 48
        %v1424 = vpop.permute.xlu0 %1423
        %1425 = vrot.lane.b32.xlu0 %v1392, 48
        %v1426 = vpop.permute.xlu0 %1425
        %1427 = vrot.lane.b32.xlu0 %v1393, 48
        %v1428 = vpop.permute.xlu0 %1427
        %1429 = vrot.lane.b32.xlu0 %v1394, 48
        %v1430 = vpop.permute.xlu0 %1429
        %vm1443 = vcmask 519552
        %1444 = vst.msk [vmem:[#allocation3] sm:$0xf] %vm1443, %v1408
        %1445 = vst.msk [vmem:[#allocation3 + $0x4] sm:$0xf] %vm1443, %v1410
        %1446 = vst.msk [vmem:[#allocation3 + $0x8] sm:$0xf] %vm1443, %v1412
        %1447 = vst.msk [vmem:[#allocation3 + $0xc] sm:$0xf] %vm1443, %v1414
        %1448 = vst.msk [vmem:[#allocation3 + $0x10] sm:$0xf] %vm1443, %v1416
        %1449 = vst.msk [vmem:[#allocation3 + $0x14] sm:$0xf] %vm1443, %v1418
        %1450 = vst.msk [vmem:[#allocation3 + $0x18] sm:$0xf] %vm1443, %v1420
        %1451 = vst.msk [vmem:[#allocation3 + $0x1c] sm:$0xf] %vm1443, %v1422
        %1452 = vst.msk [vmem:[#allocation3 + $0x20] sm:$0xf] %vm1443, %v1424
        %1453 = vst.msk [vmem:[#allocation3 + $0x24] sm:$0xf] %vm1443, %v1426
        %1454 = vst.msk [vmem:[#allocation3 + $0x28] sm:$0xf] %vm1443, %v1428
        %1455 = vst.msk [vmem:[#allocation3 + $0x2c] sm:$0xf] %vm1443, %v1430
        %v1456 = vld [vmem:[#allocation2 + $0x4] sm:$0xff]
        %v1457 = vld [vmem:[#allocation2 + $0x14] sm:$0xff]
        %v1458 = vld [vmem:[#allocation2 + $0x24] sm:$0xff]
        %v1459 = vld [vmem:[#allocation2 + $0x34] sm:$0xff]
        %v1460 = vld [vmem:[#allocation2 + $0x44] sm:$0xff]
        %v1461 = vld [vmem:[#allocation2 + $0x54] sm:$0xff]
        %v1462 = vld [vmem:[#allocation2 + $0x64] sm:$0xff]
        %v1463 = vld [vmem:[#allocation2 + $0x74] sm:$0xff]
        %v1464 = vld [vmem:[#allocation2 + $0x84] sm:$0xff]
        %v1465 = vld [vmem:[#allocation2 + $0x94] sm:$0xff]
        %v1466 = vld [vmem:[#allocation2 + $0xa4] sm:$0xff]
        %v1467 = vld [vmem:[#allocation2 + $0xb4] sm:$0xff]
        %v1468 = vpack.c.bf16 %v1456, %v1456
        %v1469 = vpack.c.bf16 %v1457, %v1457
        %v1470 = vpack.c.bf16 %v1458, %v1458
        %v1471 = vpack.c.bf16 %v1459, %v1459
        %v1472 = vpack.c.bf16 %v1460, %v1460
        %v1473 = vpack.c.bf16 %v1461, %v1461
        %v1474 = vpack.c.bf16 %v1462, %v1462
        %v1475 = vpack.c.bf16 %v1463, %v1463
        %v1476 = vpack.c.bf16 %v1464, %v1464
        %v1477 = vpack.c.bf16 %v1465, %v1465
        %v1478 = vpack.c.bf16 %v1466, %v1466
        %v1479 = vpack.c.bf16 %v1467, %v1467
        %1492 = vrot.lane.b32.xlu0 %v1468, 64
        %v1493 = vpop.permute.xlu0 %1492
        %1494 = vrot.lane.b32.xlu0 %v1469, 64
        %v1495 = vpop.permute.xlu0 %1494
        %1496 = vrot.lane.b32.xlu0 %v1470, 64
        %v1497 = vpop.permute.xlu0 %1496
        %1498 = vrot.lane.b32.xlu0 %v1471, 64
        %v1499 = vpop.permute.xlu0 %1498
        %1500 = vrot.lane.b32.xlu0 %v1472, 64
        %v1501 = vpop.permute.xlu0 %1500
        %1502 = vrot.lane.b32.xlu0 %v1473, 64
        %v1503 = vpop.permute.xlu0 %1502
        %1504 = vrot.lane.b32.xlu0 %v1474, 64
        %v1505 = vpop.permute.xlu0 %1504
        %1506 = vrot.lane.b32.xlu0 %v1475, 64
        %v1507 = vpop.permute.xlu0 %1506
        %1508 = vrot.lane.b32.xlu0 %v1476, 64
        %v1509 = vpop.permute.xlu0 %1508
        %1510 = vrot.lane.b32.xlu0 %v1477, 64
        %v1511 = vpop.permute.xlu0 %1510
        %1512 = vrot.lane.b32.xlu0 %v1478, 64
        %v1513 = vpop.permute.xlu0 %1512
        %1514 = vrot.lane.b32.xlu0 %v1479, 64
        %v1515 = vpop.permute.xlu0 %1514
        %vm1528 = vcmask 650752
        %1529 = vst.msk [vmem:[#allocation3] sm:$0xf] %vm1528, %v1493
        %1530 = vst.msk [vmem:[#allocation3 + $0x4] sm:$0xf] %vm1528, %v1495
        %1531 = vst.msk [vmem:[#allocation3 + $0x8] sm:$0xf] %vm1528, %v1497
        %1532 = vst.msk [vmem:[#allocation3 + $0xc] sm:$0xf] %vm1528, %v1499
        %1533 = vst.msk [vmem:[#allocation3 + $0x10] sm:$0xf] %vm1528, %v1501
        %1534 = vst.msk [vmem:[#allocation3 + $0x14] sm:$0xf] %vm1528, %v1503
        %1535 = vst.msk [vmem:[#allocation3 + $0x18] sm:$0xf] %vm1528, %v1505
        %1536 = vst.msk [vmem:[#allocation3 + $0x1c] sm:$0xf] %vm1528, %v1507
        %1537 = vst.msk [vmem:[#allocation3 + $0x20] sm:$0xf] %vm1528, %v1509
        %1538 = vst.msk [vmem:[#allocation3 + $0x24] sm:$0xf] %vm1528, %v1511
        %1539 = vst.msk [vmem:[#allocation3 + $0x28] sm:$0xf] %vm1528, %v1513
        %1540 = vst.msk [vmem:[#allocation3 + $0x2c] sm:$0xf] %vm1528, %v1515
        %v1541 = vld [vmem:[#allocation3] sm:$0xf]
        %v1542 = vld [vmem:[#allocation3 + $0x4] sm:$0xf]
        %v1543 = vld [vmem:[#allocation3 + $0x8] sm:$0xf]
        %v1544 = vld [vmem:[#allocation3 + $0xc] sm:$0xf]
        %v1545 = vld [vmem:[#allocation3 + $0x10] sm:$0xf]
        %v1546 = vld [vmem:[#allocation3 + $0x14] sm:$0xf]
        %v1547 = vld [vmem:[#allocation3 + $0x18] sm:$0xf]
        %v1548 = vld [vmem:[#allocation3 + $0x1c] sm:$0xf]
        %v1549 = vld [vmem:[%s365] sm:$0xf]
        %v1550 = vld [vmem:[%s365 + $0x4] sm:$0xf]
        %v1551 = vld [vmem:[%s365 + $0x8] sm:$0xf]
        %v1552 = vld [vmem:[%s365 + $0xc] sm:$0xf]
        %v1553 = vld [vmem:[%s365 + $0x10] sm:$0xf]
        %v1554 = vld [vmem:[%s365 + $0x14] sm:$0xf]
        %v1555 = vld [vmem:[%s365 + $0x18] sm:$0xf]
        %v1556 = vld [vmem:[%s365 + $0x1c] sm:$0xf]
        %v1557 = vld [vmem:[%s365 + $0x20] sm:$0xf]
        %v1558 = vld [vmem:[%s365 + $0x24] sm:$0xf]
        %v1559 = vld [vmem:[#allocation3 + $0x20] sm:$0xf]
        %s1560 = scalar_lea.vmem %s365, 40
        %v1561 = vld [vmem:[%s1560] sm:$0xf]
        %v1562 = vld [vmem:[%s1560 + $0x4] sm:$0xf]
        %v1563 = vld [vmem:[%s1560 + $0x8] sm:$0xf]
        %v1564 = vld [vmem:[%s1560 + $0xc] sm:$0xf]
        %v1565 = vld [vmem:[%s1560 + $0x10] sm:$0xf]
        %v1566 = vld [vmem:[%s1560 + $0x14] sm:$0xf]
        %v1567 = vld [vmem:[%s1560 + $0x18] sm:$0xf]
        %v1568 = vld [vmem:[%s1560 + $0x1c] sm:$0xf]
        %v1569 = vld [vmem:[%s1560 + $0x20] sm:$0xf]
        %v1570 = vld [vmem:[%s1560 + $0x24] sm:$0xf]
        %v1579 = vunpack.c.l.b16 %v1542
        %v1580 = vunpack.c.l.b16 %v1543
        %v1581 = vunpack.c.l.b16 %v1544
        %v1582 = vunpack.c.l.b16 %v1545
        %v1583 = vunpack.c.l.b16 %v1546
        %v1584 = vunpack.c.l.b16 %v1547
        %v1585 = vunpack.c.l.b16 %v1548
        %v1586 = vunpack.c.l.b16 %v1559
        %v1587 = vpack.c.b16 %v1580, %v1579
        %v1588 = vpack.c.b16 %v1582, %v1581
        %v1589 = vpack.c.b16 %v1584, %v1583
        %v1590 = vpack.c.b16 %v1586, %v1585
        %v1601 = vunpack.c.l.b16 %v1561
        %v1602 = vunpack.c.l.b16 %v1562
        %v1603 = vunpack.c.l.b16 %v1563
        %v1604 = vunpack.c.l.b16 %v1564
        %v1605 = vunpack.c.l.b16 %v1565
        %v1606 = vunpack.c.l.b16 %v1566
        %v1607 = vunpack.c.l.b16 %v1567
        %v1608 = vunpack.c.l.b16 %v1568
        %v1609 = vunpack.c.l.b16 %v1569
        %v1610 = vunpack.c.l.b16 %v1570
        %v1611 = vpack.c.b16 %v1602, %v1601
        %v1612 = vpack.c.b16 %v1604, %v1603
        %v1613 = vpack.c.b16 %v1606, %v1605
        %v1614 = vpack.c.b16 %v1608, %v1607
        %v1615 = vpack.c.b16 %v1610, %v1609
        %vm1621 = vcmask 654336
        %v1623 = vsel %vm1621, %v1587, 0
        %v1626 = vsel %vm1621, %v1588, 0
        %v1629 = vsel %vm1621, %v1589, 0
        %v1632 = vsel %vm1621, %v1590, 0
        %1634 = vmatpush.bf16.msra.mxu0 0
        %1635 = vmatpush.bf16.msra.mxu0 0
        %1636 = vmatpush.bf16.msra.mxu0 0
        %1637 = vmatpush.bf16.msra.mxu0 %v1615
        %1638 = vmatpush.bf16.msra.mxu0 %v1614
        %1639 = vmatpush.bf16.msra.mxu0 %v1613
        %1640 = vmatpush.bf16.msra.mxu0 %v1612
        %1641 = vmatpush.bf16.msra.mxu0 %v1611
        %1642 = vmatmul.bf16.gmra.mxu0 %v1623
        %v1643 = vpop.f32.mrf.mxu0
        %v1644 = vadd.f32 0.0, %v1643
        %v1645 = vpop.f32.mrf.mxu0
        %v1646 = vadd.f32 0.0, %v1645
        %1647 = vmatmul.bf16.gmra.mxu0 %v1626
        %v1648 = vpop.f32.mrf.mxu0
        %v1649 = vadd.f32 0.0, %v1648
        %v1650 = vpop.f32.mrf.mxu0
        %v1651 = vadd.f32 0.0, %v1650
        %1652 = vmatmul.bf16.gmra.mxu0 %v1629
        %v1653 = vpop.f32.mrf.mxu0
        %v1654 = vadd.f32 0.0, %v1653
        %v1655 = vpop.f32.mrf.mxu0
        %v1656 = vadd.f32 0.0, %v1655
        %1657 = vmatmul.bf16.gmra.mxu0 %v1632
        %v1658 = vpop.f32.mrf.mxu0
        %v1659 = vadd.f32 0.0, %v1658
        %v1660 = vpop.f32.mrf.mxu0
        %v1661 = vadd.f32 0.0, %v1660
        %1662 = vdwg.mxu0
        %v1664 = vunpack.c.l.b16 %v1541
        %v1665 = vpack.c.b16 %v1579, %v1664
        %v1666 = vpack.c.b16 %v1581, %v1580
        %v1667 = vpack.c.b16 %v1583, %v1582
        %v1668 = vpack.c.b16 %v1585, %v1584
        %v1679 = vunpack.c.l.b16 %v1549
        %v1680 = vunpack.c.l.b16 %v1550
        %v1681 = vunpack.c.l.b16 %v1551
        %v1682 = vunpack.c.l.b16 %v1552
        %v1683 = vunpack.c.l.b16 %v1553
        %v1684 = vunpack.c.l.b16 %v1554
        %v1685 = vunpack.c.l.b16 %v1555
        %v1686 = vunpack.c.l.b16 %v1556
        %v1687 = vunpack.c.l.b16 %v1557
        %v1688 = vunpack.c.l.b16 %v1558
        %v1689 = vpack.c.b16 %v1680, %v1679
        %v1690 = vpack.c.b16 %v1682, %v1681
        %v1691 = vpack.c.b16 %v1684, %v1683
        %v1692 = vpack.c.b16 %v1686, %v1685
        %v1693 = vpack.c.b16 %v1688, %v1687
        %v1700 = vsel %vm1621, %v1665, 0
        %v1703 = vsel %vm1621, %v1666, 0
        %v1706 = vsel %vm1621, %v1667, 0
        %v1709 = vsel %vm1621, %v1668, 0
        %1711 = vmatpush.bf16.msra.mxu0 0
        %1712 = vmatpush.bf16.msra.mxu0 0
        %1713 = vmatpush.bf16.msra.mxu0 0
        %1714 = vmatpush.bf16.msra.mxu0 %v1693
        %1715 = vmatpush.bf16.msra.mxu0 %v1692
        %1716 = vmatpush.bf16.msra.mxu0 %v1691
        %1717 = vmatpush.bf16.msra.mxu0 %v1690
        %1718 = vmatpush.bf16.msra.mxu0 %v1689
        %1719 = vmatmul.bf16.gmra.mxu0 %v1700
        %v1720 = vpop.f32.mrf.mxu0
        %v1721 = vadd.f32 %v1644, %v1720
        %v1722 = vpop.f32.mrf.mxu0
        %v1723 = vadd.f32 %v1646, %v1722
        %1724 = vmatmul.bf16.gmra.mxu0 %v1703
        %v1725 = vpop.f32.mrf.mxu0
        %v1726 = vadd.f32 %v1649, %v1725
        %v1727 = vpop.f32.mrf.mxu0
        %v1728 = vadd.f32 %v1651, %v1727
        %1729 = vmatmul.bf16.gmra.mxu0 %v1706
        %v1730 = vpop.f32.mrf.mxu0
        %v1731 = vadd.f32 %v1654, %v1730
        %v1732 = vpop.f32.mrf.mxu0
        %v1733 = vadd.f32 %v1656, %v1732
        %1734 = vmatmul.bf16.gmra.mxu0 %v1709
        %v1735 = vpop.f32.mrf.mxu0
        %v1736 = vadd.f32 %v1659, %v1735
        %v1737 = vpop.f32.mrf.mxu0
        %v1738 = vadd.f32 %v1661, %v1737
        %1739 = vdwg.mxu0
        %v1740 = vld [vmem:[#allocation3 + $0x8] sm:$0xf]
        %v1741 = vld [vmem:[#allocation3 + $0xc] sm:$0xf]
        %v1742 = vld [vmem:[#allocation3 + $0x10] sm:$0xf]
        %v1743 = vld [vmem:[#allocation3 + $0x14] sm:$0xf]
        %v1744 = vld [vmem:[#allocation3 + $0x18] sm:$0xf]
        %v1745 = vld [vmem:[#allocation3 + $0x1c] sm:$0xf]
        %v1746 = vld [vmem:[#allocation3 + $0x20] sm:$0xf]
        %v1747 = vld [vmem:[#allocation3 + $0x24] sm:$0xf]
        %s1748 = scalar_lea.vmem %s365, 80
        %v1749 = vld [vmem:[%s1748] sm:$0xf]
        %v1750 = vld [vmem:[%s1748 + $0x4] sm:$0xf]
        %v1751 = vld [vmem:[%s1748 + $0x8] sm:$0xf]
        %v1752 = vld [vmem:[%s1748 + $0xc] sm:$0xf]
        %v1753 = vld [vmem:[%s1748 + $0x10] sm:$0xf]
        %v1754 = vld [vmem:[%s1748 + $0x14] sm:$0xf]
        %v1755 = vld [vmem:[%s1748 + $0x18] sm:$0xf]
        %v1756 = vld [vmem:[%s1748 + $0x1c] sm:$0xf]
        %v1757 = vld [vmem:[%s1748 + $0x20] sm:$0xf]
        %v1758 = vld [vmem:[%s1748 + $0x24] sm:$0xf]
        %v1767 = vunpack.c.l.b16 %v1740
        %v1768 = vunpack.c.l.b16 %v1741
        %v1769 = vunpack.c.l.b16 %v1742
        %v1770 = vunpack.c.l.b16 %v1743
        %v1771 = vunpack.c.l.b16 %v1744
        %v1772 = vunpack.c.l.b16 %v1745
        %v1773 = vunpack.c.l.b16 %v1746
        %v1774 = vunpack.c.l.b16 %v1747
        %v1775 = vpack.c.b16 %v1768, %v1767
        %v1776 = vpack.c.b16 %v1770, %v1769
        %v1777 = vpack.c.b16 %v1772, %v1771
        %v1778 = vpack.c.b16 %v1774, %v1773
        %v1789 = vunpack.c.l.b16 %v1749
        %v1790 = vunpack.c.l.b16 %v1750
        %v1791 = vunpack.c.l.b16 %v1751
        %v1792 = vunpack.c.l.b16 %v1752
        %v1793 = vunpack.c.l.b16 %v1753
        %v1794 = vunpack.c.l.b16 %v1754
        %v1795 = vunpack.c.l.b16 %v1755
        %v1796 = vunpack.c.l.b16 %v1756
        %v1797 = vunpack.c.l.b16 %v1757
        %v1798 = vunpack.c.l.b16 %v1758
        %v1799 = vpack.c.b16 %v1790, %v1789
        %v1800 = vpack.c.b16 %v1792, %v1791
        %v1801 = vpack.c.b16 %v1794, %v1793
        %v1802 = vpack.c.b16 %v1796, %v1795
        %v1803 = vpack.c.b16 %v1798, %v1797
        %v1810 = vsel %vm1621, %v1775, 0
        %v1813 = vsel %vm1621, %v1776, 0
        %v1816 = vsel %vm1621, %v1777, 0
        %v1819 = vsel %vm1621, %v1778, 0
        %1821 = vmatpush.bf16.msra.mxu0 0
        %1822 = vmatpush.bf16.msra.mxu0 0
        %1823 = vmatpush.bf16.msra.mxu0 0
        %1824 = vmatpush.bf16.msra.mxu0 %v1803
        %1825 = vmatpush.bf16.msra.mxu0 %v1802
        %1826 = vmatpush.bf16.msra.mxu0 %v1801
        %1827 = vmatpush.bf16.msra.mxu0 %v1800
        %1828 = vmatpush.bf16.msra.mxu0 %v1799
        %1829 = vmatmul.bf16.gmra.mxu0 %v1810
        %v1830 = vpop.f32.mrf.mxu0
        %v1831 = vadd.f32 0.0, %v1830
        %v1832 = vpop.f32.mrf.mxu0
        %v1833 = vadd.f32 0.0, %v1832
        %1834 = vmatmul.bf16.gmra.mxu0 %v1813
        %v1835 = vpop.f32.mrf.mxu0
        %v1836 = vadd.f32 0.0, %v1835
        %v1837 = vpop.f32.mrf.mxu0
        %v1838 = vadd.f32 0.0, %v1837
        %1839 = vmatmul.bf16.gmra.mxu0 %v1816
        %v1840 = vpop.f32.mrf.mxu0
        %v1841 = vadd.f32 0.0, %v1840
        %v1842 = vpop.f32.mrf.mxu0
        %v1843 = vadd.f32 0.0, %v1842
        %1844 = vmatmul.bf16.gmra.mxu0 %v1819
        %v1845 = vpop.f32.mrf.mxu0
        %v1846 = vadd.f32 0.0, %v1845
        %v1847 = vpop.f32.mrf.mxu0
        %v1848 = vadd.f32 0.0, %v1847
        %1849 = vdwg.mxu0
        %v1850 = vadd.f32 %v1721, %v1831
        %v1851 = vadd.f32 %v1723, %v1833
        %v1852 = vadd.f32 %v1726, %v1836
        %v1853 = vadd.f32 %v1728, %v1838
        %v1854 = vadd.f32 %v1731, %v1841
        %v1855 = vadd.f32 %v1733, %v1843
        %v1856 = vadd.f32 %v1736, %v1846
        %v1857 = vadd.f32 %v1738, %v1848
        %v1858 = vld [vmem:[#allocation3 + $0xc] sm:$0xf]
        %v1859 = vld [vmem:[#allocation3 + $0x10] sm:$0xf]
        %v1860 = vld [vmem:[#allocation3 + $0x14] sm:$0xf]
        %v1861 = vld [vmem:[#allocation3 + $0x18] sm:$0xf]
        %v1862 = vld [vmem:[#allocation3 + $0x1c] sm:$0xf]
        %v1863 = vld [vmem:[#allocation3 + $0x20] sm:$0xf]
        %v1864 = vld [vmem:[#allocation3 + $0x24] sm:$0xf]
        %v1865 = vld [vmem:[#allocation3 + $0x28] sm:$0xf]
        %s1866 = scalar_lea.vmem %s365, 120
        %v1867 = vld [vmem:[%s1866] sm:$0xf]
        %v1868 = vld [vmem:[%s1866 + $0x4] sm:$0xf]
        %v1869 = vld [vmem:[%s1866 + $0x8] sm:$0xf]
        %v1870 = vld [vmem:[%s1866 + $0xc] sm:$0xf]
        %v1871 = vld [vmem:[%s1866 + $0x10] sm:$0xf]
        %v1872 = vld [vmem:[%s1866 + $0x14] sm:$0xf]
        %v1873 = vld [vmem:[%s1866 + $0x18] sm:$0xf]
        %v1874 = vld [vmem:[%s1866 + $0x1c] sm:$0xf]
        %v1875 = vld [vmem:[%s1866 + $0x20] sm:$0xf]
        %v1876 = vld [vmem:[%s1866 + $0x24] sm:$0xf]
        %v1885 = vunpack.c.l.b16 %v1858
        %v1886 = vunpack.c.l.b16 %v1859
        %v1887 = vunpack.c.l.b16 %v1860
        %v1888 = vunpack.c.l.b16 %v1861
        %v1889 = vunpack.c.l.b16 %v1862
        %v1890 = vunpack.c.l.b16 %v1863
        %v1891 = vunpack.c.l.b16 %v1864
        %v1892 = vunpack.c.l.b16 %v1865
        %v1893 = vpack.c.b16 %v1886, %v1885
        %v1894 = vpack.c.b16 %v1888, %v1887
        %v1895 = vpack.c.b16 %v1890, %v1889
        %v1896 = vpack.c.b16 %v1892, %v1891
        %v1907 = vunpack.c.l.b16 %v1867
        %v1908 = vunpack.c.l.b16 %v1868
        %v1909 = vunpack.c.l.b16 %v1869
        %v1910 = vunpack.c.l.b16 %v1870
        %v1911 = vunpack.c.l.b16 %v1871
        %v1912 = vunpack.c.l.b16 %v1872
        %v1913 = vunpack.c.l.b16 %v1873
        %v1914 = vunpack.c.l.b16 %v1874
        %v1915 = vunpack.c.l.b16 %v1875
        %v1916 = vunpack.c.l.b16 %v1876
        %v1917 = vpack.c.b16 %v1908, %v1907
        %v1918 = vpack.c.b16 %v1910, %v1909
        %v1919 = vpack.c.b16 %v1912, %v1911
        %v1920 = vpack.c.b16 %v1914, %v1913
        %v1921 = vpack.c.b16 %v1916, %v1915
        %v1928 = vsel %vm1621, %v1893, 0
        %v1931 = vsel %vm1621, %v1894, 0
        %v1934 = vsel %vm1621, %v1895, 0
        %v1937 = vsel %vm1621, %v1896, 0
        %1939 = vmatpush.bf16.msra.mxu0 0
        %1940 = vmatpush.bf16.msra.mxu0 0
        %1941 = vmatpush.bf16.msra.mxu0 0
        %1942 = vmatpush.bf16.msra.mxu0 %v1921
        %1943 = vmatpush.bf16.msra.mxu0 %v1920
        %1944 = vmatpush.bf16.msra.mxu0 %v1919
        %1945 = vmatpush.bf16.msra.mxu0 %v1918
        %1946 = vmatpush.bf16.msra.mxu0 %v1917
        %1947 = vmatmul.bf16.gmra.mxu0 %v1928
        %v1948 = vpop.f32.mrf.mxu0
        %v1949 = vadd.f32 0.0, %v1948
        %v1950 = vpop.f32.mrf.mxu0
        %v1951 = vadd.f32 0.0, %v1950
        %1952 = vmatmul.bf16.gmra.mxu0 %v1931
        %v1953 = vpop.f32.mrf.mxu0
        %v1954 = vadd.f32 0.0, %v1953
        %v1955 = vpop.f32.mrf.mxu0
        %v1956 = vadd.f32 0.0, %v1955
        %1957 = vmatmul.bf16.gmra.mxu0 %v1934
        %v1958 = vpop.f32.mrf.mxu0
        %v1959 = vadd.f32 0.0, %v1958
        %v1960 = vpop.f32.mrf.mxu0
        %v1961 = vadd.f32 0.0, %v1960
        %1962 = vmatmul.bf16.gmra.mxu0 %v1937
        %v1963 = vpop.f32.mrf.mxu0
        %v1964 = vadd.f32 0.0, %v1963
        %v1965 = vpop.f32.mrf.mxu0
        %v1966 = vadd.f32 0.0, %v1965
        %1967 = vdwg.mxu0
        %v1968 = vadd.f32 %v1850, %v1949
        %v1969 = vadd.f32 %v1851, %v1951
        %v1970 = vadd.f32 %v1852, %v1954
        %v1971 = vadd.f32 %v1853, %v1956
        %v1972 = vadd.f32 %v1854, %v1959
        %v1973 = vadd.f32 %v1855, %v1961
        %v1974 = vadd.f32 %v1856, %v1964
        %v1975 = vadd.f32 %v1857, %v1966
        %v1976 = vld [vmem:[#allocation3 + $0x10] sm:$0xf]
        %v1977 = vld [vmem:[#allocation3 + $0x14] sm:$0xf]
        %v1978 = vld [vmem:[#allocation3 + $0x18] sm:$0xf]
        %v1979 = vld [vmem:[#allocation3 + $0x1c] sm:$0xf]
        %v1980 = vld [vmem:[#allocation3 + $0x20] sm:$0xf]
        %v1981 = vld [vmem:[#allocation3 + $0x24] sm:$0xf]
        %v1982 = vld [vmem:[#allocation3 + $0x28] sm:$0xf]
        %v1983 = vld [vmem:[#allocation3 + $0x2c] sm:$0xf]
        %s1984 = scalar_lea.vmem %s365, 160
        %v1985 = vld [vmem:[%s1984] sm:$0xf]
        %v1986 = vld [vmem:[%s1984 + $0x4] sm:$0xf]
        %v1987 = vld [vmem:[%s1984 + $0x8] sm:$0xf]
        %v1988 = vld [vmem:[%s1984 + $0xc] sm:$0xf]
        %v1989 = vld [vmem:[%s1984 + $0x10] sm:$0xf]
        %v1990 = vld [vmem:[%s1984 + $0x14] sm:$0xf]
        %v1991 = vld [vmem:[%s1984 + $0x18] sm:$0xf]
        %v1992 = vld [vmem:[%s1984 + $0x1c] sm:$0xf]
        %v1993 = vld [vmem:[%s1984 + $0x20] sm:$0xf]
        %v1994 = vld [vmem:[%s1984 + $0x24] sm:$0xf]
        %v2003 = vunpack.c.l.b16 %v1976
        %v2004 = vunpack.c.l.b16 %v1977
        %v2005 = vunpack.c.l.b16 %v1978
        %v2006 = vunpack.c.l.b16 %v1979
        %v2007 = vunpack.c.l.b16 %v1980
        %v2008 = vunpack.c.l.b16 %v1981
        %v2009 = vunpack.c.l.b16 %v1982
        %v2010 = vunpack.c.l.b16 %v1983
        %v2011 = vpack.c.b16 %v2004, %v2003
        %v2012 = vpack.c.b16 %v2006, %v2005
        %v2013 = vpack.c.b16 %v2008, %v2007
        %v2014 = vpack.c.b16 %v2010, %v2009
        %v2025 = vunpack.c.l.b16 %v1985
        %v2026 = vunpack.c.l.b16 %v1986
        %v2027 = vunpack.c.l.b16 %v1987
        %v2028 = vunpack.c.l.b16 %v1988
        %v2029 = vunpack.c.l.b16 %v1989
        %v2030 = vunpack.c.l.b16 %v1990
        %v2031 = vunpack.c.l.b16 %v1991
        %v2032 = vunpack.c.l.b16 %v1992
        %v2033 = vunpack.c.l.b16 %v1993
        %v2034 = vunpack.c.l.b16 %v1994
        %v2035 = vpack.c.b16 %v2026, %v2025
        %v2036 = vpack.c.b16 %v2028, %v2027
        %v2037 = vpack.c.b16 %v2030, %v2029
        %v2038 = vpack.c.b16 %v2032, %v2031
        %v2039 = vpack.c.b16 %v2034, %v2033
        %v2046 = vsel %vm1621, %v2011, 0
        %v2049 = vsel %vm1621, %v2012, 0
        %v2052 = vsel %vm1621, %v2013, 0
        %v2055 = vsel %vm1621, %v2014, 0
        %2057 = vmatpush.bf16.msra.mxu0 0
        %2058 = vmatpush.bf16.msra.mxu0 0
        %2059 = vmatpush.bf16.msra.mxu0 0
        %2060 = vmatpush.bf16.msra.mxu0 %v2039
        %2061 = vmatpush.bf16.msra.mxu0 %v2038
        %2062 = vmatpush.bf16.msra.mxu0 %v2037
        %2063 = vmatpush.bf16.msra.mxu0 %v2036
        %2064 = vmatpush.bf16.msra.mxu0 %v2035
        %2065 = vmatmul.bf16.gmra.mxu0 %v2046
        %v2066 = vpop.f32.mrf.mxu0
        %v2067 = vadd.f32 0.0, %v2066
        %v2068 = vpop.f32.mrf.mxu0
        %v2069 = vadd.f32 0.0, %v2068
        %2070 = vmatmul.bf16.gmra.mxu0 %v2049
        %v2071 = vpop.f32.mrf.mxu0
        %v2072 = vadd.f32 0.0, %v2071
        %v2073 = vpop.f32.mrf.mxu0
        %v2074 = vadd.f32 0.0, %v2073
        %2075 = vmatmul.bf16.gmra.mxu0 %v2052
        %v2076 = vpop.f32.mrf.mxu0
        %v2077 = vadd.f32 0.0, %v2076
        %v2078 = vpop.f32.mrf.mxu0
        %v2079 = vadd.f32 0.0, %v2078
        %2080 = vmatmul.bf16.gmra.mxu0 %v2055
        %v2081 = vpop.f32.mrf.mxu0
        %v2082 = vadd.f32 0.0, %v2081
        %v2083 = vpop.f32.mrf.mxu0
        %v2084 = vadd.f32 0.0, %v2083
        %2085 = vdwg.mxu0
        %v2086 = vadd.f32 %v1968, %v2067
        %v2087 = vadd.f32 %v1969, %v2069
        %v2088 = vadd.f32 %v1970, %v2072
        %v2089 = vadd.f32 %v1971, %v2074
        %v2090 = vadd.f32 %v1972, %v2077
        %v2091 = vadd.f32 %v1973, %v2079
        %v2092 = vadd.f32 %v1974, %v2082
        %v2093 = vadd.f32 %v1975, %v2084
        %v2094 = vld [vmem:[%s368] sm:$0x1]
        %v2096 = vperm.slane %v2094, 0
        %v2098 = vadd.f32 %v2086, %v2096
        %v2099 = vadd.f32 %v2087, %v2096
        %v2100 = vadd.f32 %v2088, %v2096
        %v2101 = vadd.f32 %v2089, %v2096
        %v2102 = vadd.f32 %v2090, %v2096
        %v2103 = vadd.f32 %v2091, %v2096
        %v2104 = vadd.f32 %v2092, %v2096
        %v2105 = vadd.f32 %v2093, %v2096
        %vm2106 = vcmask 261120
        %v2107 = vsel %vm2106, %v2098, 0.0
        %v2108 = vsel %vm2106, %v2099, 0.0
        %v2109 = vadd.f32 %v2107, %v2108
        %v2110 = vsel %vm2106, %v2100, 0.0
        %v2111 = vadd.f32 %v2109, %v2110
        %v2112 = vsel %vm2106, %v2101, 0.0
        %v2113 = vadd.f32 %v2111, %v2112
        %v2114 = vsel %vm2106, %v2102, 0.0
        %v2115 = vadd.f32 %v2113, %v2114
        %v2116 = vsel %vm2106, %v2103, 0.0
        %v2117 = vadd.f32 %v2115, %v2116
        %v2118 = vsel %vm2106, %v2104, 0.0
        %v2119 = vadd.f32 %v2117, %v2118
        %v2120 = vsel %vm2106, %v2105, 0.0
        %v2121 = vadd.f32 %v2119, %v2120
        %v2122 = vrot.slane %v2121, 4
        %v2123 = vadd.f32 %v2121, %v2122
        %v2124 = vrot.slane %v2123, 2
        %v2125 = vadd.f32 %v2123, %v2124
        %v2126 = vrot.slane %v2125, 1
        %v2127 = vadd.f32 %v2125, %v2126
        %v2128 = vmul.f32 %v2098, %v2098
        %v2129 = vmul.f32 %v2099, %v2099
        %v2130 = vmul.f32 %v2100, %v2100
        %v2131 = vmul.f32 %v2101, %v2101
        %v2132 = vmul.f32 %v2102, %v2102
        %v2133 = vmul.f32 %v2103, %v2103
        %v2134 = vmul.f32 %v2104, %v2104
        %v2135 = vmul.f32 %v2105, %v2105
        %v2136 = vsel %vm2106, %v2128, 0.0
        %v2137 = vsel %vm2106, %v2129, 0.0
        %v2138 = vadd.f32 %v2136, %v2137
        %v2139 = vsel %vm2106, %v2130, 0.0
        %v2140 = vadd.f32 %v2138, %v2139
        %v2141 = vsel %vm2106, %v2131, 0.0
        %v2142 = vadd.f32 %v2140, %v2141
        %v2143 = vsel %vm2106, %v2132, 0.0
        %v2144 = vadd.f32 %v2142, %v2143
        %v2145 = vsel %vm2106, %v2133, 0.0
        %v2146 = vadd.f32 %v2144, %v2145
        %v2147 = vsel %vm2106, %v2134, 0.0
        %v2148 = vadd.f32 %v2146, %v2147
        %v2149 = vsel %vm2106, %v2135, 0.0
        %v2150 = vadd.f32 %v2148, %v2149
        %v2151 = vrot.slane %v2150, 4
        %v2152 = vadd.f32 %v2150, %v2151
        %v2153 = vrot.slane %v2152, 2
        %v2154 = vadd.f32 %v2152, %v2153
        %v2155 = vrot.slane %v2154, 1
        %v2156 = vadd.f32 %v2154, %v2155
        %vm2157 = vcmask 1040384
        %v2158 = vsel %vm2157, %v2127, %v2156
        %v2159 = vld [vmem:[%s3] sm:$0xff]
        %v2160 = vld [vmem:[%s3 + $0x8] sm:$0xff]
        %v2161 = vld [vmem:[%s3 + $0x10] sm:$0xff]
        %v2162 = vld [vmem:[%s3 + $0x18] sm:$0xff]
        %v2164 = vsel %vm2106, %v2158, 0
        %2166 = vmatpush.msra.mxu0 0.0
        %2167 = vmatpush.msra.mxu0 0.0
        %2168 = vmatpush.msra.mxu0 0.0
        %2169 = vmatpush.msra.mxu0 0.0
        %2170 = vmatpush.msra.mxu0 0.0
        %2171 = vmatpush.msra.mxu0 0.0
        %2172 = vmatpush.msra.mxu0 0.0
        %2173 = vmatpush.msra.mxu0 0.0
        %2174 = vmatpush.msra.mxu0 0.0
        %2175 = vmatpush.msra.mxu0 0.0
        %2176 = vmatpush.msra.mxu0 0.0
        %2177 = vmatpush.msra.mxu0 0.0
        %2178 = vmatpush.msra.mxu0 %v2162
        %2179 = vmatpush.msra.mxu0 %v2161
        %2180 = vmatpush.msra.mxu0 %v2160
        %2181 = vmatpush.msra.mxu0 %v2159
        %2182 = vmatmul.f32.gmra.mxu0 %v2164
        %v2183 = vpop.f32.mrf.mxu0
        %v2184 = vadd.f32 0.0, %v2183
        %2185 = vdwg.mxu0
        %v2186 = vmul.f32 %v2184, 0.001953125
        %v2187 = vmul.f32 %v2186, %v2186
        %v2189 = vrot.slane %v2187, 7
        %v2191 = vsub.f32 %v2186, %v2189
        %v2192 = vmax.f32 %v2191, 0.0
        %v2193 = vperm.slane %v2186, 0
        %v2194 = vsub.f32 %v2098, %v2193
        %v2195 = vsub.f32 %v2099, %v2193
        %v2196 = vsub.f32 %v2100, %v2193
        %v2197 = vsub.f32 %v2101, %v2193
        %v2198 = vsub.f32 %v2102, %v2193
        %v2199 = vsub.f32 %v2103, %v2193
        %v2200 = vsub.f32 %v2104, %v2193
        %v2201 = vsub.f32 %v2105, %v2193
        %v2202 = vadd.f32 %v2192, 1e-05
        %v2203 = vrsqrt.pop %v2202
        %v2204 = vmul.f32 %v2203, %v2202
        %v2205 = vmul.f32 %v2204, %v2203
        %v2206 = vmul.f32 0.5, %v2205
        %v2207 = vsub.f32 1.5, %v2206
        %v2208 = vmul.f32 %v2203, %v2207
        %vm2209 = vweird.f32 %v2202
        %vm2210 = vweird.f32 %v2203
        %vm2211 = vmor %vm2209, %vm2210
        %v2212 = vsel %vm2211, %v2203, %v2208
        %v2213 = vperm.slane %v2212, 1
        %v2214 = vmul.f32 %v2194, %v2213
        %v2215 = vmul.f32 %v2195, %v2213
        %v2216 = vmul.f32 %v2196, %v2213
        %v2217 = vmul.f32 %v2197, %v2213
        %v2218 = vmul.f32 %v2198, %v2213
        %v2219 = vmul.f32 %v2199, %v2213
        %v2220 = vmul.f32 %v2200, %v2213
        %v2221 = vmul.f32 %v2201, %v2213
        %v2222 = vld [vmem:[%s371] sm:$0x1]
        %v2224 = vperm.slane %v2222, 0
        %v2226 = vmul.f32 %v2214, %v2224
        %v2227 = vmul.f32 %v2215, %v2224
        %v2228 = vmul.f32 %v2216, %v2224
        %v2229 = vmul.f32 %v2217, %v2224
        %v2230 = vmul.f32 %v2218, %v2224
        %v2231 = vmul.f32 %v2219, %v2224
        %v2232 = vmul.f32 %v2220, %v2224
        %v2233 = vmul.f32 %v2221, %v2224
        %v2234 = vld [vmem:[%s374] sm:$0x1]
        %v2236 = vperm.slane %v2234, 0
        %v2238 = vadd.f32 %v2226, %v2236
        %v2239 = vadd.f32 %v2227, %v2236
        %v2240 = vadd.f32 %v2228, %v2236
        %v2241 = vadd.f32 %v2229, %v2236
        %v2242 = vadd.f32 %v2230, %v2236
        %v2243 = vadd.f32 %v2231, %v2236
        %v2244 = vadd.f32 %v2232, %v2236
        %v2245 = vadd.f32 %v2233, %v2236
        %vm2246 = vcmp.ge.f32.partialorder %v2238, 0.0
        %vm2247 = vcmp.ge.f32.partialorder %v2239, 0.0
        %vm2248 = vcmp.ge.f32.partialorder %v2240, 0.0
        %vm2249 = vcmp.ge.f32.partialorder %v2241, 0.0
        %vm2250 = vcmp.ge.f32.partialorder %v2242, 0.0
        %vm2251 = vcmp.ge.f32.partialorder %v2243, 0.0
        %vm2252 = vcmp.ge.f32.partialorder %v2244, 0.0
        %vm2253 = vcmp.ge.f32.partialorder %v2245, 0.0
        %v2254 = vmul.f32 %v2238, 0.2
        %v2255 = vmul.f32 %v2239, 0.2
        %v2256 = vmul.f32 %v2240, 0.2
        %v2257 = vmul.f32 %v2241, 0.2
        %v2258 = vmul.f32 %v2242, 0.2
        %v2259 = vmul.f32 %v2243, 0.2
        %v2260 = vmul.f32 %v2244, 0.2
        %v2261 = vmul.f32 %v2245, 0.2
        %v2262 = vsel %vm2246, %v2238, %v2254
        %v2263 = vsel %vm2247, %v2239, %v2255
        %v2264 = vsel %vm2248, %v2240, %v2256
        %v2265 = vsel %vm2249, %v2241, %v2257
        %v2266 = vsel %vm2250, %v2242, %v2258
        %v2267 = vsel %vm2251, %v2243, %v2259
        %v2268 = vsel %vm2252, %v2244, %v2260
        %v2269 = vsel %vm2253, %v2245, %v2261
        %v2270 = vld [vmem:[#allocation4] sm:$0xff]
        %v2271 = vld [vmem:[#allocation4 + $0x8] sm:$0xff]
        %v2272 = vld [vmem:[#allocation4 + $0x10] sm:$0xff]
        %v2273 = vld [vmem:[#allocation4 + $0x18] sm:$0xff]
        %v2274 = vld [vmem:[#allocation4 + $0x20] sm:$0xff]
        %v2275 = vld [vmem:[#allocation4 + $0x28] sm:$0xff]
        %v2276 = vld [vmem:[#allocation4 + $0x30] sm:$0xff]
        %v2277 = vld [vmem:[#allocation4 + $0x38] sm:$0xff]
        %v2278 = vadd.f32 %v2270, %v2262
        %v2279 = vadd.f32 %v2271, %v2263
        %v2280 = vadd.f32 %v2272, %v2264
        %v2281 = vadd.f32 %v2273, %v2265
        %v2282 = vadd.f32 %v2274, %v2266
        %v2283 = vadd.f32 %v2275, %v2267
        %v2284 = vadd.f32 %v2276, %v2268
        %v2285 = vadd.f32 %v2277, %v2269
        %2286 = vst.msk [vmem:[#allocation4] sm:$0xff] %vm2106, %v2278
        %2287 = vst.msk [vmem:[#allocation4 + $0x8] sm:$0xff] %vm2106, %v2279
        %2288 = vst.msk [vmem:[#allocation4 + $0x10] sm:$0xff] %vm2106, %v2280
        %2289 = vst.msk [vmem:[#allocation4 + $0x18] sm:$0xff] %vm2106, %v2281
        %2290 = vst.msk [vmem:[#allocation4 + $0x20] sm:$0xff] %vm2106, %v2282
        %2291 = vst.msk [vmem:[#allocation4 + $0x28] sm:$0xff] %vm2106, %v2283
        %2292 = vst.msk [vmem:[#allocation4 + $0x30] sm:$0xff] %vm2106, %v2284
        %2293 = vst.msk [vmem:[#allocation4 + $0x38] sm:$0xff] %vm2106, %v2285
        %v2294 = vld [vmem:[#allocation4] sm:$0xff]
        %v2295 = vld [vmem:[#allocation4 + $0x8] sm:$0xff]
        %v2296 = vld [vmem:[#allocation4 + $0x10] sm:$0xff]
        %v2297 = vld [vmem:[#allocation4 + $0x18] sm:$0xff]
        %v2298 = vld [vmem:[#allocation4 + $0x20] sm:$0xff]
        %v2299 = vld [vmem:[#allocation4 + $0x28] sm:$0xff]
        %v2300 = vld [vmem:[#allocation4 + $0x30] sm:$0xff]
        %v2301 = vld [vmem:[#allocation4 + $0x38] sm:$0xff]
        %v2302 = vpack.c.bf16 %v2294, %v2294
        %v2303 = vpack.c.bf16 %v2295, %v2295
        %v2304 = vpack.c.bf16 %v2296, %v2296
        %v2305 = vpack.c.bf16 %v2297, %v2297
        %v2306 = vpack.c.bf16 %v2298, %v2298
        %v2307 = vpack.c.bf16 %v2299, %v2299
        %v2308 = vpack.c.bf16 %v2300, %v2300
        %v2309 = vpack.c.bf16 %v2301, %v2301
        %vm2310 = vcmask 257024
        %2311 = vst.msk [vmem:[%s379] sm:$0xf] %vm2310, %v2302
        %2312 = vst.msk [vmem:[%s379 + $0x4] sm:$0xf] %vm2310, %v2303
        %2313 = vst.msk [vmem:[%s379 + $0x8] sm:$0xf] %vm2310, %v2304
        %2314 = vst.msk [vmem:[%s379 + $0xc] sm:$0xf] %vm2310, %v2305
        %2315 = vst.msk [vmem:[%s379 + $0x10] sm:$0xf] %vm2310, %v2306
        %2316 = vst.msk [vmem:[%s379 + $0x14] sm:$0xf] %vm2310, %v2307
        %2317 = vst.msk [vmem:[%s379 + $0x18] sm:$0xf] %vm2310, %v2308
        %2318 = vst.msk [vmem:[%s379 + $0x1c] sm:$0xf] %vm2310, %v2309
      $region60: #{mid_incepnet_forward.4} parent=51 // pred_fallthru
        _
      %p2319 = scmp.lt.s32.totalorder %s23, 1
      %s2320 = scalar_select %p2319, %s23, 1
      %s2321 = smul.addr %s2320, 8
      %s2322 = smul.addr %s2321, 4
      %s2323 = scalar_lea.vmem %s8, %s2322
      // Predicated region
      $region61: #{mid_incepnet_forward.4} parent=51 // pred_check
        %p2324 = pneg %p242
      $region62: #{mid_incepnet_forward.4} parent=51 // pred_check_branch
        %2326 = sbr.rel (%p2324) target = $region64
      $region63: #{mid_incepnet_forward.4} parent=51 // pred_region
        _
      $region64: #{mid_incepnet_forward.4} parent=51 // pred_fallthru
        _
    $region52: #{mid_incepnet_forward.4} parent=5 // pred_fallthru
      _
    %p2327 = scmp.le.s32.totalorder 2, %s14
    // Predicated region
    $region65: #{mid_incepnet_forward.4} parent=5 // pred_check
      %p2328 = pneg %p2327
    $region66: #{mid_incepnet_forward.4} parent=5 // pred_check_branch
      %2330 = sbr.rel (%p2328) target = $region68
    $region67: #{mid_incepnet_forward.4} parent=5 // pred_region
      %s2331 = ssub.s32 %s14, 2
      // Predicated region
      $region69: #{mid_incepnet_forward.4} parent=67 // pred_check
        %p2332 = pneg %p248
      $region70: #{mid_incepnet_forward.4} parent=67 // pred_check_branch
        %2334 = sbr.rel (%p2332) target = $region72
      $region71: #{mid_incepnet_forward.4} parent=67 // pred_region
        %p2335 = scmp.lt.s32.totalorder %s25, 1
        %s2336 = scalar_select %p2335, %s25, 1
        %s2337 = smul.addr %s2336, 8
        %s2338 = smul.addr %s2337, 4
        %s2339 = scalar_lea.vmem %s8, %s2338
      $region72: #{mid_incepnet_forward.4} parent=67 // pred_fallthru
        _
    $region68: #{mid_incepnet_forward.4} parent=5 // pred_fallthru
      _
  $region6: #{mid_incepnet_forward.4} parent=0 // loop_footer
    %s18 = sadd.s32 1, %s14
  $region7: #{mid_incepnet_forward.4} parent=0 // loop_footer_branch
    %13 = sbr.rel target = $region3
  $region8: #{mid_incepnet_forward.4} parent=0 // loop_exit
    _

// kernel: mid_incepnet_forward.5
$region0: #{mid_incepnet_forward.5}
  #allocation0 [shape = 'u32[]', space=smem, size = 0x4, offset = 0x4, fixed_abs, tag = 'smem constant byte address 0x4 - core index']
  #allocation1 [shape = 'u32[72,128]{1,0:T(1,128)}', space=vmem, size = 0x9000, scoped, tag = 'internal scratch']
  #allocation2 [shape = 'f32[12,12,16]{2,1,0:T(8,128)}', space=vmem, size = 0x18000, scoped, tag = 'scratch operand']
  #allocation3 [shape = 'bf16[96,80]{1,0:T(8,128)(2,1)}', space=vmem, size = 0x6000, scoped, tag = 'scratch operand']
  #allocation4 [shape = 'f32[64,32]{1,0:T(8,128)}', space=vmem, size = 0x8000, scoped, tag = 'scratch operand']
  %s0 = inlined_call_operand.vmem [shape: bf16[2,64,32], index: 0, kind: input, shape index: {}]
  %s1 = inlined_call_operand.vmem [shape: bf16[32,16], index: 1, kind: input, shape index: {}]
  %s2 = inlined_call_operand.vmem [shape: f32[1,16], index: 2, kind: input, shape index: {}]
  %s3 = inlined_call_operand.vmem [shape: f32[32,32], index: 3, kind: input, shape index: {}]
  %s4 = inlined_call_operand.vmem [shape: bf16[2,5,80,32], index: 4, kind: input, shape index: {}]
  %s5 = inlined_call_operand.vmem [shape: f32[2,1,32], index: 5, kind: input, shape index: {}]
  %s6 = inlined_call_operand.vmem [shape: f32[2,1,32], index: 6, kind: input, shape index: {}]
  %s7 = inlined_call_operand.vmem [shape: f32[2,1,32], index: 7, kind: input, shape index: {}]
  %s8 = inlined_call_operand.vmem [shape: bf16[2,64,32], index: 8, kind: output, shape index: {}]
  %s9 = sld [smem:[#allocation0]]
  $region73: #{mid_incepnet_forward.5} parent=0
    _
  %s11 = ssub.s32 1, %s9
  %s12 = scalar_select 0, %s11, %s9
  loop: start=0, step=1, limit=6
  $region2: #{mid_incepnet_forward.5} parent=0 // loop_pre_header
    _
  $region3: #{mid_incepnet_forward.5} parent=0 // loop_header
    %s14 = sphi 0, %s18
    %p15 = scmp.ge.s32.totalorder %s14, 6
    %s21 = sphi 0, %s33
    %s22 = sphi 0, %s29
    %s23 = sphi 0, %s21
    %s24 = sphi 0, %s22
    %s25 = sphi 0, %s23
    %s26 = sphi 0, %s24
    %s36 = sphi 0, %s38
    %s39 = sphi 0, %s36
    %s40 = sphi 0, %s39
    %s56 = sphi 0, %s40
    %s60 = sphi 0, %s60
    %s62 = sphi 0, %s60
    %s63 = sphi 0, %s62
    %s77 = sphi 0, %s63
    %s81 = sphi 0, %s81
    %s83 = sphi 0, %s81
    %s84 = sphi 0, %s83
    %s98 = sphi 0, %s84
    %s102 = sphi 0, %s102
    %s104 = sphi 0, %s102
    %s105 = sphi 0, %s104
    %s119 = sphi 0, %s105
    %s125 = sphi 0, %s127
    %s128 = sphi 0, %s125
    %s129 = sphi 0, %s128
    %s145 = sphi 0, %s129
    %s151 = sphi 0, %s153
    %s154 = sphi 0, %s151
    %s155 = sphi 0, %s154
    %s171 = sphi 0, %s155
    %s177 = sphi 0, %s179
    %s180 = sphi 0, %s177
    %s181 = sphi 0, %s180
    %s197 = sphi 0, %s181
    %s203 = sphi 0, %s205
    %s206 = sphi 0, %s203
    %s207 = sphi 0, %s206
    %s223 = sphi 0, %s207
    %s229 = sphi 0, %s231
    %s232 = sphi 0, %s229
    %s233 = sphi 0, %s232
    %s249 = sphi 0, %s233
  $region4: #{mid_incepnet_forward.5} parent=0 // loop_header_branch
    %17 = sbr.rel (%p15) target = $region8
  $region5: #{mid_incepnet_forward.5} parent=0 // loop_body
    %s19 = ssub.s32 %s14, 1
    %s20 = ssub.s32 %s14, 2
    %s27 = sadd.s32 1, %s22
    %p28 = scmp.ge.s32.totalorder %s27, 2
    %s29 = scalar_select %p28, 0, %s27
    %s30 = sadd.s32 1, %s21
    %s31 = scalar_select %p28, %s30, %s21
    %p32 = scmp.ge.s32.totalorder %s31, 2
    %s33 = scalar_select %p32, 0, %s31
    %s34 = ssub.s32 %s21, %s33
    %p35 = scmp.eq.s32.totalorder %s34, 0
    %s37 = sadd.s32 %s36, 1
    %s38 = scalar_select %p35, %s36, %s37
    %p41 = pneg %p35
    %p42 = scmp.eq.s32.totalorder %s14, 3
    %p43 = por %p41, %p42
    %p44 = scmp.ne.s32.totalorder %s36, %s39
    %p45 = scmp.eq.s32.totalorder %s14, 0
    %p46 = por %p44, %p45
    %p47 = scmp.ne.s32.totalorder %s36, %s39
    %p48 = scmp.eq.s32.totalorder %s19, 3
    %p49 = por %p47, %p48
    %p50 = scmp.ne.s32.totalorder %s39, %s40
    %p51 = scmp.eq.s32.totalorder %s19, 0
    %p52 = por %p50, %p51
    %p53 = scmp.ne.s32.totalorder %s39, %s40
    %p54 = scmp.eq.s32.totalorder %s20, 3
    %p55 = por %p53, %p54
    %p57 = scmp.ne.s32.totalorder %s40, %s56
    %p58 = scmp.eq.s32.totalorder %s20, 0
    %p59 = por %p57, %p58
    %s61 = sadd.s32 %s60, 1
    %p64 = scmp.eq.s32.totalorder %s14, 3
    %p65 = scmp.ne.s32.totalorder %s60, %s62
    %p66 = scmp.eq.s32.totalorder %s14, 0
    %p67 = por %p65, %p66
    %p68 = scmp.ne.s32.totalorder %s60, %s62
    %p69 = scmp.eq.s32.totalorder %s19, 3
    %p70 = por %p68, %p69
    %p71 = scmp.ne.s32.totalorder %s62, %s63
    %p72 = scmp.eq.s32.totalorder %s19, 0
    %p73 = por %p71, %p72
    %p74 = scmp.ne.s32.totalorder %s62, %s63
    %p75 = scmp.eq.s32.totalorder %s20, 3
    %p76 = por %p74, %p75
    %p78 = scmp.ne.s32.totalorder %s63, %s77
    %p79 = scmp.eq.s32.totalorder %s20, 0
    %p80 = por %p78, %p79
    %s82 = sadd.s32 %s81, 1
    %p85 = scmp.eq.s32.totalorder %s14, 3
    %p86 = scmp.ne.s32.totalorder %s81, %s83
    %p87 = scmp.eq.s32.totalorder %s14, 0
    %p88 = por %p86, %p87
    %p89 = scmp.ne.s32.totalorder %s81, %s83
    %p90 = scmp.eq.s32.totalorder %s19, 3
    %p91 = por %p89, %p90
    %p92 = scmp.ne.s32.totalorder %s83, %s84
    %p93 = scmp.eq.s32.totalorder %s19, 0
    %p94 = por %p92, %p93
    %p95 = scmp.ne.s32.totalorder %s83, %s84
    %p96 = scmp.eq.s32.totalorder %s20, 3
    %p97 = por %p95, %p96
    %p99 = scmp.ne.s32.totalorder %s84, %s98
    %p100 = scmp.eq.s32.totalorder %s20, 0
    %p101 = por %p99, %p100
    %s103 = sadd.s32 %s102, 1
    %p106 = scmp.eq.s32.totalorder %s14, 3
    %p107 = scmp.ne.s32.totalorder %s102, %s104
    %p108 = scmp.eq.s32.totalorder %s14, 0
    %p109 = por %p107, %p108
    %p110 = scmp.ne.s32.totalorder %s102, %s104
    %p111 = scmp.eq.s32.totalorder %s19, 3
    %p112 = por %p110, %p111
    %p113 = scmp.ne.s32.totalorder %s104, %s105
    %p114 = scmp.eq.s32.totalorder %s19, 0
    %p115 = por %p113, %p114
    %p116 = scmp.ne.s32.totalorder %s104, %s105
    %p117 = scmp.eq.s32.totalorder %s20, 3
    %p118 = por %p116, %p117
    %p120 = scmp.ne.s32.totalorder %s105, %s119
    %p121 = scmp.eq.s32.totalorder %s20, 0
    %p122 = por %p120, %p121
    %s123 = ssub.s32 %s22, %s29
    %p124 = scmp.eq.s32.totalorder %s123, 0
    %s126 = sadd.s32 %s125, 1
    %s127 = scalar_select %p124, %s125, %s126
    %p130 = pneg %p124
    %p131 = scmp.eq.s32.totalorder %s14, 3
    %p132 = por %p130, %p131
    %p133 = scmp.ne.s32.totalorder %s125, %s128
    %p134 = scmp.eq.s32.totalorder %s14, 0
    %p135 = por %p133, %p134
    %p136 = scmp.ne.s32.totalorder %s125, %s128
    %p137 = scmp.eq.s32.totalorder %s19, 3
    %p138 = por %p136, %p137
    %p139 = scmp.ne.s32.totalorder %s128, %s129
    %p140 = scmp.eq.s32.totalorder %s19, 0
    %p141 = por %p139, %p140
    %p142 = scmp.ne.s32.totalorder %s128, %s129
    %p143 = scmp.eq.s32.totalorder %s20, 3
    %p144 = por %p142, %p143
    %p146 = scmp.ne.s32.totalorder %s129, %s145
    %p147 = scmp.eq.s32.totalorder %s20, 0
    %p148 = por %p146, %p147
    %s149 = ssub.s32 %s22, %s29
    %p150 = scmp.eq.s32.totalorder %s149, 0
    %s152 = sadd.s32 %s151, 1
    %s153 = scalar_select %p150, %s151, %s152
    %p156 = pneg %p150
    %p157 = scmp.eq.s32.totalorder %s14, 3
    %p158 = por %p156, %p157
    %p159 = scmp.ne.s32.totalorder %s151, %s154
    %p160 = scmp.eq.s32.totalorder %s14, 0
    %p161 = por %p159, %p160
    %p162 = scmp.ne.s32.totalorder %s151, %s154
    %p163 = scmp.eq.s32.totalorder %s19, 3
    %p164 = por %p162, %p163
    %p165 = scmp.ne.s32.totalorder %s154, %s155
    %p166 = scmp.eq.s32.totalorder %s19, 0
    %p167 = por %p165, %p166
    %p168 = scmp.ne.s32.totalorder %s154, %s155
    %p169 = scmp.eq.s32.totalorder %s20, 3
    %p170 = por %p168, %p169
    %p172 = scmp.ne.s32.totalorder %s155, %s171
    %p173 = scmp.eq.s32.totalorder %s20, 0
    %p174 = por %p172, %p173
    %s175 = ssub.s32 %s22, %s29
    %p176 = scmp.eq.s32.totalorder %s175, 0
    %s178 = sadd.s32 %s177, 1
    %s179 = scalar_select %p176, %s177, %s178
    %p182 = pneg %p176
    %p183 = scmp.eq.s32.totalorder %s14, 3
    %p184 = por %p182, %p183
    %p185 = scmp.ne.s32.totalorder %s177, %s180
    %p186 = scmp.eq.s32.totalorder %s14, 0
    %p187 = por %p185, %p186
    %p188 = scmp.ne.s32.totalorder %s177, %s180
    %p189 = scmp.eq.s32.totalorder %s19, 3
    %p190 = por %p188, %p189
    %p191 = scmp.ne.s32.totalorder %s180, %s181
    %p192 = scmp.eq.s32.totalorder %s19, 0
    %p193 = por %p191, %p192
    %p194 = scmp.ne.s32.totalorder %s180, %s181
    %p195 = scmp.eq.s32.totalorder %s20, 3
    %p196 = por %p194, %p195
    %p198 = scmp.ne.s32.totalorder %s181, %s197
    %p199 = scmp.eq.s32.totalorder %s20, 0
    %p200 = por %p198, %p199
    %s201 = ssub.s32 %s22, %s29
    %p202 = scmp.eq.s32.totalorder %s201, 0
    %s204 = sadd.s32 %s203, 1
    %s205 = scalar_select %p202, %s203, %s204
    %p208 = pneg %p202
    %p209 = scmp.eq.s32.totalorder %s14, 3
    %p210 = por %p208, %p209
    %p211 = scmp.ne.s32.totalorder %s203, %s206
    %p212 = scmp.eq.s32.totalorder %s14, 0
    %p213 = por %p211, %p212
    %p214 = scmp.ne.s32.totalorder %s203, %s206
    %p215 = scmp.eq.s32.totalorder %s19, 3
    %p216 = por %p214, %p215
    %p217 = scmp.ne.s32.totalorder %s206, %s207
    %p218 = scmp.eq.s32.totalorder %s19, 0
    %p219 = por %p217, %p218
    %p220 = scmp.ne.s32.totalorder %s206, %s207
    %p221 = scmp.eq.s32.totalorder %s20, 3
    %p222 = por %p220, %p221
    %p224 = scmp.ne.s32.totalorder %s207, %s223
    %p225 = scmp.eq.s32.totalorder %s20, 0
    %p226 = por %p224, %p225
    %s227 = ssub.s32 %s21, %s33
    %p228 = scmp.eq.s32.totalorder %s227, 0
    %s230 = sadd.s32 %s229, 1
    %s231 = scalar_select %p228, %s229, %s230
    %p234 = pneg %p228
    %p235 = scmp.eq.s32.totalorder %s14, 3
    %p236 = por %p234, %p235
    %p237 = scmp.ne.s32.totalorder %s229, %s232
    %p238 = scmp.eq.s32.totalorder %s14, 0
    %p239 = por %p237, %p238
    %p240 = scmp.ne.s32.totalorder %s229, %s232
    %p241 = scmp.eq.s32.totalorder %s19, 3
    %p242 = por %p240, %p241
    %p243 = scmp.ne.s32.totalorder %s232, %s233
    %p244 = scmp.eq.s32.totalorder %s19, 0
    %p245 = por %p243, %p244
    %p246 = scmp.ne.s32.totalorder %s232, %s233
    %p247 = scmp.eq.s32.totalorder %s20, 3
    %p248 = por %p246, %p247
    %p250 = scmp.ne.s32.totalorder %s233, %s249
    %p251 = scmp.eq.s32.totalorder %s20, 0
    %p252 = por %p250, %p251
    %p253 = scmp.le.s32.totalorder 1, %s14
    %p254 = scmp.lt.s32.totalorder %s14, 5
    %p255 = pnand %p253, %p254
    %p256 = pneg %p255
    // Predicated region
    $region9: #{mid_incepnet_forward.5} parent=5 // pred_check
      _
    $region10: #{mid_incepnet_forward.5} parent=5 // pred_check_branch
      %258 = sbr.rel (%p255) target = $region12
    $region11: #{mid_incepnet_forward.5} parent=5 // pred_region
      %s259 = ssub.s32 %s14, 1
      // Predicated region
      $region13: #{mid_incepnet_forward.5} parent=11 // pred_check
        %p260 = pneg %p73
      $region14: #{mid_incepnet_forward.5} parent=11 // pred_check_branch
        %262 = sbr.rel (%p260) target = $region16
      $region15: #{mid_incepnet_forward.5} parent=11 // pred_region
        _
      $region16: #{mid_incepnet_forward.5} parent=11 // pred_fallthru
        _
      // Predicated region
      $region17: #{mid_incepnet_forward.5} parent=11 // pred_check
        %p263 = pneg %p94
      $region18: #{mid_incepnet_forward.5} parent=11 // pred_check_branch
        %265 = sbr.rel (%p263) target = $region20
      $region19: #{mid_incepnet_forward.5} parent=11 // pred_region
        _
      $region20: #{mid_incepnet_forward.5} parent=11 // pred_fallthru
        _
      // Predicated region
      $region21: #{mid_incepnet_forward.5} parent=11 // pred_check
        %p266 = pneg %p115
      $region22: #{mid_incepnet_forward.5} parent=11 // pred_check_branch
        %268 = sbr.rel (%p266) target = $region24
      $region23: #{mid_incepnet_forward.5} parent=11 // pred_region
        _
      $region24: #{mid_incepnet_forward.5} parent=11 // pred_fallthru
        _
    $region12: #{mid_incepnet_forward.5} parent=5 // pred_fallthru
      _
    %p269 = scmp.lt.s32.totalorder %s14, 4
    // Predicated region
    $region25: #{mid_incepnet_forward.5} parent=5 // pred_check
      %p270 = pneg %p269
    $region26: #{mid_incepnet_forward.5} parent=5 // pred_check_branch
      %272 = sbr.rel (%p270) target = $region28
    $region27: #{mid_incepnet_forward.5} parent=5 // pred_region
      // Predicated region
      $region29: #{mid_incepnet_forward.5} parent=27 // pred_check
        %p273 = pneg %p46
      $region30: #{mid_incepnet_forward.5} parent=27 // pred_check_branch
        %275 = sbr.rel (%p273) target = $region32
      $region31: #{mid_incepnet_forward.5} parent=27 // pred_region
        %p276 = scmp.lt.s32.totalorder %s21, 1
        %s277 = scalar_select %p276, %s21, 1
        %s278 = smul.addr %s277, 8
        %s279 = smul.addr %s278, 4
        %s280 = scalar_lea.vmem %s0, %s279
      $region32: #{mid_incepnet_forward.5} parent=27 // pred_fallthru
        _
      // Predicated region
      $region33: #{mid_incepnet_forward.5} parent=27 // pred_check
        %p281 = pneg %p135
      $region34: #{mid_incepnet_forward.5} parent=27 // pred_check_branch
        %283 = sbr.rel (%p281) target = $region36
      $region35: #{mid_incepnet_forward.5} parent=27 // pred_region
        %p284 = scmp.lt.s32.totalorder %s22, 1
        %s285 = scalar_select %p284, %s22, 1
        %s286 = smul.addr %s285, 50
        %s287 = smul.addr %s286, 4
        %s288 = scalar_lea.vmem %s4, %s287
      $region36: #{mid_incepnet_forward.5} parent=27 // pred_fallthru
        _
      // Predicated region
      $region37: #{mid_incepnet_forward.5} parent=27 // pred_check
        %p289 = pneg %p161
      $region38: #{mid_incepnet_forward.5} parent=27 // pred_check_branch
        %291 = sbr.rel (%p289) target = $region40
      $region39: #{mid_incepnet_forward.5} parent=27 // pred_region
        %p292 = scmp.lt.s32.totalorder %s22, 1
        %s293 = scalar_select %p292, %s22, 1
        %s294 = scalar_lea.vmem %s5, %s293
      $region40: #{mid_incepnet_forward.5} parent=27 // pred_fallthru
        _
      // Predicated region
      $region41: #{mid_incepnet_forward.5} parent=27 // pred_check
        %p295 = pneg %p187
      $region42: #{mid_incepnet_forward.5} parent=27 // pred_check_branch
        %297 = sbr.rel (%p295) target = $region44
      $region43: #{mid_incepnet_forward.5} parent=27 // pred_region
        %p298 = scmp.lt.s32.totalorder %s22, 1
        %s299 = scalar_select %p298, %s22, 1
        %s300 = scalar_lea.vmem %s6, %s299
      $region44: #{mid_incepnet_forward.5} parent=27 // pred_fallthru
        _
      // Predicated region
      $region45: #{mid_incepnet_forward.5} parent=27 // pred_check
        %p301 = pneg %p213
      $region46: #{mid_incepnet_forward.5} parent=27 // pred_check_branch
        %303 = sbr.rel (%p301) target = $region48
      $region47: #{mid_incepnet_forward.5} parent=27 // pred_region
        %p304 = scmp.lt.s32.totalorder %s22, 1
        %s305 = scalar_select %p304, %s22, 1
        %s306 = scalar_lea.vmem %s7, %s305
      $region48: #{mid_incepnet_forward.5} parent=27 // pred_fallthru
        _
    $region28: #{mid_incepnet_forward.5} parent=5 // pred_fallthru
      _
    %p307 = scmp.le.s32.totalorder 1, %s14
    %p308 = scmp.lt.s32.totalorder %s14, 5
    %p309 = pnand %p307, %p308
    %p310 = pneg %p309
    // Predicated region
    $region49: #{mid_incepnet_forward.5} parent=5 // pred_check
      _
    $region50: #{mid_incepnet_forward.5} parent=5 // pred_check_branch
      %312 = sbr.rel (%p309) target = $region52
    $region51: #{mid_incepnet_forward.5} parent=5 // pred_region
      %s313 = ssub.s32 %s14, 1
      %p314 = scmp.lt.s32.totalorder %s23, 1
      %s315 = scalar_select %p314, %s23, 1
      %s316 = smul.addr %s315, 8
      %s317 = smul.addr %s316, 4
      %s318 = scalar_lea.vmem %s0, %s317
      %p319 = pneg %p52
      %p320 = pneg %p49
      %p321 = pneg %p73
      %p322 = pneg %p70
      %p323 = pneg %p94
      %p324 = pneg %p91
      %p325 = pneg %p115
      %p326 = pneg %p112
      %p327 = scmp.lt.s32.totalorder %s24, 1
      %s328 = scalar_select %p327, %s24, 1
      %s329 = smul.addr %s328, 50
      %s330 = smul.addr %s329, 4
      %s331 = scalar_lea.vmem %s4, %s330
      %p332 = pneg %p141
      %p333 = pneg %p138
      %p334 = scmp.lt.s32.totalorder %s24, 1
      %s335 = scalar_select %p334, %s24, 1
      %s336 = scalar_lea.vmem %s5, %s335
      %p337 = pneg %p167
      %p338 = pneg %p164
      %p339 = scmp.lt.s32.totalorder %s24, 1
      %s340 = scalar_select %p339, %s24, 1
      %s341 = scalar_lea.vmem %s6, %s340
      %p342 = pneg %p193
      %p343 = pneg %p190
      %p344 = scmp.lt.s32.totalorder %s24, 1
      %s345 = scalar_select %p344, %s24, 1
      %s346 = scalar_lea.vmem %s7, %s345
      %p347 = pneg %p219
      %p348 = pneg %p216
      %p349 = pneg %p245
      %p350 = pneg %p242
      %p351 = scmp.lt.s32.totalorder %s23, 1
      %s352 = scalar_select %p351, %s23, 1
      %s353 = smul.addr %s352, 8
      %s354 = smul.addr %s353, 4
      %s355 = scalar_lea.vmem %s8, %s354
      %p356 = scmp.lt.s32.totalorder %s23, 1
      %s357 = scalar_select %p356, %s23, 1
      %s358 = smul.addr %s357, 8
      %s359 = smul.addr %s358, 4
      %s360 = scalar_lea.vmem %s0, %s359
      %p361 = scmp.lt.s32.totalorder %s24, 1
      %s362 = scalar_select %p361, %s24, 1
      %s363 = smul.addr %s362, 50
      %s364 = smul.addr %s363, 4
      %s365 = scalar_lea.vmem %s4, %s364
      %p366 = scmp.lt.s32.totalorder %s24, 1
      %s367 = scalar_select %p366, %s24, 1
      %s368 = scalar_lea.vmem %s5, %s367
      %p369 = scmp.lt.s32.totalorder %s24, 1
      %s370 = scalar_select %p369, %s24, 1
      %s371 = scalar_lea.vmem %s6, %s370
      %p372 = scmp.lt.s32.totalorder %s24, 1
      %s373 = scalar_select %p372, %s24, 1
      %s374 = scalar_lea.vmem %s7, %s373
      %p375 = scmp.lt.s32.totalorder %s23, 1
      %s376 = scalar_select %p375, %s23, 1
      %s377 = smul.addr %s376, 8
      %s378 = smul.addr %s377, 4
      %s379 = scalar_lea.vmem %s8, %s378
      %p381 = scmp.eq.s32.totalorder %s24, 0
      // Predicated region
      $region53: #{mid_incepnet_forward.5} parent=51 // pred_check
        %p382 = pneg %p381
      $region54: #{mid_incepnet_forward.5} parent=51 // pred_check_branch
        %384 = sbr.rel (%p382) target = $region56
      $region55: #{mid_incepnet_forward.5} parent=51 // pred_region
        %vm385 = vcmask 130048
        %386 = vst.msk [vmem:[#allocation2] sm:$0xff] %vm385, 0.0
        %vm387 = vcmask 125952
        %388 = vst.msk [vmem:[#allocation2 + $0x8] sm:$0xf] %vm387, 0.0
        %389 = vst.msk [vmem:[#allocation2 + $0x10] sm:$0xff] %vm385, 0.0
        %390 = vst.msk [vmem:[#allocation2 + $0x18] sm:$0xf] %vm387, 0.0
        %s391 = scalar_lea.vmem [#allocation2], 160
        %392 = vst.msk [vmem:[%s391] sm:$0xff] %vm385, 0.0
        %393 = vst.msk [vmem:[%s391 + $0x8] sm:$0xf] %vm387, 0.0
        %394 = vst.msk [vmem:[%s391 + $0x10] sm:$0xff] %vm385, 0.0
        %395 = vst.msk [vmem:[%s391 + $0x18] sm:$0xf] %vm387, 0.0
        %s396 = scalar_lea.vmem [#allocation2], 32
        %vm397 = vcmask 123904
        %398 = vst.msk [vmem:[%s396] sm:$0x3] %vm397, 0.0
        %399 = vst.msk [vmem:[%s396 + $0x10] sm:$0x3] %vm397, 0.0
        %400 = vst.msk [vmem:[%s396 + $0x20] sm:$0x3] %vm397, 0.0
        %401 = vst.msk [vmem:[%s396 + $0x30] sm:$0x3] %vm397, 0.0
        %402 = vst.msk [vmem:[%s396 + $0x40] sm:$0x3] %vm397, 0.0
        %403 = vst.msk [vmem:[%s396 + $0x50] sm:$0x3] %vm397, 0.0
        %404 = vst.msk [vmem:[%s396 + $0x60] sm:$0x3] %vm397, 0.0
        %405 = vst.msk [vmem:[%s396 + $0x70] sm:$0x3] %vm397, 0.0
        %406 = vst.msk [vmem:[%s396 + $0xa] sm:$0x3] %vm397, 0.0
        %407 = vst.msk [vmem:[%s396 + $0x1a] sm:$0x3] %vm397, 0.0
        %408 = vst.msk [vmem:[%s396 + $0x2a] sm:$0x3] %vm397, 0.0
        %409 = vst.msk [vmem:[%s396 + $0x3a] sm:$0x3] %vm397, 0.0
        %410 = vst.msk [vmem:[%s396 + $0x4a] sm:$0x3] %vm397, 0.0
        %411 = vst.msk [vmem:[%s396 + $0x5a] sm:$0x3] %vm397, 0.0
        %412 = vst.msk [vmem:[%s396 + $0x6a] sm:$0x3] %vm397, 0.0
        %413 = vst.msk [vmem:[%s396 + $0x7a] sm:$0x3] %vm397, 0.0
        %v414 = vld [vmem:[%s360] sm:$0xf]
        %v415 = vld [vmem:[%s360 + $0x4] sm:$0xf]
        %v416 = vld [vmem:[%s360 + $0x8] sm:$0xf]
        %v417 = vld [vmem:[%s360 + $0xc] sm:$0xf]
        %v418 = vld [vmem:[%s360 + $0x10] sm:$0xf]
        %v419 = vld [vmem:[%s360 + $0x14] sm:$0xf]
        %v420 = vld [vmem:[%s360 + $0x18] sm:$0xf]
        %v421 = vld [vmem:[%s360 + $0x1c] sm:$0xf]
        %v422 = vld [vmem:[%s1] sm:$0xf]
        %v423 = vld [vmem:[%s1 + $0x4] sm:$0xf]
        %v424 = vld [vmem:[%s1 + $0x8] sm:$0xf]
        %v425 = vld [vmem:[%s1 + $0xc] sm:$0xf]
        %v426 = vld [vmem:[%s2] sm:$0x1]
        %v428 = vperm.slane %v426, 0
        %v438 = vunpack.c.l.b16 %v414
        %v439 = vunpack.c.l.b16 %v415
        %v440 = vunpack.c.l.b16 %v416
        %v441 = vunpack.c.l.b16 %v417
        %v442 = vunpack.c.l.b16 %v418
        %v443 = vunpack.c.l.b16 %v419
        %v444 = vunpack.c.l.b16 %v420
        %v445 = vunpack.c.l.b16 %v421
        %v446 = vpack.c.b16 %v439, %v438
        %v447 = vpack.c.b16 %v441, %v440
        %v448 = vpack.c.b16 %v443, %v442
        %v449 = vpack.c.b16 %v445, %v444
        %v454 = vunpack.c.l.b16 %v422
        %v455 = vunpack.c.l.b16 %v423
        %v456 = vunpack.c.l.b16 %v424
        %v457 = vunpack.c.l.b16 %v425
        %v458 = vpack.c.b16 %v455, %v454
        %v459 = vpack.c.b16 %v457, %v456
        %vm462 = vcmask 261120
        %v464 = vsel %vm462, %v446, 0
        %v467 = vsel %vm462, %v447, 0
        %v470 = vsel %vm462, %v448, 0
        %v473 = vsel %vm462, %v449, 0
        %475 = vmatpush.bf16.msra.mxu0 0
        %476 = vmatpush.bf16.msra.mxu0 0
        %477 = vmatpush.bf16.msra.mxu0 0
        %478 = vmatpush.bf16.msra.mxu0 0
        %479 = vmatpush.bf16.msra.mxu0 0
        %480 = vmatpush.bf16.msra.mxu0 0
        %481 = vmatpush.bf16.msra.mxu0 %v459
        %482 = vmatpush.bf16.msra.mxu0 %v458
        %483 = vmatmul.bf16.gmra.mxu0 %v464
        %v484 = vpop.f32.mrf.mxu0
        %v485 = vadd.f32 %v428, %v484
        %v486 = vpop.f32.mrf.mxu0
        %v487 = vadd.f32 %v428, %v486
        %488 = vmatmul.bf16.gmra.mxu0 %v467
        %v489 = vpop.f32.mrf.mxu0
        %v490 = vadd.f32 %v428, %v489
        %v491 = vpop.f32.mrf.mxu0
        %v492 = vadd.f32 %v428, %v491
        %493 = vmatmul.bf16.gmra.mxu0 %v470
        %v494 = vpop.f32.mrf.mxu0
        %v495 = vadd.f32 %v428, %v494
        %v496 = vpop.f32.mrf.mxu0
        %v497 = vadd.f32 %v428, %v496
        %498 = vmatmul.bf16.gmra.mxu0 %v473
        %v499 = vpop.f32.mrf.mxu0
        %v500 = vadd.f32 %v428, %v499
        %v501 = vpop.f32.mrf.mxu0
        %v502 = vadd.f32 %v428, %v501
        %503 = vdwg.mxu0
        %504 = vst.msk [vmem:[%s396 + $0x2] sm:$0xff] %vm385, %v485
        %505 = vst.msk [vmem:[%s396 + $0x12] sm:$0xff] %vm385, %v487
        %506 = vst.msk [vmem:[%s396 + $0x22] sm:$0xff] %vm385, %v490
        %507 = vst.msk [vmem:[%s396 + $0x32] sm:$0xff] %vm385, %v492
        %508 = vst.msk [vmem:[%s396 + $0x42] sm:$0xff] %vm385, %v495
        %509 = vst.msk [vmem:[%s396 + $0x52] sm:$0xff] %vm385, %v497
        %510 = vst.msk [vmem:[%s396 + $0x62] sm:$0xff] %vm385, %v500
        %511 = vst.msk [vmem:[%s396 + $0x72] sm:$0xff] %vm385, %v502
        %v512 = vld [vmem:[#allocation2 + $0x1] sm:$0xff]
        %v513 = vld [vmem:[#allocation2 + $0x11] sm:$0xff]
        %v514 = vld [vmem:[#allocation2 + $0x21] sm:$0xff]
        %v515 = vld [vmem:[#allocation2 + $0x31] sm:$0xff]
        %v516 = vld [vmem:[#allocation2 + $0x41] sm:$0xff]
        %v517 = vld [vmem:[#allocation2 + $0x51] sm:$0xff]
        %v518 = vld [vmem:[#allocation2 + $0x61] sm:$0xff]
        %v519 = vld [vmem:[#allocation2 + $0x71] sm:$0xff]
        %v520 = vld [vmem:[#allocation2 + $0x81] sm:$0xff]
        %v521 = vld [vmem:[#allocation2 + $0x91] sm:$0xff]
        %v522 = vld [vmem:[#allocation2 + $0xa1] sm:$0xff]
        %v523 = vld [vmem:[#allocation2 + $0xb1] sm:$0xff]
        %v524 = vpack.c.bf16 %v512, %v512
        %v525 = vpack.c.bf16 %v513, %v513
        %v526 = vpack.c.bf16 %v514, %v514
        %v527 = vpack.c.bf16 %v515, %v515
        %v528 = vpack.c.bf16 %v516, %v516
        %v529 = vpack.c.bf16 %v517, %v517
        %v530 = vpack.c.bf16 %v518, %v518
        %v531 = vpack.c.bf16 %v519, %v519
        %v532 = vpack.c.bf16 %v520, %v520
        %v533 = vpack.c.bf16 %v521, %v521
        %v534 = vpack.c.bf16 %v522, %v522
        %v535 = vpack.c.bf16 %v523, %v523
        %536 = vst.msk [vmem:[#allocation3] sm:$0xf] %vm387, %v524
        %537 = vst.msk [vmem:[#allocation3 + $0x4] sm:$0xf] %vm387, %v525
        %538 = vst.msk [vmem:[#allocation3 + $0x8] sm:$0xf] %vm387, %v526
        %539 = vst.msk [vmem:[#allocation3 + $0xc] sm:$0xf] %vm387, %v527
        %540 = vst.msk [vmem:[#allocation3 + $0x10] sm:$0xf] %vm387, %v528
        %541 = vst.msk [vmem:[#allocation3 + $0x14] sm:$0xf] %vm387, %v529
        %542 = vst.msk [vmem:[#allocation3 + $0x18] sm:$0xf] %vm387, %v530
        %543 = vst.msk [vmem:[#allocation3 + $0x1c] sm:$0xf] %vm387, %v531
        %544 = vst.msk [vmem:[#allocation3 + $0x20] sm:$0xf] %vm387, %v532
        %545 = vst.msk [vmem:[#allocation3 + $0x24] sm:$0xf] %vm387, %v533
        %546 = vst.msk [vmem:[#allocation3 + $0x28] sm:$0xf] %vm387, %v534
        %547 = vst.msk [vmem:[#allocation3 + $0x2c] sm:$0xf] %vm387, %v535
        %v548 = vld [vmem:[#allocation2 + $0x2] sm:$0xff]
        %v549 = vld [vmem:[#allocation2 + $0x12] sm:$0xff]
        %v550 = vld [vmem:[#allocation2 + $0x22] sm:$0xff]
        %v551 = vld [vmem:[#allocation2 + $0x32] sm:$0xff]
        %v552 = vld [vmem:[#allocation2 + $0x42] sm:$0xff]
        %v553 = vld [vmem:[#allocation2 + $0x52] sm:$0xff]
        %v554 = vld [vmem:[#allocation2 + $0x62] sm:$0xff]
        %v555 = vld [vmem:[#allocation2 + $0x72] sm:$0xff]
        %v556 = vld [vmem:[#allocation2 + $0x82] sm:$0xff]
        %v557 = vld [vmem:[#allocation2 + $0x92] sm:$0xff]
        %v558 = vld [vmem:[#allocation2 + $0xa2] sm:$0xff]
        %v559 = vld [vmem:[#allocation2 + $0xb2] sm:$0xff]
        %v560 = vpack.c.bf16 %v548, %v548
        %v561 = vpack.c.bf16 %v549, %v549
        %v562 = vpack.c.bf16 %v550, %v550
        %v563 = vpack.c.bf16 %v551, %v551
        %v564 = vpack.c.bf16 %v552, %v552
        %v565 = vpack.c.bf16 %v553, %v553
        %v566 = vpack.c.bf16 %v554, %v554
        %v567 = vpack.c.bf16 %v555, %v555
        %v568 = vpack.c.bf16 %v556, %v556
        %v569 = vpack.c.bf16 %v557, %v557
        %v570 = vpack.c.bf16 %v558, %v558
        %v571 = vpack.c.bf16 %v559, %v559
        %584 = vrot.lane.b32.xlu0 %v560, 16
        %v585 = vpop.permute.xlu0 %584
        %586 = vrot.lane.b32.xlu0 %v561, 16
        %v587 = vpop.permute.xlu0 %586
        %588 = vrot.lane.b32.xlu0 %v562, 16
        %v589 = vpop.permute.xlu0 %588
        %590 = vrot.lane.b32.xlu0 %v563, 16
        %v591 = vpop.permute.xlu0 %590
        %592 = vrot.lane.b32.xlu0 %v564, 16
        %v593 = vpop.permute.xlu0 %592
        %594 = vrot.lane.b32.xlu0 %v565, 16
        %v595 = vpop.permute.xlu0 %594
        %596 = vrot.lane.b32.xlu0 %v566, 16
        %v597 = vpop.permute.xlu0 %596
        %598 = vrot.lane.b32.xlu0 %v567, 16
        %v599 = vpop.permute.xlu0 %598
        %600 = vrot.lane.b32.xlu0 %v568, 16
        %v601 = vpop.permute.xlu0 %600
        %602 = vrot.lane.b32.xlu0 %v569, 16
        %v603 = vpop.permute.xlu0 %602
        %604 = vrot.lane.b32.xlu0 %v570, 16
        %v605 = vpop.permute.xlu0 %604
        %606 = vrot.lane.b32.xlu0 %v571, 16
        %v607 = vpop.permute.xlu0 %606
        %vm620 = vcmask 257152
        %621 = vst.msk [vmem:[#allocation3] sm:$0xf] %vm620, %v585
        %622 = vst.msk [vmem:[#allocation3 + $0x4] sm:$0xf] %vm620, %v587
        %623 = vst.msk [vmem:[#allocation3 + $0x8] sm:$0xf] %vm620, %v589
        %624 = vst.msk [vmem:[#allocation3 + $0xc] sm:$0xf] %vm620, %v591
        %625 = vst.msk [vmem:[#allocation3 + $0x10] sm:$0xf] %vm620, %v593
        %626 = vst.msk [vmem:[#allocation3 + $0x14] sm:$0xf] %vm620, %v595
        %627 = vst.msk [vmem:[#allocation3 + $0x18] sm:$0xf] %vm620, %v597
        %628 = vst.msk [vmem:[#allocation3 + $0x1c] sm:$0xf] %vm620, %v599
        %629 = vst.msk [vmem:[#allocation3 + $0x20] sm:$0xf] %vm620, %v601
        %630 = vst.msk [vmem:[#allocation3 + $0x24] sm:$0xf] %vm620, %v603
        %631 = vst.msk [vmem:[#allocation3 + $0x28] sm:$0xf] %vm620, %v605
        %632 = vst.msk [vmem:[#allocation3 + $0x2c] sm:$0xf] %vm620, %v607
        %v633 = vld [vmem:[#allocation2 + $0x3] sm:$0xff]
        %v634 = vld [vmem:[#allocation2 + $0x13] sm:$0xff]
        %v635 = vld [vmem:[#allocation2 + $0x23] sm:$0xff]
        %v636 = vld [vmem:[#allocation2 + $0x33] sm:$0xff]
        %v637 = vld [vmem:[#allocation2 + $0x43] sm:$0xff]
        %v638 = vld [vmem:[#allocation2 + $0x53] sm:$0xff]
        %v639 = vld [vmem:[#allocation2 + $0x63] sm:$0xff]
        %v640 = vld [vmem:[#allocation2 + $0x73] sm:$0xff]
        %v641 = vld [vmem:[#allocation2 + $0x83] sm:$0xff]
        %v642 = vld [vmem:[#allocation2 + $0x93] sm:$0xff]
        %v643 = vld [vmem:[#allocation2 + $0xa3] sm:$0xff]
        %v644 = vld [vmem:[#allocation2 + $0xb3] sm:$0xff]
        %v645 = vpack.c.bf16 %v633, %v633
        %v646 = vpack.c.bf16 %v634, %v634
        %v647 = vpack.c.bf16 %v635, %v635
        %v648 = vpack.c.bf16 %v636, %v636
        %v649 = vpack.c.bf16 %v637, %v637
        %v650 = vpack.c.bf16 %v638, %v638
        %v651 = vpack.c.bf16 %v639, %v639
        %v652 = vpack.c.bf16 %v640, %v640
        %v653 = vpack.c.bf16 %v641, %v641
        %v654 = vpack.c.bf16 %v642, %v642
        %v655 = vpack.c.bf16 %v643, %v643
        %v656 = vpack.c.bf16 %v644, %v644
        %669 = vrot.lane.b32.xlu0 %v645, 32
        %v670 = vpop.permute.xlu0 %669
        %671 = vrot.lane.b32.xlu0 %v646, 32
        %v672 = vpop.permute.xlu0 %671
        %673 = vrot.lane.b32.xlu0 %v647, 32
        %v674 = vpop.permute.xlu0 %673
        %675 = vrot.lane.b32.xlu0 %v648, 32
        %v676 = vpop.permute.xlu0 %675
        %677 = vrot.lane.b32.xlu0 %v649, 32
        %v678 = vpop.permute.xlu0 %677
        %679 = vrot.lane.b32.xlu0 %v650, 32
        %v680 = vpop.permute.xlu0 %679
        %681 = vrot.lane.b32.xlu0 %v651, 32
        %v682 = vpop.permute.xlu0 %681
        %683 = vrot.lane.b32.xlu0 %v652, 32
        %v684 = vpop.permute.xlu0 %683
        %685 = vrot.lane.b32.xlu0 %v653, 32
        %v686 = vpop.permute.xlu0 %685
        %687 = vrot.lane.b32.xlu0 %v654, 32
        %v688 = vpop.permute.xlu0 %687
        %689 = vrot.lane.b32.xlu0 %v655, 32
        %v690 = vpop.permute.xlu0 %689
        %691 = vrot.lane.b32.xlu0 %v656, 32
        %v692 = vpop.permute.xlu0 %691
        %vm705 = vcmask 388352
        %706 = vst.msk [vmem:[#allocation3] sm:$0xf] %vm705, %v670
        %707 = vst.msk [vmem:[#allocation3 + $0x4] sm:$0xf] %vm705, %v672
        %708 = vst.msk [vmem:[#allocation3 + $0x8] sm:$0xf] %vm705, %v674
        %709 = vst.msk [vmem:[#allocation3 + $0xc] sm:$0xf] %vm705, %v676
        %710 = vst.msk [vmem:[#allocation3 + $0x10] sm:$0xf] %vm705, %v678
        %711 = vst.msk [vmem:[#allocation3 + $0x14] sm:$0xf] %vm705, %v680
        %712 = vst.msk [vmem:[#allocation3 + $0x18] sm:$0xf] %vm705, %v682
        %713 = vst.msk [vmem:[#allocation3 + $0x1c] sm:$0xf] %vm705, %v684
        %714 = vst.msk [vmem:[#allocation3 + $0x20] sm:$0xf] %vm705, %v686
        %715 = vst.msk [vmem:[#allocation3 + $0x24] sm:$0xf] %vm705, %v688
        %716 = vst.msk [vmem:[#allocation3 + $0x28] sm:$0xf] %vm705, %v690
        %717 = vst.msk [vmem:[#allocation3 + $0x2c] sm:$0xf] %vm705, %v692
        %v718 = vld [vmem:[#allocation3 + $0x4] sm:$0xf]
        %v719 = vld [vmem:[#allocation3 + $0x8] sm:$0xf]
        %v720 = vld [vmem:[#allocation3 + $0xc] sm:$0xf]
        %v721 = vld [vmem:[#allocation3 + $0x10] sm:$0xf]
        %v722 = vld [vmem:[#allocation3 + $0x14] sm:$0xf]
        %v723 = vld [vmem:[#allocation3 + $0x18] sm:$0xf]
        %v724 = vld [vmem:[#allocation3 + $0x1c] sm:$0xf]
        %v725 = vld [vmem:[#allocation3 + $0x20] sm:$0xf]
        %v726 = vld [vmem:[%s365] sm:$0xf]
        %v727 = vld [vmem:[%s365 + $0x4] sm:$0xf]
        %v728 = vld [vmem:[%s365 + $0x8] sm:$0xf]
        %v729 = vld [vmem:[%s365 + $0xc] sm:$0xf]
        %v730 = vld [vmem:[%s365 + $0x10] sm:$0xf]
        %v731 = vld [vmem:[%s365 + $0x14] sm:$0xf]
        %v732 = vld [vmem:[#allocation3 + $0x24] sm:$0xf]
        %s733 = scalar_lea.vmem %s365, 40
        %v734 = vld [vmem:[%s733] sm:$0xf]
        %v735 = vld [vmem:[%s733 + $0x4] sm:$0xf]
        %v736 = vld [vmem:[%s733 + $0x8] sm:$0xf]
        %v737 = vld [vmem:[%s733 + $0xc] sm:$0xf]
        %v738 = vld [vmem:[%s733 + $0x10] sm:$0xf]
        %v739 = vld [vmem:[%s733 + $0x14] sm:$0xf]
        %v748 = vunpack.c.l.b16 %v719
        %v749 = vunpack.c.l.b16 %v720
        %v750 = vunpack.c.l.b16 %v721
        %v751 = vunpack.c.l.b16 %v722
        %v752 = vunpack.c.l.b16 %v723
        %v753 = vunpack.c.l.b16 %v724
        %v754 = vunpack.c.l.b16 %v725
        %v755 = vunpack.c.l.b16 %v732
        %v756 = vpack.c.b16 %v749, %v748
        %v757 = vpack.c.b16 %v751, %v750
        %v758 = vpack.c.b16 %v753, %v752
        %v759 = vpack.c.b16 %v755, %v754
        %v766 = vunpack.c.l.b16 %v734
        %v767 = vunpack.c.l.b16 %v735
        %v768 = vunpack.c.l.b16 %v736
        %v769 = vunpack.c.l.b16 %v737
        %v770 = vunpack.c.l.b16 %v738
        %v771 = vunpack.c.l.b16 %v739
        %v772 = vpack.c.b16 %v767, %v766
        %v773 = vpack.c.b16 %v769, %v768
        %v774 = vpack.c.b16 %v771, %v770
        %vm778 = vcmask 392192
        %v780 = vsel %vm778, %v756, 0
        %v783 = vsel %vm778, %v757, 0
        %v786 = vsel %vm778, %v758, 0
        %v789 = vsel %vm778, %v759, 0
        %791 = vmatpush.bf16.msra.mxu0 0
        %792 = vmatpush.bf16.msra.mxu0 0
        %793 = vmatpush.bf16.msra.mxu0 0
        %794 = vmatpush.bf16.msra.mxu0 0
        %795 = vmatpush.bf16.msra.mxu0 0
        %796 = vmatpush.bf16.msra.mxu0 %v774
        %797 = vmatpush.bf16.msra.mxu0 %v773
        %798 = vmatpush.bf16.msra.mxu0 %v772
        %799 = vmatmul.bf16.gmra.mxu0 %v780
        %v800 = vpop.f32.mrf.mxu0
        %v801 = vadd.f32 0.0, %v800
        %v802 = vpop.f32.mrf.mxu0
        %v803 = vadd.f32 0.0, %v802
        %804 = vmatmul.bf16.gmra.mxu0 %v783
        %v805 = vpop.f32.mrf.mxu0
        %v806 = vadd.f32 0.0, %v805
        %v807 = vpop.f32.mrf.mxu0
        %v808 = vadd.f32 0.0, %v807
        %809 = vmatmul.bf16.gmra.mxu0 %v786
        %v810 = vpop.f32.mrf.mxu0
        %v811 = vadd.f32 0.0, %v810
        %v812 = vpop.f32.mrf.mxu0
        %v813 = vadd.f32 0.0, %v812
        %814 = vmatmul.bf16.gmra.mxu0 %v789
        %v815 = vpop.f32.mrf.mxu0
        %v816 = vadd.f32 0.0, %v815
        %v817 = vpop.f32.mrf.mxu0
        %v818 = vadd.f32 0.0, %v817
        %819 = vdwg.mxu0
        %v821 = vunpack.c.l.b16 %v718
        %v822 = vpack.c.b16 %v748, %v821
        %v823 = vpack.c.b16 %v750, %v749
        %v824 = vpack.c.b16 %v752, %v751
        %v825 = vpack.c.b16 %v754, %v753
        %v832 = vunpack.c.l.b16 %v726
        %v833 = vunpack.c.l.b16 %v727
        %v834 = vunpack.c.l.b16 %v728
        %v835 = vunpack.c.l.b16 %v729
        %v836 = vunpack.c.l.b16 %v730
        %v837 = vunpack.c.l.b16 %v731
        %v838 = vpack.c.b16 %v833, %v832
        %v839 = vpack.c.b16 %v835, %v834
        %v840 = vpack.c.b16 %v837, %v836
        %v845 = vsel %vm778, %v822, 0
        %v848 = vsel %vm778, %v823, 0
        %v851 = vsel %vm778, %v824, 0
        %v854 = vsel %vm778, %v825, 0
        %856 = vmatpush.bf16.msra.mxu0 0
        %857 = vmatpush.bf16.msra.mxu0 0
        %858 = vmatpush.bf16.msra.mxu0 0
        %859 = vmatpush.bf16.msra.mxu0 0
        %860 = vmatpush.bf16.msra.mxu0 0
        %861 = vmatpush.bf16.msra.mxu0 %v840
        %862 = vmatpush.bf16.msra.mxu0 %v839
        %863 = vmatpush.bf16.msra.mxu0 %v838
        %864 = vmatmul.bf16.gmra.mxu0 %v845
        %v865 = vpop.f32.mrf.mxu0
        %v866 = vadd.f32 %v801, %v865
        %v867 = vpop.f32.mrf.mxu0
        %v868 = vadd.f32 %v803, %v867
        %869 = vmatmul.bf16.gmra.mxu0 %v848
        %v870 = vpop.f32.mrf.mxu0
        %v871 = vadd.f32 %v806, %v870
        %v872 = vpop.f32.mrf.mxu0
        %v873 = vadd.f32 %v808, %v872
        %874 = vmatmul.bf16.gmra.mxu0 %v851
        %v875 = vpop.f32.mrf.mxu0
        %v876 = vadd.f32 %v811, %v875
        %v877 = vpop.f32.mrf.mxu0
        %v878 = vadd.f32 %v813, %v877
        %879 = vmatmul.bf16.gmra.mxu0 %v854
        %v880 = vpop.f32.mrf.mxu0
        %v881 = vadd.f32 %v816, %v880
        %v882 = vpop.f32.mrf.mxu0
        %v883 = vadd.f32 %v818, %v882
        %884 = vdwg.mxu0
        %v885 = vld [vmem:[#allocation3 + $0xc] sm:$0xf]
        %v886 = vld [vmem:[#allocation3 + $0x10] sm:$0xf]
        %v887 = vld [vmem:[#allocation3 + $0x14] sm:$0xf]
        %v888 = vld [vmem:[#allocation3 + $0x18] sm:$0xf]
        %v889 = vld [vmem:[#allocation3 + $0x1c] sm:$0xf]
        %v890 = vld [vmem:[#allocation3 + $0x20] sm:$0xf]
        %v891 = vld [vmem:[#allocation3 + $0x24] sm:$0xf]
        %v892 = vld [vmem:[#allocation3 + $0x28] sm:$0xf]
        %s893 = scalar_lea.vmem %s365, 80
        %v894 = vld [vmem:[%s893] sm:$0xf]
        %v895 = vld [vmem:[%s893 + $0x4] sm:$0xf]
        %v896 = vld [vmem:[%s893 + $0x8] sm:$0xf]
        %v897 = vld [vmem:[%s893 + $0xc] sm:$0xf]
        %v898 = vld [vmem:[%s893 + $0x10] sm:$0xf]
        %v899 = vld [vmem:[%s893 + $0x14] sm:$0xf]
        %v908 = vunpack.c.l.b16 %v885
        %v909 = vunpack.c.l.b16 %v886
        %v910 = vunpack.c.l.b16 %v887
        %v911 = vunpack.c.l.b16 %v888
        %v912 = vunpack.c.l.b16 %v889
        %v913 = vunpack.c.l.b16 %v890
        %v914 = vunpack.c.l.b16 %v891
        %v915 = vunpack.c.l.b16 %v892
        %v916 = vpack.c.b16 %v909, %v908
        %v917 = vpack.c.b16 %v911, %v910
        %v918 = vpack.c.b16 %v913, %v912
        %v919 = vpack.c.b16 %v915, %v914
        %v926 = vunpack.c.l.b16 %v894
        %v927 = vunpack.c.l.b16 %v895
        %v928 = vunpack.c.l.b16 %v896
        %v929 = vunpack.c.l.b16 %v897
        %v930 = vunpack.c.l.b16 %v898
        %v931 = vunpack.c.l.b16 %v899
        %v932 = vpack.c.b16 %v927, %v926
        %v933 = vpack.c.b16 %v929, %v928
        %v934 = vpack.c.b16 %v931, %v930
        %v939 = vsel %vm778, %v916, 0
        %v942 = vsel %vm778, %v917, 0
        %v945 = vsel %vm778, %v918, 0
        %v948 = vsel %vm778, %v919, 0
        %950 = vmatpush.bf16.msra.mxu0 0
        %951 = vmatpush.bf16.msra.mxu0 0
        %952 = vmatpush.bf16.msra.mxu0 0
        %953 = vmatpush.bf16.msra.mxu0 0
        %954 = vmatpush.bf16.msra.mxu0 0
        %955 = vmatpush.bf16.msra.mxu0 %v934
        %956 = vmatpush.bf16.msra.mxu0 %v933
        %957 = vmatpush.bf16.msra.mxu0 %v932
        %958 = vmatmul.bf16.gmra.mxu0 %v939
        %v959 = vpop.f32.mrf.mxu0
        %v960 = vadd.f32 0.0, %v959
        %v961 = vpop.f32.mrf.mxu0
        %v962 = vadd.f32 0.0, %v961
        %963 = vmatmul.bf16.gmra.mxu0 %v942
        %v964 = vpop.f32.mrf.mxu0
        %v965 = vadd.f32 0.0, %v964
        %v966 = vpop.f32.mrf.mxu0
        %v967 = vadd.f32 0.0, %v966
        %968 = vmatmul.bf16.gmra.mxu0 %v945
        %v969 = vpop.f32.mrf.mxu0
        %v970 = vadd.f32 0.0, %v969
        %v971 = vpop.f32.mrf.mxu0
        %v972 = vadd.f32 0.0, %v971
        %973 = vmatmul.bf16.gmra.mxu0 %v948
        %v974 = vpop.f32.mrf.mxu0
        %v975 = vadd.f32 0.0, %v974
        %v976 = vpop.f32.mrf.mxu0
        %v977 = vadd.f32 0.0, %v976
        %978 = vdwg.mxu0
        %v979 = vadd.f32 %v866, %v960
        %v980 = vadd.f32 %v868, %v962
        %v981 = vadd.f32 %v871, %v965
        %v982 = vadd.f32 %v873, %v967
        %v983 = vadd.f32 %v876, %v970
        %v984 = vadd.f32 %v878, %v972
        %v985 = vadd.f32 %v881, %v975
        %v986 = vadd.f32 %v883, %v977
        %v987 = vld [vmem:[%s368] sm:$0x1]
        %v989 = vperm.slane %v987, 0
        %v991 = vadd.f32 %v979, %v989
        %v992 = vadd.f32 %v980, %v989
        %v993 = vadd.f32 %v981, %v989
        %v994 = vadd.f32 %v982, %v989
        %v995 = vadd.f32 %v983, %v989
        %v996 = vadd.f32 %v984, %v989
        %v997 = vadd.f32 %v985, %v989
        %v998 = vadd.f32 %v986, %v989
        %v999 = vsel %vm462, %v991, 0.0
        %v1000 = vsel %vm462, %v992, 0.0
        %v1001 = vadd.f32 %v999, %v1000
        %v1002 = vsel %vm462, %v993, 0.0
        %v1003 = vadd.f32 %v1001, %v1002
        %v1004 = vsel %vm462, %v994, 0.0
        %v1005 = vadd.f32 %v1003, %v1004
        %v1006 = vsel %vm462, %v995, 0.0
        %v1007 = vadd.f32 %v1005, %v1006
        %v1008 = vsel %vm462, %v996, 0.0
        %v1009 = vadd.f32 %v1007, %v1008
        %v1010 = vsel %vm462, %v997, 0.0
        %v1011 = vadd.f32 %v1009, %v1010
        %v1012 = vsel %vm462, %v998, 0.0
        %v1013 = vadd.f32 %v1011, %v1012
        %v1014 = vrot.slane %v1013, 4
        %v1015 = vadd.f32 %v1013, %v1014
        %v1016 = vrot.slane %v1015, 2
        %v1017 = vadd.f32 %v1015, %v1016
        %v1018 = vrot.slane %v1017, 1
        %v1019 = vadd.f32 %v1017, %v1018
        %v1020 = vmul.f32 %v991, %v991
        %v1021 = vmul.f32 %v992, %v992
        %v1022 = vmul.f32 %v993, %v993
        %v1023 = vmul.f32 %v994, %v994
        %v1024 = vmul.f32 %v995, %v995
        %v1025 = vmul.f32 %v996, %v996
        %v1026 = vmul.f32 %v997, %v997
        %v1027 = vmul.f32 %v998, %v998
        %v1028 = vsel %vm462, %v1020, 0.0
        %v1029 = vsel %vm462, %v1021, 0.0
        %v1030 = vadd.f32 %v1028, %v1029
        %v1031 = vsel %vm462, %v1022, 0.0
        %v1032 = vadd.f32 %v1030, %v1031
        %v1033 = vsel %vm462, %v1023, 0.0
        %v1034 = vadd.f32 %v1032, %v1033
        %v1035 = vsel %vm462, %v1024, 0.0
        %v1036 = vadd.f32 %v1034, %v1035
        %v1037 = vsel %vm462, %v1025, 0.0
        %v1038 = vadd.f32 %v1036, %v1037
        %v1039 = vsel %vm462, %v1026, 0.0
        %v1040 = vadd.f32 %v1038, %v1039
        %v1041 = vsel %vm462, %v1027, 0.0
        %v1042 = vadd.f32 %v1040, %v1041
        %v1043 = vrot.slane %v1042, 4
        %v1044 = vadd.f32 %v1042, %v1043
        %v1045 = vrot.slane %v1044, 2
        %v1046 = vadd.f32 %v1044, %v1045
        %v1047 = vrot.slane %v1046, 1
        %v1048 = vadd.f32 %v1046, %v1047
        %vm1049 = vcmask 1040384
        %v1050 = vsel %vm1049, %v1019, %v1048
        %v1051 = vld [vmem:[%s3] sm:$0xff]
        %v1052 = vld [vmem:[%s3 + $0x8] sm:$0xff]
        %v1053 = vld [vmem:[%s3 + $0x10] sm:$0xff]
        %v1054 = vld [vmem:[%s3 + $0x18] sm:$0xff]
        %v1056 = vsel %vm462, %v1050, 0
        %1058 = vmatpush.msra.mxu0 0.0
        %1059 = vmatpush.msra.mxu0 0.0
        %1060 = vmatpush.msra.mxu0 0.0
        %1061 = vmatpush.msra.mxu0 0.0
        %1062 = vmatpush.msra.mxu0 0.0
        %1063 = vmatpush.msra.mxu0 0.0
        %1064 = vmatpush.msra.mxu0 0.0
        %1065 = vmatpush.msra.mxu0 0.0
        %1066 = vmatpush.msra.mxu0 0.0
        %1067 = vmatpush.msra.mxu0 0.0
        %1068 = vmatpush.msra.mxu0 0.0
        %1069 = vmatpush.msra.mxu0 0.0
        %1070 = vmatpush.msra.mxu0 %v1054
        %1071 = vmatpush.msra.mxu0 %v1053
        %1072 = vmatpush.msra.mxu0 %v1052
        %1073 = vmatpush.msra.mxu0 %v1051
        %1074 = vmatmul.f32.gmra.mxu0 %v1056
        %v1075 = vpop.f32.mrf.mxu0
        %v1076 = vadd.f32 0.0, %v1075
        %1077 = vdwg.mxu0
        %v1078 = vmul.f32 %v1076, 0.001953125
        %v1079 = vmul.f32 %v1078, %v1078
        %v1081 = vrot.slane %v1079, 7
        %v1083 = vsub.f32 %v1078, %v1081
        %v1084 = vmax.f32 %v1083, 0.0
        %v1085 = vperm.slane %v1078, 0
        %v1086 = vsub.f32 %v991, %v1085
        %v1087 = vsub.f32 %v992, %v1085
        %v1088 = vsub.f32 %v993, %v1085
        %v1089 = vsub.f32 %v994, %v1085
        %v1090 = vsub.f32 %v995, %v1085
        %v1091 = vsub.f32 %v996, %v1085
        %v1092 = vsub.f32 %v997, %v1085
        %v1093 = vsub.f32 %v998, %v1085
        %v1094 = vadd.f32 %v1084, 1e-05
        %v1095 = vrsqrt.pop %v1094
        %v1096 = vmul.f32 %v1095, %v1094
        %v1097 = vmul.f32 %v1096, %v1095
        %v1098 = vmul.f32 0.5, %v1097
        %v1099 = vsub.f32 1.5, %v1098
        %v1100 = vmul.f32 %v1095, %v1099
        %vm1101 = vweird.f32 %v1094
        %vm1102 = vweird.f32 %v1095
        %vm1103 = vmor %vm1101, %vm1102
        %v1104 = vsel %vm1103, %v1095, %v1100
        %v1105 = vperm.slane %v1104, 1
        %v1106 = vmul.f32 %v1086, %v1105
        %v1107 = vmul.f32 %v1087, %v1105
        %v1108 = vmul.f32 %v1088, %v1105
        %v1109 = vmul.f32 %v1089, %v1105
        %v1110 = vmul.f32 %v1090, %v1105
        %v1111 = vmul.f32 %v1091, %v1105
        %v1112 = vmul.f32 %v1092, %v1105
        %v1113 = vmul.f32 %v1093, %v1105
        %v1114 = vld [vmem:[%s371] sm:$0x1]
        %v1116 = vperm.slane %v1114, 0
        %v1118 = vmul.f32 %v1106, %v1116
        %v1119 = vmul.f32 %v1107, %v1116
        %v1120 = vmul.f32 %v1108, %v1116
        %v1121 = vmul.f32 %v1109, %v1116
        %v1122 = vmul.f32 %v1110, %v1116
        %v1123 = vmul.f32 %v1111, %v1116
        %v1124 = vmul.f32 %v1112, %v1116
        %v1125 = vmul.f32 %v1113, %v1116
        %v1126 = vld [vmem:[%s374] sm:$0x1]
        %v1128 = vperm.slane %v1126, 0
        %v1130 = vadd.f32 %v1118, %v1128
        %v1131 = vadd.f32 %v1119, %v1128
        %v1132 = vadd.f32 %v1120, %v1128
        %v1133 = vadd.f32 %v1121, %v1128
        %v1134 = vadd.f32 %v1122, %v1128
        %v1135 = vadd.f32 %v1123, %v1128
        %v1136 = vadd.f32 %v1124, %v1128
        %v1137 = vadd.f32 %v1125, %v1128
        %vm1138 = vcmp.ge.f32.partialorder %v1130, 0.0
        %vm1139 = vcmp.ge.f32.partialorder %v1131, 0.0
        %vm1140 = vcmp.ge.f32.partialorder %v1132, 0.0
        %vm1141 = vcmp.ge.f32.partialorder %v1133, 0.0
        %vm1142 = vcmp.ge.f32.partialorder %v1134, 0.0
        %vm1143 = vcmp.ge.f32.partialorder %v1135, 0.0
        %vm1144 = vcmp.ge.f32.partialorder %v1136, 0.0
        %vm1145 = vcmp.ge.f32.partialorder %v1137, 0.0
        %v1146 = vmul.f32 %v1130, 0.2
        %v1147 = vmul.f32 %v1131, 0.2
        %v1148 = vmul.f32 %v1132, 0.2
        %v1149 = vmul.f32 %v1133, 0.2
        %v1150 = vmul.f32 %v1134, 0.2
        %v1151 = vmul.f32 %v1135, 0.2
        %v1152 = vmul.f32 %v1136, 0.2
        %v1153 = vmul.f32 %v1137, 0.2
        %v1154 = vsel %vm1138, %v1130, %v1146
        %v1155 = vsel %vm1139, %v1131, %v1147
        %v1156 = vsel %vm1140, %v1132, %v1148
        %v1157 = vsel %vm1141, %v1133, %v1149
        %v1158 = vsel %vm1142, %v1134, %v1150
        %v1159 = vsel %vm1143, %v1135, %v1151
        %v1160 = vsel %vm1144, %v1136, %v1152
        %v1161 = vsel %vm1145, %v1137, %v1153
        %1162 = vst.msk [vmem:[#allocation4] sm:$0xff] %vm462, %v1154
        %1163 = vst.msk [vmem:[#allocation4 + $0x8] sm:$0xff] %vm462, %v1155
        %1164 = vst.msk [vmem:[#allocation4 + $0x10] sm:$0xff] %vm462, %v1156
        %1165 = vst.msk [vmem:[#allocation4 + $0x18] sm:$0xff] %vm462, %v1157
        %1166 = vst.msk [vmem:[#allocation4 + $0x20] sm:$0xff] %vm462, %v1158
        %1167 = vst.msk [vmem:[#allocation4 + $0x28] sm:$0xff] %vm462, %v1159
        %1168 = vst.msk [vmem:[#allocation4 + $0x30] sm:$0xff] %vm462, %v1160
        %1169 = vst.msk [vmem:[#allocation4 + $0x38] sm:$0xff] %vm462, %v1161
      $region56: #{mid_incepnet_forward.5} parent=51 // pred_fallthru
        _
      %p1170 = scmp.eq.s32.totalorder %s24, 1
      // Predicated region
      $region57: #{mid_incepnet_forward.5} parent=51 // pred_check
        %p1171 = pneg %p1170
      $region58: #{mid_incepnet_forward.5} parent=51 // pred_check_branch
        %1173 = sbr.rel (%p1171) target = $region60
      $region59: #{mid_incepnet_forward.5} parent=51 // pred_region
        %v1174 = vld [vmem:[#allocation2] sm:$0xff]
        %v1175 = vld [vmem:[#allocation2 + $0x10] sm:$0xff]
        %v1176 = vld [vmem:[#allocation2 + $0x20] sm:$0xff]
        %v1177 = vld [vmem:[#allocation2 + $0x30] sm:$0xff]
        %v1178 = vld [vmem:[#allocation2 + $0x40] sm:$0xff]
        %v1179 = vld [vmem:[#allocation2 + $0x50] sm:$0xff]
        %v1180 = vld [vmem:[#allocation2 + $0x60] sm:$0xff]
        %v1181 = vld [vmem:[#allocation2 + $0x70] sm:$0xff]
        %v1182 = vld [vmem:[#allocation2 + $0x80] sm:$0xff]
        %v1183 = vld [vmem:[#allocation2 + $0x90] sm:$0xff]
        %v1184 = vld [vmem:[#allocation2 + $0xa0] sm:$0xff]
        %v1185 = vld [vmem:[#allocation2 + $0xb0] sm:$0xff]
        %v1186 = vpack.c.bf16 %v1174, %v1174
        %v1187 = vpack.c.bf16 %v1175, %v1175
        %v1188 = vpack.c.bf16 %v1176, %v1176
        %v1189 = vpack.c.bf16 %v1177, %v1177
        %v1190 = vpack.c.bf16 %v1178, %v1178
        %v1191 = vpack.c.bf16 %v1179, %v1179
        %v1192 = vpack.c.bf16 %v1180, %v1180
        %v1193 = vpack.c.bf16 %v1181, %v1181
        %v1194 = vpack.c.bf16 %v1182, %v1182
        %v1195 = vpack.c.bf16 %v1183, %v1183
        %v1196 = vpack.c.bf16 %v1184, %v1184
        %v1197 = vpack.c.bf16 %v1185, %v1185
        %vm1198 = vcmask 125952
        %1199 = vst.msk [vmem:[#allocation3] sm:$0xf] %vm1198, %v1186
        %1200 = vst.msk [vmem:[#allocation3 + $0x4] sm:$0xf] %vm1198, %v1187
        %1201 = vst.msk [vmem:[#allocation3 + $0x8] sm:$0xf] %vm1198, %v1188
        %1202 = vst.msk [vmem:[#allocation3 + $0xc] sm:$0xf] %vm1198, %v1189
        %1203 = vst.msk [vmem:[#allocation3 + $0x10] sm:$0xf] %vm1198, %v1190
        %1204 = vst.msk [vmem:[#allocation3 + $0x14] sm:$0xf] %vm1198, %v1191
        %1205 = vst.msk [vmem:[#allocation3 + $0x18] sm:$0xf] %vm1198, %v1192
        %1206 = vst.msk [vmem:[#allocation3 + $0x1c] sm:$0xf] %vm1198, %v1193
        %1207 = vst.msk [vmem:[#allocation3 + $0x20] sm:$0xf] %vm1198, %v1194
        %1208 = vst.msk [vmem:[#allocation3 + $0x24] sm:$0xf] %vm1198, %v1195
        %1209 = vst.msk [vmem:[#allocation3 + $0x28] sm:$0xf] %vm1198, %v1196
        %1210 = vst.msk [vmem:[#allocation3 + $0x2c] sm:$0xf] %vm1198, %v1197
        %v1211 = vld [vmem:[#allocation2 + $0x1] sm:$0xff]
        %v1212 = vld [vmem:[#allocation2 + $0x11] sm:$0xff]
        %v1213 = vld [vmem:[#allocation2 + $0x21] sm:$0xff]
        %v1214 = vld [vmem:[#allocation2 + $0x31] sm:$0xff]
        %v1215 = vld [vmem:[#allocation2 + $0x41] sm:$0xff]
        %v1216 = vld [vmem:[#allocation2 + $0x51] sm:$0xff]
        %v1217 = vld [vmem:[#allocation2 + $0x61] sm:$0xff]
        %v1218 = vld [vmem:[#allocation2 + $0x71] sm:$0xff]
        %v1219 = vld [vmem:[#allocation2 + $0x81] sm:$0xff]
        %v1220 = vld [vmem:[#allocation2 + $0x91] sm:$0xff]
        %v1221 = vld [vmem:[#allocation2 + $0xa1] sm:$0xff]
        %v1222 = vld [vmem:[#allocation2 + $0xb1] sm:$0xff]
        %v1223 = vpack.c.bf16 %v1211, %v1211
        %v1224 = vpack.c.bf16 %v1212, %v1212
        %v1225 = vpack.c.bf16 %v1213, %v1213
        %v1226 = vpack.c.bf16 %v1214, %v1214
        %v1227 = vpack.c.bf16 %v1215, %v1215
        %v1228 = vpack.c.bf16 %v1216, %v1216
        %v1229 = vpack.c.bf16 %v1217, %v1217
        %v1230 = vpack.c.bf16 %v1218, %v1218
        %v1231 = vpack.c.bf16 %v1219, %v1219
        %v1232 = vpack.c.bf16 %v1220, %v1220
        %v1233 = vpack.c.bf16 %v1221, %v1221
        %v1234 = vpack.c.bf16 %v1222, %v1222
        %1247 = vrot.lane.b32.xlu0 %v1223, 16
        %v1248 = vpop.permute.xlu0 %1247
        %1249 = vrot.lane.b32.xlu0 %v1224, 16
        %v1250 = vpop.permute.xlu0 %1249
        %1251 = vrot.lane.b32.xlu0 %v1225, 16
        %v1252 = vpop.permute.xlu0 %1251
        %1253 = vrot.lane.b32.xlu0 %v1226, 16
        %v1254 = vpop.permute.xlu0 %1253
        %1255 = vrot.lane.b32.xlu0 %v1227, 16
        %v1256 = vpop.permute.xlu0 %1255
        %1257 = vrot.lane.b32.xlu0 %v1228, 16
        %v1258 = vpop.permute.xlu0 %1257
        %1259 = vrot.lane.b32.xlu0 %v1229, 16
        %v1260 = vpop.permute.xlu0 %1259
        %1261 = vrot.lane.b32.xlu0 %v1230, 16
        %v1262 = vpop.permute.xlu0 %1261
        %1263 = vrot.lane.b32.xlu0 %v1231, 16
        %v1264 = vpop.permute.xlu0 %1263
        %1265 = vrot.lane.b32.xlu0 %v1232, 16
        %v1266 = vpop.permute.xlu0 %1265
        %1267 = vrot.lane.b32.xlu0 %v1233, 16
        %v1268 = vpop.permute.xlu0 %1267
        %1269 = vrot.lane.b32.xlu0 %v1234, 16
        %v1270 = vpop.permute.xlu0 %1269
        %vm1283 = vcmask 257152
        %1284 = vst.msk [vmem:[#allocation3] sm:$0xf] %vm1283, %v1248
        %1285 = vst.msk [vmem:[#allocation3 + $0x4] sm:$0xf] %vm1283, %v1250
        %1286 = vst.msk [vmem:[#allocation3 + $0x8] sm:$0xf] %vm1283, %v1252
        %1287 = vst.msk [vmem:[#allocation3 + $0xc] sm:$0xf] %vm1283, %v1254
        %1288 = vst.msk [vmem:[#allocation3 + $0x10] sm:$0xf] %vm1283, %v1256
        %1289 = vst.msk [vmem:[#allocation3 + $0x14] sm:$0xf] %vm1283, %v1258
        %1290 = vst.msk [vmem:[#allocation3 + $0x18] sm:$0xf] %vm1283, %v1260
        %1291 = vst.msk [vmem:[#allocation3 + $0x1c] sm:$0xf] %vm1283, %v1262
        %1292 = vst.msk [vmem:[#allocation3 + $0x20] sm:$0xf] %vm1283, %v1264
        %1293 = vst.msk [vmem:[#allocation3 + $0x24] sm:$0xf] %vm1283, %v1266
        %1294 = vst.msk [vmem:[#allocation3 + $0x28] sm:$0xf] %vm1283, %v1268
        %1295 = vst.msk [vmem:[#allocation3 + $0x2c] sm:$0xf] %vm1283, %v1270
        %v1296 = vld [vmem:[#allocation2 + $0x2] sm:$0xff]
        %v1297 = vld [vmem:[#allocation2 + $0x12] sm:$0xff]
        %v1298 = vld [vmem:[#allocation2 + $0x22] sm:$0xff]
        %v1299 = vld [vmem:[#allocation2 + $0x32] sm:$0xff]
        %v1300 = vld [vmem:[#allocation2 + $0x42] sm:$0xff]
        %v1301 = vld [vmem:[#allocation2 + $0x52] sm:$0xff]
        %v1302 = vld [vmem:[#allocation2 + $0x62] sm:$0xff]
        %v1303 = vld [vmem:[#allocation2 + $0x72] sm:$0xff]
        %v1304 = vld [vmem:[#allocation2 + $0x82] sm:$0xff]
        %v1305 = vld [vmem:[#allocation2 + $0x92] sm:$0xff]
        %v1306 = vld [vmem:[#allocation2 + $0xa2] sm:$0xff]
        %v1307 = vld [vmem:[#allocation2 + $0xb2] sm:$0xff]
        %v1308 = vpack.c.bf16 %v1296, %v1296
        %v1309 = vpack.c.bf16 %v1297, %v1297
        %v1310 = vpack.c.bf16 %v1298, %v1298
        %v1311 = vpack.c.bf16 %v1299, %v1299
        %v1312 = vpack.c.bf16 %v1300, %v1300
        %v1313 = vpack.c.bf16 %v1301, %v1301
        %v1314 = vpack.c.bf16 %v1302, %v1302
        %v1315 = vpack.c.bf16 %v1303, %v1303
        %v1316 = vpack.c.bf16 %v1304, %v1304
        %v1317 = vpack.c.bf16 %v1305, %v1305
        %v1318 = vpack.c.bf16 %v1306, %v1306
        %v1319 = vpack.c.bf16 %v1307, %v1307
        %1332 = vrot.lane.b32.xlu0 %v1308, 32
        %v1333 = vpop.permute.xlu0 %1332
        %1334 = vrot.lane.b32.xlu0 %v1309, 32
        %v1335 = vpop.permute.xlu0 %1334
        %1336 = vrot.lane.b32.xlu0 %v1310, 32
        %v1337 = vpop.permute.xlu0 %1336
        %1338 = vrot.lane.b32.xlu0 %v1311, 32
        %v1339 = vpop.permute.xlu0 %1338
        %1340 = vrot.lane.b32.xlu0 %v1312, 32
        %v1341 = vpop.permute.xlu0 %1340
        %1342 = vrot.lane.b32.xlu0 %v1313, 32
        %v1343 = vpop.permute.xlu0 %1342
        %1344 = vrot.lane.b32.xlu0 %v1314, 32
        %v1345 = vpop.permute.xlu0 %1344
        %1346 = vrot.lane.b32.xlu0 %v1315, 32
        %v1347 = vpop.permute.xlu0 %1346
        %1348 = vrot.lane.b32.xlu0 %v1316, 32
        %v1349 = vpop.permute.xlu0 %1348
        %1350 = vrot.lane.b32.xlu0 %v1317, 32
        %v1351 = vpop.permute.xlu0 %1350
        %1352 = vrot.lane.b32.xlu0 %v1318, 32
        %v1353 = vpop.permute.xlu0 %1352
        %1354 = vrot.lane.b32.xlu0 %v1319, 32
        %v1355 = vpop.permute.xlu0 %1354
        %vm1368 = vcmask 388352
        %1369 = vst.msk [vmem:[#allocation3] sm:$0xf] %vm1368, %v1333
        %1370 = vst.msk [vmem:[#allocation3 + $0x4] sm:$0xf] %vm1368, %v1335
        %1371 = vst.msk [vmem:[#allocation3 + $0x8] sm:$0xf] %vm1368, %v1337
        %1372 = vst.msk [vmem:[#allocation3 + $0xc] sm:$0xf] %vm1368, %v1339
        %1373 = vst.msk [vmem:[#allocation3 + $0x10] sm:$0xf] %vm1368, %v1341
        %1374 = vst.msk [vmem:[#allocation3 + $0x14] sm:$0xf] %vm1368, %v1343
        %1375 = vst.msk [vmem:[#allocation3 + $0x18] sm:$0xf] %vm1368, %v1345
        %1376 = vst.msk [vmem:[#allocation3 + $0x1c] sm:$0xf] %vm1368, %v1347
        %1377 = vst.msk [vmem:[#allocation3 + $0x20] sm:$0xf] %vm1368, %v1349
        %1378 = vst.msk [vmem:[#allocation3 + $0x24] sm:$0xf] %vm1368, %v1351
        %1379 = vst.msk [vmem:[#allocation3 + $0x28] sm:$0xf] %vm1368, %v1353
        %1380 = vst.msk [vmem:[#allocation3 + $0x2c] sm:$0xf] %vm1368, %v1355
        %v1381 = vld [vmem:[#allocation2 + $0x3] sm:$0xff]
        %v1382 = vld [vmem:[#allocation2 + $0x13] sm:$0xff]
        %v1383 = vld [vmem:[#allocation2 + $0x23] sm:$0xff]
        %v1384 = vld [vmem:[#allocation2 + $0x33] sm:$0xff]
        %v1385 = vld [vmem:[#allocation2 + $0x43] sm:$0xff]
        %v1386 = vld [vmem:[#allocation2 + $0x53] sm:$0xff]
        %v1387 = vld [vmem:[#allocation2 + $0x63] sm:$0xff]
        %v1388 = vld [vmem:[#allocation2 + $0x73] sm:$0xff]
        %v1389 = vld [vmem:[#allocation2 + $0x83] sm:$0xff]
        %v1390 = vld [vmem:[#allocation2 + $0x93] sm:$0xff]
        %v1391 = vld [vmem:[#allocation2 + $0xa3] sm:$0xff]
        %v1392 = vld [vmem:[#allocation2 + $0xb3] sm:$0xff]
        %v1393 = vpack.c.bf16 %v1381, %v1381
        %v1394 = vpack.c.bf16 %v1382, %v1382
        %v1395 = vpack.c.bf16 %v1383, %v1383
        %v1396 = vpack.c.bf16 %v1384, %v1384
        %v1397 = vpack.c.bf16 %v1385, %v1385
        %v1398 = vpack.c.bf16 %v1386, %v1386
        %v1399 = vpack.c.bf16 %v1387, %v1387
        %v1400 = vpack.c.bf16 %v1388, %v1388
        %v1401 = vpack.c.bf16 %v1389, %v1389
        %v1402 = vpack.c.bf16 %v1390, %v1390
        %v1403 = vpack.c.bf16 %v1391, %v1391
        %v1404 = vpack.c.bf16 %v1392, %v1392
        %1417 = vrot.lane.b32.xlu0 %v1393, 48
        %v1418 = vpop.permute.xlu0 %1417
        %1419 = vrot.lane.b32.xlu0 %v1394, 48
        %v1420 = vpop.permute.xlu0 %1419
        %1421 = vrot.lane.b32.xlu0 %v1395, 48
        %v1422 = vpop.permute.xlu0 %1421
        %1423 = vrot.lane.b32.xlu0 %v1396, 48
        %v1424 = vpop.permute.xlu0 %1423
        %1425 = vrot.lane.b32.xlu0 %v1397, 48
        %v1426 = vpop.permute.xlu0 %1425
        %1427 = vrot.lane.b32.xlu0 %v1398, 48
        %v1428 = vpop.permute.xlu0 %1427
        %1429 = vrot.lane.b32.xlu0 %v1399, 48
        %v1430 = vpop.permute.xlu0 %1429
        %1431 = vrot.lane.b32.xlu0 %v1400, 48
        %v1432 = vpop.permute.xlu0 %1431
        %1433 = vrot.lane.b32.xlu0 %v1401, 48
        %v1434 = vpop.permute.xlu0 %1433
        %1435 = vrot.lane.b32.xlu0 %v1402, 48
        %v1436 = vpop.permute.xlu0 %1435
        %1437 = vrot.lane.b32.xlu0 %v1403, 48
        %v1438 = vpop.permute.xlu0 %1437
        %1439 = vrot.lane.b32.xlu0 %v1404, 48
        %v1440 = vpop.permute.xlu0 %1439
        %vm1453 = vcmask 519552
        %1454 = vst.msk [vmem:[#allocation3] sm:$0xf] %vm1453, %v1418
        %1455 = vst.msk [vmem:[#allocation3 + $0x4] sm:$0xf] %vm1453, %v1420
        %1456 = vst.msk [vmem:[#allocation3 + $0x8] sm:$0xf] %vm1453, %v1422
        %1457 = vst.msk [vmem:[#allocation3 + $0xc] sm:$0xf] %vm1453, %v1424
        %1458 = vst.msk [vmem:[#allocation3 + $0x10] sm:$0xf] %vm1453, %v1426
        %1459 = vst.msk [vmem:[#allocation3 + $0x14] sm:$0xf] %vm1453, %v1428
        %1460 = vst.msk [vmem:[#allocation3 + $0x18] sm:$0xf] %vm1453, %v1430
        %1461 = vst.msk [vmem:[#allocation3 + $0x1c] sm:$0xf] %vm1453, %v1432
        %1462 = vst.msk [vmem:[#allocation3 + $0x20] sm:$0xf] %vm1453, %v1434
        %1463 = vst.msk [vmem:[#allocation3 + $0x24] sm:$0xf] %vm1453, %v1436
        %1464 = vst.msk [vmem:[#allocation3 + $0x28] sm:$0xf] %vm1453, %v1438
        %1465 = vst.msk [vmem:[#allocation3 + $0x2c] sm:$0xf] %vm1453, %v1440
        %v1466 = vld [vmem:[#allocation2 + $0x4] sm:$0xff]
        %v1467 = vld [vmem:[#allocation2 + $0x14] sm:$0xff]
        %v1468 = vld [vmem:[#allocation2 + $0x24] sm:$0xff]
        %v1469 = vld [vmem:[#allocation2 + $0x34] sm:$0xff]
        %v1470 = vld [vmem:[#allocation2 + $0x44] sm:$0xff]
        %v1471 = vld [vmem:[#allocation2 + $0x54] sm:$0xff]
        %v1472 = vld [vmem:[#allocation2 + $0x64] sm:$0xff]
        %v1473 = vld [vmem:[#allocation2 + $0x74] sm:$0xff]
        %v1474 = vld [vmem:[#allocation2 + $0x84] sm:$0xff]
        %v1475 = vld [vmem:[#allocation2 + $0x94] sm:$0xff]
        %v1476 = vld [vmem:[#allocation2 + $0xa4] sm:$0xff]
        %v1477 = vld [vmem:[#allocation2 + $0xb4] sm:$0xff]
        %v1478 = vpack.c.bf16 %v1466, %v1466
        %v1479 = vpack.c.bf16 %v1467, %v1467
        %v1480 = vpack.c.bf16 %v1468, %v1468
        %v1481 = vpack.c.bf16 %v1469, %v1469
        %v1482 = vpack.c.bf16 %v1470, %v1470
        %v1483 = vpack.c.bf16 %v1471, %v1471
        %v1484 = vpack.c.bf16 %v1472, %v1472
        %v1485 = vpack.c.bf16 %v1473, %v1473
        %v1486 = vpack.c.bf16 %v1474, %v1474
        %v1487 = vpack.c.bf16 %v1475, %v1475
        %v1488 = vpack.c.bf16 %v1476, %v1476
        %v1489 = vpack.c.bf16 %v1477, %v1477
        %1502 = vrot.lane.b32.xlu0 %v1478, 64
        %v1503 = vpop.permute.xlu0 %1502
        %1504 = vrot.lane.b32.xlu0 %v1479, 64
        %v1505 = vpop.permute.xlu0 %1504
        %1506 = vrot.lane.b32.xlu0 %v1480, 64
        %v1507 = vpop.permute.xlu0 %1506
        %1508 = vrot.lane.b32.xlu0 %v1481, 64
        %v1509 = vpop.permute.xlu0 %1508
        %1510 = vrot.lane.b32.xlu0 %v1482, 64
        %v1511 = vpop.permute.xlu0 %1510
        %1512 = vrot.lane.b32.xlu0 %v1483, 64
        %v1513 = vpop.permute.xlu0 %1512
        %1514 = vrot.lane.b32.xlu0 %v1484, 64
        %v1515 = vpop.permute.xlu0 %1514
        %1516 = vrot.lane.b32.xlu0 %v1485, 64
        %v1517 = vpop.permute.xlu0 %1516
        %1518 = vrot.lane.b32.xlu0 %v1486, 64
        %v1519 = vpop.permute.xlu0 %1518
        %1520 = vrot.lane.b32.xlu0 %v1487, 64
        %v1521 = vpop.permute.xlu0 %1520
        %1522 = vrot.lane.b32.xlu0 %v1488, 64
        %v1523 = vpop.permute.xlu0 %1522
        %1524 = vrot.lane.b32.xlu0 %v1489, 64
        %v1525 = vpop.permute.xlu0 %1524
        %vm1538 = vcmask 650752
        %1539 = vst.msk [vmem:[#allocation3] sm:$0xf] %vm1538, %v1503
        %1540 = vst.msk [vmem:[#allocation3 + $0x4] sm:$0xf] %vm1538, %v1505
        %1541 = vst.msk [vmem:[#allocation3 + $0x8] sm:$0xf] %vm1538, %v1507
        %1542 = vst.msk [vmem:[#allocation3 + $0xc] sm:$0xf] %vm1538, %v1509
        %1543 = vst.msk [vmem:[#allocation3 + $0x10] sm:$0xf] %vm1538, %v1511
        %1544 = vst.msk [vmem:[#allocation3 + $0x14] sm:$0xf] %vm1538, %v1513
        %1545 = vst.msk [vmem:[#allocation3 + $0x18] sm:$0xf] %vm1538, %v1515
        %1546 = vst.msk [vmem:[#allocation3 + $0x1c] sm:$0xf] %vm1538, %v1517
        %1547 = vst.msk [vmem:[#allocation3 + $0x20] sm:$0xf] %vm1538, %v1519
        %1548 = vst.msk [vmem:[#allocation3 + $0x24] sm:$0xf] %vm1538, %v1521
        %1549 = vst.msk [vmem:[#allocation3 + $0x28] sm:$0xf] %vm1538, %v1523
        %1550 = vst.msk [vmem:[#allocation3 + $0x2c] sm:$0xf] %vm1538, %v1525
        %v1551 = vld [vmem:[#allocation3] sm:$0xf]
        %v1552 = vld [vmem:[#allocation3 + $0x4] sm:$0xf]
        %v1553 = vld [vmem:[#allocation3 + $0x8] sm:$0xf]
        %v1554 = vld [vmem:[#allocation3 + $0xc] sm:$0xf]
        %v1555 = vld [vmem:[#allocation3 + $0x10] sm:$0xf]
        %v1556 = vld [vmem:[#allocation3 + $0x14] sm:$0xf]
        %v1557 = vld [vmem:[#allocation3 + $0x18] sm:$0xf]
        %v1558 = vld [vmem:[#allocation3 + $0x1c] sm:$0xf]
        %v1559 = vld [vmem:[%s365] sm:$0xf]
        %v1560 = vld [vmem:[%s365 + $0x4] sm:$0xf]
        %v1561 = vld [vmem:[%s365 + $0x8] sm:$0xf]
        %v1562 = vld [vmem:[%s365 + $0xc] sm:$0xf]
        %v1563 = vld [vmem:[%s365 + $0x10] sm:$0xf]
        %v1564 = vld [vmem:[%s365 + $0x14] sm:$0xf]
        %v1565 = vld [vmem:[%s365 + $0x18] sm:$0xf]
        %v1566 = vld [vmem:[%s365 + $0x1c] sm:$0xf]
        %v1567 = vld [vmem:[%s365 + $0x20] sm:$0xf]
        %v1568 = vld [vmem:[%s365 + $0x24] sm:$0xf]
        %v1569 = vld [vmem:[#allocation3 + $0x20] sm:$0xf]
        %s1570 = scalar_lea.vmem %s365, 40
        %v1571 = vld [vmem:[%s1570] sm:$0xf]
        %v1572 = vld [vmem:[%s1570 + $0x4] sm:$0xf]
        %v1573 = vld [vmem:[%s1570 + $0x8] sm:$0xf]
        %v1574 = vld [vmem:[%s1570 + $0xc] sm:$0xf]
        %v1575 = vld [vmem:[%s1570 + $0x10] sm:$0xf]
        %v1576 = vld [vmem:[%s1570 + $0x14] sm:$0xf]
        %v1577 = vld [vmem:[%s1570 + $0x18] sm:$0xf]
        %v1578 = vld [vmem:[%s1570 + $0x1c] sm:$0xf]
        %v1579 = vld [vmem:[%s1570 + $0x20] sm:$0xf]
        %v1580 = vld [vmem:[%s1570 + $0x24] sm:$0xf]
        %v1589 = vunpack.c.l.b16 %v1552
        %v1590 = vunpack.c.l.b16 %v1553
        %v1591 = vunpack.c.l.b16 %v1554
        %v1592 = vunpack.c.l.b16 %v1555
        %v1593 = vunpack.c.l.b16 %v1556
        %v1594 = vunpack.c.l.b16 %v1557
        %v1595 = vunpack.c.l.b16 %v1558
        %v1596 = vunpack.c.l.b16 %v1569
        %v1597 = vpack.c.b16 %v1590, %v1589
        %v1598 = vpack.c.b16 %v1592, %v1591
        %v1599 = vpack.c.b16 %v1594, %v1593
        %v1600 = vpack.c.b16 %v1596, %v1595
        %v1611 = vunpack.c.l.b16 %v1571
        %v1612 = vunpack.c.l.b16 %v1572
        %v1613 = vunpack.c.l.b16 %v1573
        %v1614 = vunpack.c.l.b16 %v1574
        %v1615 = vunpack.c.l.b16 %v1575
        %v1616 = vunpack.c.l.b16 %v1576
        %v1617 = vunpack.c.l.b16 %v1577
        %v1618 = vunpack.c.l.b16 %v1578
        %v1619 = vunpack.c.l.b16 %v1579
        %v1620 = vunpack.c.l.b16 %v1580
        %v1621 = vpack.c.b16 %v1612, %v1611
        %v1622 = vpack.c.b16 %v1614, %v1613
        %v1623 = vpack.c.b16 %v1616, %v1615
        %v1624 = vpack.c.b16 %v1618, %v1617
        %v1625 = vpack.c.b16 %v1620, %v1619
        %vm1631 = vcmask 654336
        %v1633 = vsel %vm1631, %v1597, 0
        %v1636 = vsel %vm1631, %v1598, 0
        %v1639 = vsel %vm1631, %v1599, 0
        %v1642 = vsel %vm1631, %v1600, 0
        %1644 = vmatpush.bf16.msra.mxu0 0
        %1645 = vmatpush.bf16.msra.mxu0 0
        %1646 = vmatpush.bf16.msra.mxu0 0
        %1647 = vmatpush.bf16.msra.mxu0 %v1625
        %1648 = vmatpush.bf16.msra.mxu0 %v1624
        %1649 = vmatpush.bf16.msra.mxu0 %v1623
        %1650 = vmatpush.bf16.msra.mxu0 %v1622
        %1651 = vmatpush.bf16.msra.mxu0 %v1621
        %1652 = vmatmul.bf16.gmra.mxu0 %v1633
        %v1653 = vpop.f32.mrf.mxu0
        %v1654 = vadd.f32 0.0, %v1653
        %v1655 = vpop.f32.mrf.mxu0
        %v1656 = vadd.f32 0.0, %v1655
        %1657 = vmatmul.bf16.gmra.mxu0 %v1636
        %v1658 = vpop.f32.mrf.mxu0
        %v1659 = vadd.f32 0.0, %v1658
        %v1660 = vpop.f32.mrf.mxu0
        %v1661 = vadd.f32 0.0, %v1660
        %1662 = vmatmul.bf16.gmra.mxu0 %v1639
        %v1663 = vpop.f32.mrf.mxu0
        %v1664 = vadd.f32 0.0, %v1663
        %v1665 = vpop.f32.mrf.mxu0
        %v1666 = vadd.f32 0.0, %v1665
        %1667 = vmatmul.bf16.gmra.mxu0 %v1642
        %v1668 = vpop.f32.mrf.mxu0
        %v1669 = vadd.f32 0.0, %v1668
        %v1670 = vpop.f32.mrf.mxu0
        %v1671 = vadd.f32 0.0, %v1670
        %1672 = vdwg.mxu0
        %v1674 = vunpack.c.l.b16 %v1551
        %v1675 = vpack.c.b16 %v1589, %v1674
        %v1676 = vpack.c.b16 %v1591, %v1590
        %v1677 = vpack.c.b16 %v1593, %v1592
        %v1678 = vpack.c.b16 %v1595, %v1594
        %v1689 = vunpack.c.l.b16 %v1559
        %v1690 = vunpack.c.l.b16 %v1560
        %v1691 = vunpack.c.l.b16 %v1561
        %v1692 = vunpack.c.l.b16 %v1562
        %v1693 = vunpack.c.l.b16 %v1563
        %v1694 = vunpack.c.l.b16 %v1564
        %v1695 = vunpack.c.l.b16 %v1565
        %v1696 = vunpack.c.l.b16 %v1566
        %v1697 = vunpack.c.l.b16 %v1567
        %v1698 = vunpack.c.l.b16 %v1568
        %v1699 = vpack.c.b16 %v1690, %v1689
        %v1700 = vpack.c.b16 %v1692, %v1691
        %v1701 = vpack.c.b16 %v1694, %v1693
        %v1702 = vpack.c.b16 %v1696, %v1695
        %v1703 = vpack.c.b16 %v1698, %v1697
        %v1710 = vsel %vm1631, %v1675, 0
        %v1713 = vsel %vm1631, %v1676, 0
        %v1716 = vsel %vm1631, %v1677, 0
        %v1719 = vsel %vm1631, %v1678, 0
        %1721 = vmatpush.bf16.msra.mxu0 0
        %1722 = vmatpush.bf16.msra.mxu0 0
        %1723 = vmatpush.bf16.msra.mxu0 0
        %1724 = vmatpush.bf16.msra.mxu0 %v1703
        %1725 = vmatpush.bf16.msra.mxu0 %v1702
        %1726 = vmatpush.bf16.msra.mxu0 %v1701
        %1727 = vmatpush.bf16.msra.mxu0 %v1700
        %1728 = vmatpush.bf16.msra.mxu0 %v1699
        %1729 = vmatmul.bf16.gmra.mxu0 %v1710
        %v1730 = vpop.f32.mrf.mxu0
        %v1731 = vadd.f32 %v1654, %v1730
        %v1732 = vpop.f32.mrf.mxu0
        %v1733 = vadd.f32 %v1656, %v1732
        %1734 = vmatmul.bf16.gmra.mxu0 %v1713
        %v1735 = vpop.f32.mrf.mxu0
        %v1736 = vadd.f32 %v1659, %v1735
        %v1737 = vpop.f32.mrf.mxu0
        %v1738 = vadd.f32 %v1661, %v1737
        %1739 = vmatmul.bf16.gmra.mxu0 %v1716
        %v1740 = vpop.f32.mrf.mxu0
        %v1741 = vadd.f32 %v1664, %v1740
        %v1742 = vpop.f32.mrf.mxu0
        %v1743 = vadd.f32 %v1666, %v1742
        %1744 = vmatmul.bf16.gmra.mxu0 %v1719
        %v1745 = vpop.f32.mrf.mxu0
        %v1746 = vadd.f32 %v1669, %v1745
        %v1747 = vpop.f32.mrf.mxu0
        %v1748 = vadd.f32 %v1671, %v1747
        %1749 = vdwg.mxu0
        %v1750 = vld [vmem:[#allocation3 + $0x8] sm:$0xf]
        %v1751 = vld [vmem:[#allocation3 + $0xc] sm:$0xf]
        %v1752 = vld [vmem:[#allocation3 + $0x10] sm:$0xf]
        %v1753 = vld [vmem:[#allocation3 + $0x14] sm:$0xf]
        %v1754 = vld [vmem:[#allocation3 + $0x18] sm:$0xf]
        %v1755 = vld [vmem:[#allocation3 + $0x1c] sm:$0xf]
        %v1756 = vld [vmem:[#allocation3 + $0x20] sm:$0xf]
        %v1757 = vld [vmem:[#allocation3 + $0x24] sm:$0xf]
        %s1758 = scalar_lea.vmem %s365, 80
        %v1759 = vld [vmem:[%s1758] sm:$0xf]
        %v1760 = vld [vmem:[%s1758 + $0x4] sm:$0xf]
        %v1761 = vld [vmem:[%s1758 + $0x8] sm:$0xf]
        %v1762 = vld [vmem:[%s1758 + $0xc] sm:$0xf]
        %v1763 = vld [vmem:[%s1758 + $0x10] sm:$0xf]
        %v1764 = vld [vmem:[%s1758 + $0x14] sm:$0xf]
        %v1765 = vld [vmem:[%s1758 + $0x18] sm:$0xf]
        %v1766 = vld [vmem:[%s1758 + $0x1c] sm:$0xf]
        %v1767 = vld [vmem:[%s1758 + $0x20] sm:$0xf]
        %v1768 = vld [vmem:[%s1758 + $0x24] sm:$0xf]
        %v1777 = vunpack.c.l.b16 %v1750
        %v1778 = vunpack.c.l.b16 %v1751
        %v1779 = vunpack.c.l.b16 %v1752
        %v1780 = vunpack.c.l.b16 %v1753
        %v1781 = vunpack.c.l.b16 %v1754
        %v1782 = vunpack.c.l.b16 %v1755
        %v1783 = vunpack.c.l.b16 %v1756
        %v1784 = vunpack.c.l.b16 %v1757
        %v1785 = vpack.c.b16 %v1778, %v1777
        %v1786 = vpack.c.b16 %v1780, %v1779
        %v1787 = vpack.c.b16 %v1782, %v1781
        %v1788 = vpack.c.b16 %v1784, %v1783
        %v1799 = vunpack.c.l.b16 %v1759
        %v1800 = vunpack.c.l.b16 %v1760
        %v1801 = vunpack.c.l.b16 %v1761
        %v1802 = vunpack.c.l.b16 %v1762
        %v1803 = vunpack.c.l.b16 %v1763
        %v1804 = vunpack.c.l.b16 %v1764
        %v1805 = vunpack.c.l.b16 %v1765
        %v1806 = vunpack.c.l.b16 %v1766
        %v1807 = vunpack.c.l.b16 %v1767
        %v1808 = vunpack.c.l.b16 %v1768
        %v1809 = vpack.c.b16 %v1800, %v1799
        %v1810 = vpack.c.b16 %v1802, %v1801
        %v1811 = vpack.c.b16 %v1804, %v1803
        %v1812 = vpack.c.b16 %v1806, %v1805
        %v1813 = vpack.c.b16 %v1808, %v1807
        %v1820 = vsel %vm1631, %v1785, 0
        %v1823 = vsel %vm1631, %v1786, 0
        %v1826 = vsel %vm1631, %v1787, 0
        %v1829 = vsel %vm1631, %v1788, 0
        %1831 = vmatpush.bf16.msra.mxu0 0
        %1832 = vmatpush.bf16.msra.mxu0 0
        %1833 = vmatpush.bf16.msra.mxu0 0
        %1834 = vmatpush.bf16.msra.mxu0 %v1813
        %1835 = vmatpush.bf16.msra.mxu0 %v1812
        %1836 = vmatpush.bf16.msra.mxu0 %v1811
        %1837 = vmatpush.bf16.msra.mxu0 %v1810
        %1838 = vmatpush.bf16.msra.mxu0 %v1809
        %1839 = vmatmul.bf16.gmra.mxu0 %v1820
        %v1840 = vpop.f32.mrf.mxu0
        %v1841 = vadd.f32 0.0, %v1840
        %v1842 = vpop.f32.mrf.mxu0
        %v1843 = vadd.f32 0.0, %v1842
        %1844 = vmatmul.bf16.gmra.mxu0 %v1823
        %v1845 = vpop.f32.mrf.mxu0
        %v1846 = vadd.f32 0.0, %v1845
        %v1847 = vpop.f32.mrf.mxu0
        %v1848 = vadd.f32 0.0, %v1847
        %1849 = vmatmul.bf16.gmra.mxu0 %v1826
        %v1850 = vpop.f32.mrf.mxu0
        %v1851 = vadd.f32 0.0, %v1850
        %v1852 = vpop.f32.mrf.mxu0
        %v1853 = vadd.f32 0.0, %v1852
        %1854 = vmatmul.bf16.gmra.mxu0 %v1829
        %v1855 = vpop.f32.mrf.mxu0
        %v1856 = vadd.f32 0.0, %v1855
        %v1857 = vpop.f32.mrf.mxu0
        %v1858 = vadd.f32 0.0, %v1857
        %1859 = vdwg.mxu0
        %v1860 = vadd.f32 %v1731, %v1841
        %v1861 = vadd.f32 %v1733, %v1843
        %v1862 = vadd.f32 %v1736, %v1846
        %v1863 = vadd.f32 %v1738, %v1848
        %v1864 = vadd.f32 %v1741, %v1851
        %v1865 = vadd.f32 %v1743, %v1853
        %v1866 = vadd.f32 %v1746, %v1856
        %v1867 = vadd.f32 %v1748, %v1858
        %v1868 = vld [vmem:[#allocation3 + $0xc] sm:$0xf]
        %v1869 = vld [vmem:[#allocation3 + $0x10] sm:$0xf]
        %v1870 = vld [vmem:[#allocation3 + $0x14] sm:$0xf]
        %v1871 = vld [vmem:[#allocation3 + $0x18] sm:$0xf]
        %v1872 = vld [vmem:[#allocation3 + $0x1c] sm:$0xf]
        %v1873 = vld [vmem:[#allocation3 + $0x20] sm:$0xf]
        %v1874 = vld [vmem:[#allocation3 + $0x24] sm:$0xf]
        %v1875 = vld [vmem:[#allocation3 + $0x28] sm:$0xf]
        %s1876 = scalar_lea.vmem %s365, 120
        %v1877 = vld [vmem:[%s1876] sm:$0xf]
        %v1878 = vld [vmem:[%s1876 + $0x4] sm:$0xf]
        %v1879 = vld [vmem:[%s1876 + $0x8] sm:$0xf]
        %v1880 = vld [vmem:[%s1876 + $0xc] sm:$0xf]
        %v1881 = vld [vmem:[%s1876 + $0x10] sm:$0xf]
        %v1882 = vld [vmem:[%s1876 + $0x14] sm:$0xf]
        %v1883 = vld [vmem:[%s1876 + $0x18] sm:$0xf]
        %v1884 = vld [vmem:[%s1876 + $0x1c] sm:$0xf]
        %v1885 = vld [vmem:[%s1876 + $0x20] sm:$0xf]
        %v1886 = vld [vmem:[%s1876 + $0x24] sm:$0xf]
        %v1895 = vunpack.c.l.b16 %v1868
        %v1896 = vunpack.c.l.b16 %v1869
        %v1897 = vunpack.c.l.b16 %v1870
        %v1898 = vunpack.c.l.b16 %v1871
        %v1899 = vunpack.c.l.b16 %v1872
        %v1900 = vunpack.c.l.b16 %v1873
        %v1901 = vunpack.c.l.b16 %v1874
        %v1902 = vunpack.c.l.b16 %v1875
        %v1903 = vpack.c.b16 %v1896, %v1895
        %v1904 = vpack.c.b16 %v1898, %v1897
        %v1905 = vpack.c.b16 %v1900, %v1899
        %v1906 = vpack.c.b16 %v1902, %v1901
        %v1917 = vunpack.c.l.b16 %v1877
        %v1918 = vunpack.c.l.b16 %v1878
        %v1919 = vunpack.c.l.b16 %v1879
        %v1920 = vunpack.c.l.b16 %v1880
        %v1921 = vunpack.c.l.b16 %v1881
        %v1922 = vunpack.c.l.b16 %v1882
        %v1923 = vunpack.c.l.b16 %v1883
        %v1924 = vunpack.c.l.b16 %v1884
        %v1925 = vunpack.c.l.b16 %v1885
        %v1926 = vunpack.c.l.b16 %v1886
        %v1927 = vpack.c.b16 %v1918, %v1917
        %v1928 = vpack.c.b16 %v1920, %v1919
        %v1929 = vpack.c.b16 %v1922, %v1921
        %v1930 = vpack.c.b16 %v1924, %v1923
        %v1931 = vpack.c.b16 %v1926, %v1925
        %v1938 = vsel %vm1631, %v1903, 0
        %v1941 = vsel %vm1631, %v1904, 0
        %v1944 = vsel %vm1631, %v1905, 0
        %v1947 = vsel %vm1631, %v1906, 0
        %1949 = vmatpush.bf16.msra.mxu0 0
        %1950 = vmatpush.bf16.msra.mxu0 0
        %1951 = vmatpush.bf16.msra.mxu0 0
        %1952 = vmatpush.bf16.msra.mxu0 %v1931
        %1953 = vmatpush.bf16.msra.mxu0 %v1930
        %1954 = vmatpush.bf16.msra.mxu0 %v1929
        %1955 = vmatpush.bf16.msra.mxu0 %v1928
        %1956 = vmatpush.bf16.msra.mxu0 %v1927
        %1957 = vmatmul.bf16.gmra.mxu0 %v1938
        %v1958 = vpop.f32.mrf.mxu0
        %v1959 = vadd.f32 0.0, %v1958
        %v1960 = vpop.f32.mrf.mxu0
        %v1961 = vadd.f32 0.0, %v1960
        %1962 = vmatmul.bf16.gmra.mxu0 %v1941
        %v1963 = vpop.f32.mrf.mxu0
        %v1964 = vadd.f32 0.0, %v1963
        %v1965 = vpop.f32.mrf.mxu0
        %v1966 = vadd.f32 0.0, %v1965
        %1967 = vmatmul.bf16.gmra.mxu0 %v1944
        %v1968 = vpop.f32.mrf.mxu0
        %v1969 = vadd.f32 0.0, %v1968
        %v1970 = vpop.f32.mrf.mxu0
        %v1971 = vadd.f32 0.0, %v1970
        %1972 = vmatmul.bf16.gmra.mxu0 %v1947
        %v1973 = vpop.f32.mrf.mxu0
        %v1974 = vadd.f32 0.0, %v1973
        %v1975 = vpop.f32.mrf.mxu0
        %v1976 = vadd.f32 0.0, %v1975
        %1977 = vdwg.mxu0
        %v1978 = vadd.f32 %v1860, %v1959
        %v1979 = vadd.f32 %v1861, %v1961
        %v1980 = vadd.f32 %v1862, %v1964
        %v1981 = vadd.f32 %v1863, %v1966
        %v1982 = vadd.f32 %v1864, %v1969
        %v1983 = vadd.f32 %v1865, %v1971
        %v1984 = vadd.f32 %v1866, %v1974
        %v1985 = vadd.f32 %v1867, %v1976
        %v1986 = vld [vmem:[#allocation3 + $0x10] sm:$0xf]
        %v1987 = vld [vmem:[#allocation3 + $0x14] sm:$0xf]
        %v1988 = vld [vmem:[#allocation3 + $0x18] sm:$0xf]
        %v1989 = vld [vmem:[#allocation3 + $0x1c] sm:$0xf]
        %v1990 = vld [vmem:[#allocation3 + $0x20] sm:$0xf]
        %v1991 = vld [vmem:[#allocation3 + $0x24] sm:$0xf]
        %v1992 = vld [vmem:[#allocation3 + $0x28] sm:$0xf]
        %v1993 = vld [vmem:[#allocation3 + $0x2c] sm:$0xf]
        %s1994 = scalar_lea.vmem %s365, 160
        %v1995 = vld [vmem:[%s1994] sm:$0xf]
        %v1996 = vld [vmem:[%s1994 + $0x4] sm:$0xf]
        %v1997 = vld [vmem:[%s1994 + $0x8] sm:$0xf]
        %v1998 = vld [vmem:[%s1994 + $0xc] sm:$0xf]
        %v1999 = vld [vmem:[%s1994 + $0x10] sm:$0xf]
        %v2000 = vld [vmem:[%s1994 + $0x14] sm:$0xf]
        %v2001 = vld [vmem:[%s1994 + $0x18] sm:$0xf]
        %v2002 = vld [vmem:[%s1994 + $0x1c] sm:$0xf]
        %v2003 = vld [vmem:[%s1994 + $0x20] sm:$0xf]
        %v2004 = vld [vmem:[%s1994 + $0x24] sm:$0xf]
        %v2013 = vunpack.c.l.b16 %v1986
        %v2014 = vunpack.c.l.b16 %v1987
        %v2015 = vunpack.c.l.b16 %v1988
        %v2016 = vunpack.c.l.b16 %v1989
        %v2017 = vunpack.c.l.b16 %v1990
        %v2018 = vunpack.c.l.b16 %v1991
        %v2019 = vunpack.c.l.b16 %v1992
        %v2020 = vunpack.c.l.b16 %v1993
        %v2021 = vpack.c.b16 %v2014, %v2013
        %v2022 = vpack.c.b16 %v2016, %v2015
        %v2023 = vpack.c.b16 %v2018, %v2017
        %v2024 = vpack.c.b16 %v2020, %v2019
        %v2035 = vunpack.c.l.b16 %v1995
        %v2036 = vunpack.c.l.b16 %v1996
        %v2037 = vunpack.c.l.b16 %v1997
        %v2038 = vunpack.c.l.b16 %v1998
        %v2039 = vunpack.c.l.b16 %v1999
        %v2040 = vunpack.c.l.b16 %v2000
        %v2041 = vunpack.c.l.b16 %v2001
        %v2042 = vunpack.c.l.b16 %v2002
        %v2043 = vunpack.c.l.b16 %v2003
        %v2044 = vunpack.c.l.b16 %v2004
        %v2045 = vpack.c.b16 %v2036, %v2035
        %v2046 = vpack.c.b16 %v2038, %v2037
        %v2047 = vpack.c.b16 %v2040, %v2039
        %v2048 = vpack.c.b16 %v2042, %v2041
        %v2049 = vpack.c.b16 %v2044, %v2043
        %v2056 = vsel %vm1631, %v2021, 0
        %v2059 = vsel %vm1631, %v2022, 0
        %v2062 = vsel %vm1631, %v2023, 0
        %v2065 = vsel %vm1631, %v2024, 0
        %2067 = vmatpush.bf16.msra.mxu0 0
        %2068 = vmatpush.bf16.msra.mxu0 0
        %2069 = vmatpush.bf16.msra.mxu0 0
        %2070 = vmatpush.bf16.msra.mxu0 %v2049
        %2071 = vmatpush.bf16.msra.mxu0 %v2048
        %2072 = vmatpush.bf16.msra.mxu0 %v2047
        %2073 = vmatpush.bf16.msra.mxu0 %v2046
        %2074 = vmatpush.bf16.msra.mxu0 %v2045
        %2075 = vmatmul.bf16.gmra.mxu0 %v2056
        %v2076 = vpop.f32.mrf.mxu0
        %v2077 = vadd.f32 0.0, %v2076
        %v2078 = vpop.f32.mrf.mxu0
        %v2079 = vadd.f32 0.0, %v2078
        %2080 = vmatmul.bf16.gmra.mxu0 %v2059
        %v2081 = vpop.f32.mrf.mxu0
        %v2082 = vadd.f32 0.0, %v2081
        %v2083 = vpop.f32.mrf.mxu0
        %v2084 = vadd.f32 0.0, %v2083
        %2085 = vmatmul.bf16.gmra.mxu0 %v2062
        %v2086 = vpop.f32.mrf.mxu0
        %v2087 = vadd.f32 0.0, %v2086
        %v2088 = vpop.f32.mrf.mxu0
        %v2089 = vadd.f32 0.0, %v2088
        %2090 = vmatmul.bf16.gmra.mxu0 %v2065
        %v2091 = vpop.f32.mrf.mxu0
        %v2092 = vadd.f32 0.0, %v2091
        %v2093 = vpop.f32.mrf.mxu0
        %v2094 = vadd.f32 0.0, %v2093
        %2095 = vdwg.mxu0
        %v2096 = vadd.f32 %v1978, %v2077
        %v2097 = vadd.f32 %v1979, %v2079
        %v2098 = vadd.f32 %v1980, %v2082
        %v2099 = vadd.f32 %v1981, %v2084
        %v2100 = vadd.f32 %v1982, %v2087
        %v2101 = vadd.f32 %v1983, %v2089
        %v2102 = vadd.f32 %v1984, %v2092
        %v2103 = vadd.f32 %v1985, %v2094
        %v2104 = vld [vmem:[%s368] sm:$0x1]
        %v2106 = vperm.slane %v2104, 0
        %v2108 = vadd.f32 %v2096, %v2106
        %v2109 = vadd.f32 %v2097, %v2106
        %v2110 = vadd.f32 %v2098, %v2106
        %v2111 = vadd.f32 %v2099, %v2106
        %v2112 = vadd.f32 %v2100, %v2106
        %v2113 = vadd.f32 %v2101, %v2106
        %v2114 = vadd.f32 %v2102, %v2106
        %v2115 = vadd.f32 %v2103, %v2106
        %vm2116 = vcmask 261120
        %v2117 = vsel %vm2116, %v2108, 0.0
        %v2118 = vsel %vm2116, %v2109, 0.0
        %v2119 = vadd.f32 %v2117, %v2118
        %v2120 = vsel %vm2116, %v2110, 0.0
        %v2121 = vadd.f32 %v2119, %v2120
        %v2122 = vsel %vm2116, %v2111, 0.0
        %v2123 = vadd.f32 %v2121, %v2122
        %v2124 = vsel %vm2116, %v2112, 0.0
        %v2125 = vadd.f32 %v2123, %v2124
        %v2126 = vsel %vm2116, %v2113, 0.0
        %v2127 = vadd.f32 %v2125, %v2126
        %v2128 = vsel %vm2116, %v2114, 0.0
        %v2129 = vadd.f32 %v2127, %v2128
        %v2130 = vsel %vm2116, %v2115, 0.0
        %v2131 = vadd.f32 %v2129, %v2130
        %v2132 = vrot.slane %v2131, 4
        %v2133 = vadd.f32 %v2131, %v2132
        %v2134 = vrot.slane %v2133, 2
        %v2135 = vadd.f32 %v2133, %v2134
        %v2136 = vrot.slane %v2135, 1
        %v2137 = vadd.f32 %v2135, %v2136
        %v2138 = vmul.f32 %v2108, %v2108
        %v2139 = vmul.f32 %v2109, %v2109
        %v2140 = vmul.f32 %v2110, %v2110
        %v2141 = vmul.f32 %v2111, %v2111
        %v2142 = vmul.f32 %v2112, %v2112
        %v2143 = vmul.f32 %v2113, %v2113
        %v2144 = vmul.f32 %v2114, %v2114
        %v2145 = vmul.f32 %v2115, %v2115
        %v2146 = vsel %vm2116, %v2138, 0.0
        %v2147 = vsel %vm2116, %v2139, 0.0
        %v2148 = vadd.f32 %v2146, %v2147
        %v2149 = vsel %vm2116, %v2140, 0.0
        %v2150 = vadd.f32 %v2148, %v2149
        %v2151 = vsel %vm2116, %v2141, 0.0
        %v2152 = vadd.f32 %v2150, %v2151
        %v2153 = vsel %vm2116, %v2142, 0.0
        %v2154 = vadd.f32 %v2152, %v2153
        %v2155 = vsel %vm2116, %v2143, 0.0
        %v2156 = vadd.f32 %v2154, %v2155
        %v2157 = vsel %vm2116, %v2144, 0.0
        %v2158 = vadd.f32 %v2156, %v2157
        %v2159 = vsel %vm2116, %v2145, 0.0
        %v2160 = vadd.f32 %v2158, %v2159
        %v2161 = vrot.slane %v2160, 4
        %v2162 = vadd.f32 %v2160, %v2161
        %v2163 = vrot.slane %v2162, 2
        %v2164 = vadd.f32 %v2162, %v2163
        %v2165 = vrot.slane %v2164, 1
        %v2166 = vadd.f32 %v2164, %v2165
        %vm2167 = vcmask 1040384
        %v2168 = vsel %vm2167, %v2137, %v2166
        %v2169 = vld [vmem:[%s3] sm:$0xff]
        %v2170 = vld [vmem:[%s3 + $0x8] sm:$0xff]
        %v2171 = vld [vmem:[%s3 + $0x10] sm:$0xff]
        %v2172 = vld [vmem:[%s3 + $0x18] sm:$0xff]
        %v2174 = vsel %vm2116, %v2168, 0
        %2176 = vmatpush.msra.mxu0 0.0
        %2177 = vmatpush.msra.mxu0 0.0
        %2178 = vmatpush.msra.mxu0 0.0
        %2179 = vmatpush.msra.mxu0 0.0
        %2180 = vmatpush.msra.mxu0 0.0
        %2181 = vmatpush.msra.mxu0 0.0
        %2182 = vmatpush.msra.mxu0 0.0
        %2183 = vmatpush.msra.mxu0 0.0
        %2184 = vmatpush.msra.mxu0 0.0
        %2185 = vmatpush.msra.mxu0 0.0
        %2186 = vmatpush.msra.mxu0 0.0
        %2187 = vmatpush.msra.mxu0 0.0
        %2188 = vmatpush.msra.mxu0 %v2172
        %2189 = vmatpush.msra.mxu0 %v2171
        %2190 = vmatpush.msra.mxu0 %v2170
        %2191 = vmatpush.msra.mxu0 %v2169
        %2192 = vmatmul.f32.gmra.mxu0 %v2174
        %v2193 = vpop.f32.mrf.mxu0
        %v2194 = vadd.f32 0.0, %v2193
        %2195 = vdwg.mxu0
        %v2196 = vmul.f32 %v2194, 0.001953125
        %v2197 = vmul.f32 %v2196, %v2196
        %v2199 = vrot.slane %v2197, 7
        %v2201 = vsub.f32 %v2196, %v2199
        %v2202 = vmax.f32 %v2201, 0.0
        %v2203 = vperm.slane %v2196, 0
        %v2204 = vsub.f32 %v2108, %v2203
        %v2205 = vsub.f32 %v2109, %v2203
        %v2206 = vsub.f32 %v2110, %v2203
        %v2207 = vsub.f32 %v2111, %v2203
        %v2208 = vsub.f32 %v2112, %v2203
        %v2209 = vsub.f32 %v2113, %v2203
        %v2210 = vsub.f32 %v2114, %v2203
        %v2211 = vsub.f32 %v2115, %v2203
        %v2212 = vadd.f32 %v2202, 1e-05
        %v2213 = vrsqrt.pop %v2212
        %v2214 = vmul.f32 %v2213, %v2212
        %v2215 = vmul.f32 %v2214, %v2213
        %v2216 = vmul.f32 0.5, %v2215
        %v2217 = vsub.f32 1.5, %v2216
        %v2218 = vmul.f32 %v2213, %v2217
        %vm2219 = vweird.f32 %v2212
        %vm2220 = vweird.f32 %v2213
        %vm2221 = vmor %vm2219, %vm2220
        %v2222 = vsel %vm2221, %v2213, %v2218
        %v2223 = vperm.slane %v2222, 1
        %v2224 = vmul.f32 %v2204, %v2223
        %v2225 = vmul.f32 %v2205, %v2223
        %v2226 = vmul.f32 %v2206, %v2223
        %v2227 = vmul.f32 %v2207, %v2223
        %v2228 = vmul.f32 %v2208, %v2223
        %v2229 = vmul.f32 %v2209, %v2223
        %v2230 = vmul.f32 %v2210, %v2223
        %v2231 = vmul.f32 %v2211, %v2223
        %v2232 = vld [vmem:[%s371] sm:$0x1]
        %v2234 = vperm.slane %v2232, 0
        %v2236 = vmul.f32 %v2224, %v2234
        %v2237 = vmul.f32 %v2225, %v2234
        %v2238 = vmul.f32 %v2226, %v2234
        %v2239 = vmul.f32 %v2227, %v2234
        %v2240 = vmul.f32 %v2228, %v2234
        %v2241 = vmul.f32 %v2229, %v2234
        %v2242 = vmul.f32 %v2230, %v2234
        %v2243 = vmul.f32 %v2231, %v2234
        %v2244 = vld [vmem:[%s374] sm:$0x1]
        %v2246 = vperm.slane %v2244, 0
        %v2248 = vadd.f32 %v2236, %v2246
        %v2249 = vadd.f32 %v2237, %v2246
        %v2250 = vadd.f32 %v2238, %v2246
        %v2251 = vadd.f32 %v2239, %v2246
        %v2252 = vadd.f32 %v2240, %v2246
        %v2253 = vadd.f32 %v2241, %v2246
        %v2254 = vadd.f32 %v2242, %v2246
        %v2255 = vadd.f32 %v2243, %v2246
        %vm2256 = vcmp.ge.f32.partialorder %v2248, 0.0
        %vm2257 = vcmp.ge.f32.partialorder %v2249, 0.0
        %vm2258 = vcmp.ge.f32.partialorder %v2250, 0.0
        %vm2259 = vcmp.ge.f32.partialorder %v2251, 0.0
        %vm2260 = vcmp.ge.f32.partialorder %v2252, 0.0
        %vm2261 = vcmp.ge.f32.partialorder %v2253, 0.0
        %vm2262 = vcmp.ge.f32.partialorder %v2254, 0.0
        %vm2263 = vcmp.ge.f32.partialorder %v2255, 0.0
        %v2264 = vmul.f32 %v2248, 0.2
        %v2265 = vmul.f32 %v2249, 0.2
        %v2266 = vmul.f32 %v2250, 0.2
        %v2267 = vmul.f32 %v2251, 0.2
        %v2268 = vmul.f32 %v2252, 0.2
        %v2269 = vmul.f32 %v2253, 0.2
        %v2270 = vmul.f32 %v2254, 0.2
        %v2271 = vmul.f32 %v2255, 0.2
        %v2272 = vsel %vm2256, %v2248, %v2264
        %v2273 = vsel %vm2257, %v2249, %v2265
        %v2274 = vsel %vm2258, %v2250, %v2266
        %v2275 = vsel %vm2259, %v2251, %v2267
        %v2276 = vsel %vm2260, %v2252, %v2268
        %v2277 = vsel %vm2261, %v2253, %v2269
        %v2278 = vsel %vm2262, %v2254, %v2270
        %v2279 = vsel %vm2263, %v2255, %v2271
        %v2280 = vld [vmem:[#allocation4] sm:$0xff]
        %v2281 = vld [vmem:[#allocation4 + $0x8] sm:$0xff]
        %v2282 = vld [vmem:[#allocation4 + $0x10] sm:$0xff]
        %v2283 = vld [vmem:[#allocation4 + $0x18] sm:$0xff]
        %v2284 = vld [vmem:[#allocation4 + $0x20] sm:$0xff]
        %v2285 = vld [vmem:[#allocation4 + $0x28] sm:$0xff]
        %v2286 = vld [vmem:[#allocation4 + $0x30] sm:$0xff]
        %v2287 = vld [vmem:[#allocation4 + $0x38] sm:$0xff]
        %v2288 = vadd.f32 %v2280, %v2272
        %v2289 = vadd.f32 %v2281, %v2273
        %v2290 = vadd.f32 %v2282, %v2274
        %v2291 = vadd.f32 %v2283, %v2275
        %v2292 = vadd.f32 %v2284, %v2276
        %v2293 = vadd.f32 %v2285, %v2277
        %v2294 = vadd.f32 %v2286, %v2278
        %v2295 = vadd.f32 %v2287, %v2279
        %2296 = vst.msk [vmem:[#allocation4] sm:$0xff] %vm2116, %v2288
        %2297 = vst.msk [vmem:[#allocation4 + $0x8] sm:$0xff] %vm2116, %v2289
        %2298 = vst.msk [vmem:[#allocation4 + $0x10] sm:$0xff] %vm2116, %v2290
        %2299 = vst.msk [vmem:[#allocation4 + $0x18] sm:$0xff] %vm2116, %v2291
        %2300 = vst.msk [vmem:[#allocation4 + $0x20] sm:$0xff] %vm2116, %v2292
        %2301 = vst.msk [vmem:[#allocation4 + $0x28] sm:$0xff] %vm2116, %v2293
        %2302 = vst.msk [vmem:[#allocation4 + $0x30] sm:$0xff] %vm2116, %v2294
        %2303 = vst.msk [vmem:[#allocation4 + $0x38] sm:$0xff] %vm2116, %v2295
        %v2304 = vld [vmem:[#allocation4] sm:$0xff]
        %v2305 = vld [vmem:[#allocation4 + $0x8] sm:$0xff]
        %v2306 = vld [vmem:[#allocation4 + $0x10] sm:$0xff]
        %v2307 = vld [vmem:[#allocation4 + $0x18] sm:$0xff]
        %v2308 = vld [vmem:[#allocation4 + $0x20] sm:$0xff]
        %v2309 = vld [vmem:[#allocation4 + $0x28] sm:$0xff]
        %v2310 = vld [vmem:[#allocation4 + $0x30] sm:$0xff]
        %v2311 = vld [vmem:[#allocation4 + $0x38] sm:$0xff]
        %v2312 = vpack.c.bf16 %v2304, %v2304
        %v2313 = vpack.c.bf16 %v2305, %v2305
        %v2314 = vpack.c.bf16 %v2306, %v2306
        %v2315 = vpack.c.bf16 %v2307, %v2307
        %v2316 = vpack.c.bf16 %v2308, %v2308
        %v2317 = vpack.c.bf16 %v2309, %v2309
        %v2318 = vpack.c.bf16 %v2310, %v2310
        %v2319 = vpack.c.bf16 %v2311, %v2311
        %vm2320 = vcmask 257024
        %2321 = vst.msk [vmem:[%s379] sm:$0xf] %vm2320, %v2312
        %2322 = vst.msk [vmem:[%s379 + $0x4] sm:$0xf] %vm2320, %v2313
        %2323 = vst.msk [vmem:[%s379 + $0x8] sm:$0xf] %vm2320, %v2314
        %2324 = vst.msk [vmem:[%s379 + $0xc] sm:$0xf] %vm2320, %v2315
        %2325 = vst.msk [vmem:[%s379 + $0x10] sm:$0xf] %vm2320, %v2316
        %2326 = vst.msk [vmem:[%s379 + $0x14] sm:$0xf] %vm2320, %v2317
        %2327 = vst.msk [vmem:[%s379 + $0x18] sm:$0xf] %vm2320, %v2318
        %2328 = vst.msk [vmem:[%s379 + $0x1c] sm:$0xf] %vm2320, %v2319
      $region60: #{mid_incepnet_forward.5} parent=51 // pred_fallthru
        _
      %p2329 = scmp.lt.s32.totalorder %s23, 1
      %s2330 = scalar_select %p2329, %s23, 1
      %s2331 = smul.addr %s2330, 8
      %s2332 = smul.addr %s2331, 4
      %s2333 = scalar_lea.vmem %s8, %s2332
      // Predicated region
      $region61: #{mid_incepnet_forward.5} parent=51 // pred_check
        %p2334 = pneg %p242
      $region62: #{mid_incepnet_forward.5} parent=51 // pred_check_branch
        %2336 = sbr.rel (%p2334) target = $region64
      $region63: #{mid_incepnet_forward.5} parent=51 // pred_region
        _
      $region64: #{mid_incepnet_forward.5} parent=51 // pred_fallthru
        _
    $region52: #{mid_incepnet_forward.5} parent=5 // pred_fallthru
      _
    %p2337 = scmp.le.s32.totalorder 2, %s14
    // Predicated region
    $region65: #{mid_incepnet_forward.5} parent=5 // pred_check
      %p2338 = pneg %p2337
    $region66: #{mid_incepnet_forward.5} parent=5 // pred_check_branch
      %2340 = sbr.rel (%p2338) target = $region68
    $region67: #{mid_incepnet_forward.5} parent=5 // pred_region
      %s2341 = ssub.s32 %s14, 2
      // Predicated region
      $region69: #{mid_incepnet_forward.5} parent=67 // pred_check
        %p2342 = pneg %p248
      $region70: #{mid_incepnet_forward.5} parent=67 // pred_check_branch
        %2344 = sbr.rel (%p2342) target = $region72
      $region71: #{mid_incepnet_forward.5} parent=67 // pred_region
        %p2345 = scmp.lt.s32.totalorder %s25, 1
        %s2346 = scalar_select %p2345, %s25, 1
        %s2347 = smul.addr %s2346, 8
        %s2348 = smul.addr %s2347, 4
        %s2349 = scalar_lea.vmem %s8, %s2348
      $region72: #{mid_incepnet_forward.5} parent=67 // pred_fallthru
        _
    $region68: #{mid_incepnet_forward.5} parent=5 // pred_fallthru
      _
  $region6: #{mid_incepnet_forward.5} parent=0 // loop_footer
    %s18 = sadd.s32 1, %s14
  $region7: #{mid_incepnet_forward.5} parent=0 // loop_footer_branch
    %13 = sbr.rel target = $region3
  $region8: #{mid_incepnet_forward.5} parent=0 // loop_exit
    _

// kernel: mid_incepnet_forward.7
$region0: #{mid_incepnet_forward.7}
  #allocation0 [shape = 'u32[]', space=smem, size = 0x4, offset = 0x4, fixed_abs, tag = 'smem constant byte address 0x4 - core index']
  #allocation1 [shape = 'u32[72,128]{1,0:T(1,128)}', space=vmem, size = 0x9000, scoped, tag = 'internal scratch']
  #allocation2 [shape = 'f32[12,12,16]{2,1,0:T(8,128)}', space=vmem, size = 0x18000, scoped, tag = 'scratch operand']
  #allocation3 [shape = 'bf16[96,80]{1,0:T(8,128)(2,1)}', space=vmem, size = 0x6000, scoped, tag = 'scratch operand']
  #allocation4 [shape = 'f32[64,8]{1,0:T(8,128)}', space=vmem, size = 0x8000, scoped, tag = 'scratch operand']
  %s0 = inlined_call_operand.vmem [shape: bf16[2,64,32], index: 0, kind: input, shape index: {}]
  %s1 = inlined_call_operand.vmem [shape: bf16[2,64,32], index: 1, kind: input, shape index: {}]
  %s2 = inlined_call_operand.vmem [shape: bf16[32,16], index: 2, kind: input, shape index: {}]
  %s3 = inlined_call_operand.vmem [shape: bf16[32,16], index: 3, kind: input, shape index: {}]
  %s4 = inlined_call_operand.vmem [shape: f32[1,16], index: 4, kind: input, shape index: {}]
  %s5 = inlined_call_operand.vmem [shape: f32[8,8], index: 5, kind: input, shape index: {}]
  %s6 = inlined_call_operand.vmem [shape: bf16[2,5,80,8], index: 6, kind: input, shape index: {}]
  %s7 = inlined_call_operand.vmem [shape: f32[2,1,8], index: 7, kind: input, shape index: {}]
  %s8 = inlined_call_operand.vmem [shape: f32[2,1,8], index: 8, kind: input, shape index: {}]
  %s9 = inlined_call_operand.vmem [shape: f32[2,1,8], index: 9, kind: input, shape index: {}]
  %s10 = inlined_call_operand.vmem [shape: f32[2,64,8], index: 10, kind: output, shape index: {}]
  %s11 = sld [smem:[#allocation0]]
  $region81: #{mid_incepnet_forward.7} parent=0
    _
  %s13 = ssub.s32 1, %s11
  %s14 = scalar_select 0, %s13, %s11
  loop: start=0, step=1, limit=6
  $region2: #{mid_incepnet_forward.7} parent=0 // loop_pre_header
    _
  $region3: #{mid_incepnet_forward.7} parent=0 // loop_header
    %s16 = sphi 0, %s20
    %p17 = scmp.ge.s32.totalorder %s16, 6
    %s23 = sphi 0, %s35
    %s24 = sphi 0, %s31
    %s25 = sphi 0, %s23
    %s26 = sphi 0, %s24
    %s27 = sphi 0, %s25
    %s28 = sphi 0, %s26
    %s38 = sphi 0, %s40
    %s41 = sphi 0, %s38
    %s42 = sphi 0, %s41
    %s58 = sphi 0, %s42
    %s64 = sphi 0, %s66
    %s67 = sphi 0, %s64
    %s68 = sphi 0, %s67
    %s84 = sphi 0, %s68
    %s88 = sphi 0, %s88
    %s90 = sphi 0, %s88
    %s91 = sphi 0, %s90
    %s105 = sphi 0, %s91
    %s109 = sphi 0, %s109
    %s111 = sphi 0, %s109
    %s112 = sphi 0, %s111
    %s126 = sphi 0, %s112
    %s130 = sphi 0, %s130
    %s132 = sphi 0, %s130
    %s133 = sphi 0, %s132
    %s147 = sphi 0, %s133
    %s151 = sphi 0, %s151
    %s153 = sphi 0, %s151
    %s154 = sphi 0, %s153
    %s168 = sphi 0, %s154
    %s174 = sphi 0, %s176
    %s177 = sphi 0, %s174
    %s178 = sphi 0, %s177
    %s194 = sphi 0, %s178
    %s200 = sphi 0, %s202
    %s203 = sphi 0, %s200
    %s204 = sphi 0, %s203
    %s220 = sphi 0, %s204
    %s226 = sphi 0, %s228
    %s229 = sphi 0, %s226
    %s230 = sphi 0, %s229
    %s246 = sphi 0, %s230
    %s252 = sphi 0, %s254
    %s255 = sphi 0, %s252
    %s256 = sphi 0, %s255
    %s272 = sphi 0, %s256
    %s278 = sphi 0, %s280
    %s281 = sphi 0, %s278
    %s282 = sphi 0, %s281
    %s298 = sphi 0, %s282
  $region4: #{mid_incepnet_forward.7} parent=0 // loop_header_branch
    %19 = sbr.rel (%p17) target = $region8
  $region5: #{mid_incepnet_forward.7} parent=0 // loop_body
    %s21 = ssub.s32 %s16, 1
    %s22 = ssub.s32 %s16, 2
    %s29 = sadd.s32 1, %s24
    %p30 = scmp.ge.s32.totalorder %s29, 2
    %s31 = scalar_select %p30, 0, %s29
    %s32 = sadd.s32 1, %s23
    %s33 = scalar_select %p30, %s32, %s23
    %p34 = scmp.ge.s32.totalorder %s33, 2
    %s35 = scalar_select %p34, 0, %s33
    %s36 = ssub.s32 %s23, %s35
    %p37 = scmp.eq.s32.totalorder %s36, 0
    %s39 = sadd.s32 %s38, 1
    %s40 = scalar_select %p37, %s38, %s39
    %p43 = pneg %p37
    %p44 = scmp.eq.s32.totalorder %s16, 3
    %p45 = por %p43, %p44
    %p46 = scmp.ne.s32.totalorder %s38, %s41
    %p47 = scmp.eq.s32.totalorder %s16, 0
    %p48 = por %p46, %p47
    %p49 = scmp.ne.s32.totalorder %s38, %s41
    %p50 = scmp.eq.s32.totalorder %s21, 3
    %p51 = por %p49, %p50
    %p52 = scmp.ne.s32.totalorder %s41, %s42
    %p53 = scmp.eq.s32.totalorder %s21, 0
    %p54 = por %p52, %p53
    %p55 = scmp.ne.s32.totalorder %s41, %s42
    %p56 = scmp.eq.s32.totalorder %s22, 3
    %p57 = por %p55, %p56
    %p59 = scmp.ne.s32.totalorder %s42, %s58
    %p60 = scmp.eq.s32.totalorder %s22, 0
    %p61 = por %p59, %p60
    %s62 = ssub.s32 %s23, %s35
    %p63 = scmp.eq.s32.totalorder %s62, 0
    %s65 = sadd.s32 %s64, 1
    %s66 = scalar_select %p63, %s64, %s65
    %p69 = pneg %p63
    %p70 = scmp.eq.s32.totalorder %s16, 3
    %p71 = por %p69, %p70
    %p72 = scmp.ne.s32.totalorder %s64, %s67
    %p73 = scmp.eq.s32.totalorder %s16, 0
    %p74 = por %p72, %p73
    %p75 = scmp.ne.s32.totalorder %s64, %s67
    %p76 = scmp.eq.s32.totalorder %s21, 3
    %p77 = por %p75, %p76
    %p78 = scmp.ne.s32.totalorder %s67, %s68
    %p79 = scmp.eq.s32.totalorder %s21, 0
    %p80 = por %p78, %p79
    %p81 = scmp.ne.s32.totalorder %s67, %s68
    %p82 = scmp.eq.s32.totalorder %s22, 3
    %p83 = por %p81, %p82
    %p85 = scmp.ne.s32.totalorder %s68, %s84
    %p86 = scmp.eq.s32.totalorder %s22, 0
    %p87 = por %p85, %p86
    %s89 = sadd.s32 %s88, 1
    %p92 = scmp.eq.s32.totalorder %s16, 3
    %p93 = scmp.ne.s32.totalorder %s88, %s90
    %p94 = scmp.eq.s32.totalorder %s16, 0
    %p95 = por %p93, %p94
    %p96 = scmp.ne.s32.totalorder %s88, %s90
    %p97 = scmp.eq.s32.totalorder %s21, 3
    %p98 = por %p96, %p97
    %p99 = scmp.ne.s32.totalorder %s90, %s91
    %p100 = scmp.eq.s32.totalorder %s21, 0
    %p101 = por %p99, %p100
    %p102 = scmp.ne.s32.totalorder %s90, %s91
    %p103 = scmp.eq.s32.totalorder %s22, 3
    %p104 = por %p102, %p103
    %p106 = scmp.ne.s32.totalorder %s91, %s105
    %p107 = scmp.eq.s32.totalorder %s22, 0
    %p108 = por %p106, %p107
    %s110 = sadd.s32 %s109, 1
    %p113 = scmp.eq.s32.totalorder %s16, 3
    %p114 = scmp.ne.s32.totalorder %s109, %s111
    %p115 = scmp.eq.s32.totalorder %s16, 0
    %p116 = por %p114, %p115
    %p117 = scmp.ne.s32.totalorder %s109, %s111
    %p118 = scmp.eq.s32.totalorder %s21, 3
    %p119 = por %p117, %p118
    %p120 = scmp.ne.s32.totalorder %s111, %s112
    %p121 = scmp.eq.s32.totalorder %s21, 0
    %p122 = por %p120, %p121
    %p123 = scmp.ne.s32.totalorder %s111, %s112
    %p124 = scmp.eq.s32.totalorder %s22, 3
    %p125 = por %p123, %p124
    %p127 = scmp.ne.s32.totalorder %s112, %s126
    %p128 = scmp.eq.s32.totalorder %s22, 0
    %p129 = por %p127, %p128
    %s131 = sadd.s32 %s130, 1
    %p134 = scmp.eq.s32.totalorder %s16, 3
    %p135 = scmp.ne.s32.totalorder %s130, %s132
    %p136 = scmp.eq.s32.totalorder %s16, 0
    %p137 = por %p135, %p136
    %p138 = scmp.ne.s32.totalorder %s130, %s132
    %p139 = scmp.eq.s32.totalorder %s21, 3
    %p140 = por %p138, %p139
    %p141 = scmp.ne.s32.totalorder %s132, %s133
    %p142 = scmp.eq.s32.totalorder %s21, 0
    %p143 = por %p141, %p142
    %p144 = scmp.ne.s32.totalorder %s132, %s133
    %p145 = scmp.eq.s32.totalorder %s22, 3
    %p146 = por %p144, %p145
    %p148 = scmp.ne.s32.totalorder %s133, %s147
    %p149 = scmp.eq.s32.totalorder %s22, 0
    %p150 = por %p148, %p149
    %s152 = sadd.s32 %s151, 1
    %p155 = scmp.eq.s32.totalorder %s16, 3
    %p156 = scmp.ne.s32.totalorder %s151, %s153
    %p157 = scmp.eq.s32.totalorder %s16, 0
    %p158 = por %p156, %p157
    %p159 = scmp.ne.s32.totalorder %s151, %s153
    %p160 = scmp.eq.s32.totalorder %s21, 3
    %p161 = por %p159, %p160
    %p162 = scmp.ne.s32.totalorder %s153, %s154
    %p163 = scmp.eq.s32.totalorder %s21, 0
    %p164 = por %p162, %p163
    %p165 = scmp.ne.s32.totalorder %s153, %s154
    %p166 = scmp.eq.s32.totalorder %s22, 3
    %p167 = por %p165, %p166
    %p169 = scmp.ne.s32.totalorder %s154, %s168
    %p170 = scmp.eq.s32.totalorder %s22, 0
    %p171 = por %p169, %p170
    %s172 = ssub.s32 %s24, %s31
    %p173 = scmp.eq.s32.totalorder %s172, 0
    %s175 = sadd.s32 %s174, 1
    %s176 = scalar_select %p173, %s174, %s175
    %p179 = pneg %p173
    %p180 = scmp.eq.s32.totalorder %s16, 3
    %p181 = por %p179, %p180
    %p182 = scmp.ne.s32.totalorder %s174, %s177
    %p183 = scmp.eq.s32.totalorder %s16, 0
    %p184 = por %p182, %p183
    %p185 = scmp.ne.s32.totalorder %s174, %s177
    %p186 = scmp.eq.s32.totalorder %s21, 3
    %p187 = por %p185, %p186
    %p188 = scmp.ne.s32.totalorder %s177, %s178
    %p189 = scmp.eq.s32.totalorder %s21, 0
    %p190 = por %p188, %p189
    %p191 = scmp.ne.s32.totalorder %s177, %s178
    %p192 = scmp.eq.s32.totalorder %s22, 3
    %p193 = por %p191, %p192
    %p195 = scmp.ne.s32.totalorder %s178, %s194
    %p196 = scmp.eq.s32.totalorder %s22, 0
    %p197 = por %p195, %p196
    %s198 = ssub.s32 %s24, %s31
    %p199 = scmp.eq.s32.totalorder %s198, 0
    %s201 = sadd.s32 %s200, 1
    %s202 = scalar_select %p199, %s200, %s201
    %p205 = pneg %p199
    %p206 = scmp.eq.s32.totalorder %s16, 3
    %p207 = por %p205, %p206
    %p208 = scmp.ne.s32.totalorder %s200, %s203
    %p209 = scmp.eq.s32.totalorder %s16, 0
    %p210 = por %p208, %p209
    %p211 = scmp.ne.s32.totalorder %s200, %s203
    %p212 = scmp.eq.s32.totalorder %s21, 3
    %p213 = por %p211, %p212
    %p214 = scmp.ne.s32.totalorder %s203, %s204
    %p215 = scmp.eq.s32.totalorder %s21, 0
    %p216 = por %p214, %p215
    %p217 = scmp.ne.s32.totalorder %s203, %s204
    %p218 = scmp.eq.s32.totalorder %s22, 3
    %p219 = por %p217, %p218
    %p221 = scmp.ne.s32.totalorder %s204, %s220
    %p222 = scmp.eq.s32.totalorder %s22, 0
    %p223 = por %p221, %p222
    %s224 = ssub.s32 %s24, %s31
    %p225 = scmp.eq.s32.totalorder %s224, 0
    %s227 = sadd.s32 %s226, 1
    %s228 = scalar_select %p225, %s226, %s227
    %p231 = pneg %p225
    %p232 = scmp.eq.s32.totalorder %s16, 3
    %p233 = por %p231, %p232
    %p234 = scmp.ne.s32.totalorder %s226, %s229
    %p235 = scmp.eq.s32.totalorder %s16, 0
    %p236 = por %p234, %p235
    %p237 = scmp.ne.s32.totalorder %s226, %s229
    %p238 = scmp.eq.s32.totalorder %s21, 3
    %p239 = por %p237, %p238
    %p240 = scmp.ne.s32.totalorder %s229, %s230
    %p241 = scmp.eq.s32.totalorder %s21, 0
    %p242 = por %p240, %p241
    %p243 = scmp.ne.s32.totalorder %s229, %s230
    %p244 = scmp.eq.s32.totalorder %s22, 3
    %p245 = por %p243, %p244
    %p247 = scmp.ne.s32.totalorder %s230, %s246
    %p248 = scmp.eq.s32.totalorder %s22, 0
    %p249 = por %p247, %p248
    %s250 = ssub.s32 %s24, %s31
    %p251 = scmp.eq.s32.totalorder %s250, 0
    %s253 = sadd.s32 %s252, 1
    %s254 = scalar_select %p251, %s252, %s253
    %p257 = pneg %p251
    %p258 = scmp.eq.s32.totalorder %s16, 3
    %p259 = por %p257, %p258
    %p260 = scmp.ne.s32.totalorder %s252, %s255
    %p261 = scmp.eq.s32.totalorder %s16, 0
    %p262 = por %p260, %p261
    %p263 = scmp.ne.s32.totalorder %s252, %s255
    %p264 = scmp.eq.s32.totalorder %s21, 3
    %p265 = por %p263, %p264
    %p266 = scmp.ne.s32.totalorder %s255, %s256
    %p267 = scmp.eq.s32.totalorder %s21, 0
    %p268 = por %p266, %p267
    %p269 = scmp.ne.s32.totalorder %s255, %s256
    %p270 = scmp.eq.s32.totalorder %s22, 3
    %p271 = por %p269, %p270
    %p273 = scmp.ne.s32.totalorder %s256, %s272
    %p274 = scmp.eq.s32.totalorder %s22, 0
    %p275 = por %p273, %p274
    %s276 = ssub.s32 %s23, %s35
    %p277 = scmp.eq.s32.totalorder %s276, 0
    %s279 = sadd.s32 %s278, 1
    %s280 = scalar_select %p277, %s278, %s279
    %p283 = pneg %p277
    %p284 = scmp.eq.s32.totalorder %s16, 3
    %p285 = por %p283, %p284
    %p286 = scmp.ne.s32.totalorder %s278, %s281
    %p287 = scmp.eq.s32.totalorder %s16, 0
    %p288 = por %p286, %p287
    %p289 = scmp.ne.s32.totalorder %s278, %s281
    %p290 = scmp.eq.s32.totalorder %s21, 3
    %p291 = por %p289, %p290
    %p292 = scmp.ne.s32.totalorder %s281, %s282
    %p293 = scmp.eq.s32.totalorder %s21, 0
    %p294 = por %p292, %p293
    %p295 = scmp.ne.s32.totalorder %s281, %s282
    %p296 = scmp.eq.s32.totalorder %s22, 3
    %p297 = por %p295, %p296
    %p299 = scmp.ne.s32.totalorder %s282, %s298
    %p300 = scmp.eq.s32.totalorder %s22, 0
    %p301 = por %p299, %p300
    %p302 = scmp.le.s32.totalorder 1, %s16
    %p303 = scmp.lt.s32.totalorder %s16, 5
    %p304 = pnand %p302, %p303
    %p305 = pneg %p304
    // Predicated region
    $region9: #{mid_incepnet_forward.7} parent=5 // pred_check
      _
    $region10: #{mid_incepnet_forward.7} parent=5 // pred_check_branch
      %307 = sbr.rel (%p304) target = $region12
    $region11: #{mid_incepnet_forward.7} parent=5 // pred_region
      %s308 = ssub.s32 %s16, 1
      // Predicated region
      $region13: #{mid_incepnet_forward.7} parent=11 // pred_check
        %p309 = pneg %p101
      $region14: #{mid_incepnet_forward.7} parent=11 // pred_check_branch
        %311 = sbr.rel (%p309) target = $region16
      $region15: #{mid_incepnet_forward.7} parent=11 // pred_region
        _
      $region16: #{mid_incepnet_forward.7} parent=11 // pred_fallthru
        _
      // Predicated region
      $region17: #{mid_incepnet_forward.7} parent=11 // pred_check
        %p312 = pneg %p122
      $region18: #{mid_incepnet_forward.7} parent=11 // pred_check_branch
        %314 = sbr.rel (%p312) target = $region20
      $region19: #{mid_incepnet_forward.7} parent=11 // pred_region
        _
      $region20: #{mid_incepnet_forward.7} parent=11 // pred_fallthru
        _
      // Predicated region
      $region21: #{mid_incepnet_forward.7} parent=11 // pred_check
        %p315 = pneg %p143
      $region22: #{mid_incepnet_forward.7} parent=11 // pred_check_branch
        %317 = sbr.rel (%p315) target = $region24
      $region23: #{mid_incepnet_forward.7} parent=11 // pred_region
        _
      $region24: #{mid_incepnet_forward.7} parent=11 // pred_fallthru
        _
      // Predicated region
      $region25: #{mid_incepnet_forward.7} parent=11 // pred_check
        %p318 = pneg %p164
      $region26: #{mid_incepnet_forward.7} parent=11 // pred_check_branch
        %320 = sbr.rel (%p318) target = $region28
      $region27: #{mid_incepnet_forward.7} parent=11 // pred_region
        _
      $region28: #{mid_incepnet_forward.7} parent=11 // pred_fallthru
        _
    $region12: #{mid_incepnet_forward.7} parent=5 // pred_fallthru
      _
    %p321 = scmp.lt.s32.totalorder %s16, 4
    // Predicated region
    $region29: #{mid_incepnet_forward.7} parent=5 // pred_check
      %p322 = pneg %p321
    $region30: #{mid_incepnet_forward.7} parent=5 // pred_check_branch
      %324 = sbr.rel (%p322) target = $region32
    $region31: #{mid_incepnet_forward.7} parent=5 // pred_region
      // Predicated region
      $region33: #{mid_incepnet_forward.7} parent=31 // pred_check
        %p325 = pneg %p48
      $region34: #{mid_incepnet_forward.7} parent=31 // pred_check_branch
        %327 = sbr.rel (%p325) target = $region36
      $region35: #{mid_incepnet_forward.7} parent=31 // pred_region
        %p328 = scmp.lt.s32.totalorder %s23, 1
        %s329 = scalar_select %p328, %s23, 1
        %s330 = smul.addr %s329, 8
        %s331 = smul.addr %s330, 4
        %s332 = scalar_lea.vmem %s0, %s331
      $region36: #{mid_incepnet_forward.7} parent=31 // pred_fallthru
        _
      // Predicated region
      $region37: #{mid_incepnet_forward.7} parent=31 // pred_check
        %p333 = pneg %p74
      $region38: #{mid_incepnet_forward.7} parent=31 // pred_check_branch
        %335 = sbr.rel (%p333) target = $region40
      $region39: #{mid_incepnet_forward.7} parent=31 // pred_region
        %p336 = scmp.lt.s32.totalorder %s23, 1
        %s337 = scalar_select %p336, %s23, 1
        %s338 = smul.addr %s337, 8
        %s339 = smul.addr %s338, 4
        %s340 = scalar_lea.vmem %s1, %s339
      $region40: #{mid_incepnet_forward.7} parent=31 // pred_fallthru
        _
      // Predicated region
      $region41: #{mid_incepnet_forward.7} parent=31 // pred_check
        %p341 = pneg %p184
      $region42: #{mid_incepnet_forward.7} parent=31 // pred_check_branch
        %343 = sbr.rel (%p341) target = $region44
      $region43: #{mid_incepnet_forward.7} parent=31 // pred_region
        %p344 = scmp.lt.s32.totalorder %s24, 1
        %s345 = scalar_select %p344, %s24, 1
        %s346 = smul.addr %s345, 50
        %s347 = smul.addr %s346, 4
        %s348 = scalar_lea.vmem %s6, %s347
      $region44: #{mid_incepnet_forward.7} parent=31 // pred_fallthru
        _
      // Predicated region
      $region45: #{mid_incepnet_forward.7} parent=31 // pred_check
        %p349 = pneg %p210
      $region46: #{mid_incepnet_forward.7} parent=31 // pred_check_branch
        %351 = sbr.rel (%p349) target = $region48
      $region47: #{mid_incepnet_forward.7} parent=31 // pred_region
        %p352 = scmp.lt.s32.totalorder %s24, 1
        %s353 = scalar_select %p352, %s24, 1
        %s354 = scalar_lea.vmem %s7, %s353
      $region48: #{mid_incepnet_forward.7} parent=31 // pred_fallthru
        _
      // Predicated region
      $region49: #{mid_incepnet_forward.7} parent=31 // pred_check
        %p355 = pneg %p236
      $region50: #{mid_incepnet_forward.7} parent=31 // pred_check_branch
        %357 = sbr.rel (%p355) target = $region52
      $region51: #{mid_incepnet_forward.7} parent=31 // pred_region
        %p358 = scmp.lt.s32.totalorder %s24, 1
        %s359 = scalar_select %p358, %s24, 1
        %s360 = scalar_lea.vmem %s8, %s359
      $region52: #{mid_incepnet_forward.7} parent=31 // pred_fallthru
        _
      // Predicated region
      $region53: #{mid_incepnet_forward.7} parent=31 // pred_check
        %p361 = pneg %p262
      $region54: #{mid_incepnet_forward.7} parent=31 // pred_check_branch
        %363 = sbr.rel (%p361) target = $region56
      $region55: #{mid_incepnet_forward.7} parent=31 // pred_region
        %p364 = scmp.lt.s32.totalorder %s24, 1
        %s365 = scalar_select %p364, %s24, 1
        %s366 = scalar_lea.vmem %s9, %s365
      $region56: #{mid_incepnet_forward.7} parent=31 // pred_fallthru
        _
    $region32: #{mid_incepnet_forward.7} parent=5 // pred_fallthru
      _
    %p367 = scmp.le.s32.totalorder 1, %s16
    %p368 = scmp.lt.s32.totalorder %s16, 5
    %p369 = pnand %p367, %p368
    %p370 = pneg %p369
    // Predicated region
    $region57: #{mid_incepnet_forward.7} parent=5 // pred_check
      _
    $region58: #{mid_incepnet_forward.7} parent=5 // pred_check_branch
      %372 = sbr.rel (%p369) target = $region60
    $region59: #{mid_incepnet_forward.7} parent=5 // pred_region
      %s373 = ssub.s32 %s16, 1
      %p374 = scmp.lt.s32.totalorder %s25, 1
      %s375 = scalar_select %p374, %s25, 1
      %s376 = smul.addr %s375, 8
      %s377 = smul.addr %s376, 4
      %s378 = scalar_lea.vmem %s0, %s377
      %p379 = pneg %p54
      %p380 = pneg %p51
      %p381 = scmp.lt.s32.totalorder %s25, 1
      %s382 = scalar_select %p381, %s25, 1
      %s383 = smul.addr %s382, 8
      %s384 = smul.addr %s383, 4
      %s385 = scalar_lea.vmem %s1, %s384
      %p386 = pneg %p80
      %p387 = pneg %p77
      %p388 = pneg %p101
      %p389 = pneg %p98
      %p390 = pneg %p122
      %p391 = pneg %p119
      %p392 = pneg %p143
      %p393 = pneg %p140
      %p394 = pneg %p164
      %p395 = pneg %p161
      %p396 = scmp.lt.s32.totalorder %s26, 1
      %s397 = scalar_select %p396, %s26, 1
      %s398 = smul.addr %s397, 50
      %s399 = smul.addr %s398, 4
      %s400 = scalar_lea.vmem %s6, %s399
      %p401 = pneg %p190
      %p402 = pneg %p187
      %p403 = scmp.lt.s32.totalorder %s26, 1
      %s404 = scalar_select %p403, %s26, 1
      %s405 = scalar_lea.vmem %s7, %s404
      %p406 = pneg %p216
      %p407 = pneg %p213
      %p408 = scmp.lt.s32.totalorder %s26, 1
      %s409 = scalar_select %p408, %s26, 1
      %s410 = scalar_lea.vmem %s8, %s409
      %p411 = pneg %p242
      %p412 = pneg %p239
      %p413 = scmp.lt.s32.totalorder %s26, 1
      %s414 = scalar_select %p413, %s26, 1
      %s415 = scalar_lea.vmem %s9, %s414
      %p416 = pneg %p268
      %p417 = pneg %p265
      %p418 = pneg %p294
      %p419 = pneg %p291
      %p420 = scmp.lt.s32.totalorder %s25, 1
      %s421 = scalar_select %p420, %s25, 1
      %s422 = smul.addr %s421, 8
      %s423 = smul.addr %s422, 8
      %s424 = scalar_lea.vmem %s10, %s423
      %p425 = scmp.lt.s32.totalorder %s25, 1
      %s426 = scalar_select %p425, %s25, 1
      %s427 = smul.addr %s426, 8
      %s428 = smul.addr %s427, 4
      %s429 = scalar_lea.vmem %s0, %s428
      %p430 = scmp.lt.s32.totalorder %s25, 1
      %s431 = scalar_select %p430, %s25, 1
      %s432 = smul.addr %s431, 8
      %s433 = smul.addr %s432, 4
      %s434 = scalar_lea.vmem %s1, %s433
      %p435 = scmp.lt.s32.totalorder %s26, 1
      %s436 = scalar_select %p435, %s26, 1
      %s437 = smul.addr %s436, 50
      %s438 = smul.addr %s437, 4
      %s439 = scalar_lea.vmem %s6, %s438
      %p440 = scmp.lt.s32.totalorder %s26, 1
      %s441 = scalar_select %p440, %s26, 1
      %s442 = scalar_lea.vmem %s7, %s441
      %p443 = scmp.lt.s32.totalorder %s26, 1
      %s444 = scalar_select %p443, %s26, 1
      %s445 = scalar_lea.vmem %s8, %s444
      %p446 = scmp.lt.s32.totalorder %s26, 1
      %s447 = scalar_select %p446, %s26, 1
      %s448 = scalar_lea.vmem %s9, %s447
      %p449 = scmp.lt.s32.totalorder %s25, 1
      %s450 = scalar_select %p449, %s25, 1
      %s451 = smul.addr %s450, 8
      %s452 = smul.addr %s451, 8
      %s453 = scalar_lea.vmem %s10, %s452
      %p455 = scmp.eq.s32.totalorder %s26, 0
      // Predicated region
      $region61: #{mid_incepnet_forward.7} parent=59 // pred_check
        %p456 = pneg %p455
      $region62: #{mid_incepnet_forward.7} parent=59 // pred_check_branch
        %458 = sbr.rel (%p456) target = $region64
      $region63: #{mid_incepnet_forward.7} parent=59 // pred_region
        %vm459 = vcmask 130048
        %460 = vst.msk [vmem:[#allocation2] sm:$0xff] %vm459, 0.0
        %vm461 = vcmask 125952
        %462 = vst.msk [vmem:[#allocation2 + $0x8] sm:$0xf] %vm461, 0.0
        %463 = vst.msk [vmem:[#allocation2 + $0x10] sm:$0xff] %vm459, 0.0
        %464 = vst.msk [vmem:[#allocation2 + $0x18] sm:$0xf] %vm461, 0.0
        %s465 = scalar_lea.vmem [#allocation2], 160
        %466 = vst.msk [vmem:[%s465] sm:$0xff] %vm459, 0.0
        %467 = vst.msk [vmem:[%s465 + $0x8] sm:$0xf] %vm461, 0.0
        %468 = vst.msk [vmem:[%s465 + $0x10] sm:$0xff] %vm459, 0.0
        %469 = vst.msk [vmem:[%s465 + $0x18] sm:$0xf] %vm461, 0.0
        %s470 = scalar_lea.vmem [#allocation2], 32
        %vm471 = vcmask 123904
        %472 = vst.msk [vmem:[%s470] sm:$0x3] %vm471, 0.0
        %473 = vst.msk [vmem:[%s470 + $0x10] sm:$0x3] %vm471, 0.0
        %474 = vst.msk [vmem:[%s470 + $0x20] sm:$0x3] %vm471, 0.0
        %475 = vst.msk [vmem:[%s470 + $0x30] sm:$0x3] %vm471, 0.0
        %476 = vst.msk [vmem:[%s470 + $0x40] sm:$0x3] %vm471, 0.0
        %477 = vst.msk [vmem:[%s470 + $0x50] sm:$0x3] %vm471, 0.0
        %478 = vst.msk [vmem:[%s470 + $0x60] sm:$0x3] %vm471, 0.0
        %479 = vst.msk [vmem:[%s470 + $0x70] sm:$0x3] %vm471, 0.0
        %480 = vst.msk [vmem:[%s470 + $0xa] sm:$0x3] %vm471, 0.0
        %481 = vst.msk [vmem:[%s470 + $0x1a] sm:$0x3] %vm471, 0.0
        %482 = vst.msk [vmem:[%s470 + $0x2a] sm:$0x3] %vm471, 0.0
        %483 = vst.msk [vmem:[%s470 + $0x3a] sm:$0x3] %vm471, 0.0
        %484 = vst.msk [vmem:[%s470 + $0x4a] sm:$0x3] %vm471, 0.0
        %485 = vst.msk [vmem:[%s470 + $0x5a] sm:$0x3] %vm471, 0.0
        %486 = vst.msk [vmem:[%s470 + $0x6a] sm:$0x3] %vm471, 0.0
        %487 = vst.msk [vmem:[%s470 + $0x7a] sm:$0x3] %vm471, 0.0
        %v488 = vld [vmem:[%s429] sm:$0xf]
        %v489 = vld [vmem:[%s429 + $0x4] sm:$0xf]
        %v490 = vld [vmem:[%s429 + $0x8] sm:$0xf]
        %v491 = vld [vmem:[%s429 + $0xc] sm:$0xf]
        %v492 = vld [vmem:[%s429 + $0x10] sm:$0xf]
        %v493 = vld [vmem:[%s429 + $0x14] sm:$0xf]
        %v494 = vld [vmem:[%s429 + $0x18] sm:$0xf]
        %v495 = vld [vmem:[%s429 + $0x1c] sm:$0xf]
        %v496 = vld [vmem:[%s2] sm:$0xf]
        %v497 = vld [vmem:[%s2 + $0x4] sm:$0xf]
        %v498 = vld [vmem:[%s2 + $0x8] sm:$0xf]
        %v499 = vld [vmem:[%s2 + $0xc] sm:$0xf]
        %v500 = vld [vmem:[%s434] sm:$0xf]
        %v501 = vld [vmem:[%s434 + $0x4] sm:$0xf]
        %v502 = vld [vmem:[%s434 + $0x8] sm:$0xf]
        %v503 = vld [vmem:[%s434 + $0xc] sm:$0xf]
        %v504 = vld [vmem:[%s434 + $0x10] sm:$0xf]
        %v505 = vld [vmem:[%s434 + $0x14] sm:$0xf]
        %v506 = vld [vmem:[%s434 + $0x18] sm:$0xf]
        %v507 = vld [vmem:[%s434 + $0x1c] sm:$0xf]
        %v508 = vld [vmem:[%s3] sm:$0xf]
        %v509 = vld [vmem:[%s3 + $0x4] sm:$0xf]
        %v510 = vld [vmem:[%s3 + $0x8] sm:$0xf]
        %v511 = vld [vmem:[%s3 + $0xc] sm:$0xf]
        %v520 = vunpack.c.l.b16 %v500
        %v521 = vunpack.c.l.b16 %v501
        %v522 = vunpack.c.l.b16 %v502
        %v523 = vunpack.c.l.b16 %v503
        %v524 = vunpack.c.l.b16 %v504
        %v525 = vunpack.c.l.b16 %v505
        %v526 = vunpack.c.l.b16 %v506
        %v527 = vunpack.c.l.b16 %v507
        %v528 = vpack.c.b16 %v521, %v520
        %v529 = vpack.c.b16 %v523, %v522
        %v530 = vpack.c.b16 %v525, %v524
        %v531 = vpack.c.b16 %v527, %v526
        %v536 = vunpack.c.l.b16 %v508
        %v537 = vunpack.c.l.b16 %v509
        %v538 = vunpack.c.l.b16 %v510
        %v539 = vunpack.c.l.b16 %v511
        %v540 = vpack.c.b16 %v537, %v536
        %v541 = vpack.c.b16 %v539, %v538
        %vm544 = vcmask 261120
        %v546 = vsel %vm544, %v528, 0
        %v549 = vsel %vm544, %v529, 0
        %v552 = vsel %vm544, %v530, 0
        %v555 = vsel %vm544, %v531, 0
        %557 = vmatpush.bf16.msra.mxu0 0
        %558 = vmatpush.bf16.msra.mxu0 0
        %559 = vmatpush.bf16.msra.mxu0 0
        %560 = vmatpush.bf16.msra.mxu0 0
        %561 = vmatpush.bf16.msra.mxu0 0
        %562 = vmatpush.bf16.msra.mxu0 0
        %563 = vmatpush.bf16.msra.mxu0 %v541
        %564 = vmatpush.bf16.msra.mxu0 %v540
        %565 = vmatmul.bf16.gmra.mxu0 %v546
        %v566 = vpop.f32.mrf.mxu0
        %v567 = vadd.f32 0.0, %v566
        %v568 = vpop.f32.mrf.mxu0
        %v569 = vadd.f32 0.0, %v568
        %570 = vmatmul.bf16.gmra.mxu0 %v549
        %v571 = vpop.f32.mrf.mxu0
        %v572 = vadd.f32 0.0, %v571
        %v573 = vpop.f32.mrf.mxu0
        %v574 = vadd.f32 0.0, %v573
        %575 = vmatmul.bf16.gmra.mxu0 %v552
        %v576 = vpop.f32.mrf.mxu0
        %v577 = vadd.f32 0.0, %v576
        %v578 = vpop.f32.mrf.mxu0
        %v579 = vadd.f32 0.0, %v578
        %580 = vmatmul.bf16.gmra.mxu0 %v555
        %v581 = vpop.f32.mrf.mxu0
        %v582 = vadd.f32 0.0, %v581
        %v583 = vpop.f32.mrf.mxu0
        %v584 = vadd.f32 0.0, %v583
        %585 = vdwg.mxu0
        %v594 = vunpack.c.l.b16 %v488
        %v595 = vunpack.c.l.b16 %v489
        %v596 = vunpack.c.l.b16 %v490
        %v597 = vunpack.c.l.b16 %v491
        %v598 = vunpack.c.l.b16 %v492
        %v599 = vunpack.c.l.b16 %v493
        %v600 = vunpack.c.l.b16 %v494
        %v601 = vunpack.c.l.b16 %v495
        %v602 = vpack.c.b16 %v595, %v594
        %v603 = vpack.c.b16 %v597, %v596
        %v604 = vpack.c.b16 %v599, %v598
        %v605 = vpack.c.b16 %v601, %v600
        %v610 = vunpack.c.l.b16 %v496
        %v611 = vunpack.c.l.b16 %v497
        %v612 = vunpack.c.l.b16 %v498
        %v613 = vunpack.c.l.b16 %v499
        %v614 = vpack.c.b16 %v611, %v610
        %v615 = vpack.c.b16 %v613, %v612
        %v619 = vsel %vm544, %v602, 0
        %v622 = vsel %vm544, %v603, 0
        %v625 = vsel %vm544, %v604, 0
        %v628 = vsel %vm544, %v605, 0
        %630 = vmatpush.bf16.msra.mxu0 0
        %631 = vmatpush.bf16.msra.mxu0 0
        %632 = vmatpush.bf16.msra.mxu0 0
        %633 = vmatpush.bf16.msra.mxu0 0
        %634 = vmatpush.bf16.msra.mxu0 0
        %635 = vmatpush.bf16.msra.mxu0 0
        %636 = vmatpush.bf16.msra.mxu0 %v615
        %637 = vmatpush.bf16.msra.mxu0 %v614
        %638 = vmatmul.bf16.gmra.mxu0 %v619
        %v639 = vpop.f32.mrf.mxu0
        %v640 = vadd.f32 %v567, %v639
        %v641 = vpop.f32.mrf.mxu0
        %v642 = vadd.f32 %v569, %v641
        %643 = vmatmul.bf16.gmra.mxu0 %v622
        %v644 = vpop.f32.mrf.mxu0
        %v645 = vadd.f32 %v572, %v644
        %v646 = vpop.f32.mrf.mxu0
        %v647 = vadd.f32 %v574, %v646
        %648 = vmatmul.bf16.gmra.mxu0 %v625
        %v649 = vpop.f32.mrf.mxu0
        %v650 = vadd.f32 %v577, %v649
        %v651 = vpop.f32.mrf.mxu0
        %v652 = vadd.f32 %v579, %v651
        %653 = vmatmul.bf16.gmra.mxu0 %v628
        %v654 = vpop.f32.mrf.mxu0
        %v655 = vadd.f32 %v582, %v654
        %v656 = vpop.f32.mrf.mxu0
        %v657 = vadd.f32 %v584, %v656
        %658 = vdwg.mxu0
        %v659 = vld [vmem:[%s4] sm:$0x1]
        %v661 = vperm.slane %v659, 0
        %v663 = vadd.f32 %v640, %v661
        %v664 = vadd.f32 %v642, %v661
        %v665 = vadd.f32 %v645, %v661
        %v666 = vadd.f32 %v647, %v661
        %v667 = vadd.f32 %v650, %v661
        %v668 = vadd.f32 %v652, %v661
        %v669 = vadd.f32 %v655, %v661
        %v670 = vadd.f32 %v657, %v661
        %671 = vst.msk [vmem:[%s470 + $0x2] sm:$0xff] %vm459, %v663
        %672 = vst.msk [vmem:[%s470 + $0x12] sm:$0xff] %vm459, %v664
        %673 = vst.msk [vmem:[%s470 + $0x22] sm:$0xff] %vm459, %v665
        %674 = vst.msk [vmem:[%s470 + $0x32] sm:$0xff] %vm459, %v666
        %675 = vst.msk [vmem:[%s470 + $0x42] sm:$0xff] %vm459, %v667
        %676 = vst.msk [vmem:[%s470 + $0x52] sm:$0xff] %vm459, %v668
        %677 = vst.msk [vmem:[%s470 + $0x62] sm:$0xff] %vm459, %v669
        %678 = vst.msk [vmem:[%s470 + $0x72] sm:$0xff] %vm459, %v670
        %v679 = vld [vmem:[#allocation2 + $0x1] sm:$0xff]
        %v680 = vld [vmem:[#allocation2 + $0x11] sm:$0xff]
        %v681 = vld [vmem:[#allocation2 + $0x21] sm:$0xff]
        %v682 = vld [vmem:[#allocation2 + $0x31] sm:$0xff]
        %v683 = vld [vmem:[#allocation2 + $0x41] sm:$0xff]
        %v684 = vld [vmem:[#allocation2 + $0x51] sm:$0xff]
        %v685 = vld [vmem:[#allocation2 + $0x61] sm:$0xff]
        %v686 = vld [vmem:[#allocation2 + $0x71] sm:$0xff]
        %v687 = vld [vmem:[#allocation2 + $0x81] sm:$0xff]
        %v688 = vld [vmem:[#allocation2 + $0x91] sm:$0xff]
        %v689 = vld [vmem:[#allocation2 + $0xa1] sm:$0xff]
        %v690 = vld [vmem:[#allocation2 + $0xb1] sm:$0xff]
        %v691 = vpack.c.bf16 %v679, %v679
        %v692 = vpack.c.bf16 %v680, %v680
        %v693 = vpack.c.bf16 %v681, %v681
        %v694 = vpack.c.bf16 %v682, %v682
        %v695 = vpack.c.bf16 %v683, %v683
        %v696 = vpack.c.bf16 %v684, %v684
        %v697 = vpack.c.bf16 %v685, %v685
        %v698 = vpack.c.bf16 %v686, %v686
        %v699 = vpack.c.bf16 %v687, %v687
        %v700 = vpack.c.bf16 %v688, %v688
        %v701 = vpack.c.bf16 %v689, %v689
        %v702 = vpack.c.bf16 %v690, %v690
        %703 = vst.msk [vmem:[#allocation3] sm:$0xf] %vm461, %v691
        %704 = vst.msk [vmem:[#allocation3 + $0x4] sm:$0xf] %vm461, %v692
        %705 = vst.msk [vmem:[#allocation3 + $0x8] sm:$0xf] %vm461, %v693
        %706 = vst.msk [vmem:[#allocation3 + $0xc] sm:$0xf] %vm461, %v694
        %707 = vst.msk [vmem:[#allocation3 + $0x10] sm:$0xf] %vm461, %v695
        %708 = vst.msk [vmem:[#allocation3 + $0x14] sm:$0xf] %vm461, %v696
        %709 = vst.msk [vmem:[#allocation3 + $0x18] sm:$0xf] %vm461, %v697
        %710 = vst.msk [vmem:[#allocation3 + $0x1c] sm:$0xf] %vm461, %v698
        %711 = vst.msk [vmem:[#allocation3 + $0x20] sm:$0xf] %vm461, %v699
        %712 = vst.msk [vmem:[#allocation3 + $0x24] sm:$0xf] %vm461, %v700
        %713 = vst.msk [vmem:[#allocation3 + $0x28] sm:$0xf] %vm461, %v701
        %714 = vst.msk [vmem:[#allocation3 + $0x2c] sm:$0xf] %vm461, %v702
        %v715 = vld [vmem:[#allocation2 + $0x2] sm:$0xff]
        %v716 = vld [vmem:[#allocation2 + $0x12] sm:$0xff]
        %v717 = vld [vmem:[#allocation2 + $0x22] sm:$0xff]
        %v718 = vld [vmem:[#allocation2 + $0x32] sm:$0xff]
        %v719 = vld [vmem:[#allocation2 + $0x42] sm:$0xff]
        %v720 = vld [vmem:[#allocation2 + $0x52] sm:$0xff]
        %v721 = vld [vmem:[#allocation2 + $0x62] sm:$0xff]
        %v722 = vld [vmem:[#allocation2 + $0x72] sm:$0xff]
        %v723 = vld [vmem:[#allocation2 + $0x82] sm:$0xff]
        %v724 = vld [vmem:[#allocation2 + $0x92] sm:$0xff]
        %v725 = vld [vmem:[#allocation2 + $0xa2] sm:$0xff]
        %v726 = vld [vmem:[#allocation2 + $0xb2] sm:$0xff]
        %v727 = vpack.c.bf16 %v715, %v715
        %v728 = vpack.c.bf16 %v716, %v716
        %v729 = vpack.c.bf16 %v717, %v717
        %v730 = vpack.c.bf16 %v718, %v718
        %v731 = vpack.c.bf16 %v719, %v719
        %v732 = vpack.c.bf16 %v720, %v720
        %v733 = vpack.c.bf16 %v721, %v721
        %v734 = vpack.c.bf16 %v722, %v722
        %v735 = vpack.c.bf16 %v723, %v723
        %v736 = vpack.c.bf16 %v724, %v724
        %v737 = vpack.c.bf16 %v725, %v725
        %v738 = vpack.c.bf16 %v726, %v726
        %751 = vrot.lane.b32.xlu0 %v727, 16
        %v752 = vpop.permute.xlu0 %751
        %753 = vrot.lane.b32.xlu0 %v728, 16
        %v754 = vpop.permute.xlu0 %753
        %755 = vrot.lane.b32.xlu0 %v729, 16
        %v756 = vpop.permute.xlu0 %755
        %757 = vrot.lane.b32.xlu0 %v730, 16
        %v758 = vpop.permute.xlu0 %757
        %759 = vrot.lane.b32.xlu0 %v731, 16
        %v760 = vpop.permute.xlu0 %759
        %761 = vrot.lane.b32.xlu0 %v732, 16
        %v762 = vpop.permute.xlu0 %761
        %763 = vrot.lane.b32.xlu0 %v733, 16
        %v764 = vpop.permute.xlu0 %763
        %765 = vrot.lane.b32.xlu0 %v734, 16
        %v766 = vpop.permute.xlu0 %765
        %767 = vrot.lane.b32.xlu0 %v735, 16
        %v768 = vpop.permute.xlu0 %767
        %769 = vrot.lane.b32.xlu0 %v736, 16
        %v770 = vpop.permute.xlu0 %769
        %771 = vrot.lane.b32.xlu0 %v737, 16
        %v772 = vpop.permute.xlu0 %771
        %773 = vrot.lane.b32.xlu0 %v738, 16
        %v774 = vpop.permute.xlu0 %773
        %vm787 = vcmask 257152
        %788 = vst.msk [vmem:[#allocation3] sm:$0xf] %vm787, %v752
        %789 = vst.msk [vmem:[#allocation3 + $0x4] sm:$0xf] %vm787, %v754
        %790 = vst.msk [vmem:[#allocation3 + $0x8] sm:$0xf] %vm787, %v756
        %791 = vst.msk [vmem:[#allocation3 + $0xc] sm:$0xf] %vm787, %v758
        %792 = vst.msk [vmem:[#allocation3 + $0x10] sm:$0xf] %vm787, %v760
        %793 = vst.msk [vmem:[#allocation3 + $0x14] sm:$0xf] %vm787, %v762
        %794 = vst.msk [vmem:[#allocation3 + $0x18] sm:$0xf] %vm787, %v764
        %795 = vst.msk [vmem:[#allocation3 + $0x1c] sm:$0xf] %vm787, %v766
        %796 = vst.msk [vmem:[#allocation3 + $0x20] sm:$0xf] %vm787, %v768
        %797 = vst.msk [vmem:[#allocation3 + $0x24] sm:$0xf] %vm787, %v770
        %798 = vst.msk [vmem:[#allocation3 + $0x28] sm:$0xf] %vm787, %v772
        %799 = vst.msk [vmem:[#allocation3 + $0x2c] sm:$0xf] %vm787, %v774
        %v800 = vld [vmem:[#allocation2 + $0x3] sm:$0xff]
        %v801 = vld [vmem:[#allocation2 + $0x13] sm:$0xff]
        %v802 = vld [vmem:[#allocation2 + $0x23] sm:$0xff]
        %v803 = vld [vmem:[#allocation2 + $0x33] sm:$0xff]
        %v804 = vld [vmem:[#allocation2 + $0x43] sm:$0xff]
        %v805 = vld [vmem:[#allocation2 + $0x53] sm:$0xff]
        %v806 = vld [vmem:[#allocation2 + $0x63] sm:$0xff]
        %v807 = vld [vmem:[#allocation2 + $0x73] sm:$0xff]
        %v808 = vld [vmem:[#allocation2 + $0x83] sm:$0xff]
        %v809 = vld [vmem:[#allocation2 + $0x93] sm:$0xff]
        %v810 = vld [vmem:[#allocation2 + $0xa3] sm:$0xff]
        %v811 = vld [vmem:[#allocation2 + $0xb3] sm:$0xff]
        %v812 = vpack.c.bf16 %v800, %v800
        %v813 = vpack.c.bf16 %v801, %v801
        %v814 = vpack.c.bf16 %v802, %v802
        %v815 = vpack.c.bf16 %v803, %v803
        %v816 = vpack.c.bf16 %v804, %v804
        %v817 = vpack.c.bf16 %v805, %v805
        %v818 = vpack.c.bf16 %v806, %v806
        %v819 = vpack.c.bf16 %v807, %v807
        %v820 = vpack.c.bf16 %v808, %v808
        %v821 = vpack.c.bf16 %v809, %v809
        %v822 = vpack.c.bf16 %v810, %v810
        %v823 = vpack.c.bf16 %v811, %v811
        %836 = vrot.lane.b32.xlu0 %v812, 32
        %v837 = vpop.permute.xlu0 %836
        %838 = vrot.lane.b32.xlu0 %v813, 32
        %v839 = vpop.permute.xlu0 %838
        %840 = vrot.lane.b32.xlu0 %v814, 32
        %v841 = vpop.permute.xlu0 %840
        %842 = vrot.lane.b32.xlu0 %v815, 32
        %v843 = vpop.permute.xlu0 %842
        %844 = vrot.lane.b32.xlu0 %v816, 32
        %v845 = vpop.permute.xlu0 %844
        %846 = vrot.lane.b32.xlu0 %v817, 32
        %v847 = vpop.permute.xlu0 %846
        %848 = vrot.lane.b32.xlu0 %v818, 32
        %v849 = vpop.permute.xlu0 %848
        %850 = vrot.lane.b32.xlu0 %v819, 32
        %v851 = vpop.permute.xlu0 %850
        %852 = vrot.lane.b32.xlu0 %v820, 32
        %v853 = vpop.permute.xlu0 %852
        %854 = vrot.lane.b32.xlu0 %v821, 32
        %v855 = vpop.permute.xlu0 %854
        %856 = vrot.lane.b32.xlu0 %v822, 32
        %v857 = vpop.permute.xlu0 %856
        %858 = vrot.lane.b32.xlu0 %v823, 32
        %v859 = vpop.permute.xlu0 %858
        %vm872 = vcmask 388352
        %873 = vst.msk [vmem:[#allocation3] sm:$0xf] %vm872, %v837
        %874 = vst.msk [vmem:[#allocation3 + $0x4] sm:$0xf] %vm872, %v839
        %875 = vst.msk [vmem:[#allocation3 + $0x8] sm:$0xf] %vm872, %v841
        %876 = vst.msk [vmem:[#allocation3 + $0xc] sm:$0xf] %vm872, %v843
        %877 = vst.msk [vmem:[#allocation3 + $0x10] sm:$0xf] %vm872, %v845
        %878 = vst.msk [vmem:[#allocation3 + $0x14] sm:$0xf] %vm872, %v847
        %879 = vst.msk [vmem:[#allocation3 + $0x18] sm:$0xf] %vm872, %v849
        %880 = vst.msk [vmem:[#allocation3 + $0x1c] sm:$0xf] %vm872, %v851
        %881 = vst.msk [vmem:[#allocation3 + $0x20] sm:$0xf] %vm872, %v853
        %882 = vst.msk [vmem:[#allocation3 + $0x24] sm:$0xf] %vm872, %v855
        %883 = vst.msk [vmem:[#allocation3 + $0x28] sm:$0xf] %vm872, %v857
        %884 = vst.msk [vmem:[#allocation3 + $0x2c] sm:$0xf] %vm872, %v859
        %v885 = vld [vmem:[#allocation3 + $0x4] sm:$0xf]
        %v886 = vld [vmem:[#allocation3 + $0x8] sm:$0xf]
        %v887 = vld [vmem:[#allocation3 + $0xc] sm:$0xf]
        %v888 = vld [vmem:[#allocation3 + $0x10] sm:$0xf]
        %v889 = vld [vmem:[#allocation3 + $0x14] sm:$0xf]
        %v890 = vld [vmem:[#allocation3 + $0x18] sm:$0xf]
        %v891 = vld [vmem:[#allocation3 + $0x1c] sm:$0xf]
        %v892 = vld [vmem:[#allocation3 + $0x20] sm:$0xf]
        %v893 = vld [vmem:[%s439] sm:$0xf]
        %v894 = vld [vmem:[%s439 + $0x4] sm:$0xf]
        %v895 = vld [vmem:[%s439 + $0x8] sm:$0xf]
        %v896 = vld [vmem:[%s439 + $0xc] sm:$0xf]
        %v897 = vld [vmem:[%s439 + $0x10] sm:$0xf]
        %v898 = vld [vmem:[%s439 + $0x14] sm:$0xf]
        %v899 = vld [vmem:[#allocation3 + $0x24] sm:$0xf]
        %s900 = scalar_lea.vmem %s439, 40
        %v901 = vld [vmem:[%s900] sm:$0xf]
        %v902 = vld [vmem:[%s900 + $0x4] sm:$0xf]
        %v903 = vld [vmem:[%s900 + $0x8] sm:$0xf]
        %v904 = vld [vmem:[%s900 + $0xc] sm:$0xf]
        %v905 = vld [vmem:[%s900 + $0x10] sm:$0xf]
        %v906 = vld [vmem:[%s900 + $0x14] sm:$0xf]
        %v915 = vunpack.c.l.b16 %v886
        %v916 = vunpack.c.l.b16 %v887
        %v917 = vunpack.c.l.b16 %v888
        %v918 = vunpack.c.l.b16 %v889
        %v919 = vunpack.c.l.b16 %v890
        %v920 = vunpack.c.l.b16 %v891
        %v921 = vunpack.c.l.b16 %v892
        %v922 = vunpack.c.l.b16 %v899
        %v923 = vpack.c.b16 %v916, %v915
        %v924 = vpack.c.b16 %v918, %v917
        %v925 = vpack.c.b16 %v920, %v919
        %v926 = vpack.c.b16 %v922, %v921
        %v933 = vunpack.c.l.b16 %v901
        %v934 = vunpack.c.l.b16 %v902
        %v935 = vunpack.c.l.b16 %v903
        %v936 = vunpack.c.l.b16 %v904
        %v937 = vunpack.c.l.b16 %v905
        %v938 = vunpack.c.l.b16 %v906
        %v939 = vpack.c.b16 %v934, %v933
        %v940 = vpack.c.b16 %v936, %v935
        %v941 = vpack.c.b16 %v938, %v937
        %vm945 = vcmask 392192
        %v947 = vsel %vm945, %v923, 0
        %v950 = vsel %vm945, %v924, 0
        %v953 = vsel %vm945, %v925, 0
        %v956 = vsel %vm945, %v926, 0
        %958 = vmatpush.bf16.msra.mxu0 0
        %959 = vmatpush.bf16.msra.mxu0 0
        %960 = vmatpush.bf16.msra.mxu0 0
        %961 = vmatpush.bf16.msra.mxu0 0
        %962 = vmatpush.bf16.msra.mxu0 0
        %963 = vmatpush.bf16.msra.mxu0 %v941
        %964 = vmatpush.bf16.msra.mxu0 %v940
        %965 = vmatpush.bf16.msra.mxu0 %v939
        %966 = vmatmul.bf16.gmra.mxu0 %v947
        %v967 = vpop.f32.mrf.mxu0
        %v968 = vadd.f32 0.0, %v967
        %v969 = vpop.f32.mrf.mxu0
        %v970 = vadd.f32 0.0, %v969
        %971 = vmatmul.bf16.gmra.mxu0 %v950
        %v972 = vpop.f32.mrf.mxu0
        %v973 = vadd.f32 0.0, %v972
        %v974 = vpop.f32.mrf.mxu0
        %v975 = vadd.f32 0.0, %v974
        %976 = vmatmul.bf16.gmra.mxu0 %v953
        %v977 = vpop.f32.mrf.mxu0
        %v978 = vadd.f32 0.0, %v977
        %v979 = vpop.f32.mrf.mxu0
        %v980 = vadd.f32 0.0, %v979
        %981 = vmatmul.bf16.gmra.mxu0 %v956
        %v982 = vpop.f32.mrf.mxu0
        %v983 = vadd.f32 0.0, %v982
        %v984 = vpop.f32.mrf.mxu0
        %v985 = vadd.f32 0.0, %v984
        %986 = vdwg.mxu0
        %v988 = vunpack.c.l.b16 %v885
        %v989 = vpack.c.b16 %v915, %v988
        %v990 = vpack.c.b16 %v917, %v916
        %v991 = vpack.c.b16 %v919, %v918
        %v992 = vpack.c.b16 %v921, %v920
        %v999 = vunpack.c.l.b16 %v893
        %v1000 = vunpack.c.l.b16 %v894
        %v1001 = vunpack.c.l.b16 %v895
        %v1002 = vunpack.c.l.b16 %v896
        %v1003 = vunpack.c.l.b16 %v897
        %v1004 = vunpack.c.l.b16 %v898
        %v1005 = vpack.c.b16 %v1000, %v999
        %v1006 = vpack.c.b16 %v1002, %v1001
        %v1007 = vpack.c.b16 %v1004, %v1003
        %v1012 = vsel %vm945, %v989, 0
        %v1015 = vsel %vm945, %v990, 0
        %v1018 = vsel %vm945, %v991, 0
        %v1021 = vsel %vm945, %v992, 0
        %1023 = vmatpush.bf16.msra.mxu0 0
        %1024 = vmatpush.bf16.msra.mxu0 0
        %1025 = vmatpush.bf16.msra.mxu0 0
        %1026 = vmatpush.bf16.msra.mxu0 0
        %1027 = vmatpush.bf16.msra.mxu0 0
        %1028 = vmatpush.bf16.msra.mxu0 %v1007
        %1029 = vmatpush.bf16.msra.mxu0 %v1006
        %1030 = vmatpush.bf16.msra.mxu0 %v1005
        %1031 = vmatmul.bf16.gmra.mxu0 %v1012
        %v1032 = vpop.f32.mrf.mxu0
        %v1033 = vadd.f32 %v968, %v1032
        %v1034 = vpop.f32.mrf.mxu0
        %v1035 = vadd.f32 %v970, %v1034
        %1036 = vmatmul.bf16.gmra.mxu0 %v1015
        %v1037 = vpop.f32.mrf.mxu0
        %v1038 = vadd.f32 %v973, %v1037
        %v1039 = vpop.f32.mrf.mxu0
        %v1040 = vadd.f32 %v975, %v1039
        %1041 = vmatmul.bf16.gmra.mxu0 %v1018
        %v1042 = vpop.f32.mrf.mxu0
        %v1043 = vadd.f32 %v978, %v1042
        %v1044 = vpop.f32.mrf.mxu0
        %v1045 = vadd.f32 %v980, %v1044
        %1046 = vmatmul.bf16.gmra.mxu0 %v1021
        %v1047 = vpop.f32.mrf.mxu0
        %v1048 = vadd.f32 %v983, %v1047
        %v1049 = vpop.f32.mrf.mxu0
        %v1050 = vadd.f32 %v985, %v1049
        %1051 = vdwg.mxu0
        %v1052 = vld [vmem:[#allocation3 + $0xc] sm:$0xf]
        %v1053 = vld [vmem:[#allocation3 + $0x10] sm:$0xf]
        %v1054 = vld [vmem:[#allocation3 + $0x14] sm:$0xf]
        %v1055 = vld [vmem:[#allocation3 + $0x18] sm:$0xf]
        %v1056 = vld [vmem:[#allocation3 + $0x1c] sm:$0xf]
        %v1057 = vld [vmem:[#allocation3 + $0x20] sm:$0xf]
        %v1058 = vld [vmem:[#allocation3 + $0x24] sm:$0xf]
        %v1059 = vld [vmem:[#allocation3 + $0x28] sm:$0xf]
        %s1060 = scalar_lea.vmem %s439, 80
        %v1061 = vld [vmem:[%s1060] sm:$0xf]
        %v1062 = vld [vmem:[%s1060 + $0x4] sm:$0xf]
        %v1063 = vld [vmem:[%s1060 + $0x8] sm:$0xf]
        %v1064 = vld [vmem:[%s1060 + $0xc] sm:$0xf]
        %v1065 = vld [vmem:[%s1060 + $0x10] sm:$0xf]
        %v1066 = vld [vmem:[%s1060 + $0x14] sm:$0xf]
        %v1075 = vunpack.c.l.b16 %v1052
        %v1076 = vunpack.c.l.b16 %v1053
        %v1077 = vunpack.c.l.b16 %v1054
        %v1078 = vunpack.c.l.b16 %v1055
        %v1079 = vunpack.c.l.b16 %v1056
        %v1080 = vunpack.c.l.b16 %v1057
        %v1081 = vunpack.c.l.b16 %v1058
        %v1082 = vunpack.c.l.b16 %v1059
        %v1083 = vpack.c.b16 %v1076, %v1075
        %v1084 = vpack.c.b16 %v1078, %v1077
        %v1085 = vpack.c.b16 %v1080, %v1079
        %v1086 = vpack.c.b16 %v1082, %v1081
        %v1093 = vunpack.c.l.b16 %v1061
        %v1094 = vunpack.c.l.b16 %v1062
        %v1095 = vunpack.c.l.b16 %v1063
        %v1096 = vunpack.c.l.b16 %v1064
        %v1097 = vunpack.c.l.b16 %v1065
        %v1098 = vunpack.c.l.b16 %v1066
        %v1099 = vpack.c.b16 %v1094, %v1093
        %v1100 = vpack.c.b16 %v1096, %v1095
        %v1101 = vpack.c.b16 %v1098, %v1097
        %v1106 = vsel %vm945, %v1083, 0
        %v1109 = vsel %vm945, %v1084, 0
        %v1112 = vsel %vm945, %v1085, 0
        %v1115 = vsel %vm945, %v1086, 0
        %1117 = vmatpush.bf16.msra.mxu0 0
        %1118 = vmatpush.bf16.msra.mxu0 0
        %1119 = vmatpush.bf16.msra.mxu0 0
        %1120 = vmatpush.bf16.msra.mxu0 0
        %1121 = vmatpush.bf16.msra.mxu0 0
        %1122 = vmatpush.bf16.msra.mxu0 %v1101
        %1123 = vmatpush.bf16.msra.mxu0 %v1100
        %1124 = vmatpush.bf16.msra.mxu0 %v1099
        %1125 = vmatmul.bf16.gmra.mxu0 %v1106
        %v1126 = vpop.f32.mrf.mxu0
        %v1127 = vadd.f32 0.0, %v1126
        %v1128 = vpop.f32.mrf.mxu0
        %v1129 = vadd.f32 0.0, %v1128
        %1130 = vmatmul.bf16.gmra.mxu0 %v1109
        %v1131 = vpop.f32.mrf.mxu0
        %v1132 = vadd.f32 0.0, %v1131
        %v1133 = vpop.f32.mrf.mxu0
        %v1134 = vadd.f32 0.0, %v1133
        %1135 = vmatmul.bf16.gmra.mxu0 %v1112
        %v1136 = vpop.f32.mrf.mxu0
        %v1137 = vadd.f32 0.0, %v1136
        %v1138 = vpop.f32.mrf.mxu0
        %v1139 = vadd.f32 0.0, %v1138
        %1140 = vmatmul.bf16.gmra.mxu0 %v1115
        %v1141 = vpop.f32.mrf.mxu0
        %v1142 = vadd.f32 0.0, %v1141
        %v1143 = vpop.f32.mrf.mxu0
        %v1144 = vadd.f32 0.0, %v1143
        %1145 = vdwg.mxu0
        %v1146 = vadd.f32 %v1033, %v1127
        %v1147 = vadd.f32 %v1035, %v1129
        %v1148 = vadd.f32 %v1038, %v1132
        %v1149 = vadd.f32 %v1040, %v1134
        %v1150 = vadd.f32 %v1043, %v1137
        %v1151 = vadd.f32 %v1045, %v1139
        %v1152 = vadd.f32 %v1048, %v1142
        %v1153 = vadd.f32 %v1050, %v1144
        %v1154 = vld [vmem:[%s442] sm:$0x1]
        %v1156 = vperm.slane %v1154, 0
        %v1158 = vadd.f32 %v1146, %v1156
        %v1159 = vadd.f32 %v1147, %v1156
        %v1160 = vadd.f32 %v1148, %v1156
        %v1161 = vadd.f32 %v1149, %v1156
        %v1162 = vadd.f32 %v1150, %v1156
        %v1163 = vadd.f32 %v1151, %v1156
        %v1164 = vadd.f32 %v1152, %v1156
        %v1165 = vadd.f32 %v1153, %v1156
        %vm1166 = vcmask 64512
        %v1167 = vsel %vm1166, %v1158, 0.0
        %v1168 = vsel %vm1166, %v1159, 0.0
        %v1169 = vadd.f32 %v1167, %v1168
        %v1170 = vsel %vm1166, %v1160, 0.0
        %v1171 = vadd.f32 %v1169, %v1170
        %v1172 = vsel %vm1166, %v1161, 0.0
        %v1173 = vadd.f32 %v1171, %v1172
        %v1174 = vsel %vm1166, %v1162, 0.0
        %v1175 = vadd.f32 %v1173, %v1174
        %v1176 = vsel %vm1166, %v1163, 0.0
        %v1177 = vadd.f32 %v1175, %v1176
        %v1178 = vsel %vm1166, %v1164, 0.0
        %v1179 = vadd.f32 %v1177, %v1178
        %v1180 = vsel %vm1166, %v1165, 0.0
        %v1181 = vadd.f32 %v1179, %v1180
        %v1182 = vrot.slane %v1181, 4
        %v1183 = vadd.f32 %v1181, %v1182
        %v1184 = vrot.slane %v1183, 2
        %v1185 = vadd.f32 %v1183, %v1184
        %v1186 = vrot.slane %v1185, 1
        %v1187 = vadd.f32 %v1185, %v1186
        %v1188 = vmul.f32 %v1158, %v1158
        %v1189 = vmul.f32 %v1159, %v1159
        %v1190 = vmul.f32 %v1160, %v1160
        %v1191 = vmul.f32 %v1161, %v1161
        %v1192 = vmul.f32 %v1162, %v1162
        %v1193 = vmul.f32 %v1163, %v1163
        %v1194 = vmul.f32 %v1164, %v1164
        %v1195 = vmul.f32 %v1165, %v1165
        %v1196 = vsel %vm1166, %v1188, 0.0
        %v1197 = vsel %vm1166, %v1189, 0.0
        %v1198 = vadd.f32 %v1196, %v1197
        %v1199 = vsel %vm1166, %v1190, 0.0
        %v1200 = vadd.f32 %v1198, %v1199
        %v1201 = vsel %vm1166, %v1191, 0.0
        %v1202 = vadd.f32 %v1200, %v1201
        %v1203 = vsel %vm1166, %v1192, 0.0
        %v1204 = vadd.f32 %v1202, %v1203
        %v1205 = vsel %vm1166, %v1193, 0.0
        %v1206 = vadd.f32 %v1204, %v1205
        %v1207 = vsel %vm1166, %v1194, 0.0
        %v1208 = vadd.f32 %v1206, %v1207
        %v1209 = vsel %vm1166, %v1195, 0.0
        %v1210 = vadd.f32 %v1208, %v1209
        %v1211 = vrot.slane %v1210, 4
        %v1212 = vadd.f32 %v1210, %v1211
        %v1213 = vrot.slane %v1212, 2
        %v1214 = vadd.f32 %v1212, %v1213
        %v1215 = vrot.slane %v1214, 1
        %v1216 = vadd.f32 %v1214, %v1215
        %vm1217 = vcmask 1040384
        %v1218 = vsel %vm1217, %v1187, %v1216
        %v1219 = vld [vmem:[%s5] sm:$0xff]
        %v1221 = vsel %vm1166, %v1218, 0
        %1223 = vmatpush.msra.mxu0 0.0
        %1224 = vmatpush.msra.mxu0 0.0
        %1225 = vmatpush.msra.mxu0 0.0
        %1226 = vmatpush.msra.mxu0 0.0
        %1227 = vmatpush.msra.mxu0 0.0
        %1228 = vmatpush.msra.mxu0 0.0
        %1229 = vmatpush.msra.mxu0 0.0
        %1230 = vmatpush.msra.mxu0 0.0
        %1231 = vmatpush.msra.mxu0 0.0
        %1232 = vmatpush.msra.mxu0 0.0
        %1233 = vmatpush.msra.mxu0 0.0
        %1234 = vmatpush.msra.mxu0 0.0
        %1235 = vmatpush.msra.mxu0 0.0
        %1236 = vmatpush.msra.mxu0 0.0
        %1237 = vmatpush.msra.mxu0 0.0
        %1238 = vmatpush.msra.mxu0 %v1219
        %1239 = vmatmul.f32.gmra.mxu0 %v1221
        %v1240 = vpop.f32.mrf.mxu0
        %v1241 = vadd.f32 0.0, %v1240
        %1242 = vdwg.mxu0
        %v1243 = vmul.f32 %v1241, 0.0078125
        %v1244 = vmul.f32 %v1243, %v1243
        %v1246 = vrot.slane %v1244, 7
        %v1248 = vsub.f32 %v1243, %v1246
        %v1249 = vmax.f32 %v1248, 0.0
        %v1250 = vperm.slane %v1243, 0
        %v1251 = vsub.f32 %v1158, %v1250
        %v1252 = vsub.f32 %v1159, %v1250
        %v1253 = vsub.f32 %v1160, %v1250
        %v1254 = vsub.f32 %v1161, %v1250
        %v1255 = vsub.f32 %v1162, %v1250
        %v1256 = vsub.f32 %v1163, %v1250
        %v1257 = vsub.f32 %v1164, %v1250
        %v1258 = vsub.f32 %v1165, %v1250
        %v1259 = vadd.f32 %v1249, 1e-05
        %v1260 = vrsqrt.pop %v1259
        %v1261 = vmul.f32 %v1260, %v1259
        %v1262 = vmul.f32 %v1261, %v1260
        %v1263 = vmul.f32 0.5, %v1262
        %v1264 = vsub.f32 1.5, %v1263
        %v1265 = vmul.f32 %v1260, %v1264
        %vm1266 = vweird.f32 %v1259
        %vm1267 = vweird.f32 %v1260
        %vm1268 = vmor %vm1266, %vm1267
        %v1269 = vsel %vm1268, %v1260, %v1265
        %v1270 = vperm.slane %v1269, 1
        %v1271 = vmul.f32 %v1251, %v1270
        %v1272 = vmul.f32 %v1252, %v1270
        %v1273 = vmul.f32 %v1253, %v1270
        %v1274 = vmul.f32 %v1254, %v1270
        %v1275 = vmul.f32 %v1255, %v1270
        %v1276 = vmul.f32 %v1256, %v1270
        %v1277 = vmul.f32 %v1257, %v1270
        %v1278 = vmul.f32 %v1258, %v1270
        %v1279 = vld [vmem:[%s445] sm:$0x1]
        %v1281 = vperm.slane %v1279, 0
        %v1283 = vmul.f32 %v1271, %v1281
        %v1284 = vmul.f32 %v1272, %v1281
        %v1285 = vmul.f32 %v1273, %v1281
        %v1286 = vmul.f32 %v1274, %v1281
        %v1287 = vmul.f32 %v1275, %v1281
        %v1288 = vmul.f32 %v1276, %v1281
        %v1289 = vmul.f32 %v1277, %v1281
        %v1290 = vmul.f32 %v1278, %v1281
        %v1291 = vld [vmem:[%s448] sm:$0x1]
        %v1293 = vperm.slane %v1291, 0
        %v1295 = vadd.f32 %v1283, %v1293
        %v1296 = vadd.f32 %v1284, %v1293
        %v1297 = vadd.f32 %v1285, %v1293
        %v1298 = vadd.f32 %v1286, %v1293
        %v1299 = vadd.f32 %v1287, %v1293
        %v1300 = vadd.f32 %v1288, %v1293
        %v1301 = vadd.f32 %v1289, %v1293
        %v1302 = vadd.f32 %v1290, %v1293
        %vm1303 = vcmp.ge.f32.partialorder %v1295, 0.0
        %vm1304 = vcmp.ge.f32.partialorder %v1296, 0.0
        %vm1305 = vcmp.ge.f32.partialorder %v1297, 0.0
        %vm1306 = vcmp.ge.f32.partialorder %v1298, 0.0
        %vm1307 = vcmp.ge.f32.partialorder %v1299, 0.0
        %vm1308 = vcmp.ge.f32.partialorder %v1300, 0.0
        %vm1309 = vcmp.ge.f32.partialorder %v1301, 0.0
        %vm1310 = vcmp.ge.f32.partialorder %v1302, 0.0
        %v1311 = vmul.f32 %v1295, 0.2
        %v1312 = vmul.f32 %v1296, 0.2
        %v1313 = vmul.f32 %v1297, 0.2
        %v1314 = vmul.f32 %v1298, 0.2
        %v1315 = vmul.f32 %v1299, 0.2
        %v1316 = vmul.f32 %v1300, 0.2
        %v1317 = vmul.f32 %v1301, 0.2
        %v1318 = vmul.f32 %v1302, 0.2
        %v1319 = vsel %vm1303, %v1295, %v1311
        %v1320 = vsel %vm1304, %v1296, %v1312
        %v1321 = vsel %vm1305, %v1297, %v1313
        %v1322 = vsel %vm1306, %v1298, %v1314
        %v1323 = vsel %vm1307, %v1299, %v1315
        %v1324 = vsel %vm1308, %v1300, %v1316
        %v1325 = vsel %vm1309, %v1301, %v1317
        %v1326 = vsel %vm1310, %v1302, %v1318
        %1327 = vst.msk [vmem:[#allocation4] sm:$0xff] %vm1166, %v1319
        %1328 = vst.msk [vmem:[#allocation4 + $0x8] sm:$0xff] %vm1166, %v1320
        %1329 = vst.msk [vmem:[#allocation4 + $0x10] sm:$0xff] %vm1166, %v1321
        %1330 = vst.msk [vmem:[#allocation4 + $0x18] sm:$0xff] %vm1166, %v1322
        %1331 = vst.msk [vmem:[#allocation4 + $0x20] sm:$0xff] %vm1166, %v1323
        %1332 = vst.msk [vmem:[#allocation4 + $0x28] sm:$0xff] %vm1166, %v1324
        %1333 = vst.msk [vmem:[#allocation4 + $0x30] sm:$0xff] %vm1166, %v1325
        %1334 = vst.msk [vmem:[#allocation4 + $0x38] sm:$0xff] %vm1166, %v1326
      $region64: #{mid_incepnet_forward.7} parent=59 // pred_fallthru
        _
      %p1335 = scmp.eq.s32.totalorder %s26, 1
      // Predicated region
      $region65: #{mid_incepnet_forward.7} parent=59 // pred_check
        %p1336 = pneg %p1335
      $region66: #{mid_incepnet_forward.7} parent=59 // pred_check_branch
        %1338 = sbr.rel (%p1336) target = $region68
      $region67: #{mid_incepnet_forward.7} parent=59 // pred_region
        %v1339 = vld [vmem:[#allocation2] sm:$0xff]
        %v1340 = vld [vmem:[#allocation2 + $0x10] sm:$0xff]
        %v1341 = vld [vmem:[#allocation2 + $0x20] sm:$0xff]
        %v1342 = vld [vmem:[#allocation2 + $0x30] sm:$0xff]
        %v1343 = vld [vmem:[#allocation2 + $0x40] sm:$0xff]
        %v1344 = vld [vmem:[#allocation2 + $0x50] sm:$0xff]
        %v1345 = vld [vmem:[#allocation2 + $0x60] sm:$0xff]
        %v1346 = vld [vmem:[#allocation2 + $0x70] sm:$0xff]
        %v1347 = vld [vmem:[#allocation2 + $0x80] sm:$0xff]
        %v1348 = vld [vmem:[#allocation2 + $0x90] sm:$0xff]
        %v1349 = vld [vmem:[#allocation2 + $0xa0] sm:$0xff]
        %v1350 = vld [vmem:[#allocation2 + $0xb0] sm:$0xff]
        %v1351 = vpack.c.bf16 %v1339, %v1339
        %v1352 = vpack.c.bf16 %v1340, %v1340
        %v1353 = vpack.c.bf16 %v1341, %v1341
        %v1354 = vpack.c.bf16 %v1342, %v1342
        %v1355 = vpack.c.bf16 %v1343, %v1343
        %v1356 = vpack.c.bf16 %v1344, %v1344
        %v1357 = vpack.c.bf16 %v1345, %v1345
        %v1358 = vpack.c.bf16 %v1346, %v1346
        %v1359 = vpack.c.bf16 %v1347, %v1347
        %v1360 = vpack.c.bf16 %v1348, %v1348
        %v1361 = vpack.c.bf16 %v1349, %v1349
        %v1362 = vpack.c.bf16 %v1350, %v1350
        %vm1363 = vcmask 125952
        %1364 = vst.msk [vmem:[#allocation3] sm:$0xf] %vm1363, %v1351
        %1365 = vst.msk [vmem:[#allocation3 + $0x4] sm:$0xf] %vm1363, %v1352
        %1366 = vst.msk [vmem:[#allocation3 + $0x8] sm:$0xf] %vm1363, %v1353
        %1367 = vst.msk [vmem:[#allocation3 + $0xc] sm:$0xf] %vm1363, %v1354
        %1368 = vst.msk [vmem:[#allocation3 + $0x10] sm:$0xf] %vm1363, %v1355
        %1369 = vst.msk [vmem:[#allocation3 + $0x14] sm:$0xf] %vm1363, %v1356
        %1370 = vst.msk [vmem:[#allocation3 + $0x18] sm:$0xf] %vm1363, %v1357
        %1371 = vst.msk [vmem:[#allocation3 + $0x1c] sm:$0xf] %vm1363, %v1358
        %1372 = vst.msk [vmem:[#allocation3 + $0x20] sm:$0xf] %vm1363, %v1359
        %1373 = vst.msk [vmem:[#allocation3 + $0x24] sm:$0xf] %vm1363, %v1360
        %1374 = vst.msk [vmem:[#allocation3 + $0x28] sm:$0xf] %vm1363, %v1361
        %1375 = vst.msk [vmem:[#allocation3 + $0x2c] sm:$0xf] %vm1363, %v1362
        %v1376 = vld [vmem:[#allocation2 + $0x1] sm:$0xff]
        %v1377 = vld [vmem:[#allocation2 + $0x11] sm:$0xff]
        %v1378 = vld [vmem:[#allocation2 + $0x21] sm:$0xff]
        %v1379 = vld [vmem:[#allocation2 + $0x31] sm:$0xff]
        %v1380 = vld [vmem:[#allocation2 + $0x41] sm:$0xff]
        %v1381 = vld [vmem:[#allocation2 + $0x51] sm:$0xff]
        %v1382 = vld [vmem:[#allocation2 + $0x61] sm:$0xff]
        %v1383 = vld [vmem:[#allocation2 + $0x71] sm:$0xff]
        %v1384 = vld [vmem:[#allocation2 + $0x81] sm:$0xff]
        %v1385 = vld [vmem:[#allocation2 + $0x91] sm:$0xff]
        %v1386 = vld [vmem:[#allocation2 + $0xa1] sm:$0xff]
        %v1387 = vld [vmem:[#allocation2 + $0xb1] sm:$0xff]
        %v1388 = vpack.c.bf16 %v1376, %v1376
        %v1389 = vpack.c.bf16 %v1377, %v1377
        %v1390 = vpack.c.bf16 %v1378, %v1378
        %v1391 = vpack.c.bf16 %v1379, %v1379
        %v1392 = vpack.c.bf16 %v1380, %v1380
        %v1393 = vpack.c.bf16 %v1381, %v1381
        %v1394 = vpack.c.bf16 %v1382, %v1382
        %v1395 = vpack.c.bf16 %v1383, %v1383
        %v1396 = vpack.c.bf16 %v1384, %v1384
        %v1397 = vpack.c.bf16 %v1385, %v1385
        %v1398 = vpack.c.bf16 %v1386, %v1386
        %v1399 = vpack.c.bf16 %v1387, %v1387
        %1412 = vrot.lane.b32.xlu0 %v1388, 16
        %v1413 = vpop.permute.xlu0 %1412
        %1414 = vrot.lane.b32.xlu0 %v1389, 16
        %v1415 = vpop.permute.xlu0 %1414
        %1416 = vrot.lane.b32.xlu0 %v1390, 16
        %v1417 = vpop.permute.xlu0 %1416
        %1418 = vrot.lane.b32.xlu0 %v1391, 16
        %v1419 = vpop.permute.xlu0 %1418
        %1420 = vrot.lane.b32.xlu0 %v1392, 16
        %v1421 = vpop.permute.xlu0 %1420
        %1422 = vrot.lane.b32.xlu0 %v1393, 16
        %v1423 = vpop.permute.xlu0 %1422
        %1424 = vrot.lane.b32.xlu0 %v1394, 16
        %v1425 = vpop.permute.xlu0 %1424
        %1426 = vrot.lane.b32.xlu0 %v1395, 16
        %v1427 = vpop.permute.xlu0 %1426
        %1428 = vrot.lane.b32.xlu0 %v1396, 16
        %v1429 = vpop.permute.xlu0 %1428
        %1430 = vrot.lane.b32.xlu0 %v1397, 16
        %v1431 = vpop.permute.xlu0 %1430
        %1432 = vrot.lane.b32.xlu0 %v1398, 16
        %v1433 = vpop.permute.xlu0 %1432
        %1434 = vrot.lane.b32.xlu0 %v1399, 16
        %v1435 = vpop.permute.xlu0 %1434
        %vm1448 = vcmask 257152
        %1449 = vst.msk [vmem:[#allocation3] sm:$0xf] %vm1448, %v1413
        %1450 = vst.msk [vmem:[#allocation3 + $0x4] sm:$0xf] %vm1448, %v1415
        %1451 = vst.msk [vmem:[#allocation3 + $0x8] sm:$0xf] %vm1448, %v1417
        %1452 = vst.msk [vmem:[#allocation3 + $0xc] sm:$0xf] %vm1448, %v1419
        %1453 = vst.msk [vmem:[#allocation3 + $0x10] sm:$0xf] %vm1448, %v1421
        %1454 = vst.msk [vmem:[#allocation3 + $0x14] sm:$0xf] %vm1448, %v1423
        %1455 = vst.msk [vmem:[#allocation3 + $0x18] sm:$0xf] %vm1448, %v1425
        %1456 = vst.msk [vmem:[#allocation3 + $0x1c] sm:$0xf] %vm1448, %v1427
        %1457 = vst.msk [vmem:[#allocation3 + $0x20] sm:$0xf] %vm1448, %v1429
        %1458 = vst.msk [vmem:[#allocation3 + $0x24] sm:$0xf] %vm1448, %v1431
        %1459 = vst.msk [vmem:[#allocation3 + $0x28] sm:$0xf] %vm1448, %v1433
        %1460 = vst.msk [vmem:[#allocation3 + $0x2c] sm:$0xf] %vm1448, %v1435
        %v1461 = vld [vmem:[#allocation2 + $0x2] sm:$0xff]
        %v1462 = vld [vmem:[#allocation2 + $0x12] sm:$0xff]
        %v1463 = vld [vmem:[#allocation2 + $0x22] sm:$0xff]
        %v1464 = vld [vmem:[#allocation2 + $0x32] sm:$0xff]
        %v1465 = vld [vmem:[#allocation2 + $0x42] sm:$0xff]
        %v1466 = vld [vmem:[#allocation2 + $0x52] sm:$0xff]
        %v1467 = vld [vmem:[#allocation2 + $0x62] sm:$0xff]
        %v1468 = vld [vmem:[#allocation2 + $0x72] sm:$0xff]
        %v1469 = vld [vmem:[#allocation2 + $0x82] sm:$0xff]
        %v1470 = vld [vmem:[#allocation2 + $0x92] sm:$0xff]
        %v1471 = vld [vmem:[#allocation2 + $0xa2] sm:$0xff]
        %v1472 = vld [vmem:[#allocation2 + $0xb2] sm:$0xff]
        %v1473 = vpack.c.bf16 %v1461, %v1461
        %v1474 = vpack.c.bf16 %v1462, %v1462
        %v1475 = vpack.c.bf16 %v1463, %v1463
        %v1476 = vpack.c.bf16 %v1464, %v1464
        %v1477 = vpack.c.bf16 %v1465, %v1465
        %v1478 = vpack.c.bf16 %v1466, %v1466
        %v1479 = vpack.c.bf16 %v1467, %v1467
        %v1480 = vpack.c.bf16 %v1468, %v1468
        %v1481 = vpack.c.bf16 %v1469, %v1469
        %v1482 = vpack.c.bf16 %v1470, %v1470
        %v1483 = vpack.c.bf16 %v1471, %v1471
        %v1484 = vpack.c.bf16 %v1472, %v1472
        %1497 = vrot.lane.b32.xlu0 %v1473, 32
        %v1498 = vpop.permute.xlu0 %1497
        %1499 = vrot.lane.b32.xlu0 %v1474, 32
        %v1500 = vpop.permute.xlu0 %1499
        %1501 = vrot.lane.b32.xlu0 %v1475, 32
        %v1502 = vpop.permute.xlu0 %1501
        %1503 = vrot.lane.b32.xlu0 %v1476, 32
        %v1504 = vpop.permute.xlu0 %1503
        %1505 = vrot.lane.b32.xlu0 %v1477, 32
        %v1506 = vpop.permute.xlu0 %1505
        %1507 = vrot.lane.b32.xlu0 %v1478, 32
        %v1508 = vpop.permute.xlu0 %1507
        %1509 = vrot.lane.b32.xlu0 %v1479, 32
        %v1510 = vpop.permute.xlu0 %1509
        %1511 = vrot.lane.b32.xlu0 %v1480, 32
        %v1512 = vpop.permute.xlu0 %1511
        %1513 = vrot.lane.b32.xlu0 %v1481, 32
        %v1514 = vpop.permute.xlu0 %1513
        %1515 = vrot.lane.b32.xlu0 %v1482, 32
        %v1516 = vpop.permute.xlu0 %1515
        %1517 = vrot.lane.b32.xlu0 %v1483, 32
        %v1518 = vpop.permute.xlu0 %1517
        %1519 = vrot.lane.b32.xlu0 %v1484, 32
        %v1520 = vpop.permute.xlu0 %1519
        %vm1533 = vcmask 388352
        %1534 = vst.msk [vmem:[#allocation3] sm:$0xf] %vm1533, %v1498
        %1535 = vst.msk [vmem:[#allocation3 + $0x4] sm:$0xf] %vm1533, %v1500
        %1536 = vst.msk [vmem:[#allocation3 + $0x8] sm:$0xf] %vm1533, %v1502
        %1537 = vst.msk [vmem:[#allocation3 + $0xc] sm:$0xf] %vm1533, %v1504
        %1538 = vst.msk [vmem:[#allocation3 + $0x10] sm:$0xf] %vm1533, %v1506
        %1539 = vst.msk [vmem:[#allocation3 + $0x14] sm:$0xf] %vm1533, %v1508
        %1540 = vst.msk [vmem:[#allocation3 + $0x18] sm:$0xf] %vm1533, %v1510
        %1541 = vst.msk [vmem:[#allocation3 + $0x1c] sm:$0xf] %vm1533, %v1512
        %1542 = vst.msk [vmem:[#allocation3 + $0x20] sm:$0xf] %vm1533, %v1514
        %1543 = vst.msk [vmem:[#allocation3 + $0x24] sm:$0xf] %vm1533, %v1516
        %1544 = vst.msk [vmem:[#allocation3 + $0x28] sm:$0xf] %vm1533, %v1518
        %1545 = vst.msk [vmem:[#allocation3 + $0x2c] sm:$0xf] %vm1533, %v1520
        %v1546 = vld [vmem:[#allocation2 + $0x3] sm:$0xff]
        %v1547 = vld [vmem:[#allocation2 + $0x13] sm:$0xff]
        %v1548 = vld [vmem:[#allocation2 + $0x23] sm:$0xff]
        %v1549 = vld [vmem:[#allocation2 + $0x33] sm:$0xff]
        %v1550 = vld [vmem:[#allocation2 + $0x43] sm:$0xff]
        %v1551 = vld [vmem:[#allocation2 + $0x53] sm:$0xff]
        %v1552 = vld [vmem:[#allocation2 + $0x63] sm:$0xff]
        %v1553 = vld [vmem:[#allocation2 + $0x73] sm:$0xff]
        %v1554 = vld [vmem:[#allocation2 + $0x83] sm:$0xff]
        %v1555 = vld [vmem:[#allocation2 + $0x93] sm:$0xff]
        %v1556 = vld [vmem:[#allocation2 + $0xa3] sm:$0xff]
        %v1557 = vld [vmem:[#allocation2 + $0xb3] sm:$0xff]
        %v1558 = vpack.c.bf16 %v1546, %v1546
        %v1559 = vpack.c.bf16 %v1547, %v1547
        %v1560 = vpack.c.bf16 %v1548, %v1548
        %v1561 = vpack.c.bf16 %v1549, %v1549
        %v1562 = vpack.c.bf16 %v1550, %v1550
        %v1563 = vpack.c.bf16 %v1551, %v1551
        %v1564 = vpack.c.bf16 %v1552, %v1552
        %v1565 = vpack.c.bf16 %v1553, %v1553
        %v1566 = vpack.c.bf16 %v1554, %v1554
        %v1567 = vpack.c.bf16 %v1555, %v1555
        %v1568 = vpack.c.bf16 %v1556, %v1556
        %v1569 = vpack.c.bf16 %v1557, %v1557
        %1582 = vrot.lane.b32.xlu0 %v1558, 48
        %v1583 = vpop.permute.xlu0 %1582
        %1584 = vrot.lane.b32.xlu0 %v1559, 48
        %v1585 = vpop.permute.xlu0 %1584
        %1586 = vrot.lane.b32.xlu0 %v1560, 48
        %v1587 = vpop.permute.xlu0 %1586
        %1588 = vrot.lane.b32.xlu0 %v1561, 48
        %v1589 = vpop.permute.xlu0 %1588
        %1590 = vrot.lane.b32.xlu0 %v1562, 48
        %v1591 = vpop.permute.xlu0 %1590
        %1592 = vrot.lane.b32.xlu0 %v1563, 48
        %v1593 = vpop.permute.xlu0 %1592
        %1594 = vrot.lane.b32.xlu0 %v1564, 48
        %v1595 = vpop.permute.xlu0 %1594
        %1596 = vrot.lane.b32.xlu0 %v1565, 48
        %v1597 = vpop.permute.xlu0 %1596
        %1598 = vrot.lane.b32.xlu0 %v1566, 48
        %v1599 = vpop.permute.xlu0 %1598
        %1600 = vrot.lane.b32.xlu0 %v1567, 48
        %v1601 = vpop.permute.xlu0 %1600
        %1602 = vrot.lane.b32.xlu0 %v1568, 48
        %v1603 = vpop.permute.xlu0 %1602
        %1604 = vrot.lane.b32.xlu0 %v1569, 48
        %v1605 = vpop.permute.xlu0 %1604
        %vm1618 = vcmask 519552
        %1619 = vst.msk [vmem:[#allocation3] sm:$0xf] %vm1618, %v1583
        %1620 = vst.msk [vmem:[#allocation3 + $0x4] sm:$0xf] %vm1618, %v1585
        %1621 = vst.msk [vmem:[#allocation3 + $0x8] sm:$0xf] %vm1618, %v1587
        %1622 = vst.msk [vmem:[#allocation3 + $0xc] sm:$0xf] %vm1618, %v1589
        %1623 = vst.msk [vmem:[#allocation3 + $0x10] sm:$0xf] %vm1618, %v1591
        %1624 = vst.msk [vmem:[#allocation3 + $0x14] sm:$0xf] %vm1618, %v1593
        %1625 = vst.msk [vmem:[#allocation3 + $0x18] sm:$0xf] %vm1618, %v1595
        %1626 = vst.msk [vmem:[#allocation3 + $0x1c] sm:$0xf] %vm1618, %v1597
        %1627 = vst.msk [vmem:[#allocation3 + $0x20] sm:$0xf] %vm1618, %v1599
        %1628 = vst.msk [vmem:[#allocation3 + $0x24] sm:$0xf] %vm1618, %v1601
        %1629 = vst.msk [vmem:[#allocation3 + $0x28] sm:$0xf] %vm1618, %v1603
        %1630 = vst.msk [vmem:[#allocation3 + $0x2c] sm:$0xf] %vm1618, %v1605
        %v1631 = vld [vmem:[#allocation2 + $0x4] sm:$0xff]
        %v1632 = vld [vmem:[#allocation2 + $0x14] sm:$0xff]
        %v1633 = vld [vmem:[#allocation2 + $0x24] sm:$0xff]
        %v1634 = vld [vmem:[#allocation2 + $0x34] sm:$0xff]
        %v1635 = vld [vmem:[#allocation2 + $0x44] sm:$0xff]
        %v1636 = vld [vmem:[#allocation2 + $0x54] sm:$0xff]
        %v1637 = vld [vmem:[#allocation2 + $0x64] sm:$0xff]
        %v1638 = vld [vmem:[#allocation2 + $0x74] sm:$0xff]
        %v1639 = vld [vmem:[#allocation2 + $0x84] sm:$0xff]
        %v1640 = vld [vmem:[#allocation2 + $0x94] sm:$0xff]
        %v1641 = vld [vmem:[#allocation2 + $0xa4] sm:$0xff]
        %v1642 = vld [vmem:[#allocation2 + $0xb4] sm:$0xff]
        %v1643 = vpack.c.bf16 %v1631, %v1631
        %v1644 = vpack.c.bf16 %v1632, %v1632
        %v1645 = vpack.c.bf16 %v1633, %v1633
        %v1646 = vpack.c.bf16 %v1634, %v1634
        %v1647 = vpack.c.bf16 %v1635, %v1635
        %v1648 = vpack.c.bf16 %v1636, %v1636
        %v1649 = vpack.c.bf16 %v1637, %v1637
        %v1650 = vpack.c.bf16 %v1638, %v1638
        %v1651 = vpack.c.bf16 %v1639, %v1639
        %v1652 = vpack.c.bf16 %v1640, %v1640
        %v1653 = vpack.c.bf16 %v1641, %v1641
        %v1654 = vpack.c.bf16 %v1642, %v1642
        %1667 = vrot.lane.b32.xlu0 %v1643, 64
        %v1668 = vpop.permute.xlu0 %1667
        %1669 = vrot.lane.b32.xlu0 %v1644, 64
        %v1670 = vpop.permute.xlu0 %1669
        %1671 = vrot.lane.b32.xlu0 %v1645, 64
        %v1672 = vpop.permute.xlu0 %1671
        %1673 = vrot.lane.b32.xlu0 %v1646, 64
        %v1674 = vpop.permute.xlu0 %1673
        %1675 = vrot.lane.b32.xlu0 %v1647, 64
        %v1676 = vpop.permute.xlu0 %1675
        %1677 = vrot.lane.b32.xlu0 %v1648, 64
        %v1678 = vpop.permute.xlu0 %1677
        %1679 = vrot.lane.b32.xlu0 %v1649, 64
        %v1680 = vpop.permute.xlu0 %1679
        %1681 = vrot.lane.b32.xlu0 %v1650, 64
        %v1682 = vpop.permute.xlu0 %1681
        %1683 = vrot.lane.b32.xlu0 %v1651, 64
        %v1684 = vpop.permute.xlu0 %1683
        %1685 = vrot.lane.b32.xlu0 %v1652, 64
        %v1686 = vpop.permute.xlu0 %1685
        %1687 = vrot.lane.b32.xlu0 %v1653, 64
        %v1688 = vpop.permute.xlu0 %1687
        %1689 = vrot.lane.b32.xlu0 %v1654, 64
        %v1690 = vpop.permute.xlu0 %1689
        %vm1703 = vcmask 650752
        %1704 = vst.msk [vmem:[#allocation3] sm:$0xf] %vm1703, %v1668
        %1705 = vst.msk [vmem:[#allocation3 + $0x4] sm:$0xf] %vm1703, %v1670
        %1706 = vst.msk [vmem:[#allocation3 + $0x8] sm:$0xf] %vm1703, %v1672
        %1707 = vst.msk [vmem:[#allocation3 + $0xc] sm:$0xf] %vm1703, %v1674
        %1708 = vst.msk [vmem:[#allocation3 + $0x10] sm:$0xf] %vm1703, %v1676
        %1709 = vst.msk [vmem:[#allocation3 + $0x14] sm:$0xf] %vm1703, %v1678
        %1710 = vst.msk [vmem:[#allocation3 + $0x18] sm:$0xf] %vm1703, %v1680
        %1711 = vst.msk [vmem:[#allocation3 + $0x1c] sm:$0xf] %vm1703, %v1682
        %1712 = vst.msk [vmem:[#allocation3 + $0x20] sm:$0xf] %vm1703, %v1684
        %1713 = vst.msk [vmem:[#allocation3 + $0x24] sm:$0xf] %vm1703, %v1686
        %1714 = vst.msk [vmem:[#allocation3 + $0x28] sm:$0xf] %vm1703, %v1688
        %1715 = vst.msk [vmem:[#allocation3 + $0x2c] sm:$0xf] %vm1703, %v1690
        %v1716 = vld [vmem:[#allocation3] sm:$0xf]
        %v1717 = vld [vmem:[#allocation3 + $0x4] sm:$0xf]
        %v1718 = vld [vmem:[#allocation3 + $0x8] sm:$0xf]
        %v1719 = vld [vmem:[#allocation3 + $0xc] sm:$0xf]
        %v1720 = vld [vmem:[#allocation3 + $0x10] sm:$0xf]
        %v1721 = vld [vmem:[#allocation3 + $0x14] sm:$0xf]
        %v1722 = vld [vmem:[#allocation3 + $0x18] sm:$0xf]
        %v1723 = vld [vmem:[#allocation3 + $0x1c] sm:$0xf]
        %v1724 = vld [vmem:[%s439] sm:$0xf]
        %v1725 = vld [vmem:[%s439 + $0x4] sm:$0xf]
        %v1726 = vld [vmem:[%s439 + $0x8] sm:$0xf]
        %v1727 = vld [vmem:[%s439 + $0xc] sm:$0xf]
        %v1728 = vld [vmem:[%s439 + $0x10] sm:$0xf]
        %v1729 = vld [vmem:[%s439 + $0x14] sm:$0xf]
        %v1730 = vld [vmem:[%s439 + $0x18] sm:$0xf]
        %v1731 = vld [vmem:[%s439 + $0x1c] sm:$0xf]
        %v1732 = vld [vmem:[%s439 + $0x20] sm:$0xf]
        %v1733 = vld [vmem:[%s439 + $0x24] sm:$0xf]
        %v1734 = vld [vmem:[#allocation3 + $0x20] sm:$0xf]
        %s1735 = scalar_lea.vmem %s439, 40
        %v1736 = vld [vmem:[%s1735] sm:$0xf]
        %v1737 = vld [vmem:[%s1735 + $0x4] sm:$0xf]
        %v1738 = vld [vmem:[%s1735 + $0x8] sm:$0xf]
        %v1739 = vld [vmem:[%s1735 + $0xc] sm:$0xf]
        %v1740 = vld [vmem:[%s1735 + $0x10] sm:$0xf]
        %v1741 = vld [vmem:[%s1735 + $0x14] sm:$0xf]
        %v1742 = vld [vmem:[%s1735 + $0x18] sm:$0xf]
        %v1743 = vld [vmem:[%s1735 + $0x1c] sm:$0xf]
        %v1744 = vld [vmem:[%s1735 + $0x20] sm:$0xf]
        %v1745 = vld [vmem:[%s1735 + $0x24] sm:$0xf]
        %v1754 = vunpack.c.l.b16 %v1717
        %v1755 = vunpack.c.l.b16 %v1718
        %v1756 = vunpack.c.l.b16 %v1719
        %v1757 = vunpack.c.l.b16 %v1720
        %v1758 = vunpack.c.l.b16 %v1721
        %v1759 = vunpack.c.l.b16 %v1722
        %v1760 = vunpack.c.l.b16 %v1723
        %v1761 = vunpack.c.l.b16 %v1734
        %v1762 = vpack.c.b16 %v1755, %v1754
        %v1763 = vpack.c.b16 %v1757, %v1756
        %v1764 = vpack.c.b16 %v1759, %v1758
        %v1765 = vpack.c.b16 %v1761, %v1760
        %v1776 = vunpack.c.l.b16 %v1736
        %v1777 = vunpack.c.l.b16 %v1737
        %v1778 = vunpack.c.l.b16 %v1738
        %v1779 = vunpack.c.l.b16 %v1739
        %v1780 = vunpack.c.l.b16 %v1740
        %v1781 = vunpack.c.l.b16 %v1741
        %v1782 = vunpack.c.l.b16 %v1742
        %v1783 = vunpack.c.l.b16 %v1743
        %v1784 = vunpack.c.l.b16 %v1744
        %v1785 = vunpack.c.l.b16 %v1745
        %v1786 = vpack.c.b16 %v1777, %v1776
        %v1787 = vpack.c.b16 %v1779, %v1778
        %v1788 = vpack.c.b16 %v1781, %v1780
        %v1789 = vpack.c.b16 %v1783, %v1782
        %v1790 = vpack.c.b16 %v1785, %v1784
        %vm1796 = vcmask 654336
        %v1798 = vsel %vm1796, %v1762, 0
        %v1801 = vsel %vm1796, %v1763, 0
        %v1804 = vsel %vm1796, %v1764, 0
        %v1807 = vsel %vm1796, %v1765, 0
        %1809 = vmatpush.bf16.msra.mxu0 0
        %1810 = vmatpush.bf16.msra.mxu0 0
        %1811 = vmatpush.bf16.msra.mxu0 0
        %1812 = vmatpush.bf16.msra.mxu0 %v1790
        %1813 = vmatpush.bf16.msra.mxu0 %v1789
        %1814 = vmatpush.bf16.msra.mxu0 %v1788
        %1815 = vmatpush.bf16.msra.mxu0 %v1787
        %1816 = vmatpush.bf16.msra.mxu0 %v1786
        %1817 = vmatmul.bf16.gmra.mxu0 %v1798
        %v1818 = vpop.f32.mrf.mxu0
        %v1819 = vadd.f32 0.0, %v1818
        %v1820 = vpop.f32.mrf.mxu0
        %v1821 = vadd.f32 0.0, %v1820
        %1822 = vmatmul.bf16.gmra.mxu0 %v1801
        %v1823 = vpop.f32.mrf.mxu0
        %v1824 = vadd.f32 0.0, %v1823
        %v1825 = vpop.f32.mrf.mxu0
        %v1826 = vadd.f32 0.0, %v1825
        %1827 = vmatmul.bf16.gmra.mxu0 %v1804
        %v1828 = vpop.f32.mrf.mxu0
        %v1829 = vadd.f32 0.0, %v1828
        %v1830 = vpop.f32.mrf.mxu0
        %v1831 = vadd.f32 0.0, %v1830
        %1832 = vmatmul.bf16.gmra.mxu0 %v1807
        %v1833 = vpop.f32.mrf.mxu0
        %v1834 = vadd.f32 0.0, %v1833
        %v1835 = vpop.f32.mrf.mxu0
        %v1836 = vadd.f32 0.0, %v1835
        %1837 = vdwg.mxu0
        %v1839 = vunpack.c.l.b16 %v1716
        %v1840 = vpack.c.b16 %v1754, %v1839
        %v1841 = vpack.c.b16 %v1756, %v1755
        %v1842 = vpack.c.b16 %v1758, %v1757
        %v1843 = vpack.c.b16 %v1760, %v1759
        %v1854 = vunpack.c.l.b16 %v1724
        %v1855 = vunpack.c.l.b16 %v1725
        %v1856 = vunpack.c.l.b16 %v1726
        %v1857 = vunpack.c.l.b16 %v1727
        %v1858 = vunpack.c.l.b16 %v1728
        %v1859 = vunpack.c.l.b16 %v1729
        %v1860 = vunpack.c.l.b16 %v1730
        %v1861 = vunpack.c.l.b16 %v1731
        %v1862 = vunpack.c.l.b16 %v1732
        %v1863 = vunpack.c.l.b16 %v1733
        %v1864 = vpack.c.b16 %v1855, %v1854
        %v1865 = vpack.c.b16 %v1857, %v1856
        %v1866 = vpack.c.b16 %v1859, %v1858
        %v1867 = vpack.c.b16 %v1861, %v1860
        %v1868 = vpack.c.b16 %v1863, %v1862
        %v1875 = vsel %vm1796, %v1840, 0
        %v1878 = vsel %vm1796, %v1841, 0
        %v1881 = vsel %vm1796, %v1842, 0
        %v1884 = vsel %vm1796, %v1843, 0
        %1886 = vmatpush.bf16.msra.mxu0 0
        %1887 = vmatpush.bf16.msra.mxu0 0
        %1888 = vmatpush.bf16.msra.mxu0 0
        %1889 = vmatpush.bf16.msra.mxu0 %v1868
        %1890 = vmatpush.bf16.msra.mxu0 %v1867
        %1891 = vmatpush.bf16.msra.mxu0 %v1866
        %1892 = vmatpush.bf16.msra.mxu0 %v1865
        %1893 = vmatpush.bf16.msra.mxu0 %v1864
        %1894 = vmatmul.bf16.gmra.mxu0 %v1875
        %v1895 = vpop.f32.mrf.mxu0
        %v1896 = vadd.f32 %v1819, %v1895
        %v1897 = vpop.f32.mrf.mxu0
        %v1898 = vadd.f32 %v1821, %v1897
        %1899 = vmatmul.bf16.gmra.mxu0 %v1878
        %v1900 = vpop.f32.mrf.mxu0
        %v1901 = vadd.f32 %v1824, %v1900
        %v1902 = vpop.f32.mrf.mxu0
        %v1903 = vadd.f32 %v1826, %v1902
        %1904 = vmatmul.bf16.gmra.mxu0 %v1881
        %v1905 = vpop.f32.mrf.mxu0
        %v1906 = vadd.f32 %v1829, %v1905
        %v1907 = vpop.f32.mrf.mxu0
        %v1908 = vadd.f32 %v1831, %v1907
        %1909 = vmatmul.bf16.gmra.mxu0 %v1884
        %v1910 = vpop.f32.mrf.mxu0
        %v1911 = vadd.f32 %v1834, %v1910
        %v1912 = vpop.f32.mrf.mxu0
        %v1913 = vadd.f32 %v1836, %v1912
        %1914 = vdwg.mxu0
        %v1915 = vld [vmem:[#allocation3 + $0x8] sm:$0xf]
        %v1916 = vld [vmem:[#allocation3 + $0xc] sm:$0xf]
        %v1917 = vld [vmem:[#allocation3 + $0x10] sm:$0xf]
        %v1918 = vld [vmem:[#allocation3 + $0x14] sm:$0xf]
        %v1919 = vld [vmem:[#allocation3 + $0x18] sm:$0xf]
        %v1920 = vld [vmem:[#allocation3 + $0x1c] sm:$0xf]
        %v1921 = vld [vmem:[#allocation3 + $0x20] sm:$0xf]
        %v1922 = vld [vmem:[#allocation3 + $0x24] sm:$0xf]
        %s1923 = scalar_lea.vmem %s439, 80
        %v1924 = vld [vmem:[%s1923] sm:$0xf]
        %v1925 = vld [vmem:[%s1923 + $0x4] sm:$0xf]
        %v1926 = vld [vmem:[%s1923 + $0x8] sm:$0xf]
        %v1927 = vld [vmem:[%s1923 + $0xc] sm:$0xf]
        %v1928 = vld [vmem:[%s1923 + $0x10] sm:$0xf]
        %v1929 = vld [vmem:[%s1923 + $0x14] sm:$0xf]
        %v1930 = vld [vmem:[%s1923 + $0x18] sm:$0xf]
        %v1931 = vld [vmem:[%s1923 + $0x1c] sm:$0xf]
        %v1932 = vld [vmem:[%s1923 + $0x20] sm:$0xf]
        %v1933 = vld [vmem:[%s1923 + $0x24] sm:$0xf]
        %v1942 = vunpack.c.l.b16 %v1915
        %v1943 = vunpack.c.l.b16 %v1916
        %v1944 = vunpack.c.l.b16 %v1917
        %v1945 = vunpack.c.l.b16 %v1918
        %v1946 = vunpack.c.l.b16 %v1919
        %v1947 = vunpack.c.l.b16 %v1920
        %v1948 = vunpack.c.l.b16 %v1921
        %v1949 = vunpack.c.l.b16 %v1922
        %v1950 = vpack.c.b16 %v1943, %v1942
        %v1951 = vpack.c.b16 %v1945, %v1944
        %v1952 = vpack.c.b16 %v1947, %v1946
        %v1953 = vpack.c.b16 %v1949, %v1948
        %v1964 = vunpack.c.l.b16 %v1924
        %v1965 = vunpack.c.l.b16 %v1925
        %v1966 = vunpack.c.l.b16 %v1926
        %v1967 = vunpack.c.l.b16 %v1927
        %v1968 = vunpack.c.l.b16 %v1928
        %v1969 = vunpack.c.l.b16 %v1929
        %v1970 = vunpack.c.l.b16 %v1930
        %v1971 = vunpack.c.l.b16 %v1931
        %v1972 = vunpack.c.l.b16 %v1932
        %v1973 = vunpack.c.l.b16 %v1933
        %v1974 = vpack.c.b16 %v1965, %v1964
        %v1975 = vpack.c.b16 %v1967, %v1966
        %v1976 = vpack.c.b16 %v1969, %v1968
        %v1977 = vpack.c.b16 %v1971, %v1970
        %v1978 = vpack.c.b16 %v1973, %v1972
        %v1985 = vsel %vm1796, %v1950, 0
        %v1988 = vsel %vm1796, %v1951, 0
        %v1991 = vsel %vm1796, %v1952, 0
        %v1994 = vsel %vm1796, %v1953, 0
        %1996 = vmatpush.bf16.msra.mxu0 0
        %1997 = vmatpush.bf16.msra.mxu0 0
        %1998 = vmatpush.bf16.msra.mxu0 0
        %1999 = vmatpush.bf16.msra.mxu0 %v1978
        %2000 = vmatpush.bf16.msra.mxu0 %v1977
        %2001 = vmatpush.bf16.msra.mxu0 %v1976
        %2002 = vmatpush.bf16.msra.mxu0 %v1975
        %2003 = vmatpush.bf16.msra.mxu0 %v1974
        %2004 = vmatmul.bf16.gmra.mxu0 %v1985
        %v2005 = vpop.f32.mrf.mxu0
        %v2006 = vadd.f32 0.0, %v2005
        %v2007 = vpop.f32.mrf.mxu0
        %v2008 = vadd.f32 0.0, %v2007
        %2009 = vmatmul.bf16.gmra.mxu0 %v1988
        %v2010 = vpop.f32.mrf.mxu0
        %v2011 = vadd.f32 0.0, %v2010
        %v2012 = vpop.f32.mrf.mxu0
        %v2013 = vadd.f32 0.0, %v2012
        %2014 = vmatmul.bf16.gmra.mxu0 %v1991
        %v2015 = vpop.f32.mrf.mxu0
        %v2016 = vadd.f32 0.0, %v2015
        %v2017 = vpop.f32.mrf.mxu0
        %v2018 = vadd.f32 0.0, %v2017
        %2019 = vmatmul.bf16.gmra.mxu0 %v1994
        %v2020 = vpop.f32.mrf.mxu0
        %v2021 = vadd.f32 0.0, %v2020
        %v2022 = vpop.f32.mrf.mxu0
        %v2023 = vadd.f32 0.0, %v2022
        %2024 = vdwg.mxu0
        %v2025 = vadd.f32 %v1896, %v2006
        %v2026 = vadd.f32 %v1898, %v2008
        %v2027 = vadd.f32 %v1901, %v2011
        %v2028 = vadd.f32 %v1903, %v2013
        %v2029 = vadd.f32 %v1906, %v2016
        %v2030 = vadd.f32 %v1908, %v2018
        %v2031 = vadd.f32 %v1911, %v2021
        %v2032 = vadd.f32 %v1913, %v2023
        %v2033 = vld [vmem:[#allocation3 + $0xc] sm:$0xf]
        %v2034 = vld [vmem:[#allocation3 + $0x10] sm:$0xf]
        %v2035 = vld [vmem:[#allocation3 + $0x14] sm:$0xf]
        %v2036 = vld [vmem:[#allocation3 + $0x18] sm:$0xf]
        %v2037 = vld [vmem:[#allocation3 + $0x1c] sm:$0xf]
        %v2038 = vld [vmem:[#allocation3 + $0x20] sm:$0xf]
        %v2039 = vld [vmem:[#allocation3 + $0x24] sm:$0xf]
        %v2040 = vld [vmem:[#allocation3 + $0x28] sm:$0xf]
        %s2041 = scalar_lea.vmem %s439, 120
        %v2042 = vld [vmem:[%s2041] sm:$0xf]
        %v2043 = vld [vmem:[%s2041 + $0x4] sm:$0xf]
        %v2044 = vld [vmem:[%s2041 + $0x8] sm:$0xf]
        %v2045 = vld [vmem:[%s2041 + $0xc] sm:$0xf]
        %v2046 = vld [vmem:[%s2041 + $0x10] sm:$0xf]
        %v2047 = vld [vmem:[%s2041 + $0x14] sm:$0xf]
        %v2048 = vld [vmem:[%s2041 + $0x18] sm:$0xf]
        %v2049 = vld [vmem:[%s2041 + $0x1c] sm:$0xf]
        %v2050 = vld [vmem:[%s2041 + $0x20] sm:$0xf]
        %v2051 = vld [vmem:[%s2041 + $0x24] sm:$0xf]
        %v2060 = vunpack.c.l.b16 %v2033
        %v2061 = vunpack.c.l.b16 %v2034
        %v2062 = vunpack.c.l.b16 %v2035
        %v2063 = vunpack.c.l.b16 %v2036
        %v2064 = vunpack.c.l.b16 %v2037
        %v2065 = vunpack.c.l.b16 %v2038
        %v2066 = vunpack.c.l.b16 %v2039
        %v2067 = vunpack.c.l.b16 %v2040
        %v2068 = vpack.c.b16 %v2061, %v2060
        %v2069 = vpack.c.b16 %v2063, %v2062
        %v2070 = vpack.c.b16 %v2065, %v2064
        %v2071 = vpack.c.b16 %v2067, %v2066
        %v2082 = vunpack.c.l.b16 %v2042
        %v2083 = vunpack.c.l.b16 %v2043
        %v2084 = vunpack.c.l.b16 %v2044
        %v2085 = vunpack.c.l.b16 %v2045
        %v2086 = vunpack.c.l.b16 %v2046
        %v2087 = vunpack.c.l.b16 %v2047
        %v2088 = vunpack.c.l.b16 %v2048
        %v2089 = vunpack.c.l.b16 %v2049
        %v2090 = vunpack.c.l.b16 %v2050
        %v2091 = vunpack.c.l.b16 %v2051
        %v2092 = vpack.c.b16 %v2083, %v2082
        %v2093 = vpack.c.b16 %v2085, %v2084
        %v2094 = vpack.c.b16 %v2087, %v2086
        %v2095 = vpack.c.b16 %v2089, %v2088
        %v2096 = vpack.c.b16 %v2091, %v2090
        %v2103 = vsel %vm1796, %v2068, 0
        %v2106 = vsel %vm1796, %v2069, 0
        %v2109 = vsel %vm1796, %v2070, 0
        %v2112 = vsel %vm1796, %v2071, 0
        %2114 = vmatpush.bf16.msra.mxu0 0
        %2115 = vmatpush.bf16.msra.mxu0 0
        %2116 = vmatpush.bf16.msra.mxu0 0
        %2117 = vmatpush.bf16.msra.mxu0 %v2096
        %2118 = vmatpush.bf16.msra.mxu0 %v2095
        %2119 = vmatpush.bf16.msra.mxu0 %v2094
        %2120 = vmatpush.bf16.msra.mxu0 %v2093
        %2121 = vmatpush.bf16.msra.mxu0 %v2092
        %2122 = vmatmul.bf16.gmra.mxu0 %v2103
        %v2123 = vpop.f32.mrf.mxu0
        %v2124 = vadd.f32 0.0, %v2123
        %v2125 = vpop.f32.mrf.mxu0
        %v2126 = vadd.f32 0.0, %v2125
        %2127 = vmatmul.bf16.gmra.mxu0 %v2106
        %v2128 = vpop.f32.mrf.mxu0
        %v2129 = vadd.f32 0.0, %v2128
        %v2130 = vpop.f32.mrf.mxu0
        %v2131 = vadd.f32 0.0, %v2130
        %2132 = vmatmul.bf16.gmra.mxu0 %v2109
        %v2133 = vpop.f32.mrf.mxu0
        %v2134 = vadd.f32 0.0, %v2133
        %v2135 = vpop.f32.mrf.mxu0
        %v2136 = vadd.f32 0.0, %v2135
        %2137 = vmatmul.bf16.gmra.mxu0 %v2112
        %v2138 = vpop.f32.mrf.mxu0
        %v2139 = vadd.f32 0.0, %v2138
        %v2140 = vpop.f32.mrf.mxu0
        %v2141 = vadd.f32 0.0, %v2140
        %2142 = vdwg.mxu0
        %v2143 = vadd.f32 %v2025, %v2124
        %v2144 = vadd.f32 %v2026, %v2126
        %v2145 = vadd.f32 %v2027, %v2129
        %v2146 = vadd.f32 %v2028, %v2131
        %v2147 = vadd.f32 %v2029, %v2134
        %v2148 = vadd.f32 %v2030, %v2136
        %v2149 = vadd.f32 %v2031, %v2139
        %v2150 = vadd.f32 %v2032, %v2141
        %v2151 = vld [vmem:[#allocation3 + $0x10] sm:$0xf]
        %v2152 = vld [vmem:[#allocation3 + $0x14] sm:$0xf]
        %v2153 = vld [vmem:[#allocation3 + $0x18] sm:$0xf]
        %v2154 = vld [vmem:[#allocation3 + $0x1c] sm:$0xf]
        %v2155 = vld [vmem:[#allocation3 + $0x20] sm:$0xf]
        %v2156 = vld [vmem:[#allocation3 + $0x24] sm:$0xf]
        %v2157 = vld [vmem:[#allocation3 + $0x28] sm:$0xf]
        %v2158 = vld [vmem:[#allocation3 + $0x2c] sm:$0xf]
        %s2159 = scalar_lea.vmem %s439, 160
        %v2160 = vld [vmem:[%s2159] sm:$0xf]
        %v2161 = vld [vmem:[%s2159 + $0x4] sm:$0xf]
        %v2162 = vld [vmem:[%s2159 + $0x8] sm:$0xf]
        %v2163 = vld [vmem:[%s2159 + $0xc] sm:$0xf]
        %v2164 = vld [vmem:[%s2159 + $0x10] sm:$0xf]
        %v2165 = vld [vmem:[%s2159 + $0x14] sm:$0xf]
        %v2166 = vld [vmem:[%s2159 + $0x18] sm:$0xf]
        %v2167 = vld [vmem:[%s2159 + $0x1c] sm:$0xf]
        %v2168 = vld [vmem:[%s2159 + $0x20] sm:$0xf]
        %v2169 = vld [vmem:[%s2159 + $0x24] sm:$0xf]
        %v2178 = vunpack.c.l.b16 %v2151
        %v2179 = vunpack.c.l.b16 %v2152
        %v2180 = vunpack.c.l.b16 %v2153
        %v2181 = vunpack.c.l.b16 %v2154
        %v2182 = vunpack.c.l.b16 %v2155
        %v2183 = vunpack.c.l.b16 %v2156
        %v2184 = vunpack.c.l.b16 %v2157
        %v2185 = vunpack.c.l.b16 %v2158
        %v2186 = vpack.c.b16 %v2179, %v2178
        %v2187 = vpack.c.b16 %v2181, %v2180
        %v2188 = vpack.c.b16 %v2183, %v2182
        %v2189 = vpack.c.b16 %v2185, %v2184
        %v2200 = vunpack.c.l.b16 %v2160
        %v2201 = vunpack.c.l.b16 %v2161
        %v2202 = vunpack.c.l.b16 %v2162
        %v2203 = vunpack.c.l.b16 %v2163
        %v2204 = vunpack.c.l.b16 %v2164
        %v2205 = vunpack.c.l.b16 %v2165
        %v2206 = vunpack.c.l.b16 %v2166
        %v2207 = vunpack.c.l.b16 %v2167
        %v2208 = vunpack.c.l.b16 %v2168
        %v2209 = vunpack.c.l.b16 %v2169
        %v2210 = vpack.c.b16 %v2201, %v2200
        %v2211 = vpack.c.b16 %v2203, %v2202
        %v2212 = vpack.c.b16 %v2205, %v2204
        %v2213 = vpack.c.b16 %v2207, %v2206
        %v2214 = vpack.c.b16 %v2209, %v2208
        %v2221 = vsel %vm1796, %v2186, 0
        %v2224 = vsel %vm1796, %v2187, 0
        %v2227 = vsel %vm1796, %v2188, 0
        %v2230 = vsel %vm1796, %v2189, 0
        %2232 = vmatpush.bf16.msra.mxu0 0
        %2233 = vmatpush.bf16.msra.mxu0 0
        %2234 = vmatpush.bf16.msra.mxu0 0
        %2235 = vmatpush.bf16.msra.mxu0 %v2214
        %2236 = vmatpush.bf16.msra.mxu0 %v2213
        %2237 = vmatpush.bf16.msra.mxu0 %v2212
        %2238 = vmatpush.bf16.msra.mxu0 %v2211
        %2239 = vmatpush.bf16.msra.mxu0 %v2210
        %2240 = vmatmul.bf16.gmra.mxu0 %v2221
        %v2241 = vpop.f32.mrf.mxu0
        %v2242 = vadd.f32 0.0, %v2241
        %v2243 = vpop.f32.mrf.mxu0
        %v2244 = vadd.f32 0.0, %v2243
        %2245 = vmatmul.bf16.gmra.mxu0 %v2224
        %v2246 = vpop.f32.mrf.mxu0
        %v2247 = vadd.f32 0.0, %v2246
        %v2248 = vpop.f32.mrf.mxu0
        %v2249 = vadd.f32 0.0, %v2248
        %2250 = vmatmul.bf16.gmra.mxu0 %v2227
        %v2251 = vpop.f32.mrf.mxu0
        %v2252 = vadd.f32 0.0, %v2251
        %v2253 = vpop.f32.mrf.mxu0
        %v2254 = vadd.f32 0.0, %v2253
        %2255 = vmatmul.bf16.gmra.mxu0 %v2230
        %v2256 = vpop.f32.mrf.mxu0
        %v2257 = vadd.f32 0.0, %v2256
        %v2258 = vpop.f32.mrf.mxu0
        %v2259 = vadd.f32 0.0, %v2258
        %2260 = vdwg.mxu0
        %v2261 = vadd.f32 %v2143, %v2242
        %v2262 = vadd.f32 %v2144, %v2244
        %v2263 = vadd.f32 %v2145, %v2247
        %v2264 = vadd.f32 %v2146, %v2249
        %v2265 = vadd.f32 %v2147, %v2252
        %v2266 = vadd.f32 %v2148, %v2254
        %v2267 = vadd.f32 %v2149, %v2257
        %v2268 = vadd.f32 %v2150, %v2259
        %v2269 = vld [vmem:[%s442] sm:$0x1]
        %v2271 = vperm.slane %v2269, 0
        %v2273 = vadd.f32 %v2261, %v2271
        %v2274 = vadd.f32 %v2262, %v2271
        %v2275 = vadd.f32 %v2263, %v2271
        %v2276 = vadd.f32 %v2264, %v2271
        %v2277 = vadd.f32 %v2265, %v2271
        %v2278 = vadd.f32 %v2266, %v2271
        %v2279 = vadd.f32 %v2267, %v2271
        %v2280 = vadd.f32 %v2268, %v2271
        %vm2281 = vcmask 64512
        %v2282 = vsel %vm2281, %v2273, 0.0
        %v2283 = vsel %vm2281, %v2274, 0.0
        %v2284 = vadd.f32 %v2282, %v2283
        %v2285 = vsel %vm2281, %v2275, 0.0
        %v2286 = vadd.f32 %v2284, %v2285
        %v2287 = vsel %vm2281, %v2276, 0.0
        %v2288 = vadd.f32 %v2286, %v2287
        %v2289 = vsel %vm2281, %v2277, 0.0
        %v2290 = vadd.f32 %v2288, %v2289
        %v2291 = vsel %vm2281, %v2278, 0.0
        %v2292 = vadd.f32 %v2290, %v2291
        %v2293 = vsel %vm2281, %v2279, 0.0
        %v2294 = vadd.f32 %v2292, %v2293
        %v2295 = vsel %vm2281, %v2280, 0.0
        %v2296 = vadd.f32 %v2294, %v2295
        %v2297 = vrot.slane %v2296, 4
        %v2298 = vadd.f32 %v2296, %v2297
        %v2299 = vrot.slane %v2298, 2
        %v2300 = vadd.f32 %v2298, %v2299
        %v2301 = vrot.slane %v2300, 1
        %v2302 = vadd.f32 %v2300, %v2301
        %v2303 = vmul.f32 %v2273, %v2273
        %v2304 = vmul.f32 %v2274, %v2274
        %v2305 = vmul.f32 %v2275, %v2275
        %v2306 = vmul.f32 %v2276, %v2276
        %v2307 = vmul.f32 %v2277, %v2277
        %v2308 = vmul.f32 %v2278, %v2278
        %v2309 = vmul.f32 %v2279, %v2279
        %v2310 = vmul.f32 %v2280, %v2280
        %v2311 = vsel %vm2281, %v2303, 0.0
        %v2312 = vsel %vm2281, %v2304, 0.0
        %v2313 = vadd.f32 %v2311, %v2312
        %v2314 = vsel %vm2281, %v2305, 0.0
        %v2315 = vadd.f32 %v2313, %v2314
        %v2316 = vsel %vm2281, %v2306, 0.0
        %v2317 = vadd.f32 %v2315, %v2316
        %v2318 = vsel %vm2281, %v2307, 0.0
        %v2319 = vadd.f32 %v2317, %v2318
        %v2320 = vsel %vm2281, %v2308, 0.0
        %v2321 = vadd.f32 %v2319, %v2320
        %v2322 = vsel %vm2281, %v2309, 0.0
        %v2323 = vadd.f32 %v2321, %v2322
        %v2324 = vsel %vm2281, %v2310, 0.0
        %v2325 = vadd.f32 %v2323, %v2324
        %v2326 = vrot.slane %v2325, 4
        %v2327 = vadd.f32 %v2325, %v2326
        %v2328 = vrot.slane %v2327, 2
        %v2329 = vadd.f32 %v2327, %v2328
        %v2330 = vrot.slane %v2329, 1
        %v2331 = vadd.f32 %v2329, %v2330
        %vm2332 = vcmask 1040384
        %v2333 = vsel %vm2332, %v2302, %v2331
        %v2334 = vld [vmem:[%s5] sm:$0xff]
        %v2336 = vsel %vm2281, %v2333, 0
        %2338 = vmatpush.msra.mxu0 0.0
        %2339 = vmatpush.msra.mxu0 0.0
        %2340 = vmatpush.msra.mxu0 0.0
        %2341 = vmatpush.msra.mxu0 0.0
        %2342 = vmatpush.msra.mxu0 0.0
        %2343 = vmatpush.msra.mxu0 0.0
        %2344 = vmatpush.msra.mxu0 0.0
        %2345 = vmatpush.msra.mxu0 0.0
        %2346 = vmatpush.msra.mxu0 0.0
        %2347 = vmatpush.msra.mxu0 0.0
        %2348 = vmatpush.msra.mxu0 0.0
        %2349 = vmatpush.msra.mxu0 0.0
        %2350 = vmatpush.msra.mxu0 0.0
        %2351 = vmatpush.msra.mxu0 0.0
        %2352 = vmatpush.msra.mxu0 0.0
        %2353 = vmatpush.msra.mxu0 %v2334
        %2354 = vmatmul.f32.gmra.mxu0 %v2336
        %v2355 = vpop.f32.mrf.mxu0
        %v2356 = vadd.f32 0.0, %v2355
        %2357 = vdwg.mxu0
        %v2358 = vmul.f32 %v2356, 0.0078125
        %v2359 = vmul.f32 %v2358, %v2358
        %v2361 = vrot.slane %v2359, 7
        %v2363 = vsub.f32 %v2358, %v2361
        %v2364 = vmax.f32 %v2363, 0.0
        %v2365 = vperm.slane %v2358, 0
        %v2366 = vsub.f32 %v2273, %v2365
        %v2367 = vsub.f32 %v2274, %v2365
        %v2368 = vsub.f32 %v2275, %v2365
        %v2369 = vsub.f32 %v2276, %v2365
        %v2370 = vsub.f32 %v2277, %v2365
        %v2371 = vsub.f32 %v2278, %v2365
        %v2372 = vsub.f32 %v2279, %v2365
        %v2373 = vsub.f32 %v2280, %v2365
        %v2374 = vadd.f32 %v2364, 1e-05
        %v2375 = vrsqrt.pop %v2374
        %v2376 = vmul.f32 %v2375, %v2374
        %v2377 = vmul.f32 %v2376, %v2375
        %v2378 = vmul.f32 0.5, %v2377
        %v2379 = vsub.f32 1.5, %v2378
        %v2380 = vmul.f32 %v2375, %v2379
        %vm2381 = vweird.f32 %v2374
        %vm2382 = vweird.f32 %v2375
        %vm2383 = vmor %vm2381, %vm2382
        %v2384 = vsel %vm2383, %v2375, %v2380
        %v2385 = vperm.slane %v2384, 1
        %v2386 = vmul.f32 %v2366, %v2385
        %v2387 = vmul.f32 %v2367, %v2385
        %v2388 = vmul.f32 %v2368, %v2385
        %v2389 = vmul.f32 %v2369, %v2385
        %v2390 = vmul.f32 %v2370, %v2385
        %v2391 = vmul.f32 %v2371, %v2385
        %v2392 = vmul.f32 %v2372, %v2385
        %v2393 = vmul.f32 %v2373, %v2385
        %v2394 = vld [vmem:[%s445] sm:$0x1]
        %v2396 = vperm.slane %v2394, 0
        %v2398 = vmul.f32 %v2386, %v2396
        %v2399 = vmul.f32 %v2387, %v2396
        %v2400 = vmul.f32 %v2388, %v2396
        %v2401 = vmul.f32 %v2389, %v2396
        %v2402 = vmul.f32 %v2390, %v2396
        %v2403 = vmul.f32 %v2391, %v2396
        %v2404 = vmul.f32 %v2392, %v2396
        %v2405 = vmul.f32 %v2393, %v2396
        %v2406 = vld [vmem:[%s448] sm:$0x1]
        %v2408 = vperm.slane %v2406, 0
        %v2410 = vadd.f32 %v2398, %v2408
        %v2411 = vadd.f32 %v2399, %v2408
        %v2412 = vadd.f32 %v2400, %v2408
        %v2413 = vadd.f32 %v2401, %v2408
        %v2414 = vadd.f32 %v2402, %v2408
        %v2415 = vadd.f32 %v2403, %v2408
        %v2416 = vadd.f32 %v2404, %v2408
        %v2417 = vadd.f32 %v2405, %v2408
        %vm2418 = vcmp.ge.f32.partialorder %v2410, 0.0
        %vm2419 = vcmp.ge.f32.partialorder %v2411, 0.0
        %vm2420 = vcmp.ge.f32.partialorder %v2412, 0.0
        %vm2421 = vcmp.ge.f32.partialorder %v2413, 0.0
        %vm2422 = vcmp.ge.f32.partialorder %v2414, 0.0
        %vm2423 = vcmp.ge.f32.partialorder %v2415, 0.0
        %vm2424 = vcmp.ge.f32.partialorder %v2416, 0.0
        %vm2425 = vcmp.ge.f32.partialorder %v2417, 0.0
        %v2426 = vmul.f32 %v2410, 0.2
        %v2427 = vmul.f32 %v2411, 0.2
        %v2428 = vmul.f32 %v2412, 0.2
        %v2429 = vmul.f32 %v2413, 0.2
        %v2430 = vmul.f32 %v2414, 0.2
        %v2431 = vmul.f32 %v2415, 0.2
        %v2432 = vmul.f32 %v2416, 0.2
        %v2433 = vmul.f32 %v2417, 0.2
        %v2434 = vsel %vm2418, %v2410, %v2426
        %v2435 = vsel %vm2419, %v2411, %v2427
        %v2436 = vsel %vm2420, %v2412, %v2428
        %v2437 = vsel %vm2421, %v2413, %v2429
        %v2438 = vsel %vm2422, %v2414, %v2430
        %v2439 = vsel %vm2423, %v2415, %v2431
        %v2440 = vsel %vm2424, %v2416, %v2432
        %v2441 = vsel %vm2425, %v2417, %v2433
        %v2442 = vld [vmem:[#allocation4] sm:$0xff]
        %v2443 = vld [vmem:[#allocation4 + $0x8] sm:$0xff]
        %v2444 = vld [vmem:[#allocation4 + $0x10] sm:$0xff]
        %v2445 = vld [vmem:[#allocation4 + $0x18] sm:$0xff]
        %v2446 = vld [vmem:[#allocation4 + $0x20] sm:$0xff]
        %v2447 = vld [vmem:[#allocation4 + $0x28] sm:$0xff]
        %v2448 = vld [vmem:[#allocation4 + $0x30] sm:$0xff]
        %v2449 = vld [vmem:[#allocation4 + $0x38] sm:$0xff]
        %v2450 = vadd.f32 %v2442, %v2434
        %v2451 = vadd.f32 %v2443, %v2435
        %v2452 = vadd.f32 %v2444, %v2436
        %v2453 = vadd.f32 %v2445, %v2437
        %v2454 = vadd.f32 %v2446, %v2438
        %v2455 = vadd.f32 %v2447, %v2439
        %v2456 = vadd.f32 %v2448, %v2440
        %v2457 = vadd.f32 %v2449, %v2441
        %2458 = vst.msk [vmem:[#allocation4] sm:$0xff] %vm2281, %v2450
        %2459 = vst.msk [vmem:[#allocation4 + $0x8] sm:$0xff] %vm2281, %v2451
        %2460 = vst.msk [vmem:[#allocation4 + $0x10] sm:$0xff] %vm2281, %v2452
        %2461 = vst.msk [vmem:[#allocation4 + $0x18] sm:$0xff] %vm2281, %v2453
        %2462 = vst.msk [vmem:[#allocation4 + $0x20] sm:$0xff] %vm2281, %v2454
        %2463 = vst.msk [vmem:[#allocation4 + $0x28] sm:$0xff] %vm2281, %v2455
        %2464 = vst.msk [vmem:[#allocation4 + $0x30] sm:$0xff] %vm2281, %v2456
        %2465 = vst.msk [vmem:[#allocation4 + $0x38] sm:$0xff] %vm2281, %v2457
        %v2466 = vld [vmem:[#allocation4] sm:$0xff]
        %v2467 = vld [vmem:[#allocation4 + $0x8] sm:$0xff]
        %v2468 = vld [vmem:[#allocation4 + $0x10] sm:$0xff]
        %v2469 = vld [vmem:[#allocation4 + $0x18] sm:$0xff]
        %v2470 = vld [vmem:[#allocation4 + $0x20] sm:$0xff]
        %v2471 = vld [vmem:[#allocation4 + $0x28] sm:$0xff]
        %v2472 = vld [vmem:[#allocation4 + $0x30] sm:$0xff]
        %v2473 = vld [vmem:[#allocation4 + $0x38] sm:$0xff]
        %2474 = vst.msk [vmem:[%s453] sm:$0xff] %vm2281, %v2466
        %2475 = vst.msk [vmem:[%s453 + $0x8] sm:$0xff] %vm2281, %v2467
        %2476 = vst.msk [vmem:[%s453 + $0x10] sm:$0xff] %vm2281, %v2468
        %2477 = vst.msk [vmem:[%s453 + $0x18] sm:$0xff] %vm2281, %v2469
        %2478 = vst.msk [vmem:[%s453 + $0x20] sm:$0xff] %vm2281, %v2470
        %2479 = vst.msk [vmem:[%s453 + $0x28] sm:$0xff] %vm2281, %v2471
        %2480 = vst.msk [vmem:[%s453 + $0x30] sm:$0xff] %vm2281, %v2472
        %2481 = vst.msk [vmem:[%s453 + $0x38] sm:$0xff] %vm2281, %v2473
      $region68: #{mid_incepnet_forward.7} parent=59 // pred_fallthru
        _
      %p2482 = scmp.lt.s32.totalorder %s25, 1
      %s2483 = scalar_select %p2482, %s25, 1
      %s2484 = smul.addr %s2483, 8
      %s2485 = smul.addr %s2484, 8
      %s2486 = scalar_lea.vmem %s10, %s2485
      // Predicated region
      $region69: #{mid_incepnet_forward.7} parent=59 // pred_check
        %p2487 = pneg %p291
      $region70: #{mid_incepnet_forward.7} parent=59 // pred_check_branch
        %2489 = sbr.rel (%p2487) target = $region72
      $region71: #{mid_incepnet_forward.7} parent=59 // pred_region
        _
      $region72: #{mid_incepnet_forward.7} parent=59 // pred_fallthru
        _
    $region60: #{mid_incepnet_forward.7} parent=5 // pred_fallthru
      _
    %p2490 = scmp.le.s32.totalorder 2, %s16
    // Predicated region
    $region73: #{mid_incepnet_forward.7} parent=5 // pred_check
      %p2491 = pneg %p2490
    $region74: #{mid_incepnet_forward.7} parent=5 // pred_check_branch
      %2493 = sbr.rel (%p2491) target = $region76
    $region75: #{mid_incepnet_forward.7} parent=5 // pred_region
      %s2494 = ssub.s32 %s16, 2
      // Predicated region
      $region77: #{mid_incepnet_forward.7} parent=75 // pred_check
        %p2495 = pneg %p297
      $region78: #{mid_incepnet_forward.7} parent=75 // pred_check_branch
        %2497 = sbr.rel (%p2495) target = $region80
      $region79: #{mid_incepnet_forward.7} parent=75 // pred_region
        %p2498 = scmp.lt.s32.totalorder %s27, 1
        %s2499 = scalar_select %p2498, %s27, 1
        %s2500 = smul.addr %s2499, 8
        %s2501 = smul.addr %s2500, 8
        %s2502 = scalar_lea.vmem %s10, %s2501
      $region80: #{mid_incepnet_forward.7} parent=75 // pred_fallthru
        _
    $region76: #{mid_incepnet_forward.7} parent=5 // pred_fallthru
      _
  $region6: #{mid_incepnet_forward.7} parent=0 // loop_footer
    %s20 = sadd.s32 1, %s16
  $region7: #{mid_incepnet_forward.7} parent=0 // loop_footer_branch
    %15 = sbr.rel target = $region3
  $region8: #{mid_incepnet_forward.7} parent=0 // loop_exit
    _

</llo_original>
